<compile_context>
chip_gen: v7x
topology: tpu7x:2x2x1
jax: 0.10.0
libtpu: 0.0.40
codegen_flags: <defaults>
</compile_context>

<pallas_src>
import functools

import jax
import jax.numpy as jnp
import numpy as np
from jax.experimental import pallas as pl
from jax.experimental.pallas import tpu as pltpu


# ----------------------------------------------------------------------------
# Pallas kernels: tiled matmul + bias + optional ReLU (the only hot path)
# ----------------------------------------------------------------------------
def _matmul_kernel_single_k(x_ref, w_ref, b_ref, o_ref, *, relu):
    """All of K resident in one tile: no accumulator scratch needed."""
    r = jnp.dot(x_ref[...], w_ref[...], preferred_element_type=jnp.float32)
    r = r + b_ref[...]
    if relu:
        r = jnp.maximum(r, 0.0)
    o_ref[...] = r.astype(o_ref.dtype)


def _matmul_kernel_multi_k(x_ref, w_ref, b_ref, o_ref, acc_ref, *, relu):
    k = pl.program_id(2)

    @pl.when(k == 0)
    def _():
        acc_ref[...] = jnp.zeros_like(acc_ref)

    acc_ref[...] += jnp.dot(x_ref[...], w_ref[...],
                            preferred_element_type=jnp.float32)

    @pl.when(k == pl.num_programs(2) - 1)
    def _():
        r = acc_ref[...] + b_ref[...]
        if relu:
            r = jnp.maximum(r, 0.0)
        o_ref[...] = r.astype(o_ref.dtype)


def _round_up(v, m):
    return (v + m - 1) // m * m


def pallas_matmul_bias_act(x, w, b, relu):
    """act(x @ w + b).  x:(M,K), w:(K,N), b:(N,) -> (M,N) f32.

    x / w streamed as bf16; accumulation stays f32 on the MXU.
    """
    M, K = x.shape
    N = w.shape[1]

    # --- tile selection (weight-streaming / per-step-overhead bound regime) ---
    Mp = _round_up(M, 16)            # bf16 sublane packing
    tm = min(Mp, 256)                # cap M block (v7x 64 MiB VMEM) + parallel M
    Mp = _round_up(Mp, tm)

    Kp = _round_up(K, 128)
    tk = min(Kp, 2048)               # keep (almost always all of) K resident
    Kp = _round_up(Kp, tk)

    Np = _round_up(N, 128)
    tn = min(Np, 512)                # wide, lane-dense output tile
    Np = _round_up(Np, tn)

    xp = jnp.pad(x, ((0, Mp - M), (0, Kp - K))).astype(jnp.bfloat16)
    wp = jnp.pad(w, ((0, Kp - K), (0, Np - N))).astype(jnp.bfloat16)
    bp = jnp.pad(b.astype(jnp.float32), (0, Np - N)).reshape(1, Np)

    gk = Kp // tk
    cparams = pltpu.CompilerParams(
        dimension_semantics=("parallel", "parallel") + (() if gk == 1
                                                        else ("arbitrary",)),
        vmem_limit_bytes=48 * 1024 * 1024,
    )

    if gk == 1:
        grid_spec = pltpu.PrefetchScalarGridSpec(
            num_scalar_prefetch=0,
            grid=(Mp // tm, Np // tn),
            in_specs=[
                pl.BlockSpec((tm, tk), lambda i, j: (i, 0)),
                pl.BlockSpec((tk, tn), lambda i, j: (0, j)),
                pl.BlockSpec((1, tn), lambda i, j: (0, j)),
            ],
            out_specs=pl.BlockSpec((tm, tn), lambda i, j: (i, j)),
        )
        kernel = functools.partial(_matmul_kernel_single_k, relu=relu)
    else:
        grid_spec = pltpu.PrefetchScalarGridSpec(
            num_scalar_prefetch=0,
            grid=(Mp // tm, Np // tn, gk),
            in_specs=[
                pl.BlockSpec((tm, tk), lambda i, j, k: (i, k)),
                pl.BlockSpec((tk, tn), lambda i, j, k: (k, j)),
                pl.BlockSpec((1, tn), lambda i, j, k: (0, j)),
            ],
            out_specs=pl.BlockSpec((tm, tn), lambda i, j, k: (i, j)),
            scratch_shapes=[pltpu.VMEM((tm, tn), jnp.float32)],
        )
        kernel = functools.partial(_matmul_kernel_multi_k, relu=relu)

    out = pl.pallas_call(
        kernel,
        out_shape=jax.ShapeDtypeStruct((Mp, Np), jnp.float32),
        grid_spec=grid_spec,
        compiler_params=cparams,
    )(xp, wp, bp)
    return out[:M, :N]


# Pure-JAX matmul references (for verification only).
def _ref_matmul_bias_act_bf16(x, w, b, relu):
    r = jnp.dot(x.astype(jnp.bfloat16), w.astype(jnp.bfloat16),
                preferred_element_type=jnp.float32) + b.astype(jnp.float32)
    return jnp.maximum(r, 0.0) if relu else r


def _ref_matmul_bias_act_f32(x, w, b, relu):
    r = jnp.dot(x, w, preferred_element_type=jnp.float32) + b
    return jnp.maximum(r, 0.0) if relu else r


# ----------------------------------------------------------------------------
# Weight folding: ConvTranspose2d(k=2,s=2) + Conv2d(1x1) -> one matmul
# ----------------------------------------------------------------------------
def fuse_deconv_conv(w_dec, b_dec, w_conv, b_conv):
    """w_dec:(Cin,Cmid,2,2) b_dec:(Cmid,) w_conv:(Cout,Cmid,1,1) b_conv:(Cout,)
    -> w_fused:(Cin, 4*Cout) [columns laid out (a, b, Cout)], b_fused:(4*Cout,)."""
    cin, cmid = w_dec.shape[:2]
    cout = w_conv.shape[0]
    wc = w_conv.reshape(cout, cmid)
    w_fused = jnp.einsum('imab,om->iabo', w_dec, wc).reshape(cin, 4 * cout)
    b_fused = jnp.tile(wc @ b_dec + b_conv, 4)
    return w_fused, b_fused


def fuse_params(params, dtype=jnp.bfloat16):
    """One-time weight prep (call outside the jitted forward)."""
    fused = {}
    for dec, conv, name in (("dt1", "c1", "s1"), ("dt2", "c2", "s2"),
                            ("dt3", "c3", "s3"), ("dt4", "c4a", "s4")):
        w_f, b_f = fuse_deconv_conv(params[dec + "_w"], params[dec + "_b"],
                                    params[conv + "_w"], params[conv + "_b"])
        fused[name + "_w"] = w_f.astype(dtype)
        fused[name + "_b"] = b_f.astype(jnp.float32)
    c4b_w = params["c4b_w"]
    fused["c4b_w"] = c4b_w.reshape(c4b_w.shape[0], -1).T.astype(dtype)
    fused["c4b_b"] = params["c4b_b"].astype(jnp.float32)
    return fused


def fused_stage(x_nhwc, w_fused, b_fused, relu, matmul_fn):
    """Fused deconv(2,2,stride2)+1x1 conv (+ReLU), then spatial interleave."""
    n, h, w, cin = x_nhwc.shape
    cout = w_fused.shape[1] // 4
    y = matmul_fn(x_nhwc.reshape(n * h * w, cin), w_fused, b_fused, relu)
    y = y.reshape(n, h, w, 2, 2, cout)
    y = jnp.transpose(y, (0, 1, 3, 2, 4, 5)).reshape(n, 2 * h, 2 * w, cout)
    return y


# ----------------------------------------------------------------------------
# Decoder forward (NCHW in / NCHW out), fused Pallas path
# ----------------------------------------------------------------------------
def decoder_forward_fused(fp, x, x1, x2, x3, matmul_fn=pallas_matmul_bias_act):
    to_nhwc = lambda t: jnp.transpose(t, (0, 2, 3, 1))
    x, x1, x2, x3 = map(to_nhwc, (x, x1, x2, x3))

    y = fused_stage(x, fp["s1_w"], fp["s1_b"], True, matmul_fn)
    y = jnp.concatenate([y, x1], axis=-1)
    y = fused_stage(y, fp["s2_w"], fp["s2_b"], True, matmul_fn)
    y = jnp.concatenate([y, x2], axis=-1)
    y = fused_stage(y, fp["s3_w"], fp["s3_b"], True, matmul_fn)
    y = jnp.concatenate([y, x3], axis=-1)

    # decoder4: fused deconv+1x1(+ReLU), then the final 1x1 conv (no ReLU)
    # applied *before* the spatial interleave so the 6-D transpose touches the
    # 2-channel output instead of the 64-channel intermediate.
    n, h, w, cin = y.shape
    c_mid = fp["s4_w"].shape[1] // 4            # 64
    c_out = fp["c4b_w"].shape[1]                # 2
    y = matmul_fn(y.reshape(n * h * w, cin), fp["s4_w"], fp["s4_b"], True)
    y = matmul_fn(y.reshape(n * h * w * 4, c_mid), fp["c4b_w"], fp["c4b_b"], False)
    y = y.reshape(n, h, w, 2, 2, c_out)
    y = jnp.transpose(y, (0, 1, 3, 2, 4, 5)).reshape(n, 2 * h, 2 * w, c_out)
    return jnp.transpose(y, (0, 3, 1, 2))       # NHWC -> NCHW


# ----------------------------------------------------------------------------
# Unfused plain-JAX f32 reference (mirrors the PyTorch module exactly)
# ----------------------------------------------------------------------------
def _deconv2x2_ref(x_nhwc, w, b):
    n, h, ww, cin = x_nhwc.shape
    cout = w.shape[1]
    w_mat = jnp.transpose(w, (0, 2, 3, 1)).reshape(cin, 4 * cout)
    y = x_nhwc.reshape(n * h * ww, cin) @ w_mat + jnp.tile(b, 4)
    y = y.reshape(n, h, ww, 2, 2, cout)
    return jnp.transpose(y, (0, 1, 3, 2, 4, 5)).reshape(n, 2 * h, 2 * ww, cout)


def _conv1x1_ref(x_nhwc, w, b, relu):
    cout = w.shape[0]
    y = x_nhwc @ w.reshape(cout, -1).T + b
    return jnp.maximum(y, 0.0) if relu else y


def decoder_forward_ref(params, x, x1, x2, x3):
    to_nhwc = lambda t: jnp.transpose(t, (0, 2, 3, 1))
    x, x1, x2, x3 = map(to_nhwc, (x, x1, x2, x3))
    y = _deconv2x2_ref(x, params["dt1_w"], params["dt1_b"])
    y = _conv1x1_ref(y, params["c1_w"], params["c1_b"], True)
    y = jnp.concatenate([y, x1], axis=-1)
    y = _deconv2x2_ref(y, params["dt2_w"], params["dt2_b"])
    y = _conv1x1_ref(y, params["c2_w"], params["c2_b"], True)
    y = jnp.concatenate([y, x2], axis=-1)
    y = _deconv2x2_ref(y, params["dt3_w"], params["dt3_b"])
    y = _conv1x1_ref(y, params["c3_w"], params["c3_b"], True)
    y = jnp.concatenate([y, x3], axis=-1)
    y = _deconv2x2_ref(y, params["dt4_w"], params["dt4_b"])
    y = _conv1x1_ref(y, params["c4a_w"], params["c4a_b"], True)
    y = _conv1x1_ref(y, params["c4b_w"], params["c4b_b"], False)
    return jnp.transpose(y, (0, 3, 1, 2))


# ----------------------------------------------------------------------------
# Parameter init (xavier-uniform weights / uniform(0,1) biases, like PyTorch)
# ----------------------------------------------------------------------------
def _xavier(key, shape, fan_in, fan_out):
    bound = float(np.sqrt(6.0 / (fan_in + fan_out)))
    return jax.random.uniform(key, shape, jnp.float32, -bound, bound)


def init_params(key):
    params = {}
    deconvs = {"dt1": (2048, 1024), "dt2": (1024, 512),
               "dt3": (512, 256), "dt4": (256, 128)}
    convs = {"c1": (512, 1024), "c2": (256, 512), "c3": (128, 256),
             "c4a": (64, 128), "c4b": (2, 64)}
    names = list(deconvs) + list(convs)
    keys = jax.random.split(key, 2 * len(names))
    for i, name in enumerate(names):
        kw, kb = keys[2 * i], keys[2 * i + 1]
        if name in deconvs:
            cin, cout = deconvs[name]
            params[name + "_w"] = _xavier(kw, (cin, cout, 2, 2), cout * 4, cin * 4)
            params[name + "_b"] = jax.random.uniform(kb, (cout,), jnp.float32)
        else:
            cout, cin = convs[name]
            params[name + "_w"] = _xavier(kw, (cout, cin, 1, 1), cin, cout)
            params[name + "_b"] = jax.random.uniform(kb, (cout,), jnp.float32)
    return params


if __name__ == "__main__":
    key = jax.random.PRNGKey(0)
    kp, k0, k1, k2, k3 = jax.random.split(key, 5)
    params = init_params(kp)

    # One-time weight folding (outside the jitted forward).
    fused_bf16 = fuse_params(params, dtype=jnp.bfloat16)
    fused_f32 = fuse_params(params, dtype=jnp.float32)

    N, H, W = 2, 2, 2
    x = jax.random.normal(k0, (N, 2048, H, W), jnp.float32)
    x1 = jax.random.normal(k1, (N, 512, 2 * H, 2 * W), jnp.float32)
    x2 = jax.random.normal(k2, (N, 256, 4 * H, 4 * W), jnp.float32)
    x3 = jax.random.normal(k3, (N, 128, 8 * H, 8 * W), jnp.float32)

    fwd = jax.jit(decoder_forward_fused)
    out = jax.block_until_ready(fwd(fused_bf16, x, x1, x2, x3))
    assert out.shape == (N, 2, 16 * H, 16 * W), out.shape

    # (1) Kernel check: Pallas path vs jnp matmul on the SAME fused bf16
    #     weights / bf16 activations (f32 accumulation in both).
    ref_bf16 = decoder_forward_fused(fused_bf16, x, x1, x2, x3,
                                     matmul_fn=_ref_matmul_bias_act_bf16)
    ref_bf16 = jax.block_until_ready(ref_bf16)
    np.testing.assert_allclose(np.asarray(out), np.asarray(ref_bf16),
                               rtol=2e-2, atol=2e-2)

    # (2) Fusion-semantics check (both f32, plain JAX): fused weights vs the
    #     unfused deconv -> 1x1-conv reference mirroring the PyTorch module.
    ref_fused_f32 = decoder_forward_fused(fused_f32, x, x1, x2, x3,
                                          matmul_fn=_ref_matmul_bias_act_f32)
    ref_f32 = decoder_forward_ref(params, x, x1, x2, x3)
    ref_fused_f32, ref_f32 = jax.block_until_ready((ref_fused_f32, ref_f32))
    np.testing.assert_allclose(np.asarray(ref_fused_f32), np.asarray(ref_f32),
                               rtol=1e-3, atol=1e-3)

    print("KERNEL_OK")
</pallas_src>

<mosaic_0001>
module attributes {stable_mosaic.version = 11 : i64} {
  func.func @_matmul_kernel_single_k(%arg0: i32, %arg1: i32, %arg2: memref<16x2048xbf16, #tpu.memory_space<vmem>>, %arg3: memref<2048x512xbf16, #tpu.memory_space<vmem>>, %arg4: memref<1x512xf32, #tpu.memory_space<vmem>>, %arg5: memref<16x512xf32, #tpu.memory_space<vmem>>) attributes {dimension_semantics = [#tpu.dimension_semantics<parallel>, #tpu.dimension_semantics<parallel>], iteration_bounds = array<i64: 1, 4>, scalar_prefetch = 0 : i64, scratch_operands = 0 : i64, tpu.core_type = #tpu.core_type<tc>, window_params = [{transform_indices = @transform_0, window_bounds = array<i64: 16, 2048>}, {transform_indices = @transform_1, window_bounds = array<i64: 2048, 512>}, {transform_indices = @transform_2, window_bounds = array<i64: 1, 512>}, {transform_indices = @transform_3, window_bounds = array<i64: 16, 512>}]} {
    %c0 = arith.constant 0 : index
    %c0_0 = arith.constant 0 : index
    %0 = vector.load %arg2[%c0, %c0_0] : memref<16x2048xbf16, #tpu.memory_space<vmem>>, vector<16x2048xbf16>
    %c0_1 = arith.constant 0 : index
    %c0_2 = arith.constant 0 : index
    %1 = vector.load %arg3[%c0_1, %c0_2] : memref<2048x512xbf16, #tpu.memory_space<vmem>>, vector<2048x512xbf16>
    %cst = arith.constant dense<0.000000e+00> : vector<16x512xf32>
    %2 = tpu.matmul %0, %1, %cst {dimension_numbers = #tpu.dot_dimension_numbers<[1], [0], [0], [1], [0, 0, 1, 1], [], []>} : vector<16x2048xbf16>, vector<2048x512xbf16>, vector<16x512xf32> -> vector<16x512xf32>
    %c0_3 = arith.constant 0 : index
    %c0_4 = arith.constant 0 : index
    %3 = vector.load %arg4[%c0_3, %c0_4] : memref<1x512xf32, #tpu.memory_space<vmem>>, vector<1x512xf32>
    %4 = vector.broadcast %3 : vector<1x512xf32> to vector<16x512xf32>
    %5 = arith.addf %2, %4 : vector<16x512xf32>
    %cst_5 = arith.constant 0.000000e+00 : f32
    %6 = vector.broadcast %cst_5 : f32 to vector<16x512xf32>
    %7 = arith.maximumf %5, %6 : vector<16x512xf32>
    %c0_6 = arith.constant 0 : index
    %c0_7 = arith.constant 0 : index
    %8 = vector.load %arg5[%c0_6, %c0_7] : memref<16x512xf32, #tpu.memory_space<vmem>>, vector<16x512xf32>
    tpu.vector_store %arg5[%c0_6, %c0_7], %7 {strides = array<i32>} : memref<16x512xf32, #tpu.memory_space<vmem>>, vector<16x512xf32>,
    return
  }
  func.func @transform_0(%arg0: i32, %arg1: i32) -> (i32, i32) {
    %c0_i32 = arith.constant 0 : i32
    %c0_i32_0 = arith.constant 0 : i32
    return %arg0, %c0_i32 : i32, i32
  }
  func.func @transform_1(%arg0: i32, %arg1: i32) -> (i32, i32) {
    %c0_i32 = arith.constant 0 : i32
    %c0_i32_0 = arith.constant 0 : i32
    return %c0_i32, %arg1 : i32, i32
  }
  func.func @transform_2(%arg0: i32, %arg1: i32) -> (i32, i32) {
    %c0_i32 = arith.constant 0 : i32
    %c0_i32_0 = arith.constant 0 : i32
    return %c0_i32, %arg1 : i32, i32
  }
  func.func @transform_3(%arg0: i32, %arg1: i32) -> (i32, i32) {
    %c0_i32 = arith.constant 0 : i32
    return %arg0, %arg1 : i32, i32
  }
}

module attributes {stable_mosaic.version = 11 : i64} {
  func.func @_matmul_kernel_single_k(%arg0: i32, %arg1: i32, %arg2: memref<32x1024xbf16, #tpu.memory_space<vmem>>, %arg3: memref<1024x512xbf16, #tpu.memory_space<vmem>>, %arg4: memref<1x512xf32, #tpu.memory_space<vmem>>, %arg5: memref<32x512xf32, #tpu.memory_space<vmem>>) attributes {dimension_semantics = [#tpu.dimension_semantics<parallel>, #tpu.dimension_semantics<parallel>], iteration_bounds = array<i64: 1, 2>, scalar_prefetch = 0 : i64, scratch_operands = 0 : i64, tpu.core_type = #tpu.core_type<tc>, window_params = [{transform_indices = @transform_0, window_bounds = array<i64: 32, 1024>}, {transform_indices = @transform_1, window_bounds = array<i64: 1024, 512>}, {transform_indices = @transform_2, window_bounds = array<i64: 1, 512>}, {transform_indices = @transform_3, window_bounds = array<i64: 32, 512>}]} {
    %c0 = arith.constant 0 : index
    %c0_0 = arith.constant 0 : index
    %0 = vector.load %arg2[%c0, %c0_0] : memref<32x1024xbf16, #tpu.memory_space<vmem>>, vector<32x1024xbf16>
    %c0_1 = arith.constant 0 : index
    %c0_2 = arith.constant 0 : index
    %1 = vector.load %arg3[%c0_1, %c0_2] : memref<1024x512xbf16, #tpu.memory_space<vmem>>, vector<1024x512xbf16>
    %cst = arith.constant dense<0.000000e+00> : vector<32x512xf32>
    %2 = tpu.matmul %0, %1, %cst {dimension_numbers = #tpu.dot_dimension_numbers<[1], [0], [0], [1], [0, 0, 1, 1], [], []>} : vector<32x1024xbf16>, vector<1024x512xbf16>, vector<32x512xf32> -> vector<32x512xf32>
    %c0_3 = arith.constant 0 : index
    %c0_4 = arith.constant 0 : index
    %3 = vector.load %arg4[%c0_3, %c0_4] : memref<1x512xf32, #tpu.memory_space<vmem>>, vector<1x512xf32>
    %4 = vector.broadcast %3 : vector<1x512xf32> to vector<32x512xf32>
    %5 = arith.addf %2, %4 : vector<32x512xf32>
    %cst_5 = arith.constant 0.000000e+00 : f32
    %6 = vector.broadcast %cst_5 : f32 to vector<32x512xf32>
    %7 = arith.maximumf %5, %6 : vector<32x512xf32>
    %c0_6 = arith.constant 0 : index
    %c0_7 = arith.constant 0 : index
    %8 = vector.load %arg5[%c0_6, %c0_7] : memref<32x512xf32, #tpu.memory_space<vmem>>, vector<32x512xf32>
    tpu.vector_store %arg5[%c0_6, %c0_7], %7 {strides = array<i32>} : memref<32x512xf32, #tpu.memory_space<vmem>>, vector<32x512xf32>,
    return
  }
  func.func @transform_0(%arg0: i32, %arg1: i32) -> (i32, i32) {
    %c0_i32 = arith.constant 0 : i32
    %c0_i32_0 = arith.constant 0 : i32
    return %arg0, %c0_i32 : i32, i32
  }
  func.func @transform_1(%arg0: i32, %arg1: i32) -> (i32, i32) {
    %c0_i32 = arith.constant 0 : i32
    %c0_i32_0 = arith.constant 0 : i32
    return %c0_i32, %arg1 : i32, i32
  }
  func.func @transform_2(%arg0: i32, %arg1: i32) -> (i32, i32) {
    %c0_i32 = arith.constant 0 : i32
    %c0_i32_0 = arith.constant 0 : i32
    return %c0_i32, %arg1 : i32, i32
  }
  func.func @transform_3(%arg0: i32, %arg1: i32) -> (i32, i32) {
    %c0_i32 = arith.constant 0 : i32
    return %arg0, %arg1 : i32, i32
  }
}

module attributes {stable_mosaic.version = 11 : i64} {
  func.func @_matmul_kernel_single_k(%arg0: i32, %arg1: i32, %arg2: memref<128x512xbf16, #tpu.memory_space<vmem>>, %arg3: memref<512x512xbf16, #tpu.memory_space<vmem>>, %arg4: memref<1x512xf32, #tpu.memory_space<vmem>>, %arg5: memref<128x512xf32, #tpu.memory_space<vmem>>) attributes {dimension_semantics = [#tpu.dimension_semantics<parallel>, #tpu.dimension_semantics<parallel>], iteration_bounds = array<i64: 1, 1>, scalar_prefetch = 0 : i64, scratch_operands = 0 : i64, tpu.core_type = #tpu.core_type<tc>, window_params = [{transform_indices = @transform_0, window_bounds = array<i64: 128, 512>}, {transform_indices = @transform_1, window_bounds = array<i64: 512, 512>}, {transform_indices = @transform_2, window_bounds = array<i64: 1, 512>}, {transform_indices = @transform_3, window_bounds = array<i64: 128, 512>}]} {
    %c0 = arith.constant 0 : index
    %c0_0 = arith.constant 0 : index
    %0 = vector.load %arg2[%c0, %c0_0] : memref<128x512xbf16, #tpu.memory_space<vmem>>, vector<128x512xbf16>
    %c0_1 = arith.constant 0 : index
    %c0_2 = arith.constant 0 : index
    %1 = vector.load %arg3[%c0_1, %c0_2] : memref<512x512xbf16, #tpu.memory_space<vmem>>, vector<512x512xbf16>
    %cst = arith.constant dense<0.000000e+00> : vector<128x512xf32>
    %2 = tpu.matmul %0, %1, %cst {dimension_numbers = #tpu.dot_dimension_numbers<[1], [0], [0], [1], [0, 0, 1, 1], [], []>} : vector<128x512xbf16>, vector<512x512xbf16>, vector<128x512xf32> -> vector<128x512xf32>
    %c0_3 = arith.constant 0 : index
    %c0_4 = arith.constant 0 : index
    %3 = vector.load %arg4[%c0_3, %c0_4] : memref<1x512xf32, #tpu.memory_space<vmem>>, vector<1x512xf32>
    %4 = vector.broadcast %3 : vector<1x512xf32> to vector<128x512xf32>
    %5 = arith.addf %2, %4 : vector<128x512xf32>
    %cst_5 = arith.constant 0.000000e+00 : f32
    %6 = vector.broadcast %cst_5 : f32 to vector<128x512xf32>
    %7 = arith.maximumf %5, %6 : vector<128x512xf32>
    %c0_6 = arith.constant 0 : index
    %c0_7 = arith.constant 0 : index
    %8 = vector.load %arg5[%c0_6, %c0_7] : memref<128x512xf32, #tpu.memory_space<vmem>>, vector<128x512xf32>
    tpu.vector_store %arg5[%c0_6, %c0_7], %7 {strides = array<i32>} : memref<128x512xf32, #tpu.memory_space<vmem>>, vector<128x512xf32>,
    return
  }
  func.func @transform_0(%arg0: i32, %arg1: i32) -> (i32, i32) {
    %c0_i32 = arith.constant 0 : i32
    %c0_i32_0 = arith.constant 0 : i32
    return %arg0, %c0_i32 : i32, i32
  }
  func.func @transform_1(%arg0: i32, %arg1: i32) -> (i32, i32) {
    %c0_i32 = arith.constant 0 : i32
    %c0_i32_0 = arith.constant 0 : i32
    return %c0_i32, %arg1 : i32, i32
  }
  func.func @transform_2(%arg0: i32, %arg1: i32) -> (i32, i32) {
    %c0_i32 = arith.constant 0 : i32
    %c0_i32_0 = arith.constant 0 : i32
    return %c0_i32, %arg1 : i32, i32
  }
  func.func @transform_3(%arg0: i32, %arg1: i32) -> (i32, i32) {
    %c0_i32 = arith.constant 0 : i32
    return %arg0, %arg1 : i32, i32
  }
}

module attributes {stable_mosaic.version = 11 : i64} {
  func.func @_matmul_kernel_single_k(%arg0: i32, %arg1: i32, %arg2: memref<256x256xbf16, #tpu.memory_space<vmem>>, %arg3: memref<256x256xbf16, #tpu.memory_space<vmem>>, %arg4: memref<1x256xf32, #tpu.memory_space<vmem>>, %arg5: memref<256x256xf32, #tpu.memory_space<vmem>>) attributes {dimension_semantics = [#tpu.dimension_semantics<parallel>, #tpu.dimension_semantics<parallel>], iteration_bounds = array<i64: 2, 1>, scalar_prefetch = 0 : i64, scratch_operands = 0 : i64, tpu.core_type = #tpu.core_type<tc>, window_params = [{transform_indices = @transform_0, window_bounds = array<i64: 256, 256>}, {transform_indices = @transform_1, window_bounds = array<i64: 256, 256>}, {transform_indices = @transform_2, window_bounds = array<i64: 1, 256>}, {transform_indices = @transform_3, window_bounds = array<i64: 256, 256>}]} {
    %c0 = arith.constant 0 : index
    %c0_0 = arith.constant 0 : index
    %0 = vector.load %arg2[%c0, %c0_0] : memref<256x256xbf16, #tpu.memory_space<vmem>>, vector<256x256xbf16>
    %c0_1 = arith.constant 0 : index
    %c0_2 = arith.constant 0 : index
    %1 = vector.load %arg3[%c0_1, %c0_2] : memref<256x256xbf16, #tpu.memory_space<vmem>>, vector<256x256xbf16>
    %cst = arith.constant dense<0.000000e+00> : vector<256x256xf32>
    %2 = tpu.matmul %0, %1, %cst {dimension_numbers = #tpu.dot_dimension_numbers<[1], [0], [0], [1], [0, 0, 1, 1], [], []>} : vector<256x256xbf16>, vector<256x256xbf16>, vector<256x256xf32> -> vector<256x256xf32>
    %c0_3 = arith.constant 0 : index
    %c0_4 = arith.constant 0 : index
    %3 = vector.load %arg4[%c0_3, %c0_4] : memref<1x256xf32, #tpu.memory_space<vmem>>, vector<1x256xf32>
    %4 = vector.broadcast %3 : vector<1x256xf32> to vector<256x256xf32>
    %5 = arith.addf %2, %4 : vector<256x256xf32>
    %cst_5 = arith.constant 0.000000e+00 : f32
    %6 = vector.broadcast %cst_5 : f32 to vector<256x256xf32>
    %7 = arith.maximumf %5, %6 : vector<256x256xf32>
    %c0_6 = arith.constant 0 : index
    %c0_7 = arith.constant 0 : index
    %8 = vector.load %arg5[%c0_6, %c0_7] : memref<256x256xf32, #tpu.memory_space<vmem>>, vector<256x256xf32>
    tpu.vector_store %arg5[%c0_6, %c0_7], %7 {strides = array<i32>} : memref<256x256xf32, #tpu.memory_space<vmem>>, vector<256x256xf32>,
    return
  }
  func.func @transform_0(%arg0: i32, %arg1: i32) -> (i32, i32) {
    %c0_i32 = arith.constant 0 : i32
    %c0_i32_0 = arith.constant 0 : i32
    return %arg0, %c0_i32 : i32, i32
  }
  func.func @transform_1(%arg0: i32, %arg1: i32) -> (i32, i32) {
    %c0_i32 = arith.constant 0 : i32
    %c0_i32_0 = arith.constant 0 : i32
    return %c0_i32, %arg1 : i32, i32
  }
  func.func @transform_2(%arg0: i32, %arg1: i32) -> (i32, i32) {
    %c0_i32 = arith.constant 0 : i32
    %c0_i32_0 = arith.constant 0 : i32
    return %c0_i32, %arg1 : i32, i32
  }
  func.func @transform_3(%arg0: i32, %arg1: i32) -> (i32, i32) {
    %c0_i32 = arith.constant 0 : i32
    return %arg0, %arg1 : i32, i32
  }
}

module attributes {stable_mosaic.version = 11 : i64} {
  func.func @_matmul_kernel_single_k(%arg0: i32, %arg1: i32, %arg2: memref<256x128xbf16, #tpu.memory_space<vmem>>, %arg3: memref<128x128xbf16, #tpu.memory_space<vmem>>, %arg4: memref<1x128xf32, #tpu.memory_space<vmem>>, %arg5: memref<256x128xf32, #tpu.memory_space<vmem>>) attributes {dimension_semantics = [#tpu.dimension_semantics<parallel>, #tpu.dimension_semantics<parallel>], iteration_bounds = array<i64: 8, 1>, scalar_prefetch = 0 : i64, scratch_operands = 0 : i64, tpu.core_type = #tpu.core_type<tc>, window_params = [{transform_indices = @transform_0, window_bounds = array<i64: 256, 128>}, {transform_indices = @transform_1, window_bounds = array<i64: 128, 128>}, {transform_indices = @transform_2, window_bounds = array<i64: 1, 128>}, {transform_indices = @transform_3, window_bounds = array<i64: 256, 128>}]} {
    %c0 = arith.constant 0 : index
    %c0_0 = arith.constant 0 : index
    %0 = vector.load %arg2[%c0, %c0_0] : memref<256x128xbf16, #tpu.memory_space<vmem>>, vector<256x128xbf16>
    %c0_1 = arith.constant 0 : index
    %c0_2 = arith.constant 0 : index
    %1 = vector.load %arg3[%c0_1, %c0_2] : memref<128x128xbf16, #tpu.memory_space<vmem>>, vector<128x128xbf16>
    %cst = arith.constant dense<0.000000e+00> : vector<256x128xf32>
    %2 = tpu.matmul %0, %1, %cst {dimension_numbers = #tpu.dot_dimension_numbers<[1], [0], [0], [1], [0, 0, 1, 1], [], []>} : vector<256x128xbf16>, vector<128x128xbf16>, vector<256x128xf32> -> vector<256x128xf32>
    %c0_3 = arith.constant 0 : index
    %c0_4 = arith.constant 0 : index
    %3 = vector.load %arg4[%c0_3, %c0_4] : memref<1x128xf32, #tpu.memory_space<vmem>>, vector<1x128xf32>
    %4 = vector.broadcast %3 : vector<1x128xf32> to vector<256x128xf32>
    %5 = arith.addf %2, %4 : vector<256x128xf32>
    %c0_5 = arith.constant 0 : index
    %c0_6 = arith.constant 0 : index
    %6 = vector.load %arg5[%c0_5, %c0_6] : memref<256x128xf32, #tpu.memory_space<vmem>>, vector<256x128xf32>
    tpu.vector_store %arg5[%c0_5, %c0_6], %5 {strides = array<i32>} : memref<256x128xf32, #tpu.memory_space<vmem>>, vector<256x128xf32>,
    return
  }
  func.func @transform_0(%arg0: i32, %arg1: i32) -> (i32, i32) {
    %c0_i32 = arith.constant 0 : i32
    %c0_i32_0 = arith.constant 0 : i32
    return %arg0, %c0_i32 : i32, i32
  }
  func.func @transform_1(%arg0: i32, %arg1: i32) -> (i32, i32) {
    %c0_i32 = arith.constant 0 : i32
    %c0_i32_0 = arith.constant 0 : i32
    return %c0_i32, %arg1 : i32, i32
  }
  func.func @transform_2(%arg0: i32, %arg1: i32) -> (i32, i32) {
    %c0_i32 = arith.constant 0 : i32
    %c0_i32_0 = arith.constant 0 : i32
    return %c0_i32, %arg1 : i32, i32
  }
  func.func @transform_3(%arg0: i32, %arg1: i32) -> (i32, i32) {
    %c0_i32 = arith.constant 0 : i32
    return %arg0, %arg1 : i32, i32
  }
}

</mosaic_0001>

<llo_original>
// kernel: decoder_forward_fused.7
$region0: #{decoder_forward_fused.7}
  #allocation0 [shape = 'u32[]', space=smem, size = 0x4, offset = 0x4, fixed_abs, tag = 'smem constant byte address 0x4 - core index']
  #allocation1 [shape = 'u32[144,128]{1,0:T(1,128)}', space=vmem, size = 0x12000, scoped, tag = 'internal scratch']
  %s0 = inlined_call_operand.vmem [shape: bf16[128,512], index: 0, kind: input, shape index: {}]
  %s1 = inlined_call_operand.vmem [shape: bf16[512,512], index: 1, kind: input, shape index: {}]
  %s2 = inlined_call_operand.vmem [shape: f32[1,512], index: 2, kind: input, shape index: {}]
  %s3 = inlined_call_operand.vmem [shape: f32[128,512], index: 3, kind: output, shape index: {}]
  %s4 = sld [smem:[#allocation0]]
  $region22: #{decoder_forward_fused.7} parent=0
    _
  %s6 = ssub.s32 1, %s4
  %s7 = scalar_select 0, %s6, %s4
  // Predicated region
  $region2: #{decoder_forward_fused.7} parent=0 // pred_check
    _
  $region3: #{decoder_forward_fused.7} parent=0 // pred_check_branch
    %9 = sbr.rel (0) target = $region5
  $region4: #{decoder_forward_fused.7} parent=0 // pred_region
    _
  $region5: #{decoder_forward_fused.7} parent=0 // pred_fallthru
    _
  // Predicated region
  $region6: #{decoder_forward_fused.7} parent=0 // pred_check
    _
  $region7: #{decoder_forward_fused.7} parent=0 // pred_check_branch
    %11 = sbr.rel (0) target = $region9
  $region8: #{decoder_forward_fused.7} parent=0 // pred_region
    _
  $region9: #{decoder_forward_fused.7} parent=0 // pred_fallthru
    _
  // Predicated region
  $region10: #{decoder_forward_fused.7} parent=0 // pred_check
    _
  $region11: #{decoder_forward_fused.7} parent=0 // pred_check_branch
    %13 = sbr.rel (0) target = $region13
  $region12: #{decoder_forward_fused.7} parent=0 // pred_region
    _
  $region13: #{decoder_forward_fused.7} parent=0 // pred_fallthru
    _
  %v14 = vld [vmem:[%s0] sm:$0xff]
  %v15 = vld [vmem:[%s0 + $0x8] sm:$0xff]
  %v16 = vld [vmem:[%s0 + $0x10] sm:$0xff]
  %v17 = vld [vmem:[%s0 + $0x18] sm:$0xff]
  %v18 = vld [vmem:[%s0 + $0x20] sm:$0xff]
  %v19 = vld [vmem:[%s0 + $0x28] sm:$0xff]
  %v20 = vld [vmem:[%s0 + $0x30] sm:$0xff]
  %v21 = vld [vmem:[%s0 + $0x38] sm:$0xff]
  %v22 = vld [vmem:[%s0 + $0x40] sm:$0xff]
  %v23 = vld [vmem:[%s0 + $0x48] sm:$0xff]
  %v24 = vld [vmem:[%s0 + $0x50] sm:$0xff]
  %v25 = vld [vmem:[%s0 + $0x58] sm:$0xff]
  %v26 = vld [vmem:[%s0 + $0x60] sm:$0xff]
  %v27 = vld [vmem:[%s0 + $0x68] sm:$0xff]
  %v28 = vld [vmem:[%s0 + $0x70] sm:$0xff]
  %v29 = vld [vmem:[%s0 + $0x78] sm:$0xff]
  %v30 = vld [vmem:[%s0 + $0x80] sm:$0xff]
  %v31 = vld [vmem:[%s0 + $0x88] sm:$0xff]
  %v32 = vld [vmem:[%s0 + $0x90] sm:$0xff]
  %v33 = vld [vmem:[%s0 + $0x98] sm:$0xff]
  %v34 = vld [vmem:[%s0 + $0xa0] sm:$0xff]
  %v35 = vld [vmem:[%s0 + $0xa8] sm:$0xff]
  %v36 = vld [vmem:[%s0 + $0xb0] sm:$0xff]
  %v37 = vld [vmem:[%s0 + $0xb8] sm:$0xff]
  %v38 = vld [vmem:[%s0 + $0xc0] sm:$0xff]
  %v39 = vld [vmem:[%s0 + $0xc8] sm:$0xff]
  %v40 = vld [vmem:[%s0 + $0xd0] sm:$0xff]
  %v41 = vld [vmem:[%s0 + $0xd8] sm:$0xff]
  %v42 = vld [vmem:[%s0 + $0xe0] sm:$0xff]
  %v43 = vld [vmem:[%s0 + $0xe8] sm:$0xff]
  %v44 = vld [vmem:[%s0 + $0xf0] sm:$0xff]
  %v45 = vld [vmem:[%s0 + $0xf8] sm:$0xff]
  %v46 = vld [vmem:[%s1] sm:$0xff]
  %v47 = vld [vmem:[%s1 + $0x8] sm:$0xff]
  %v48 = vld [vmem:[%s1 + $0x10] sm:$0xff]
  %v49 = vld [vmem:[%s1 + $0x18] sm:$0xff]
  %v50 = vld [vmem:[%s1 + $0x20] sm:$0xff]
  %v51 = vld [vmem:[%s1 + $0x28] sm:$0xff]
  %v52 = vld [vmem:[%s1 + $0x30] sm:$0xff]
  %v53 = vld [vmem:[%s1 + $0x38] sm:$0xff]
  %v54 = vld [vmem:[%s1 + $0x40] sm:$0xff]
  %v55 = vld [vmem:[%s1 + $0x48] sm:$0xff]
  %v56 = vld [vmem:[%s1 + $0x50] sm:$0xff]
  %v57 = vld [vmem:[%s1 + $0x58] sm:$0xff]
  %v58 = vld [vmem:[%s1 + $0x60] sm:$0xff]
  %v59 = vld [vmem:[%s1 + $0x68] sm:$0xff]
  %v60 = vld [vmem:[%s1 + $0x70] sm:$0xff]
  %v61 = vld [vmem:[%s1 + $0x78] sm:$0xff]
  %v62 = vld [vmem:[%s1 + $0x80] sm:$0xff]
  %v63 = vld [vmem:[%s1 + $0x88] sm:$0xff]
  %v64 = vld [vmem:[%s1 + $0x90] sm:$0xff]
  %v65 = vld [vmem:[%s1 + $0x98] sm:$0xff]
  %v66 = vld [vmem:[%s1 + $0xa0] sm:$0xff]
  %v67 = vld [vmem:[%s1 + $0xa8] sm:$0xff]
  %v68 = vld [vmem:[%s1 + $0xb0] sm:$0xff]
  %v69 = vld [vmem:[%s1 + $0xb8] sm:$0xff]
  %v70 = vld [vmem:[%s1 + $0xc0] sm:$0xff]
  %v71 = vld [vmem:[%s1 + $0xc8] sm:$0xff]
  %v72 = vld [vmem:[%s1 + $0xd0] sm:$0xff]
  %v73 = vld [vmem:[%s1 + $0xd8] sm:$0xff]
  %v74 = vld [vmem:[%s1 + $0xe0] sm:$0xff]
  %v75 = vld [vmem:[%s1 + $0xe8] sm:$0xff]
  %v76 = vld [vmem:[%s1 + $0xf0] sm:$0xff]
  %v77 = vld [vmem:[%s1 + $0xf8] sm:$0xff]
  %v78 = vld [vmem:[%s1 + $0x100] sm:$0xff]
  %v79 = vld [vmem:[%s1 + $0x108] sm:$0xff]
  %v80 = vld [vmem:[%s1 + $0x110] sm:$0xff]
  %v81 = vld [vmem:[%s1 + $0x118] sm:$0xff]
  %v82 = vld [vmem:[%s1 + $0x120] sm:$0xff]
  %v83 = vld [vmem:[%s1 + $0x128] sm:$0xff]
  %v84 = vld [vmem:[%s1 + $0x130] sm:$0xff]
  %v85 = vld [vmem:[%s1 + $0x138] sm:$0xff]
  %v86 = vld [vmem:[%s1 + $0x140] sm:$0xff]
  %v87 = vld [vmem:[%s1 + $0x148] sm:$0xff]
  %v88 = vld [vmem:[%s1 + $0x150] sm:$0xff]
  %v89 = vld [vmem:[%s1 + $0x158] sm:$0xff]
  %v90 = vld [vmem:[%s1 + $0x160] sm:$0xff]
  %v91 = vld [vmem:[%s1 + $0x168] sm:$0xff]
  %v92 = vld [vmem:[%s1 + $0x170] sm:$0xff]
  %v93 = vld [vmem:[%s1 + $0x178] sm:$0xff]
  %v94 = vld [vmem:[%s1 + $0x180] sm:$0xff]
  %v95 = vld [vmem:[%s1 + $0x188] sm:$0xff]
  %v96 = vld [vmem:[%s1 + $0x190] sm:$0xff]
  %v97 = vld [vmem:[%s1 + $0x198] sm:$0xff]
  %v98 = vld [vmem:[%s1 + $0x1a0] sm:$0xff]
  %v99 = vld [vmem:[%s1 + $0x1a8] sm:$0xff]
  %v100 = vld [vmem:[%s1 + $0x1b0] sm:$0xff]
  %v101 = vld [vmem:[%s1 + $0x1b8] sm:$0xff]
  %v102 = vld [vmem:[%s1 + $0x1c0] sm:$0xff]
  %v103 = vld [vmem:[%s1 + $0x1c8] sm:$0xff]
  %v104 = vld [vmem:[%s1 + $0x1d0] sm:$0xff]
  %v105 = vld [vmem:[%s1 + $0x1d8] sm:$0xff]
  %v106 = vld [vmem:[%s1 + $0x1e0] sm:$0xff]
  %v107 = vld [vmem:[%s1 + $0x1e8] sm:$0xff]
  %v108 = vld [vmem:[%s1 + $0x1f0] sm:$0xff]
  %v109 = vld [vmem:[%s1 + $0x1f8] sm:$0xff]
  %v110 = vld [vmem:[%s1 + $0x200] sm:$0xff]
  %v111 = vld [vmem:[%s1 + $0x208] sm:$0xff]
  %v112 = vld [vmem:[%s1 + $0x210] sm:$0xff]
  %v113 = vld [vmem:[%s1 + $0x218] sm:$0xff]
  %v114 = vld [vmem:[%s1 + $0x220] sm:$0xff]
  %v115 = vld [vmem:[%s1 + $0x228] sm:$0xff]
  %v116 = vld [vmem:[%s1 + $0x230] sm:$0xff]
  %v117 = vld [vmem:[%s1 + $0x238] sm:$0xff]
  %v118 = vld [vmem:[%s1 + $0x240] sm:$0xff]
  %v119 = vld [vmem:[%s1 + $0x248] sm:$0xff]
  %v120 = vld [vmem:[%s1 + $0x250] sm:$0xff]
  %v121 = vld [vmem:[%s1 + $0x258] sm:$0xff]
  %v122 = vld [vmem:[%s1 + $0x260] sm:$0xff]
  %v123 = vld [vmem:[%s1 + $0x268] sm:$0xff]
  %v124 = vld [vmem:[%s1 + $0x270] sm:$0xff]
  %v125 = vld [vmem:[%s1 + $0x278] sm:$0xff]
  %v126 = vld [vmem:[%s1 + $0x280] sm:$0xff]
  %v127 = vld [vmem:[%s1 + $0x288] sm:$0xff]
  %v128 = vld [vmem:[%s1 + $0x290] sm:$0xff]
  %v129 = vld [vmem:[%s1 + $0x298] sm:$0xff]
  %v130 = vld [vmem:[%s1 + $0x2a0] sm:$0xff]
  %v131 = vld [vmem:[%s1 + $0x2a8] sm:$0xff]
  %v132 = vld [vmem:[%s1 + $0x2b0] sm:$0xff]
  %v133 = vld [vmem:[%s1 + $0x2b8] sm:$0xff]
  %v134 = vld [vmem:[%s1 + $0x2c0] sm:$0xff]
  %v135 = vld [vmem:[%s1 + $0x2c8] sm:$0xff]
  %v136 = vld [vmem:[%s1 + $0x2d0] sm:$0xff]
  %v137 = vld [vmem:[%s1 + $0x2d8] sm:$0xff]
  %v138 = vld [vmem:[%s1 + $0x2e0] sm:$0xff]
  %v139 = vld [vmem:[%s1 + $0x2e8] sm:$0xff]
  %v140 = vld [vmem:[%s1 + $0x2f0] sm:$0xff]
  %v141 = vld [vmem:[%s1 + $0x2f8] sm:$0xff]
  %v142 = vld [vmem:[%s1 + $0x300] sm:$0xff]
  %v143 = vld [vmem:[%s1 + $0x308] sm:$0xff]
  %v144 = vld [vmem:[%s1 + $0x310] sm:$0xff]
  %v145 = vld [vmem:[%s1 + $0x318] sm:$0xff]
  %v146 = vld [vmem:[%s1 + $0x320] sm:$0xff]
  %v147 = vld [vmem:[%s1 + $0x328] sm:$0xff]
  %v148 = vld [vmem:[%s1 + $0x330] sm:$0xff]
  %v149 = vld [vmem:[%s1 + $0x338] sm:$0xff]
  %v150 = vld [vmem:[%s1 + $0x340] sm:$0xff]
  %v151 = vld [vmem:[%s1 + $0x348] sm:$0xff]
  %v152 = vld [vmem:[%s1 + $0x350] sm:$0xff]
  %v153 = vld [vmem:[%s1 + $0x358] sm:$0xff]
  %v154 = vld [vmem:[%s1 + $0x360] sm:$0xff]
  %v155 = vld [vmem:[%s1 + $0x368] sm:$0xff]
  %v156 = vld [vmem:[%s1 + $0x370] sm:$0xff]
  %v157 = vld [vmem:[%s1 + $0x378] sm:$0xff]
  %v158 = vld [vmem:[%s1 + $0x380] sm:$0xff]
  %v159 = vld [vmem:[%s1 + $0x388] sm:$0xff]
  %v160 = vld [vmem:[%s1 + $0x390] sm:$0xff]
  %v161 = vld [vmem:[%s1 + $0x398] sm:$0xff]
  %v162 = vld [vmem:[%s1 + $0x3a0] sm:$0xff]
  %v163 = vld [vmem:[%s1 + $0x3a8] sm:$0xff]
  %v164 = vld [vmem:[%s1 + $0x3b0] sm:$0xff]
  %v165 = vld [vmem:[%s1 + $0x3b8] sm:$0xff]
  %v166 = vld [vmem:[%s1 + $0x3c0] sm:$0xff]
  %v167 = vld [vmem:[%s1 + $0x3c8] sm:$0xff]
  %v168 = vld [vmem:[%s1 + $0x3d0] sm:$0xff]
  %v169 = vld [vmem:[%s1 + $0x3d8] sm:$0xff]
  %v170 = vld [vmem:[%s1 + $0x3e0] sm:$0xff]
  %v171 = vld [vmem:[%s1 + $0x3e8] sm:$0xff]
  %v172 = vld [vmem:[%s1 + $0x3f0] sm:$0xff]
  %v173 = vld [vmem:[%s1 + $0x3f8] sm:$0xff]
  %v174 = vld [vmem:[%s2] sm:$0xf]
  %v176 = vlaneseq
  %v177 = vshrl.u32 %v176, 7
  %v178 = vsub.s32 0, %v177
  %v179 = vrot.slane %v174, %v178
  %v180 = vlaneseq
  %v181 = vshrl.u32 %v180, 7
  %v182 = vsub.s32 1, %v181
  %v183 = vrot.slane %v174, %v182
  %v184 = vlaneseq
  %v185 = vshrl.u32 %v184, 7
  %v186 = vsub.s32 2, %v185
  %v187 = vrot.slane %v174, %v186
  %v188 = vlaneseq
  %v189 = vshrl.u32 %v188, 7
  %v190 = vsub.s32 3, %v189
  %v191 = vrot.slane %v174, %v190
  %v228 = vunpack.c.l.b16 %v14
  %v229 = vunpack.c.h.b16 %v14
  %v230 = vunpack.c.l.b16 %v15
  %v231 = vunpack.c.h.b16 %v15
  %v232 = vunpack.c.l.b16 %v16
  %v233 = vunpack.c.h.b16 %v16
  %v234 = vunpack.c.l.b16 %v17
  %v235 = vunpack.c.h.b16 %v17
  %v236 = vunpack.c.l.b16 %v18
  %v237 = vunpack.c.h.b16 %v18
  %v238 = vunpack.c.l.b16 %v19
  %v239 = vunpack.c.h.b16 %v19
  %v240 = vunpack.c.l.b16 %v20
  %v241 = vunpack.c.h.b16 %v20
  %v242 = vunpack.c.l.b16 %v21
  %v243 = vunpack.c.h.b16 %v21
  %v244 = vunpack.c.l.b16 %v22
  %v245 = vunpack.c.h.b16 %v22
  %v246 = vunpack.c.l.b16 %v23
  %v247 = vunpack.c.h.b16 %v23
  %v248 = vunpack.c.l.b16 %v24
  %v249 = vunpack.c.h.b16 %v24
  %v250 = vunpack.c.l.b16 %v25
  %v251 = vunpack.c.h.b16 %v25
  %v252 = vunpack.c.l.b16 %v26
  %v253 = vunpack.c.h.b16 %v26
  %v254 = vunpack.c.l.b16 %v27
  %v255 = vunpack.c.h.b16 %v27
  %v256 = vunpack.c.l.b16 %v28
  %v257 = vunpack.c.h.b16 %v28
  %v258 = vunpack.c.l.b16 %v29
  %v259 = vunpack.c.h.b16 %v29
  %v260 = vunpack.c.l.b16 %v30
  %v261 = vunpack.c.h.b16 %v30
  %v262 = vunpack.c.l.b16 %v31
  %v263 = vunpack.c.h.b16 %v31
  %v264 = vunpack.c.l.b16 %v32
  %v265 = vunpack.c.h.b16 %v32
  %v266 = vunpack.c.l.b16 %v33
  %v267 = vunpack.c.h.b16 %v33
  %v268 = vunpack.c.l.b16 %v34
  %v269 = vunpack.c.h.b16 %v34
  %v270 = vunpack.c.l.b16 %v35
  %v271 = vunpack.c.h.b16 %v35
  %v272 = vunpack.c.l.b16 %v36
  %v273 = vunpack.c.h.b16 %v36
  %v274 = vunpack.c.l.b16 %v37
  %v275 = vunpack.c.h.b16 %v37
  %v276 = vunpack.c.l.b16 %v38
  %v277 = vunpack.c.h.b16 %v38
  %v278 = vunpack.c.l.b16 %v39
  %v279 = vunpack.c.h.b16 %v39
  %v280 = vunpack.c.l.b16 %v40
  %v281 = vunpack.c.h.b16 %v40
  %v282 = vunpack.c.l.b16 %v41
  %v283 = vunpack.c.h.b16 %v41
  %v284 = vunpack.c.l.b16 %v42
  %v285 = vunpack.c.h.b16 %v42
  %v286 = vunpack.c.l.b16 %v43
  %v287 = vunpack.c.h.b16 %v43
  %v288 = vunpack.c.l.b16 %v44
  %v289 = vunpack.c.h.b16 %v44
  %v290 = vunpack.c.l.b16 %v45
  %v291 = vunpack.c.h.b16 %v45
  %v292 = vpack.c.b16 %v232, %v228
  %v293 = vpack.c.b16 %v233, %v229
  %v294 = vpack.c.b16 %v234, %v230
  %v295 = vpack.c.b16 %v235, %v231
  %v296 = vpack.c.b16 %v240, %v236
  %v297 = vpack.c.b16 %v241, %v237
  %v298 = vpack.c.b16 %v242, %v238
  %v299 = vpack.c.b16 %v243, %v239
  %v300 = vpack.c.b16 %v248, %v244
  %v301 = vpack.c.b16 %v249, %v245
  %v302 = vpack.c.b16 %v250, %v246
  %v303 = vpack.c.b16 %v251, %v247
  %v304 = vpack.c.b16 %v256, %v252
  %v305 = vpack.c.b16 %v257, %v253
  %v306 = vpack.c.b16 %v258, %v254
  %v307 = vpack.c.b16 %v259, %v255
  %v308 = vpack.c.b16 %v264, %v260
  %v309 = vpack.c.b16 %v265, %v261
  %v310 = vpack.c.b16 %v266, %v262
  %v311 = vpack.c.b16 %v267, %v263
  %v312 = vpack.c.b16 %v272, %v268
  %v313 = vpack.c.b16 %v273, %v269
  %v314 = vpack.c.b16 %v274, %v270
  %v315 = vpack.c.b16 %v275, %v271
  %v316 = vpack.c.b16 %v280, %v276
  %v317 = vpack.c.b16 %v281, %v277
  %v318 = vpack.c.b16 %v282, %v278
  %v319 = vpack.c.b16 %v283, %v279
  %v320 = vpack.c.b16 %v288, %v284
  %v321 = vpack.c.b16 %v289, %v285
  %v322 = vpack.c.b16 %v290, %v286
  %v323 = vpack.c.b16 %v291, %v287
  %v484 = vunpack.c.l.b16 %v46
  %v485 = vunpack.c.h.b16 %v46
  %v486 = vunpack.c.l.b16 %v47
  %v487 = vunpack.c.h.b16 %v47
  %v488 = vunpack.c.l.b16 %v48
  %v489 = vunpack.c.h.b16 %v48
  %v490 = vunpack.c.l.b16 %v49
  %v491 = vunpack.c.h.b16 %v49
  %v492 = vunpack.c.l.b16 %v50
  %v493 = vunpack.c.h.b16 %v50
  %v494 = vunpack.c.l.b16 %v51
  %v495 = vunpack.c.h.b16 %v51
  %v496 = vunpack.c.l.b16 %v52
  %v497 = vunpack.c.h.b16 %v52
  %v498 = vunpack.c.l.b16 %v53
  %v499 = vunpack.c.h.b16 %v53
  %v500 = vunpack.c.l.b16 %v54
  %v501 = vunpack.c.h.b16 %v54
  %v502 = vunpack.c.l.b16 %v55
  %v503 = vunpack.c.h.b16 %v55
  %v504 = vunpack.c.l.b16 %v56
  %v505 = vunpack.c.h.b16 %v56
  %v506 = vunpack.c.l.b16 %v57
  %v507 = vunpack.c.h.b16 %v57
  %v508 = vunpack.c.l.b16 %v58
  %v509 = vunpack.c.h.b16 %v58
  %v510 = vunpack.c.l.b16 %v59
  %v511 = vunpack.c.h.b16 %v59
  %v512 = vunpack.c.l.b16 %v60
  %v513 = vunpack.c.h.b16 %v60
  %v514 = vunpack.c.l.b16 %v61
  %v515 = vunpack.c.h.b16 %v61
  %v516 = vunpack.c.l.b16 %v62
  %v517 = vunpack.c.h.b16 %v62
  %v518 = vunpack.c.l.b16 %v63
  %v519 = vunpack.c.h.b16 %v63
  %v520 = vunpack.c.l.b16 %v64
  %v521 = vunpack.c.h.b16 %v64
  %v522 = vunpack.c.l.b16 %v65
  %v523 = vunpack.c.h.b16 %v65
  %v524 = vunpack.c.l.b16 %v66
  %v525 = vunpack.c.h.b16 %v66
  %v526 = vunpack.c.l.b16 %v67
  %v527 = vunpack.c.h.b16 %v67
  %v528 = vunpack.c.l.b16 %v68
  %v529 = vunpack.c.h.b16 %v68
  %v530 = vunpack.c.l.b16 %v69
  %v531 = vunpack.c.h.b16 %v69
  %v532 = vunpack.c.l.b16 %v70
  %v533 = vunpack.c.h.b16 %v70
  %v534 = vunpack.c.l.b16 %v71
  %v535 = vunpack.c.h.b16 %v71
  %v536 = vunpack.c.l.b16 %v72
  %v537 = vunpack.c.h.b16 %v72
  %v538 = vunpack.c.l.b16 %v73
  %v539 = vunpack.c.h.b16 %v73
  %v540 = vunpack.c.l.b16 %v74
  %v541 = vunpack.c.h.b16 %v74
  %v542 = vunpack.c.l.b16 %v75
  %v543 = vunpack.c.h.b16 %v75
  %v544 = vunpack.c.l.b16 %v76
  %v545 = vunpack.c.h.b16 %v76
  %v546 = vunpack.c.l.b16 %v77
  %v547 = vunpack.c.h.b16 %v77
  %v548 = vunpack.c.l.b16 %v78
  %v549 = vunpack.c.h.b16 %v78
  %v550 = vunpack.c.l.b16 %v79
  %v551 = vunpack.c.h.b16 %v79
  %v552 = vunpack.c.l.b16 %v80
  %v553 = vunpack.c.h.b16 %v80
  %v554 = vunpack.c.l.b16 %v81
  %v555 = vunpack.c.h.b16 %v81
  %v556 = vunpack.c.l.b16 %v82
  %v557 = vunpack.c.h.b16 %v82
  %v558 = vunpack.c.l.b16 %v83
  %v559 = vunpack.c.h.b16 %v83
  %v560 = vunpack.c.l.b16 %v84
  %v561 = vunpack.c.h.b16 %v84
  %v562 = vunpack.c.l.b16 %v85
  %v563 = vunpack.c.h.b16 %v85
  %v564 = vunpack.c.l.b16 %v86
  %v565 = vunpack.c.h.b16 %v86
  %v566 = vunpack.c.l.b16 %v87
  %v567 = vunpack.c.h.b16 %v87
  %v568 = vunpack.c.l.b16 %v88
  %v569 = vunpack.c.h.b16 %v88
  %v570 = vunpack.c.l.b16 %v89
  %v571 = vunpack.c.h.b16 %v89
  %v572 = vunpack.c.l.b16 %v90
  %v573 = vunpack.c.h.b16 %v90
  %v574 = vunpack.c.l.b16 %v91
  %v575 = vunpack.c.h.b16 %v91
  %v576 = vunpack.c.l.b16 %v92
  %v577 = vunpack.c.h.b16 %v92
  %v578 = vunpack.c.l.b16 %v93
  %v579 = vunpack.c.h.b16 %v93
  %v580 = vunpack.c.l.b16 %v94
  %v581 = vunpack.c.h.b16 %v94
  %v582 = vunpack.c.l.b16 %v95
  %v583 = vunpack.c.h.b16 %v95
  %v584 = vunpack.c.l.b16 %v96
  %v585 = vunpack.c.h.b16 %v96
  %v586 = vunpack.c.l.b16 %v97
  %v587 = vunpack.c.h.b16 %v97
  %v588 = vunpack.c.l.b16 %v98
  %v589 = vunpack.c.h.b16 %v98
  %v590 = vunpack.c.l.b16 %v99
  %v591 = vunpack.c.h.b16 %v99
  %v592 = vunpack.c.l.b16 %v100
  %v593 = vunpack.c.h.b16 %v100
  %v594 = vunpack.c.l.b16 %v101
  %v595 = vunpack.c.h.b16 %v101
  %v596 = vunpack.c.l.b16 %v102
  %v597 = vunpack.c.h.b16 %v102
  %v598 = vunpack.c.l.b16 %v103
  %v599 = vunpack.c.h.b16 %v103
  %v600 = vunpack.c.l.b16 %v104
  %v601 = vunpack.c.h.b16 %v104
  %v602 = vunpack.c.l.b16 %v105
  %v603 = vunpack.c.h.b16 %v105
  %v604 = vunpack.c.l.b16 %v106
  %v605 = vunpack.c.h.b16 %v106
  %v606 = vunpack.c.l.b16 %v107
  %v607 = vunpack.c.h.b16 %v107
  %v608 = vunpack.c.l.b16 %v108
  %v609 = vunpack.c.h.b16 %v108
  %v610 = vunpack.c.l.b16 %v109
  %v611 = vunpack.c.h.b16 %v109
  %v612 = vunpack.c.l.b16 %v110
  %v613 = vunpack.c.h.b16 %v110
  %v614 = vunpack.c.l.b16 %v111
  %v615 = vunpack.c.h.b16 %v111
  %v616 = vunpack.c.l.b16 %v112
  %v617 = vunpack.c.h.b16 %v112
  %v618 = vunpack.c.l.b16 %v113
  %v619 = vunpack.c.h.b16 %v113
  %v620 = vunpack.c.l.b16 %v114
  %v621 = vunpack.c.h.b16 %v114
  %v622 = vunpack.c.l.b16 %v115
  %v623 = vunpack.c.h.b16 %v115
  %v624 = vunpack.c.l.b16 %v116
  %v625 = vunpack.c.h.b16 %v116
  %v626 = vunpack.c.l.b16 %v117
  %v627 = vunpack.c.h.b16 %v117
  %v628 = vunpack.c.l.b16 %v118
  %v629 = vunpack.c.h.b16 %v118
  %v630 = vunpack.c.l.b16 %v119
  %v631 = vunpack.c.h.b16 %v119
  %v632 = vunpack.c.l.b16 %v120
  %v633 = vunpack.c.h.b16 %v120
  %v634 = vunpack.c.l.b16 %v121
  %v635 = vunpack.c.h.b16 %v121
  %v636 = vunpack.c.l.b16 %v122
  %v637 = vunpack.c.h.b16 %v122
  %v638 = vunpack.c.l.b16 %v123
  %v639 = vunpack.c.h.b16 %v123
  %v640 = vunpack.c.l.b16 %v124
  %v641 = vunpack.c.h.b16 %v124
  %v642 = vunpack.c.l.b16 %v125
  %v643 = vunpack.c.h.b16 %v125
  %v644 = vunpack.c.l.b16 %v126
  %v645 = vunpack.c.h.b16 %v126
  %v646 = vunpack.c.l.b16 %v127
  %v647 = vunpack.c.h.b16 %v127
  %v648 = vunpack.c.l.b16 %v128
  %v649 = vunpack.c.h.b16 %v128
  %v650 = vunpack.c.l.b16 %v129
  %v651 = vunpack.c.h.b16 %v129
  %v652 = vunpack.c.l.b16 %v130
  %v653 = vunpack.c.h.b16 %v130
  %v654 = vunpack.c.l.b16 %v131
  %v655 = vunpack.c.h.b16 %v131
  %v656 = vunpack.c.l.b16 %v132
  %v657 = vunpack.c.h.b16 %v132
  %v658 = vunpack.c.l.b16 %v133
  %v659 = vunpack.c.h.b16 %v133
  %v660 = vunpack.c.l.b16 %v134
  %v661 = vunpack.c.h.b16 %v134
  %v662 = vunpack.c.l.b16 %v135
  %v663 = vunpack.c.h.b16 %v135
  %v664 = vunpack.c.l.b16 %v136
  %v665 = vunpack.c.h.b16 %v136
  %v666 = vunpack.c.l.b16 %v137
  %v667 = vunpack.c.h.b16 %v137
  %v668 = vunpack.c.l.b16 %v138
  %v669 = vunpack.c.h.b16 %v138
  %v670 = vunpack.c.l.b16 %v139
  %v671 = vunpack.c.h.b16 %v139
  %v672 = vunpack.c.l.b16 %v140
  %v673 = vunpack.c.h.b16 %v140
  %v674 = vunpack.c.l.b16 %v141
  %v675 = vunpack.c.h.b16 %v141
  %v676 = vunpack.c.l.b16 %v142
  %v677 = vunpack.c.h.b16 %v142
  %v678 = vunpack.c.l.b16 %v143
  %v679 = vunpack.c.h.b16 %v143
  %v680 = vunpack.c.l.b16 %v144
  %v681 = vunpack.c.h.b16 %v144
  %v682 = vunpack.c.l.b16 %v145
  %v683 = vunpack.c.h.b16 %v145
  %v684 = vunpack.c.l.b16 %v146
  %v685 = vunpack.c.h.b16 %v146
  %v686 = vunpack.c.l.b16 %v147
  %v687 = vunpack.c.h.b16 %v147
  %v688 = vunpack.c.l.b16 %v148
  %v689 = vunpack.c.h.b16 %v148
  %v690 = vunpack.c.l.b16 %v149
  %v691 = vunpack.c.h.b16 %v149
  %v692 = vunpack.c.l.b16 %v150
  %v693 = vunpack.c.h.b16 %v150
  %v694 = vunpack.c.l.b16 %v151
  %v695 = vunpack.c.h.b16 %v151
  %v696 = vunpack.c.l.b16 %v152
  %v697 = vunpack.c.h.b16 %v152
  %v698 = vunpack.c.l.b16 %v153
  %v699 = vunpack.c.h.b16 %v153
  %v700 = vunpack.c.l.b16 %v154
  %v701 = vunpack.c.h.b16 %v154
  %v702 = vunpack.c.l.b16 %v155
  %v703 = vunpack.c.h.b16 %v155
  %v704 = vunpack.c.l.b16 %v156
  %v705 = vunpack.c.h.b16 %v156
  %v706 = vunpack.c.l.b16 %v157
  %v707 = vunpack.c.h.b16 %v157
  %v708 = vunpack.c.l.b16 %v158
  %v709 = vunpack.c.h.b16 %v158
  %v710 = vunpack.c.l.b16 %v159
  %v711 = vunpack.c.h.b16 %v159
  %v712 = vunpack.c.l.b16 %v160
  %v713 = vunpack.c.h.b16 %v160
  %v714 = vunpack.c.l.b16 %v161
  %v715 = vunpack.c.h.b16 %v161
  %v716 = vunpack.c.l.b16 %v162
  %v717 = vunpack.c.h.b16 %v162
  %v718 = vunpack.c.l.b16 %v163
  %v719 = vunpack.c.h.b16 %v163
  %v720 = vunpack.c.l.b16 %v164
  %v721 = vunpack.c.h.b16 %v164
  %v722 = vunpack.c.l.b16 %v165
  %v723 = vunpack.c.h.b16 %v165
  %v724 = vunpack.c.l.b16 %v166
  %v725 = vunpack.c.h.b16 %v166
  %v726 = vunpack.c.l.b16 %v167
  %v727 = vunpack.c.h.b16 %v167
  %v728 = vunpack.c.l.b16 %v168
  %v729 = vunpack.c.h.b16 %v168
  %v730 = vunpack.c.l.b16 %v169
  %v731 = vunpack.c.h.b16 %v169
  %v732 = vunpack.c.l.b16 %v170
  %v733 = vunpack.c.h.b16 %v170
  %v734 = vunpack.c.l.b16 %v171
  %v735 = vunpack.c.h.b16 %v171
  %v736 = vunpack.c.l.b16 %v172
  %v737 = vunpack.c.h.b16 %v172
  %v738 = vunpack.c.l.b16 %v173
  %v739 = vunpack.c.h.b16 %v173
  %v740 = vpack.c.b16 %v488, %v484
  %v741 = vpack.c.b16 %v489, %v485
  %v742 = vpack.c.b16 %v490, %v486
  %v743 = vpack.c.b16 %v491, %v487
  %v744 = vpack.c.b16 %v496, %v492
  %v745 = vpack.c.b16 %v497, %v493
  %v746 = vpack.c.b16 %v498, %v494
  %v747 = vpack.c.b16 %v499, %v495
  %v748 = vpack.c.b16 %v504, %v500
  %v749 = vpack.c.b16 %v505, %v501
  %v750 = vpack.c.b16 %v506, %v502
  %v751 = vpack.c.b16 %v507, %v503
  %v752 = vpack.c.b16 %v512, %v508
  %v753 = vpack.c.b16 %v513, %v509
  %v754 = vpack.c.b16 %v514, %v510
  %v755 = vpack.c.b16 %v515, %v511
  %v756 = vpack.c.b16 %v520, %v516
  %v757 = vpack.c.b16 %v521, %v517
  %v758 = vpack.c.b16 %v522, %v518
  %v759 = vpack.c.b16 %v523, %v519
  %v760 = vpack.c.b16 %v528, %v524
  %v761 = vpack.c.b16 %v529, %v525
  %v762 = vpack.c.b16 %v530, %v526
  %v763 = vpack.c.b16 %v531, %v527
  %v764 = vpack.c.b16 %v536, %v532
  %v765 = vpack.c.b16 %v537, %v533
  %v766 = vpack.c.b16 %v538, %v534
  %v767 = vpack.c.b16 %v539, %v535
  %v768 = vpack.c.b16 %v544, %v540
  %v769 = vpack.c.b16 %v545, %v541
  %v770 = vpack.c.b16 %v546, %v542
  %v771 = vpack.c.b16 %v547, %v543
  %v772 = vpack.c.b16 %v552, %v548
  %v773 = vpack.c.b16 %v553, %v549
  %v774 = vpack.c.b16 %v554, %v550
  %v775 = vpack.c.b16 %v555, %v551
  %v776 = vpack.c.b16 %v560, %v556
  %v777 = vpack.c.b16 %v561, %v557
  %v778 = vpack.c.b16 %v562, %v558
  %v779 = vpack.c.b16 %v563, %v559
  %v780 = vpack.c.b16 %v568, %v564
  %v781 = vpack.c.b16 %v569, %v565
  %v782 = vpack.c.b16 %v570, %v566
  %v783 = vpack.c.b16 %v571, %v567
  %v784 = vpack.c.b16 %v576, %v572
  %v785 = vpack.c.b16 %v577, %v573
  %v786 = vpack.c.b16 %v578, %v574
  %v787 = vpack.c.b16 %v579, %v575
  %v788 = vpack.c.b16 %v584, %v580
  %v789 = vpack.c.b16 %v585, %v581
  %v790 = vpack.c.b16 %v586, %v582
  %v791 = vpack.c.b16 %v587, %v583
  %v792 = vpack.c.b16 %v592, %v588
  %v793 = vpack.c.b16 %v593, %v589
  %v794 = vpack.c.b16 %v594, %v590
  %v795 = vpack.c.b16 %v595, %v591
  %v796 = vpack.c.b16 %v600, %v596
  %v797 = vpack.c.b16 %v601, %v597
  %v798 = vpack.c.b16 %v602, %v598
  %v799 = vpack.c.b16 %v603, %v599
  %v800 = vpack.c.b16 %v608, %v604
  %v801 = vpack.c.b16 %v609, %v605
  %v802 = vpack.c.b16 %v610, %v606
  %v803 = vpack.c.b16 %v611, %v607
  %v804 = vpack.c.b16 %v616, %v612
  %v805 = vpack.c.b16 %v617, %v613
  %v806 = vpack.c.b16 %v618, %v614
  %v807 = vpack.c.b16 %v619, %v615
  %v808 = vpack.c.b16 %v624, %v620
  %v809 = vpack.c.b16 %v625, %v621
  %v810 = vpack.c.b16 %v626, %v622
  %v811 = vpack.c.b16 %v627, %v623
  %v812 = vpack.c.b16 %v632, %v628
  %v813 = vpack.c.b16 %v633, %v629
  %v814 = vpack.c.b16 %v634, %v630
  %v815 = vpack.c.b16 %v635, %v631
  %v816 = vpack.c.b16 %v640, %v636
  %v817 = vpack.c.b16 %v641, %v637
  %v818 = vpack.c.b16 %v642, %v638
  %v819 = vpack.c.b16 %v643, %v639
  %v820 = vpack.c.b16 %v648, %v644
  %v821 = vpack.c.b16 %v649, %v645
  %v822 = vpack.c.b16 %v650, %v646
  %v823 = vpack.c.b16 %v651, %v647
  %v824 = vpack.c.b16 %v656, %v652
  %v825 = vpack.c.b16 %v657, %v653
  %v826 = vpack.c.b16 %v658, %v654
  %v827 = vpack.c.b16 %v659, %v655
  %v828 = vpack.c.b16 %v664, %v660
  %v829 = vpack.c.b16 %v665, %v661
  %v830 = vpack.c.b16 %v666, %v662
  %v831 = vpack.c.b16 %v667, %v663
  %v832 = vpack.c.b16 %v672, %v668
  %v833 = vpack.c.b16 %v673, %v669
  %v834 = vpack.c.b16 %v674, %v670
  %v835 = vpack.c.b16 %v675, %v671
  %v836 = vpack.c.b16 %v680, %v676
  %v837 = vpack.c.b16 %v681, %v677
  %v838 = vpack.c.b16 %v682, %v678
  %v839 = vpack.c.b16 %v683, %v679
  %v840 = vpack.c.b16 %v688, %v684
  %v841 = vpack.c.b16 %v689, %v685
  %v842 = vpack.c.b16 %v690, %v686
  %v843 = vpack.c.b16 %v691, %v687
  %v844 = vpack.c.b16 %v696, %v692
  %v845 = vpack.c.b16 %v697, %v693
  %v846 = vpack.c.b16 %v698, %v694
  %v847 = vpack.c.b16 %v699, %v695
  %v848 = vpack.c.b16 %v704, %v700
  %v849 = vpack.c.b16 %v705, %v701
  %v850 = vpack.c.b16 %v706, %v702
  %v851 = vpack.c.b16 %v707, %v703
  %v852 = vpack.c.b16 %v712, %v708
  %v853 = vpack.c.b16 %v713, %v709
  %v854 = vpack.c.b16 %v714, %v710
  %v855 = vpack.c.b16 %v715, %v711
  %v856 = vpack.c.b16 %v720, %v716
  %v857 = vpack.c.b16 %v721, %v717
  %v858 = vpack.c.b16 %v722, %v718
  %v859 = vpack.c.b16 %v723, %v719
  %v860 = vpack.c.b16 %v728, %v724
  %v861 = vpack.c.b16 %v729, %v725
  %v862 = vpack.c.b16 %v730, %v726
  %v863 = vpack.c.b16 %v731, %v727
  %v864 = vpack.c.b16 %v736, %v732
  %v865 = vpack.c.b16 %v737, %v733
  %v866 = vpack.c.b16 %v738, %v734
  %v867 = vpack.c.b16 %v739, %v735
  %996 = vmatprep.subr.bf16.mxu0 %v741
  %997 = vmatpush1.bf16.msra.mxu0 %v740
  %998 = vmatprep.subr.bf16.mxu0 %v745
  %999 = vmatpush1.bf16.msra.mxu0 %v744
  %1000 = vmatprep.subr.bf16.mxu0 %v749
  %1001 = vmatpush1.bf16.msra.mxu0 %v748
  %1002 = vmatprep.subr.bf16.mxu0 %v753
  %1003 = vmatpush1.bf16.msra.mxu0 %v752
  %1004 = vmatprep.subr.bf16.mxu0 %v757
  %1005 = vmatpush1.bf16.msra.mxu0 %v756
  %1006 = vmatprep.subr.bf16.mxu0 %v761
  %1007 = vmatpush1.bf16.msra.mxu0 %v760
  %1008 = vmatprep.subr.bf16.mxu0 %v765
  %1009 = vmatpush1.bf16.msra.mxu0 %v764
  %1010 = vmatprep.subr.bf16.mxu0 %v769
  %1011 = vmatpush1.bf16.msra.mxu0 %v768
  %1012 = vmatprep.subr.bf16.mxu0 %v773
  %1013 = vmatpush1.bf16.msra.mxu0 %v772
  %1014 = vmatprep.subr.bf16.mxu0 %v777
  %1015 = vmatpush1.bf16.msra.mxu0 %v776
  %1016 = vmatprep.subr.bf16.mxu0 %v781
  %1017 = vmatpush1.bf16.msra.mxu0 %v780
  %1018 = vmatprep.subr.bf16.mxu0 %v785
  %1019 = vmatpush1.bf16.msra.mxu0 %v784
  %1020 = vmatprep.subr.bf16.mxu0 %v789
  %1021 = vmatpush1.bf16.msra.mxu0 %v788
  %1022 = vmatprep.subr.bf16.mxu0 %v793
  %1023 = vmatpush1.bf16.msra.mxu0 %v792
  %1024 = vmatprep.subr.bf16.mxu0 %v797
  %1025 = vmatpush1.bf16.msra.mxu0 %v796
  %1026 = vmatprep.subr.bf16.mxu0 %v801
  %1027 = vmatpush1.bf16.msra.mxu0 %v800
  %1028 = vmatprep.mubr.bf16.mxu0 %v293
  %1029 = vmatmul.mubr.bf16.gmra.mrb[0].mxu0 %v292
  %v1030 = vpop.f32.mrb[0].mxu0
  %v1031 = vadd.f32 %v179, %v1030
  %v1032 = vpop.f32.mrb[0].mxu0
  %v1033 = vadd.f32 %v183, %v1032
  %v1034 = vpop.f32.mrb[0].mxu0
  %v1035 = vadd.f32 %v179, %v1034
  %v1036 = vpop.f32.mrb[0].mxu0
  %v1037 = vadd.f32 %v183, %v1036
  %1038 = vmatprep.mubr.bf16.mxu0 %v297
  %1039 = vmatmul.mubr.bf16.gmra.mrb[0].mxu0 %v296
  %v1040 = vpop.f32.mrb[0].mxu0
  %v1041 = vadd.f32 %v179, %v1040
  %v1042 = vpop.f32.mrb[0].mxu0
  %v1043 = vadd.f32 %v183, %v1042
  %v1044 = vpop.f32.mrb[0].mxu0
  %v1045 = vadd.f32 %v179, %v1044
  %v1046 = vpop.f32.mrb[0].mxu0
  %v1047 = vadd.f32 %v183, %v1046
  %1048 = vmatprep.mubr.bf16.mxu0 %v301
  %1049 = vmatmul.mubr.bf16.gmra.mrb[0].mxu0 %v300
  %v1050 = vpop.f32.mrb[0].mxu0
  %v1051 = vadd.f32 %v179, %v1050
  %v1052 = vpop.f32.mrb[0].mxu0
  %v1053 = vadd.f32 %v183, %v1052
  %v1054 = vpop.f32.mrb[0].mxu0
  %v1055 = vadd.f32 %v179, %v1054
  %v1056 = vpop.f32.mrb[0].mxu0
  %v1057 = vadd.f32 %v183, %v1056
  %1058 = vmatprep.mubr.bf16.mxu0 %v305
  %1059 = vmatmul.mubr.bf16.gmra.mrb[0].mxu0 %v304
  %v1060 = vpop.f32.mrb[0].mxu0
  %v1061 = vadd.f32 %v179, %v1060
  %v1062 = vpop.f32.mrb[0].mxu0
  %v1063 = vadd.f32 %v183, %v1062
  %v1064 = vpop.f32.mrb[0].mxu0
  %v1065 = vadd.f32 %v179, %v1064
  %v1066 = vpop.f32.mrb[0].mxu0
  %v1067 = vadd.f32 %v183, %v1066
  %1068 = vmatprep.mubr.bf16.mxu0 %v309
  %1069 = vmatmul.mubr.bf16.gmra.mrb[0].mxu0 %v308
  %v1070 = vpop.f32.mrb[0].mxu0
  %v1071 = vadd.f32 %v179, %v1070
  %v1072 = vpop.f32.mrb[0].mxu0
  %v1073 = vadd.f32 %v183, %v1072
  %v1074 = vpop.f32.mrb[0].mxu0
  %v1075 = vadd.f32 %v179, %v1074
  %v1076 = vpop.f32.mrb[0].mxu0
  %v1077 = vadd.f32 %v183, %v1076
  %1078 = vmatprep.mubr.bf16.mxu0 %v313
  %1079 = vmatmul.mubr.bf16.gmra.mrb[0].mxu0 %v312
  %v1080 = vpop.f32.mrb[0].mxu0
  %v1081 = vadd.f32 %v179, %v1080
  %v1082 = vpop.f32.mrb[0].mxu0
  %v1083 = vadd.f32 %v183, %v1082
  %v1084 = vpop.f32.mrb[0].mxu0
  %v1085 = vadd.f32 %v179, %v1084
  %v1086 = vpop.f32.mrb[0].mxu0
  %v1087 = vadd.f32 %v183, %v1086
  %1088 = vmatprep.mubr.bf16.mxu0 %v317
  %1089 = vmatmul.mubr.bf16.gmra.mrb[0].mxu0 %v316
  %v1090 = vpop.f32.mrb[0].mxu0
  %v1091 = vadd.f32 %v179, %v1090
  %v1092 = vpop.f32.mrb[0].mxu0
  %v1093 = vadd.f32 %v183, %v1092
  %v1094 = vpop.f32.mrb[0].mxu0
  %v1095 = vadd.f32 %v179, %v1094
  %v1096 = vpop.f32.mrb[0].mxu0
  %v1097 = vadd.f32 %v183, %v1096
  %1098 = vmatprep.mubr.bf16.mxu0 %v321
  %1099 = vmatmul.mubr.bf16.gmra.mrb[0].mxu0 %v320
  %v1100 = vpop.f32.mrb[0].mxu0
  %v1101 = vadd.f32 %v179, %v1100
  %v1102 = vpop.f32.mrb[0].mxu0
  %v1103 = vadd.f32 %v183, %v1102
  %v1104 = vpop.f32.mrb[0].mxu0
  %v1105 = vadd.f32 %v179, %v1104
  %v1106 = vpop.f32.mrb[0].mxu0
  %v1107 = vadd.f32 %v183, %v1106
  %1108 = vdwg.mxu0
  %1109 = vmatprep.subr.bf16.mxu0 %v805
  %1110 = vmatpush1.bf16.msra.mxu0 %v804
  %1111 = vmatprep.subr.bf16.mxu0 %v809
  %1112 = vmatpush1.bf16.msra.mxu0 %v808
  %1113 = vmatprep.subr.bf16.mxu0 %v813
  %1114 = vmatpush1.bf16.msra.mxu0 %v812
  %1115 = vmatprep.subr.bf16.mxu0 %v817
  %1116 = vmatpush1.bf16.msra.mxu0 %v816
  %1117 = vmatprep.subr.bf16.mxu0 %v821
  %1118 = vmatpush1.bf16.msra.mxu0 %v820
  %1119 = vmatprep.subr.bf16.mxu0 %v825
  %1120 = vmatpush1.bf16.msra.mxu0 %v824
  %1121 = vmatprep.subr.bf16.mxu0 %v829
  %1122 = vmatpush1.bf16.msra.mxu0 %v828
  %1123 = vmatprep.subr.bf16.mxu0 %v833
  %1124 = vmatpush1.bf16.msra.mxu0 %v832
  %1125 = vmatprep.subr.bf16.mxu0 %v837
  %1126 = vmatpush1.bf16.msra.mxu0 %v836
  %1127 = vmatprep.subr.bf16.mxu0 %v841
  %1128 = vmatpush1.bf16.msra.mxu0 %v840
  %1129 = vmatprep.subr.bf16.mxu0 %v845
  %1130 = vmatpush1.bf16.msra.mxu0 %v844
  %1131 = vmatprep.subr.bf16.mxu0 %v849
  %1132 = vmatpush1.bf16.msra.mxu0 %v848
  %1133 = vmatprep.subr.bf16.mxu0 %v853
  %1134 = vmatpush1.bf16.msra.mxu0 %v852
  %1135 = vmatprep.subr.bf16.mxu0 %v857
  %1136 = vmatpush1.bf16.msra.mxu0 %v856
  %1137 = vmatprep.subr.bf16.mxu0 %v861
  %1138 = vmatpush1.bf16.msra.mxu0 %v860
  %1139 = vmatprep.subr.bf16.mxu0 %v865
  %1140 = vmatpush1.bf16.msra.mxu0 %v864
  %1141 = vmatprep.mubr.bf16.mxu0 %v295
  %1142 = vmatmul.mubr.bf16.gmra.mrb[0].mxu0 %v294
  %v1143 = vpop.f32.mrb[0].mxu0
  %v1144 = vadd.f32 %v1031, %v1143
  %v1145 = vpop.f32.mrb[0].mxu0
  %v1146 = vadd.f32 %v1033, %v1145
  %v1147 = vpop.f32.mrb[0].mxu0
  %v1148 = vadd.f32 %v1035, %v1147
  %v1149 = vpop.f32.mrb[0].mxu0
  %v1150 = vadd.f32 %v1037, %v1149
  %1151 = vmatprep.mubr.bf16.mxu0 %v299
  %1152 = vmatmul.mubr.bf16.gmra.mrb[0].mxu0 %v298
  %v1153 = vpop.f32.mrb[0].mxu0
  %v1154 = vadd.f32 %v1041, %v1153
  %v1155 = vpop.f32.mrb[0].mxu0
  %v1156 = vadd.f32 %v1043, %v1155
  %v1157 = vpop.f32.mrb[0].mxu0
  %v1158 = vadd.f32 %v1045, %v1157
  %v1159 = vpop.f32.mrb[0].mxu0
  %v1160 = vadd.f32 %v1047, %v1159
  %1161 = vmatprep.mubr.bf16.mxu0 %v303
  %1162 = vmatmul.mubr.bf16.gmra.mrb[0].mxu0 %v302
  %v1163 = vpop.f32.mrb[0].mxu0
  %v1164 = vadd.f32 %v1051, %v1163
  %v1165 = vpop.f32.mrb[0].mxu0
  %v1166 = vadd.f32 %v1053, %v1165
  %v1167 = vpop.f32.mrb[0].mxu0
  %v1168 = vadd.f32 %v1055, %v1167
  %v1169 = vpop.f32.mrb[0].mxu0
  %v1170 = vadd.f32 %v1057, %v1169
  %1171 = vmatprep.mubr.bf16.mxu0 %v307
  %1172 = vmatmul.mubr.bf16.gmra.mrb[0].mxu0 %v306
  %v1173 = vpop.f32.mrb[0].mxu0
  %v1174 = vadd.f32 %v1061, %v1173
  %v1175 = vpop.f32.mrb[0].mxu0
  %v1176 = vadd.f32 %v1063, %v1175
  %v1177 = vpop.f32.mrb[0].mxu0
  %v1178 = vadd.f32 %v1065, %v1177
  %v1179 = vpop.f32.mrb[0].mxu0
  %v1180 = vadd.f32 %v1067, %v1179
  %1181 = vmatprep.mubr.bf16.mxu0 %v311
  %1182 = vmatmul.mubr.bf16.gmra.mrb[0].mxu0 %v310
  %v1183 = vpop.f32.mrb[0].mxu0
  %v1184 = vadd.f32 %v1071, %v1183
  %v1185 = vpop.f32.mrb[0].mxu0
  %v1186 = vadd.f32 %v1073, %v1185
  %v1187 = vpop.f32.mrb[0].mxu0
  %v1188 = vadd.f32 %v1075, %v1187
  %v1189 = vpop.f32.mrb[0].mxu0
  %v1190 = vadd.f32 %v1077, %v1189
  %1191 = vmatprep.mubr.bf16.mxu0 %v315
  %1192 = vmatmul.mubr.bf16.gmra.mrb[0].mxu0 %v314
  %v1193 = vpop.f32.mrb[0].mxu0
  %v1194 = vadd.f32 %v1081, %v1193
  %v1195 = vpop.f32.mrb[0].mxu0
  %v1196 = vadd.f32 %v1083, %v1195
  %v1197 = vpop.f32.mrb[0].mxu0
  %v1198 = vadd.f32 %v1085, %v1197
  %v1199 = vpop.f32.mrb[0].mxu0
  %v1200 = vadd.f32 %v1087, %v1199
  %1201 = vmatprep.mubr.bf16.mxu0 %v319
  %1202 = vmatmul.mubr.bf16.gmra.mrb[0].mxu0 %v318
  %v1203 = vpop.f32.mrb[0].mxu0
  %v1204 = vadd.f32 %v1091, %v1203
  %v1205 = vpop.f32.mrb[0].mxu0
  %v1206 = vadd.f32 %v1093, %v1205
  %v1207 = vpop.f32.mrb[0].mxu0
  %v1208 = vadd.f32 %v1095, %v1207
  %v1209 = vpop.f32.mrb[0].mxu0
  %v1210 = vadd.f32 %v1097, %v1209
  %1211 = vmatprep.mubr.bf16.mxu0 %v323
  %1212 = vmatmul.mubr.bf16.gmra.mrb[0].mxu0 %v322
  %v1213 = vpop.f32.mrb[0].mxu0
  %v1214 = vadd.f32 %v1101, %v1213
  %v1215 = vpop.f32.mrb[0].mxu0
  %v1216 = vadd.f32 %v1103, %v1215
  %v1217 = vpop.f32.mrb[0].mxu0
  %v1218 = vadd.f32 %v1105, %v1217
  %v1219 = vpop.f32.mrb[0].mxu0
  %v1220 = vadd.f32 %v1107, %v1219
  %1221 = vdwg.mxu0
  %1222 = vmatprep.subr.bf16.mxu0 %v743
  %1223 = vmatpush1.bf16.msra.mxu0 %v742
  %1224 = vmatprep.subr.bf16.mxu0 %v747
  %1225 = vmatpush1.bf16.msra.mxu0 %v746
  %1226 = vmatprep.subr.bf16.mxu0 %v751
  %1227 = vmatpush1.bf16.msra.mxu0 %v750
  %1228 = vmatprep.subr.bf16.mxu0 %v755
  %1229 = vmatpush1.bf16.msra.mxu0 %v754
  %1230 = vmatprep.subr.bf16.mxu0 %v759
  %1231 = vmatpush1.bf16.msra.mxu0 %v758
  %1232 = vmatprep.subr.bf16.mxu0 %v763
  %1233 = vmatpush1.bf16.msra.mxu0 %v762
  %1234 = vmatprep.subr.bf16.mxu0 %v767
  %1235 = vmatpush1.bf16.msra.mxu0 %v766
  %1236 = vmatprep.subr.bf16.mxu0 %v771
  %1237 = vmatpush1.bf16.msra.mxu0 %v770
  %1238 = vmatprep.subr.bf16.mxu0 %v775
  %1239 = vmatpush1.bf16.msra.mxu0 %v774
  %1240 = vmatprep.subr.bf16.mxu0 %v779
  %1241 = vmatpush1.bf16.msra.mxu0 %v778
  %1242 = vmatprep.subr.bf16.mxu0 %v783
  %1243 = vmatpush1.bf16.msra.mxu0 %v782
  %1244 = vmatprep.subr.bf16.mxu0 %v787
  %1245 = vmatpush1.bf16.msra.mxu0 %v786
  %1246 = vmatprep.subr.bf16.mxu0 %v791
  %1247 = vmatpush1.bf16.msra.mxu0 %v790
  %1248 = vmatprep.subr.bf16.mxu0 %v795
  %1249 = vmatpush1.bf16.msra.mxu0 %v794
  %1250 = vmatprep.subr.bf16.mxu0 %v799
  %1251 = vmatpush1.bf16.msra.mxu0 %v798
  %1252 = vmatprep.subr.bf16.mxu0 %v803
  %1253 = vmatpush1.bf16.msra.mxu0 %v802
  %1254 = vmatprep.mubr.bf16.mxu0 %v293
  %1255 = vmatmul.mubr.bf16.gmra.mrb[0].mxu0 %v292
  %v1256 = vpop.f32.mrb[0].mxu0
  %v1257 = vadd.f32 %v187, %v1256
  %v1258 = vpop.f32.mrb[0].mxu0
  %v1259 = vadd.f32 %v191, %v1258
  %v1260 = vpop.f32.mrb[0].mxu0
  %v1261 = vadd.f32 %v187, %v1260
  %v1262 = vpop.f32.mrb[0].mxu0
  %v1263 = vadd.f32 %v191, %v1262
  %1264 = vmatprep.mubr.bf16.mxu0 %v297
  %1265 = vmatmul.mubr.bf16.gmra.mrb[0].mxu0 %v296
  %v1266 = vpop.f32.mrb[0].mxu0
  %v1267 = vadd.f32 %v187, %v1266
  %v1268 = vpop.f32.mrb[0].mxu0
  %v1269 = vadd.f32 %v191, %v1268
  %v1270 = vpop.f32.mrb[0].mxu0
  %v1271 = vadd.f32 %v187, %v1270
  %v1272 = vpop.f32.mrb[0].mxu0
  %v1273 = vadd.f32 %v191, %v1272
  %1274 = vmatprep.mubr.bf16.mxu0 %v301
  %1275 = vmatmul.mubr.bf16.gmra.mrb[0].mxu0 %v300
  %v1276 = vpop.f32.mrb[0].mxu0
  %v1277 = vadd.f32 %v187, %v1276
  %v1278 = vpop.f32.mrb[0].mxu0
  %v1279 = vadd.f32 %v191, %v1278
  %v1280 = vpop.f32.mrb[0].mxu0
  %v1281 = vadd.f32 %v187, %v1280
  %v1282 = vpop.f32.mrb[0].mxu0
  %v1283 = vadd.f32 %v191, %v1282
  %1284 = vmatprep.mubr.bf16.mxu0 %v305
  %1285 = vmatmul.mubr.bf16.gmra.mrb[0].mxu0 %v304
  %v1286 = vpop.f32.mrb[0].mxu0
  %v1287 = vadd.f32 %v187, %v1286
  %v1288 = vpop.f32.mrb[0].mxu0
  %v1289 = vadd.f32 %v191, %v1288
  %v1290 = vpop.f32.mrb[0].mxu0
  %v1291 = vadd.f32 %v187, %v1290
  %v1292 = vpop.f32.mrb[0].mxu0
  %v1293 = vadd.f32 %v191, %v1292
  %1294 = vmatprep.mubr.bf16.mxu0 %v309
  %1295 = vmatmul.mubr.bf16.gmra.mrb[0].mxu0 %v308
  %v1296 = vpop.f32.mrb[0].mxu0
  %v1297 = vadd.f32 %v187, %v1296
  %v1298 = vpop.f32.mrb[0].mxu0
  %v1299 = vadd.f32 %v191, %v1298
  %v1300 = vpop.f32.mrb[0].mxu0
  %v1301 = vadd.f32 %v187, %v1300
  %v1302 = vpop.f32.mrb[0].mxu0
  %v1303 = vadd.f32 %v191, %v1302
  %1304 = vmatprep.mubr.bf16.mxu0 %v313
  %1305 = vmatmul.mubr.bf16.gmra.mrb[0].mxu0 %v312
  %v1306 = vpop.f32.mrb[0].mxu0
  %v1307 = vadd.f32 %v187, %v1306
  %v1308 = vpop.f32.mrb[0].mxu0
  %v1309 = vadd.f32 %v191, %v1308
  %v1310 = vpop.f32.mrb[0].mxu0
  %v1311 = vadd.f32 %v187, %v1310
  %v1312 = vpop.f32.mrb[0].mxu0
  %v1313 = vadd.f32 %v191, %v1312
  %1314 = vmatprep.mubr.bf16.mxu0 %v317
  %1315 = vmatmul.mubr.bf16.gmra.mrb[0].mxu0 %v316
  %v1316 = vpop.f32.mrb[0].mxu0
  %v1317 = vadd.f32 %v187, %v1316
  %v1318 = vpop.f32.mrb[0].mxu0
  %v1319 = vadd.f32 %v191, %v1318
  %v1320 = vpop.f32.mrb[0].mxu0
  %v1321 = vadd.f32 %v187, %v1320
  %v1322 = vpop.f32.mrb[0].mxu0
  %v1323 = vadd.f32 %v191, %v1322
  %1324 = vmatprep.mubr.bf16.mxu0 %v321
  %1325 = vmatmul.mubr.bf16.gmra.mrb[0].mxu0 %v320
  %v1326 = vpop.f32.mrb[0].mxu0
  %v1327 = vadd.f32 %v187, %v1326
  %v1328 = vpop.f32.mrb[0].mxu0
  %v1329 = vadd.f32 %v191, %v1328
  %v1330 = vpop.f32.mrb[0].mxu0
  %v1331 = vadd.f32 %v187, %v1330
  %v1332 = vpop.f32.mrb[0].mxu0
  %v1333 = vadd.f32 %v191, %v1332
  %1334 = vdwg.mxu0
  %1335 = vmatprep.subr.bf16.mxu0 %v807
  %1336 = vmatpush1.bf16.msra.mxu0 %v806
  %1337 = vmatprep.subr.bf16.mxu0 %v811
  %1338 = vmatpush1.bf16.msra.mxu0 %v810
  %1339 = vmatprep.subr.bf16.mxu0 %v815
  %1340 = vmatpush1.bf16.msra.mxu0 %v814
  %1341 = vmatprep.subr.bf16.mxu0 %v819
  %1342 = vmatpush1.bf16.msra.mxu0 %v818
  %1343 = vmatprep.subr.bf16.mxu0 %v823
  %1344 = vmatpush1.bf16.msra.mxu0 %v822
  %1345 = vmatprep.subr.bf16.mxu0 %v827
  %1346 = vmatpush1.bf16.msra.mxu0 %v826
  %1347 = vmatprep.subr.bf16.mxu0 %v831
  %1348 = vmatpush1.bf16.msra.mxu0 %v830
  %1349 = vmatprep.subr.bf16.mxu0 %v835
  %1350 = vmatpush1.bf16.msra.mxu0 %v834
  %1351 = vmatprep.subr.bf16.mxu0 %v839
  %1352 = vmatpush1.bf16.msra.mxu0 %v838
  %1353 = vmatprep.subr.bf16.mxu0 %v843
  %1354 = vmatpush1.bf16.msra.mxu0 %v842
  %1355 = vmatprep.subr.bf16.mxu0 %v847
  %1356 = vmatpush1.bf16.msra.mxu0 %v846
  %1357 = vmatprep.subr.bf16.mxu0 %v851
  %1358 = vmatpush1.bf16.msra.mxu0 %v850
  %1359 = vmatprep.subr.bf16.mxu0 %v855
  %1360 = vmatpush1.bf16.msra.mxu0 %v854
  %1361 = vmatprep.subr.bf16.mxu0 %v859
  %1362 = vmatpush1.bf16.msra.mxu0 %v858
  %1363 = vmatprep.subr.bf16.mxu0 %v863
  %1364 = vmatpush1.bf16.msra.mxu0 %v862
  %1365 = vmatprep.subr.bf16.mxu0 %v867
  %1366 = vmatpush1.bf16.msra.mxu0 %v866
  %1367 = vmatprep.mubr.bf16.mxu0 %v295
  %1368 = vmatmul.mubr.bf16.gmra.mrb[0].mxu0 %v294
  %v1369 = vpop.f32.mrb[0].mxu0
  %v1370 = vadd.f32 %v1257, %v1369
  %v1371 = vpop.f32.mrb[0].mxu0
  %v1372 = vadd.f32 %v1259, %v1371
  %v1373 = vpop.f32.mrb[0].mxu0
  %v1374 = vadd.f32 %v1261, %v1373
  %v1375 = vpop.f32.mrb[0].mxu0
  %v1376 = vadd.f32 %v1263, %v1375
  %1377 = vmatprep.mubr.bf16.mxu0 %v299
  %1378 = vmatmul.mubr.bf16.gmra.mrb[0].mxu0 %v298
  %v1379 = vpop.f32.mrb[0].mxu0
  %v1380 = vadd.f32 %v1267, %v1379
  %v1381 = vpop.f32.mrb[0].mxu0
  %v1382 = vadd.f32 %v1269, %v1381
  %v1383 = vpop.f32.mrb[0].mxu0
  %v1384 = vadd.f32 %v1271, %v1383
  %v1385 = vpop.f32.mrb[0].mxu0
  %v1386 = vadd.f32 %v1273, %v1385
  %1387 = vmatprep.mubr.bf16.mxu0 %v303
  %1388 = vmatmul.mubr.bf16.gmra.mrb[0].mxu0 %v302
  %v1389 = vpop.f32.mrb[0].mxu0
  %v1390 = vadd.f32 %v1277, %v1389
  %v1391 = vpop.f32.mrb[0].mxu0
  %v1392 = vadd.f32 %v1279, %v1391
  %v1393 = vpop.f32.mrb[0].mxu0
  %v1394 = vadd.f32 %v1281, %v1393
  %v1395 = vpop.f32.mrb[0].mxu0
  %v1396 = vadd.f32 %v1283, %v1395
  %1397 = vmatprep.mubr.bf16.mxu0 %v307
  %1398 = vmatmul.mubr.bf16.gmra.mrb[0].mxu0 %v306
  %v1399 = vpop.f32.mrb[0].mxu0
  %v1400 = vadd.f32 %v1287, %v1399
  %v1401 = vpop.f32.mrb[0].mxu0
  %v1402 = vadd.f32 %v1289, %v1401
  %v1403 = vpop.f32.mrb[0].mxu0
  %v1404 = vadd.f32 %v1291, %v1403
  %v1405 = vpop.f32.mrb[0].mxu0
  %v1406 = vadd.f32 %v1293, %v1405
  %1407 = vmatprep.mubr.bf16.mxu0 %v311
  %1408 = vmatmul.mubr.bf16.gmra.mrb[0].mxu0 %v310
  %v1409 = vpop.f32.mrb[0].mxu0
  %v1410 = vadd.f32 %v1297, %v1409
  %v1411 = vpop.f32.mrb[0].mxu0
  %v1412 = vadd.f32 %v1299, %v1411
  %v1413 = vpop.f32.mrb[0].mxu0
  %v1414 = vadd.f32 %v1301, %v1413
  %v1415 = vpop.f32.mrb[0].mxu0
  %v1416 = vadd.f32 %v1303, %v1415
  %1417 = vmatprep.mubr.bf16.mxu0 %v315
  %1418 = vmatmul.mubr.bf16.gmra.mrb[0].mxu0 %v314
  %v1419 = vpop.f32.mrb[0].mxu0
  %v1420 = vadd.f32 %v1307, %v1419
  %v1421 = vpop.f32.mrb[0].mxu0
  %v1422 = vadd.f32 %v1309, %v1421
  %v1423 = vpop.f32.mrb[0].mxu0
  %v1424 = vadd.f32 %v1311, %v1423
  %v1425 = vpop.f32.mrb[0].mxu0
  %v1426 = vadd.f32 %v1313, %v1425
  %1427 = vmatprep.mubr.bf16.mxu0 %v319
  %1428 = vmatmul.mubr.bf16.gmra.mrb[0].mxu0 %v318
  %v1429 = vpop.f32.mrb[0].mxu0
  %v1430 = vadd.f32 %v1317, %v1429
  %v1431 = vpop.f32.mrb[0].mxu0
  %v1432 = vadd.f32 %v1319, %v1431
  %v1433 = vpop.f32.mrb[0].mxu0
  %v1434 = vadd.f32 %v1321, %v1433
  %v1435 = vpop.f32.mrb[0].mxu0
  %v1436 = vadd.f32 %v1323, %v1435
  %1437 = vmatprep.mubr.bf16.mxu0 %v323
  %1438 = vmatmul.mubr.bf16.gmra.mrb[0].mxu0 %v322
  %v1439 = vpop.f32.mrb[0].mxu0
  %v1440 = vadd.f32 %v1327, %v1439
  %v1441 = vpop.f32.mrb[0].mxu0
  %v1442 = vadd.f32 %v1329, %v1441
  %v1443 = vpop.f32.mrb[0].mxu0
  %v1444 = vadd.f32 %v1331, %v1443
  %v1445 = vpop.f32.mrb[0].mxu0
  %v1446 = vadd.f32 %v1333, %v1445
  %1447 = vdwg.mxu0
  %v1448 = vmax.f32 %v1144, 0.0
  %v1449 = vmax.f32 %v1146, 0.0
  %v1450 = vmax.f32 %v1370, 0.0
  %v1451 = vmax.f32 %v1372, 0.0
  %v1452 = vmax.f32 %v1148, 0.0
  %v1453 = vmax.f32 %v1150, 0.0
  %v1454 = vmax.f32 %v1374, 0.0
  %v1455 = vmax.f32 %v1376, 0.0
  %v1456 = vmax.f32 %v1154, 0.0
  %v1457 = vmax.f32 %v1156, 0.0
  %v1458 = vmax.f32 %v1380, 0.0
  %v1459 = vmax.f32 %v1382, 0.0
  %v1460 = vmax.f32 %v1158, 0.0
  %v1461 = vmax.f32 %v1160, 0.0
  %v1462 = vmax.f32 %v1384, 0.0
  %v1463 = vmax.f32 %v1386, 0.0
  %v1464 = vmax.f32 %v1164, 0.0
  %v1465 = vmax.f32 %v1166, 0.0
  %v1466 = vmax.f32 %v1390, 0.0
  %v1467 = vmax.f32 %v1392, 0.0
  %v1468 = vmax.f32 %v1168, 0.0
  %v1469 = vmax.f32 %v1170, 0.0
  %v1470 = vmax.f32 %v1394, 0.0
  %v1471 = vmax.f32 %v1396, 0.0
  %v1472 = vmax.f32 %v1174, 0.0
  %v1473 = vmax.f32 %v1176, 0.0
  %v1474 = vmax.f32 %v1400, 0.0
  %v1475 = vmax.f32 %v1402, 0.0
  %v1476 = vmax.f32 %v1178, 0.0
  %v1477 = vmax.f32 %v1180, 0.0
  %v1478 = vmax.f32 %v1404, 0.0
  %v1479 = vmax.f32 %v1406, 0.0
  %v1480 = vmax.f32 %v1184, 0.0
  %v1481 = vmax.f32 %v1186, 0.0
  %v1482 = vmax.f32 %v1410, 0.0
  %v1483 = vmax.f32 %v1412, 0.0
  %v1484 = vmax.f32 %v1188, 0.0
  %v1485 = vmax.f32 %v1190, 0.0
  %v1486 = vmax.f32 %v1414, 0.0
  %v1487 = vmax.f32 %v1416, 0.0
  %v1488 = vmax.f32 %v1194, 0.0
  %v1489 = vmax.f32 %v1196, 0.0
  %v1490 = vmax.f32 %v1420, 0.0
  %v1491 = vmax.f32 %v1422, 0.0
  %v1492 = vmax.f32 %v1198, 0.0
  %v1493 = vmax.f32 %v1200, 0.0
  %v1494 = vmax.f32 %v1424, 0.0
  %v1495 = vmax.f32 %v1426, 0.0
  %v1496 = vmax.f32 %v1204, 0.0
  %v1497 = vmax.f32 %v1206, 0.0
  %v1498 = vmax.f32 %v1430, 0.0
  %v1499 = vmax.f32 %v1432, 0.0
  %v1500 = vmax.f32 %v1208, 0.0
  %v1501 = vmax.f32 %v1210, 0.0
  %v1502 = vmax.f32 %v1434, 0.0
  %v1503 = vmax.f32 %v1436, 0.0
  %v1504 = vmax.f32 %v1214, 0.0
  %v1505 = vmax.f32 %v1216, 0.0
  %v1506 = vmax.f32 %v1440, 0.0
  %v1507 = vmax.f32 %v1442, 0.0
  %v1508 = vmax.f32 %v1218, 0.0
  %v1509 = vmax.f32 %v1220, 0.0
  %v1510 = vmax.f32 %v1444, 0.0
  %v1511 = vmax.f32 %v1446, 0.0
  %1512 = vst [vmem:[%s3] sm:$0xff] %v1448
  %1513 = vst [vmem:[%s3 + $0x8] sm:$0xff] %v1449
  %1514 = vst [vmem:[%s3 + $0x10] sm:$0xff] %v1450
  %1515 = vst [vmem:[%s3 + $0x18] sm:$0xff] %v1451
  %1516 = vst [vmem:[%s3 + $0x20] sm:$0xff] %v1452
  %1517 = vst [vmem:[%s3 + $0x28] sm:$0xff] %v1453
  %1518 = vst [vmem:[%s3 + $0x30] sm:$0xff] %v1454
  %1519 = vst [vmem:[%s3 + $0x38] sm:$0xff] %v1455
  %1520 = vst [vmem:[%s3 + $0x40] sm:$0xff] %v1456
  %1521 = vst [vmem:[%s3 + $0x48] sm:$0xff] %v1457
  %1522 = vst [vmem:[%s3 + $0x50] sm:$0xff] %v1458
  %1523 = vst [vmem:[%s3 + $0x58] sm:$0xff] %v1459
  %1524 = vst [vmem:[%s3 + $0x60] sm:$0xff] %v1460
  %1525 = vst [vmem:[%s3 + $0x68] sm:$0xff] %v1461
  %1526 = vst [vmem:[%s3 + $0x70] sm:$0xff] %v1462
  %1527 = vst [vmem:[%s3 + $0x78] sm:$0xff] %v1463
  %1528 = vst [vmem:[%s3 + $0x80] sm:$0xff] %v1464
  %1529 = vst [vmem:[%s3 + $0x88] sm:$0xff] %v1465
  %1530 = vst [vmem:[%s3 + $0x90] sm:$0xff] %v1466
  %1531 = vst [vmem:[%s3 + $0x98] sm:$0xff] %v1467
  %1532 = vst [vmem:[%s3 + $0xa0] sm:$0xff] %v1468
  %1533 = vst [vmem:[%s3 + $0xa8] sm:$0xff] %v1469
  %1534 = vst [vmem:[%s3 + $0xb0] sm:$0xff] %v1470
  %1535 = vst [vmem:[%s3 + $0xb8] sm:$0xff] %v1471
  %1536 = vst [vmem:[%s3 + $0xc0] sm:$0xff] %v1472
  %1537 = vst [vmem:[%s3 + $0xc8] sm:$0xff] %v1473
  %1538 = vst [vmem:[%s3 + $0xd0] sm:$0xff] %v1474
  %1539 = vst [vmem:[%s3 + $0xd8] sm:$0xff] %v1475
  %1540 = vst [vmem:[%s3 + $0xe0] sm:$0xff] %v1476
  %1541 = vst [vmem:[%s3 + $0xe8] sm:$0xff] %v1477
  %1542 = vst [vmem:[%s3 + $0xf0] sm:$0xff] %v1478
  %1543 = vst [vmem:[%s3 + $0xf8] sm:$0xff] %v1479
  %1544 = vst [vmem:[%s3 + $0x100] sm:$0xff] %v1480
  %1545 = vst [vmem:[%s3 + $0x108] sm:$0xff] %v1481
  %1546 = vst [vmem:[%s3 + $0x110] sm:$0xff] %v1482
  %1547 = vst [vmem:[%s3 + $0x118] sm:$0xff] %v1483
  %1548 = vst [vmem:[%s3 + $0x120] sm:$0xff] %v1484
  %1549 = vst [vmem:[%s3 + $0x128] sm:$0xff] %v1485
  %1550 = vst [vmem:[%s3 + $0x130] sm:$0xff] %v1486
  %1551 = vst [vmem:[%s3 + $0x138] sm:$0xff] %v1487
  %1552 = vst [vmem:[%s3 + $0x140] sm:$0xff] %v1488
  %1553 = vst [vmem:[%s3 + $0x148] sm:$0xff] %v1489
  %1554 = vst [vmem:[%s3 + $0x150] sm:$0xff] %v1490
  %1555 = vst [vmem:[%s3 + $0x158] sm:$0xff] %v1491
  %1556 = vst [vmem:[%s3 + $0x160] sm:$0xff] %v1492
  %1557 = vst [vmem:[%s3 + $0x168] sm:$0xff] %v1493
  %1558 = vst [vmem:[%s3 + $0x170] sm:$0xff] %v1494
  %1559 = vst [vmem:[%s3 + $0x178] sm:$0xff] %v1495
  %1560 = vst [vmem:[%s3 + $0x180] sm:$0xff] %v1496
  %1561 = vst [vmem:[%s3 + $0x188] sm:$0xff] %v1497
  %1562 = vst [vmem:[%s3 + $0x190] sm:$0xff] %v1498
  %1563 = vst [vmem:[%s3 + $0x198] sm:$0xff] %v1499
  %1564 = vst [vmem:[%s3 + $0x1a0] sm:$0xff] %v1500
  %1565 = vst [vmem:[%s3 + $0x1a8] sm:$0xff] %v1501
  %1566 = vst [vmem:[%s3 + $0x1b0] sm:$0xff] %v1502
  %1567 = vst [vmem:[%s3 + $0x1b8] sm:$0xff] %v1503
  %1568 = vst [vmem:[%s3 + $0x1c0] sm:$0xff] %v1504
  %1569 = vst [vmem:[%s3 + $0x1c8] sm:$0xff] %v1505
  %1570 = vst [vmem:[%s3 + $0x1d0] sm:$0xff] %v1506
  %1571 = vst [vmem:[%s3 + $0x1d8] sm:$0xff] %v1507
  %1572 = vst [vmem:[%s3 + $0x1e0] sm:$0xff] %v1508
  %1573 = vst [vmem:[%s3 + $0x1e8] sm:$0xff] %v1509
  %1574 = vst [vmem:[%s3 + $0x1f0] sm:$0xff] %v1510
  %1575 = vst [vmem:[%s3 + $0x1f8] sm:$0xff] %v1511
  // Predicated region
  $region14: #{decoder_forward_fused.7} parent=0 // pred_check
    _
  $region15: #{decoder_forward_fused.7} parent=0 // pred_check_branch
    %1577 = sbr.rel (0) target = $region17
  $region16: #{decoder_forward_fused.7} parent=0 // pred_region
    _
  $region17: #{decoder_forward_fused.7} parent=0 // pred_fallthru
    _
  // Predicated region
  $region18: #{decoder_forward_fused.7} parent=0 // pred_check
    _
  $region19: #{decoder_forward_fused.7} parent=0 // pred_check_branch
    %1579 = sbr.rel (0) target = $region21
  $region20: #{decoder_forward_fused.7} parent=0 // pred_region
    _
  $region21: #{decoder_forward_fused.7} parent=0 // pred_fallthru
    _

// kernel: decoder_forward_fused.6
$region0: #{decoder_forward_fused.6}
  #allocation0 [shape = 'u32[]', space=smem, size = 0x4, offset = 0x4, fixed_abs, tag = 'smem constant byte address 0x4 - core index']
  #allocation1 [shape = 'u32[144,128]{1,0:T(1,128)}', space=vmem, size = 0x12000, scoped, tag = 'internal scratch']
  %s0 = inlined_call_operand.vmem [shape: bf16[32,1024], index: 0, kind: input, shape index: {}]
  %s1 = inlined_call_operand.vmem [shape: bf16[1024,1024], index: 1, kind: input, shape index: {}]
  %s2 = inlined_call_operand.vmem [shape: f32[1,1024], index: 2, kind: input, shape index: {}]
  %s3 = inlined_call_operand.vmem [shape: f32[32,1024], index: 3, kind: output, shape index: {}]
  %s4 = sld [smem:[#allocation0]]
  $region87: #{decoder_forward_fused.6} parent=0
    _
  %s6 = ssub.s32 1, %s4
  %s7 = scalar_select 0, %s6, %s4
  $region1: #{decoder_forward_fused.6} parent=0
    #allocation2 [shape = 'u8[2097152]{0}', space=vmem, size = 0x200000, scoped, tag = 'input window, operand 1']
    #allocation3 [shape = 'u8[131072]{0}', space=vmem, size = 0x20000, scoped, tag = 'output window, operand 0']
    loop: start=0, step=1, limit=4
    $region2: #{decoder_forward_fused.6} parent=1 // loop_pre_header
      _
    $region3: #{decoder_forward_fused.6} parent=1 // loop_header
      %s9 = sphi 0, %s13
      %p10 = scmp.ge.s32.totalorder %s9, 4
      %s16 = sphi 0, %s28
      %s17 = sphi 0, %s24
      %s18 = sphi 0, %s16
      %s19 = sphi 0, %s17
      %s20 = sphi 0, %s18
      %s21 = sphi 0, %s19
      %s31 = sphi 0, %s33
      %s34 = sphi 0, %s31
      %s35 = sphi 0, %s34
      %s51 = sphi 0, %s35
      %s57 = sphi 0, %s59
      %s60 = sphi 0, %s57
      %s61 = sphi 0, %s60
      %s77 = sphi 0, %s61
      %s83 = sphi 0, %s85
      %s86 = sphi 0, %s83
      %s87 = sphi 0, %s86
      %s103 = sphi 0, %s87
      %s111 = sphi 0, %s113
      %s114 = sphi 0, %s111
      %s115 = sphi 0, %s114
      %s131 = sphi 0, %s115
    $region4: #{decoder_forward_fused.6} parent=1 // loop_header_branch
      %12 = sbr.rel (%p10) target = $region8
    $region5: #{decoder_forward_fused.6} parent=1 // loop_body
      %s14 = ssub.s32 %s9, 1
      %s15 = ssub.s32 %s9, 2
      %s22 = sadd.s32 1, %s17
      %p23 = scmp.ge.s32.totalorder %s22, 2
      %s24 = scalar_select %p23, 0, %s22
      %s25 = sadd.s32 1, %s16
      %s26 = scalar_select %p23, %s25, %s16
      %p27 = scmp.ge.s32.totalorder %s26, 1
      %s28 = scalar_select %p27, 0, %s26
      %s29 = ssub.s32 %s16, %s28
      %p30 = scmp.eq.s32.totalorder %s29, 0
      %s32 = sadd.s32 %s31, 1
      %s33 = scalar_select %p30, %s31, %s32
      %p36 = pneg %p30
      %p37 = scmp.eq.s32.totalorder %s9, 1
      %p38 = por %p36, %p37
      %p39 = scmp.ne.s32.totalorder %s31, %s34
      %p40 = scmp.eq.s32.totalorder %s9, 0
      %p41 = por %p39, %p40
      %p42 = scmp.ne.s32.totalorder %s31, %s34
      %p43 = scmp.eq.s32.totalorder %s14, 1
      %p44 = por %p42, %p43
      %p45 = scmp.ne.s32.totalorder %s34, %s35
      %p46 = scmp.eq.s32.totalorder %s14, 0
      %p47 = por %p45, %p46
      %p48 = scmp.ne.s32.totalorder %s34, %s35
      %p49 = scmp.eq.s32.totalorder %s15, 1
      %p50 = por %p48, %p49
      %p52 = scmp.ne.s32.totalorder %s35, %s51
      %p53 = scmp.eq.s32.totalorder %s15, 0
      %p54 = por %p52, %p53
      %s55 = ssub.s32 %s17, %s24
      %p56 = scmp.eq.s32.totalorder %s55, 0
      %s58 = sadd.s32 %s57, 1
      %s59 = scalar_select %p56, %s57, %s58
      %p62 = pneg %p56
      %p63 = scmp.eq.s32.totalorder %s9, 1
      %p64 = por %p62, %p63
      %p65 = scmp.ne.s32.totalorder %s57, %s60
      %p66 = scmp.eq.s32.totalorder %s9, 0
      %p67 = por %p65, %p66
      %p68 = scmp.ne.s32.totalorder %s57, %s60
      %p69 = scmp.eq.s32.totalorder %s14, 1
      %p70 = por %p68, %p69
      %p71 = scmp.ne.s32.totalorder %s60, %s61
      %p72 = scmp.eq.s32.totalorder %s14, 0
      %p73 = por %p71, %p72
      %p74 = scmp.ne.s32.totalorder %s60, %s61
      %p75 = scmp.eq.s32.totalorder %s15, 1
      %p76 = por %p74, %p75
      %p78 = scmp.ne.s32.totalorder %s61, %s77
      %p79 = scmp.eq.s32.totalorder %s15, 0
      %p80 = por %p78, %p79
      %s81 = ssub.s32 %s17, %s24
      %p82 = scmp.eq.s32.totalorder %s81, 0
      %s84 = sadd.s32 %s83, 1
      %s85 = scalar_select %p82, %s83, %s84
      %p88 = pneg %p82
      %p89 = scmp.eq.s32.totalorder %s9, 1
      %p90 = por %p88, %p89
      %p91 = scmp.ne.s32.totalorder %s83, %s86
      %p92 = scmp.eq.s32.totalorder %s9, 0
      %p93 = por %p91, %p92
      %p94 = scmp.ne.s32.totalorder %s83, %s86
      %p95 = scmp.eq.s32.totalorder %s14, 1
      %p96 = por %p94, %p95
      %p97 = scmp.ne.s32.totalorder %s86, %s87
      %p98 = scmp.eq.s32.totalorder %s14, 0
      %p99 = por %p97, %p98
      %p100 = scmp.ne.s32.totalorder %s86, %s87
      %p101 = scmp.eq.s32.totalorder %s15, 1
      %p102 = por %p100, %p101
      %p104 = scmp.ne.s32.totalorder %s87, %s103
      %p105 = scmp.eq.s32.totalorder %s15, 0
      %p106 = por %p104, %p105
      %s107 = ssub.s32 %s16, %s28
      %s108 = ssub.s32 %s17, %s24
      %s109 = sor.u32 %s107, %s108
      %p110 = scmp.eq.s32.totalorder %s109, 0
      %s112 = sadd.s32 %s111, 1
      %s113 = scalar_select %p110, %s111, %s112
      %p116 = pneg %p110
      %p117 = scmp.eq.s32.totalorder %s9, 1
      %p118 = por %p116, %p117
      %p119 = scmp.ne.s32.totalorder %s111, %s114
      %p120 = scmp.eq.s32.totalorder %s9, 0
      %p121 = por %p119, %p120
      %p122 = scmp.ne.s32.totalorder %s111, %s114
      %p123 = scmp.eq.s32.totalorder %s14, 1
      %p124 = por %p122, %p123
      %p125 = scmp.ne.s32.totalorder %s114, %s115
      %p126 = scmp.eq.s32.totalorder %s14, 0
      %p127 = por %p125, %p126
      %p128 = scmp.ne.s32.totalorder %s114, %s115
      %p129 = scmp.eq.s32.totalorder %s15, 1
      %p130 = por %p128, %p129
      %p132 = scmp.ne.s32.totalorder %s115, %s131
      %p133 = scmp.eq.s32.totalorder %s15, 0
      %p134 = por %p132, %p133
      %p135 = scmp.le.s32.totalorder 1, %s9
      %p136 = scmp.lt.s32.totalorder %s9, 3
      %p137 = pnand %p135, %p136
      %p138 = pneg %p137
      // Predicated region
      $region9: #{decoder_forward_fused.6} parent=5 // pred_check
        _
      $region10: #{decoder_forward_fused.6} parent=5 // pred_check_branch
        %140 = sbr.rel (%p137) target = $region12
      $region11: #{decoder_forward_fused.6} parent=5 // pred_region
        %s141 = ssub.s32 %s9, 1
        // Predicated region
        $region13: #{decoder_forward_fused.6} parent=11 // pred_check
          %p142 = pneg %p47
        $region14: #{decoder_forward_fused.6} parent=11 // pred_check_branch
          %144 = sbr.rel (%p142) target = $region16
        $region15: #{decoder_forward_fused.6} parent=11 // pred_region
          %s145 = smul.u32 4, %s18
          %p146 = scmp.lt.s32.totalorder %s145, 3
          %s147 = scalar_select %p146, %s145, 3
          %s148 = smul.addr %s147, 8
          %s149 = smul.addr %s148, 4
          %s150 = scalar_lea.vmem %s0, %s149
          %s151 = smul.u32 4, %s18
        $region16: #{decoder_forward_fused.6} parent=11 // pred_fallthru
          _
      $region12: #{decoder_forward_fused.6} parent=5 // pred_fallthru
        _
      %p152 = scmp.lt.s32.totalorder %s9, 2
      // Predicated region
      $region17: #{decoder_forward_fused.6} parent=5 // pred_check
        %p153 = pneg %p152
      $region18: #{decoder_forward_fused.6} parent=5 // pred_check_branch
        %155 = sbr.rel (%p153) target = $region20
      $region19: #{decoder_forward_fused.6} parent=5 // pred_region
        // Predicated region
        $region21: #{decoder_forward_fused.6} parent=19 // pred_check
          %p156 = pneg %p67
        $region22: #{decoder_forward_fused.6} parent=19 // pred_check_branch
          %158 = sbr.rel (%p156) target = $region24
        $region23: #{decoder_forward_fused.6} parent=19 // pred_region
          %s159 = sand.u32 %s57, 1
          %s160 = sand.u32 %s57, 1
          %s161 = smul.addr %s160, 2048
          %s162 = scalar_lea.vmem [#allocation2], %s161
          %s163 = smul.u32 4, %s17
          %s164 = smul.addr %s163, 4
          %s165 = scalar_lea.vmem %s1, %s164
          // Predicated region
          $region25: #{decoder_forward_fused.6} parent=23 // pred_check
            _
          $region26: #{decoder_forward_fused.6} parent=23 // pred_check_branch
            %167 = sbr.rel (0) target = $region28
          $region27: #{decoder_forward_fused.6} parent=23 // pred_region
            // Predicated region
            $region29: #{decoder_forward_fused.6} parent=27 // pred_check
              _
            $region30: #{decoder_forward_fused.6} parent=27 // pred_check_branch
              %169 = sbr.rel (0) target = $region32
            $region31: #{decoder_forward_fused.6} parent=27 // pred_region
              loop: start=0, step=1, limit=1
              $region33: #{decoder_forward_fused.6} parent=31 // loop_pre_header
                _
              $region34: #{decoder_forward_fused.6} parent=31 // loop_header
                %s171 = sphi 0, %s175
                %p172 = scmp.ge.s32.totalorder %s171, 1
                %s176 = sphi %s165, %s165
                %s177 = sphi %s162, %s162
              $region35: #{decoder_forward_fused.6} parent=31 // loop_header_branch
                %174 = sbr.rel (%p172) target = $region39
              $region36: #{decoder_forward_fused.6} parent=31 // loop_body
                %v178 = vld [vmem:[%s176] sm:$0xff]
                %179 = vst [vmem:[%s177] sm:$0xff] %v178
                %v180 = vld [vmem:[%s176 + $0x8] sm:$0xff]
                %181 = vst [vmem:[%s177 + $0x8] sm:$0xff] %v180
                %v182 = vld [vmem:[%s176 + $0x20] sm:$0xff]
                %183 = vst [vmem:[%s177 + $0x10] sm:$0xff] %v182
                %v184 = vld [vmem:[%s176 + $0x28] sm:$0xff]
                %185 = vst [vmem:[%s177 + $0x18] sm:$0xff] %v184
                %v186 = vld [vmem:[%s176 + $0x40] sm:$0xff]
                %187 = vst [vmem:[%s177 + $0x20] sm:$0xff] %v186
                %v188 = vld [vmem:[%s176 + $0x48] sm:$0xff]
                %189 = vst [vmem:[%s177 + $0x28] sm:$0xff] %v188
                %v190 = vld [vmem:[%s176 + $0x60] sm:$0xff]
                %191 = vst [vmem:[%s177 + $0x30] sm:$0xff] %v190
                %v192 = vld [vmem:[%s176 + $0x68] sm:$0xff]
                %193 = vst [vmem:[%s177 + $0x38] sm:$0xff] %v192
                %v194 = vld [vmem:[%s176 + $0x80] sm:$0xff]
                %195 = vst [vmem:[%s177 + $0x40] sm:$0xff] %v194
                %v196 = vld [vmem:[%s176 + $0x88] sm:$0xff]
                %197 = vst [vmem:[%s177 + $0x48] sm:$0xff] %v196
                %v198 = vld [vmem:[%s176 + $0xa0] sm:$0xff]
                %199 = vst [vmem:[%s177 + $0x50] sm:$0xff] %v198
                %v200 = vld [vmem:[%s176 + $0xa8] sm:$0xff]
                %201 = vst [vmem:[%s177 + $0x58] sm:$0xff] %v200
                %v202 = vld [vmem:[%s176 + $0xc0] sm:$0xff]
                %203 = vst [vmem:[%s177 + $0x60] sm:$0xff] %v202
                %v204 = vld [vmem:[%s176 + $0xc8] sm:$0xff]
                %205 = vst [vmem:[%s177 + $0x68] sm:$0xff] %v204
                %v206 = vld [vmem:[%s176 + $0xe0] sm:$0xff]
                %207 = vst [vmem:[%s177 + $0x70] sm:$0xff] %v206
                %v208 = vld [vmem:[%s176 + $0xe8] sm:$0xff]
                %209 = vst [vmem:[%s177 + $0x78] sm:$0xff] %v208
                %v210 = vld [vmem:[%s176 + $0x100] sm:$0xff]
                %211 = vst [vmem:[%s177 + $0x80] sm:$0xff] %v210
                %v212 = vld [vmem:[%s176 + $0x108] sm:$0xff]
                %213 = vst [vmem:[%s177 + $0x88] sm:$0xff] %v212
                %v214 = vld [vmem:[%s176 + $0x120] sm:$0xff]
                %215 = vst [vmem:[%s177 + $0x90] sm:$0xff] %v214
                %v216 = vld [vmem:[%s176 + $0x128] sm:$0xff]
                %217 = vst [vmem:[%s177 + $0x98] sm:$0xff] %v216
                %v218 = vld [vmem:[%s176 + $0x140] sm:$0xff]
                %219 = vst [vmem:[%s177 + $0xa0] sm:$0xff] %v218
                %v220 = vld [vmem:[%s176 + $0x148] sm:$0xff]
                %221 = vst [vmem:[%s177 + $0xa8] sm:$0xff] %v220
                %v222 = vld [vmem:[%s176 + $0x160] sm:$0xff]
                %223 = vst [vmem:[%s177 + $0xb0] sm:$0xff] %v222
                %v224 = vld [vmem:[%s176 + $0x168] sm:$0xff]
                %225 = vst [vmem:[%s177 + $0xb8] sm:$0xff] %v224
                %v226 = vld [vmem:[%s176 + $0x180] sm:$0xff]
                %227 = vst [vmem:[%s177 + $0xc0] sm:$0xff] %v226
                %v228 = vld [vmem:[%s176 + $0x188] sm:$0xff]
                %229 = vst [vmem:[%s177 + $0xc8] sm:$0xff] %v228
                %v230 = vld [vmem:[%s176 + $0x1a0] sm:$0xff]
                %231 = vst [vmem:[%s177 + $0xd0] sm:$0xff] %v230
                %v232 = vld [vmem:[%s176 + $0x1a8] sm:$0xff]
                %233 = vst [vmem:[%s177 + $0xd8] sm:$0xff] %v232
                %v234 = vld [vmem:[%s176 + $0x1c0] sm:$0xff]
                %235 = vst [vmem:[%s177 + $0xe0] sm:$0xff] %v234
                %v236 = vld [vmem:[%s176 + $0x1c8] sm:$0xff]
                %237 = vst [vmem:[%s177 + $0xe8] sm:$0xff] %v236
                %v238 = vld [vmem:[%s176 + $0x1e0] sm:$0xff]
                %239 = vst [vmem:[%s177 + $0xf0] sm:$0xff] %v238
                %v240 = vld [vmem:[%s176 + $0x1e8] sm:$0xff]
                %241 = vst [vmem:[%s177 + $0xf8] sm:$0xff] %v240
                %v242 = vld [vmem:[%s176 + $0x200] sm:$0xff]
                %243 = vst [vmem:[%s177 + $0x100] sm:$0xff] %v242
                %v244 = vld [vmem:[%s176 + $0x208] sm:$0xff]
                %245 = vst [vmem:[%s177 + $0x108] sm:$0xff] %v244
                %v246 = vld [vmem:[%s176 + $0x220] sm:$0xff]
                %247 = vst [vmem:[%s177 + $0x110] sm:$0xff] %v246
                %v248 = vld [vmem:[%s176 + $0x228] sm:$0xff]
                %249 = vst [vmem:[%s177 + $0x118] sm:$0xff] %v248
                %v250 = vld [vmem:[%s176 + $0x240] sm:$0xff]
                %251 = vst [vmem:[%s177 + $0x120] sm:$0xff] %v250
                %v252 = vld [vmem:[%s176 + $0x248] sm:$0xff]
                %253 = vst [vmem:[%s177 + $0x128] sm:$0xff] %v252
                %v254 = vld [vmem:[%s176 + $0x260] sm:$0xff]
                %255 = vst [vmem:[%s177 + $0x130] sm:$0xff] %v254
                %v256 = vld [vmem:[%s176 + $0x268] sm:$0xff]
                %257 = vst [vmem:[%s177 + $0x138] sm:$0xff] %v256
                %v258 = vld [vmem:[%s176 + $0x280] sm:$0xff]
                %259 = vst [vmem:[%s177 + $0x140] sm:$0xff] %v258
                %v260 = vld [vmem:[%s176 + $0x288] sm:$0xff]
                %261 = vst [vmem:[%s177 + $0x148] sm:$0xff] %v260
                %v262 = vld [vmem:[%s176 + $0x2a0] sm:$0xff]
                %263 = vst [vmem:[%s177 + $0x150] sm:$0xff] %v262
                %v264 = vld [vmem:[%s176 + $0x2a8] sm:$0xff]
                %265 = vst [vmem:[%s177 + $0x158] sm:$0xff] %v264
                %v266 = vld [vmem:[%s176 + $0x2c0] sm:$0xff]
                %267 = vst [vmem:[%s177 + $0x160] sm:$0xff] %v266
                %v268 = vld [vmem:[%s176 + $0x2c8] sm:$0xff]
                %269 = vst [vmem:[%s177 + $0x168] sm:$0xff] %v268
                %v270 = vld [vmem:[%s176 + $0x2e0] sm:$0xff]
                %271 = vst [vmem:[%s177 + $0x170] sm:$0xff] %v270
                %v272 = vld [vmem:[%s176 + $0x2e8] sm:$0xff]
                %273 = vst [vmem:[%s177 + $0x178] sm:$0xff] %v272
                %v274 = vld [vmem:[%s176 + $0x300] sm:$0xff]
                %275 = vst [vmem:[%s177 + $0x180] sm:$0xff] %v274
                %v276 = vld [vmem:[%s176 + $0x308] sm:$0xff]
                %277 = vst [vmem:[%s177 + $0x188] sm:$0xff] %v276
                %v278 = vld [vmem:[%s176 + $0x320] sm:$0xff]
                %279 = vst [vmem:[%s177 + $0x190] sm:$0xff] %v278
                %v280 = vld [vmem:[%s176 + $0x328] sm:$0xff]
                %281 = vst [vmem:[%s177 + $0x198] sm:$0xff] %v280
                %v282 = vld [vmem:[%s176 + $0x340] sm:$0xff]
                %283 = vst [vmem:[%s177 + $0x1a0] sm:$0xff] %v282
                %v284 = vld [vmem:[%s176 + $0x348] sm:$0xff]
                %285 = vst [vmem:[%s177 + $0x1a8] sm:$0xff] %v284
                %v286 = vld [vmem:[%s176 + $0x360] sm:$0xff]
                %287 = vst [vmem:[%s177 + $0x1b0] sm:$0xff] %v286
                %v288 = vld [vmem:[%s176 + $0x368] sm:$0xff]
                %289 = vst [vmem:[%s177 + $0x1b8] sm:$0xff] %v288
                %v290 = vld [vmem:[%s176 + $0x380] sm:$0xff]
                %291 = vst [vmem:[%s177 + $0x1c0] sm:$0xff] %v290
                %v292 = vld [vmem:[%s176 + $0x388] sm:$0xff]
                %293 = vst [vmem:[%s177 + $0x1c8] sm:$0xff] %v292
                %v294 = vld [vmem:[%s176 + $0x3a0] sm:$0xff]
                %295 = vst [vmem:[%s177 + $0x1d0] sm:$0xff] %v294
                %v296 = vld [vmem:[%s176 + $0x3a8] sm:$0xff]
                %297 = vst [vmem:[%s177 + $0x1d8] sm:$0xff] %v296
                %v298 = vld [vmem:[%s176 + $0x3c0] sm:$0xff]
                %299 = vst [vmem:[%s177 + $0x1e0] sm:$0xff] %v298
                %v300 = vld [vmem:[%s176 + $0x3c8] sm:$0xff]
                %301 = vst [vmem:[%s177 + $0x1e8] sm:$0xff] %v300
                %v302 = vld [vmem:[%s176 + $0x3e0] sm:$0xff]
                %303 = vst [vmem:[%s177 + $0x1f0] sm:$0xff] %v302
                %v304 = vld [vmem:[%s176 + $0x3e8] sm:$0xff]
                %305 = vst [vmem:[%s177 + $0x1f8] sm:$0xff] %v304
                %v306 = vld [vmem:[%s176 + $0x400] sm:$0xff]
                %307 = vst [vmem:[%s177 + $0x200] sm:$0xff] %v306
                %v308 = vld [vmem:[%s176 + $0x408] sm:$0xff]
                %309 = vst [vmem:[%s177 + $0x208] sm:$0xff] %v308
                %v310 = vld [vmem:[%s176 + $0x420] sm:$0xff]
                %311 = vst [vmem:[%s177 + $0x210] sm:$0xff] %v310
                %v312 = vld [vmem:[%s176 + $0x428] sm:$0xff]
                %313 = vst [vmem:[%s177 + $0x218] sm:$0xff] %v312
                %v314 = vld [vmem:[%s176 + $0x440] sm:$0xff]
                %315 = vst [vmem:[%s177 + $0x220] sm:$0xff] %v314
                %v316 = vld [vmem:[%s176 + $0x448] sm:$0xff]
                %317 = vst [vmem:[%s177 + $0x228] sm:$0xff] %v316
                %v318 = vld [vmem:[%s176 + $0x460] sm:$0xff]
                %319 = vst [vmem:[%s177 + $0x230] sm:$0xff] %v318
                %v320 = vld [vmem:[%s176 + $0x468] sm:$0xff]
                %321 = vst [vmem:[%s177 + $0x238] sm:$0xff] %v320
                %v322 = vld [vmem:[%s176 + $0x480] sm:$0xff]
                %323 = vst [vmem:[%s177 + $0x240] sm:$0xff] %v322
                %v324 = vld [vmem:[%s176 + $0x488] sm:$0xff]
                %325 = vst [vmem:[%s177 + $0x248] sm:$0xff] %v324
                %v326 = vld [vmem:[%s176 + $0x4a0] sm:$0xff]
                %327 = vst [vmem:[%s177 + $0x250] sm:$0xff] %v326
                %v328 = vld [vmem:[%s176 + $0x4a8] sm:$0xff]
                %329 = vst [vmem:[%s177 + $0x258] sm:$0xff] %v328
                %v330 = vld [vmem:[%s176 + $0x4c0] sm:$0xff]
                %331 = vst [vmem:[%s177 + $0x260] sm:$0xff] %v330
                %v332 = vld [vmem:[%s176 + $0x4c8] sm:$0xff]
                %333 = vst [vmem:[%s177 + $0x268] sm:$0xff] %v332
                %v334 = vld [vmem:[%s176 + $0x4e0] sm:$0xff]
                %335 = vst [vmem:[%s177 + $0x270] sm:$0xff] %v334
                %v336 = vld [vmem:[%s176 + $0x4e8] sm:$0xff]
                %337 = vst [vmem:[%s177 + $0x278] sm:$0xff] %v336
                %v338 = vld [vmem:[%s176 + $0x500] sm:$0xff]
                %339 = vst [vmem:[%s177 + $0x280] sm:$0xff] %v338
                %v340 = vld [vmem:[%s176 + $0x508] sm:$0xff]
                %341 = vst [vmem:[%s177 + $0x288] sm:$0xff] %v340
                %v342 = vld [vmem:[%s176 + $0x520] sm:$0xff]
                %343 = vst [vmem:[%s177 + $0x290] sm:$0xff] %v342
                %v344 = vld [vmem:[%s176 + $0x528] sm:$0xff]
                %345 = vst [vmem:[%s177 + $0x298] sm:$0xff] %v344
                %v346 = vld [vmem:[%s176 + $0x540] sm:$0xff]
                %347 = vst [vmem:[%s177 + $0x2a0] sm:$0xff] %v346
                %v348 = vld [vmem:[%s176 + $0x548] sm:$0xff]
                %349 = vst [vmem:[%s177 + $0x2a8] sm:$0xff] %v348
                %v350 = vld [vmem:[%s176 + $0x560] sm:$0xff]
                %351 = vst [vmem:[%s177 + $0x2b0] sm:$0xff] %v350
                %v352 = vld [vmem:[%s176 + $0x568] sm:$0xff]
                %353 = vst [vmem:[%s177 + $0x2b8] sm:$0xff] %v352
                %v354 = vld [vmem:[%s176 + $0x580] sm:$0xff]
                %355 = vst [vmem:[%s177 + $0x2c0] sm:$0xff] %v354
                %v356 = vld [vmem:[%s176 + $0x588] sm:$0xff]
                %357 = vst [vmem:[%s177 + $0x2c8] sm:$0xff] %v356
                %v358 = vld [vmem:[%s176 + $0x5a0] sm:$0xff]
                %359 = vst [vmem:[%s177 + $0x2d0] sm:$0xff] %v358
                %v360 = vld [vmem:[%s176 + $0x5a8] sm:$0xff]
                %361 = vst [vmem:[%s177 + $0x2d8] sm:$0xff] %v360
                %v362 = vld [vmem:[%s176 + $0x5c0] sm:$0xff]
                %363 = vst [vmem:[%s177 + $0x2e0] sm:$0xff] %v362
                %v364 = vld [vmem:[%s176 + $0x5c8] sm:$0xff]
                %365 = vst [vmem:[%s177 + $0x2e8] sm:$0xff] %v364
                %v366 = vld [vmem:[%s176 + $0x5e0] sm:$0xff]
                %367 = vst [vmem:[%s177 + $0x2f0] sm:$0xff] %v366
                %v368 = vld [vmem:[%s176 + $0x5e8] sm:$0xff]
                %369 = vst [vmem:[%s177 + $0x2f8] sm:$0xff] %v368
                %v370 = vld [vmem:[%s176 + $0x600] sm:$0xff]
                %371 = vst [vmem:[%s177 + $0x300] sm:$0xff] %v370
                %v372 = vld [vmem:[%s176 + $0x608] sm:$0xff]
                %373 = vst [vmem:[%s177 + $0x308] sm:$0xff] %v372
                %v374 = vld [vmem:[%s176 + $0x620] sm:$0xff]
                %375 = vst [vmem:[%s177 + $0x310] sm:$0xff] %v374
                %v376 = vld [vmem:[%s176 + $0x628] sm:$0xff]
                %377 = vst [vmem:[%s177 + $0x318] sm:$0xff] %v376
                %v378 = vld [vmem:[%s176 + $0x640] sm:$0xff]
                %379 = vst [vmem:[%s177 + $0x320] sm:$0xff] %v378
                %v380 = vld [vmem:[%s176 + $0x648] sm:$0xff]
                %381 = vst [vmem:[%s177 + $0x328] sm:$0xff] %v380
                %v382 = vld [vmem:[%s176 + $0x660] sm:$0xff]
                %383 = vst [vmem:[%s177 + $0x330] sm:$0xff] %v382
                %v384 = vld [vmem:[%s176 + $0x668] sm:$0xff]
                %385 = vst [vmem:[%s177 + $0x338] sm:$0xff] %v384
                %v386 = vld [vmem:[%s176 + $0x680] sm:$0xff]
                %387 = vst [vmem:[%s177 + $0x340] sm:$0xff] %v386
                %v388 = vld [vmem:[%s176 + $0x688] sm:$0xff]
                %389 = vst [vmem:[%s177 + $0x348] sm:$0xff] %v388
                %v390 = vld [vmem:[%s176 + $0x6a0] sm:$0xff]
                %391 = vst [vmem:[%s177 + $0x350] sm:$0xff] %v390
                %v392 = vld [vmem:[%s176 + $0x6a8] sm:$0xff]
                %393 = vst [vmem:[%s177 + $0x358] sm:$0xff] %v392
                %v394 = vld [vmem:[%s176 + $0x6c0] sm:$0xff]
                %395 = vst [vmem:[%s177 + $0x360] sm:$0xff] %v394
                %v396 = vld [vmem:[%s176 + $0x6c8] sm:$0xff]
                %397 = vst [vmem:[%s177 + $0x368] sm:$0xff] %v396
                %v398 = vld [vmem:[%s176 + $0x6e0] sm:$0xff]
                %399 = vst [vmem:[%s177 + $0x370] sm:$0xff] %v398
                %v400 = vld [vmem:[%s176 + $0x6e8] sm:$0xff]
                %401 = vst [vmem:[%s177 + $0x378] sm:$0xff] %v400
                %v402 = vld [vmem:[%s176 + $0x700] sm:$0xff]
                %403 = vst [vmem:[%s177 + $0x380] sm:$0xff] %v402
                %v404 = vld [vmem:[%s176 + $0x708] sm:$0xff]
                %405 = vst [vmem:[%s177 + $0x388] sm:$0xff] %v404
                %v406 = vld [vmem:[%s176 + $0x720] sm:$0xff]
                %407 = vst [vmem:[%s177 + $0x390] sm:$0xff] %v406
                %v408 = vld [vmem:[%s176 + $0x728] sm:$0xff]
                %409 = vst [vmem:[%s177 + $0x398] sm:$0xff] %v408
                %v410 = vld [vmem:[%s176 + $0x740] sm:$0xff]
                %411 = vst [vmem:[%s177 + $0x3a0] sm:$0xff] %v410
                %v412 = vld [vmem:[%s176 + $0x748] sm:$0xff]
                %413 = vst [vmem:[%s177 + $0x3a8] sm:$0xff] %v412
                %v414 = vld [vmem:[%s176 + $0x760] sm:$0xff]
                %415 = vst [vmem:[%s177 + $0x3b0] sm:$0xff] %v414
                %v416 = vld [vmem:[%s176 + $0x768] sm:$0xff]
                %417 = vst [vmem:[%s177 + $0x3b8] sm:$0xff] %v416
                %v418 = vld [vmem:[%s176 + $0x780] sm:$0xff]
                %419 = vst [vmem:[%s177 + $0x3c0] sm:$0xff] %v418
                %v420 = vld [vmem:[%s176 + $0x788] sm:$0xff]
                %421 = vst [vmem:[%s177 + $0x3c8] sm:$0xff] %v420
                %v422 = vld [vmem:[%s176 + $0x7a0] sm:$0xff]
                %423 = vst [vmem:[%s177 + $0x3d0] sm:$0xff] %v422
                %v424 = vld [vmem:[%s176 + $0x7a8] sm:$0xff]
                %425 = vst [vmem:[%s177 + $0x3d8] sm:$0xff] %v424
                %v426 = vld [vmem:[%s176 + $0x7c0] sm:$0xff]
                %427 = vst [vmem:[%s177 + $0x3e0] sm:$0xff] %v426
                %v428 = vld [vmem:[%s176 + $0x7c8] sm:$0xff]
                %429 = vst [vmem:[%s177 + $0x3e8] sm:$0xff] %v428
                %v430 = vld [vmem:[%s176 + $0x7e0] sm:$0xff]
                %431 = vst [vmem:[%s177 + $0x3f0] sm:$0xff] %v430
                %v432 = vld [vmem:[%s176 + $0x7e8] sm:$0xff]
                %433 = vst [vmem:[%s177 + $0x3f8] sm:$0xff] %v432
                %v434 = vld [vmem:[%s176 + $0x800] sm:$0xff]
                %435 = vst [vmem:[%s177 + $0x400] sm:$0xff] %v434
                %v436 = vld [vmem:[%s176 + $0x808] sm:$0xff]
                %437 = vst [vmem:[%s177 + $0x408] sm:$0xff] %v436
                %v438 = vld [vmem:[%s176 + $0x820] sm:$0xff]
                %439 = vst [vmem:[%s177 + $0x410] sm:$0xff] %v438
                %v440 = vld [vmem:[%s176 + $0x828] sm:$0xff]
                %441 = vst [vmem:[%s177 + $0x418] sm:$0xff] %v440
                %v442 = vld [vmem:[%s176 + $0x840] sm:$0xff]
                %443 = vst [vmem:[%s177 + $0x420] sm:$0xff] %v442
                %v444 = vld [vmem:[%s176 + $0x848] sm:$0xff]
                %445 = vst [vmem:[%s177 + $0x428] sm:$0xff] %v444
                %v446 = vld [vmem:[%s176 + $0x860] sm:$0xff]
                %447 = vst [vmem:[%s177 + $0x430] sm:$0xff] %v446
                %v448 = vld [vmem:[%s176 + $0x868] sm:$0xff]
                %449 = vst [vmem:[%s177 + $0x438] sm:$0xff] %v448
                %v450 = vld [vmem:[%s176 + $0x880] sm:$0xff]
                %451 = vst [vmem:[%s177 + $0x440] sm:$0xff] %v450
                %v452 = vld [vmem:[%s176 + $0x888] sm:$0xff]
                %453 = vst [vmem:[%s177 + $0x448] sm:$0xff] %v452
                %v454 = vld [vmem:[%s176 + $0x8a0] sm:$0xff]
                %455 = vst [vmem:[%s177 + $0x450] sm:$0xff] %v454
                %v456 = vld [vmem:[%s176 + $0x8a8] sm:$0xff]
                %457 = vst [vmem:[%s177 + $0x458] sm:$0xff] %v456
                %v458 = vld [vmem:[%s176 + $0x8c0] sm:$0xff]
                %459 = vst [vmem:[%s177 + $0x460] sm:$0xff] %v458
                %v460 = vld [vmem:[%s176 + $0x8c8] sm:$0xff]
                %461 = vst [vmem:[%s177 + $0x468] sm:$0xff] %v460
                %v462 = vld [vmem:[%s176 + $0x8e0] sm:$0xff]
                %463 = vst [vmem:[%s177 + $0x470] sm:$0xff] %v462
                %v464 = vld [vmem:[%s176 + $0x8e8] sm:$0xff]
                %465 = vst [vmem:[%s177 + $0x478] sm:$0xff] %v464
                %v466 = vld [vmem:[%s176 + $0x900] sm:$0xff]
                %467 = vst [vmem:[%s177 + $0x480] sm:$0xff] %v466
                %v468 = vld [vmem:[%s176 + $0x908] sm:$0xff]
                %469 = vst [vmem:[%s177 + $0x488] sm:$0xff] %v468
                %v470 = vld [vmem:[%s176 + $0x920] sm:$0xff]
                %471 = vst [vmem:[%s177 + $0x490] sm:$0xff] %v470
                %v472 = vld [vmem:[%s176 + $0x928] sm:$0xff]
                %473 = vst [vmem:[%s177 + $0x498] sm:$0xff] %v472
                %v474 = vld [vmem:[%s176 + $0x940] sm:$0xff]
                %475 = vst [vmem:[%s177 + $0x4a0] sm:$0xff] %v474
                %v476 = vld [vmem:[%s176 + $0x948] sm:$0xff]
                %477 = vst [vmem:[%s177 + $0x4a8] sm:$0xff] %v476
                %v478 = vld [vmem:[%s176 + $0x960] sm:$0xff]
                %479 = vst [vmem:[%s177 + $0x4b0] sm:$0xff] %v478
                %v480 = vld [vmem:[%s176 + $0x968] sm:$0xff]
                %481 = vst [vmem:[%s177 + $0x4b8] sm:$0xff] %v480
                %v482 = vld [vmem:[%s176 + $0x980] sm:$0xff]
                %483 = vst [vmem:[%s177 + $0x4c0] sm:$0xff] %v482
                %v484 = vld [vmem:[%s176 + $0x988] sm:$0xff]
                %485 = vst [vmem:[%s177 + $0x4c8] sm:$0xff] %v484
                %v486 = vld [vmem:[%s176 + $0x9a0] sm:$0xff]
                %487 = vst [vmem:[%s177 + $0x4d0] sm:$0xff] %v486
                %v488 = vld [vmem:[%s176 + $0x9a8] sm:$0xff]
                %489 = vst [vmem:[%s177 + $0x4d8] sm:$0xff] %v488
                %v490 = vld [vmem:[%s176 + $0x9c0] sm:$0xff]
                %491 = vst [vmem:[%s177 + $0x4e0] sm:$0xff] %v490
                %v492 = vld [vmem:[%s176 + $0x9c8] sm:$0xff]
                %493 = vst [vmem:[%s177 + $0x4e8] sm:$0xff] %v492
                %v494 = vld [vmem:[%s176 + $0x9e0] sm:$0xff]
                %495 = vst [vmem:[%s177 + $0x4f0] sm:$0xff] %v494
                %v496 = vld [vmem:[%s176 + $0x9e8] sm:$0xff]
                %497 = vst [vmem:[%s177 + $0x4f8] sm:$0xff] %v496
                %v498 = vld [vmem:[%s176 + $0xa00] sm:$0xff]
                %499 = vst [vmem:[%s177 + $0x500] sm:$0xff] %v498
                %v500 = vld [vmem:[%s176 + $0xa08] sm:$0xff]
                %501 = vst [vmem:[%s177 + $0x508] sm:$0xff] %v500
                %v502 = vld [vmem:[%s176 + $0xa20] sm:$0xff]
                %503 = vst [vmem:[%s177 + $0x510] sm:$0xff] %v502
                %v504 = vld [vmem:[%s176 + $0xa28] sm:$0xff]
                %505 = vst [vmem:[%s177 + $0x518] sm:$0xff] %v504
                %v506 = vld [vmem:[%s176 + $0xa40] sm:$0xff]
                %507 = vst [vmem:[%s177 + $0x520] sm:$0xff] %v506
                %v508 = vld [vmem:[%s176 + $0xa48] sm:$0xff]
                %509 = vst [vmem:[%s177 + $0x528] sm:$0xff] %v508
                %v510 = vld [vmem:[%s176 + $0xa60] sm:$0xff]
                %511 = vst [vmem:[%s177 + $0x530] sm:$0xff] %v510
                %v512 = vld [vmem:[%s176 + $0xa68] sm:$0xff]
                %513 = vst [vmem:[%s177 + $0x538] sm:$0xff] %v512
                %v514 = vld [vmem:[%s176 + $0xa80] sm:$0xff]
                %515 = vst [vmem:[%s177 + $0x540] sm:$0xff] %v514
                %v516 = vld [vmem:[%s176 + $0xa88] sm:$0xff]
                %517 = vst [vmem:[%s177 + $0x548] sm:$0xff] %v516
                %v518 = vld [vmem:[%s176 + $0xaa0] sm:$0xff]
                %519 = vst [vmem:[%s177 + $0x550] sm:$0xff] %v518
                %v520 = vld [vmem:[%s176 + $0xaa8] sm:$0xff]
                %521 = vst [vmem:[%s177 + $0x558] sm:$0xff] %v520
                %v522 = vld [vmem:[%s176 + $0xac0] sm:$0xff]
                %523 = vst [vmem:[%s177 + $0x560] sm:$0xff] %v522
                %v524 = vld [vmem:[%s176 + $0xac8] sm:$0xff]
                %525 = vst [vmem:[%s177 + $0x568] sm:$0xff] %v524
                %v526 = vld [vmem:[%s176 + $0xae0] sm:$0xff]
                %527 = vst [vmem:[%s177 + $0x570] sm:$0xff] %v526
                %v528 = vld [vmem:[%s176 + $0xae8] sm:$0xff]
                %529 = vst [vmem:[%s177 + $0x578] sm:$0xff] %v528
                %v530 = vld [vmem:[%s176 + $0xb00] sm:$0xff]
                %531 = vst [vmem:[%s177 + $0x580] sm:$0xff] %v530
                %v532 = vld [vmem:[%s176 + $0xb08] sm:$0xff]
                %533 = vst [vmem:[%s177 + $0x588] sm:$0xff] %v532
                %v534 = vld [vmem:[%s176 + $0xb20] sm:$0xff]
                %535 = vst [vmem:[%s177 + $0x590] sm:$0xff] %v534
                %v536 = vld [vmem:[%s176 + $0xb28] sm:$0xff]
                %537 = vst [vmem:[%s177 + $0x598] sm:$0xff] %v536
                %v538 = vld [vmem:[%s176 + $0xb40] sm:$0xff]
                %539 = vst [vmem:[%s177 + $0x5a0] sm:$0xff] %v538
                %v540 = vld [vmem:[%s176 + $0xb48] sm:$0xff]
                %541 = vst [vmem:[%s177 + $0x5a8] sm:$0xff] %v540
                %v542 = vld [vmem:[%s176 + $0xb60] sm:$0xff]
                %543 = vst [vmem:[%s177 + $0x5b0] sm:$0xff] %v542
                %v544 = vld [vmem:[%s176 + $0xb68] sm:$0xff]
                %545 = vst [vmem:[%s177 + $0x5b8] sm:$0xff] %v544
                %v546 = vld [vmem:[%s176 + $0xb80] sm:$0xff]
                %547 = vst [vmem:[%s177 + $0x5c0] sm:$0xff] %v546
                %v548 = vld [vmem:[%s176 + $0xb88] sm:$0xff]
                %549 = vst [vmem:[%s177 + $0x5c8] sm:$0xff] %v548
                %v550 = vld [vmem:[%s176 + $0xba0] sm:$0xff]
                %551 = vst [vmem:[%s177 + $0x5d0] sm:$0xff] %v550
                %v552 = vld [vmem:[%s176 + $0xba8] sm:$0xff]
                %553 = vst [vmem:[%s177 + $0x5d8] sm:$0xff] %v552
                %v554 = vld [vmem:[%s176 + $0xbc0] sm:$0xff]
                %555 = vst [vmem:[%s177 + $0x5e0] sm:$0xff] %v554
                %v556 = vld [vmem:[%s176 + $0xbc8] sm:$0xff]
                %557 = vst [vmem:[%s177 + $0x5e8] sm:$0xff] %v556
                %v558 = vld [vmem:[%s176 + $0xbe0] sm:$0xff]
                %559 = vst [vmem:[%s177 + $0x5f0] sm:$0xff] %v558
                %v560 = vld [vmem:[%s176 + $0xbe8] sm:$0xff]
                %561 = vst [vmem:[%s177 + $0x5f8] sm:$0xff] %v560
                %v562 = vld [vmem:[%s176 + $0xc00] sm:$0xff]
                %563 = vst [vmem:[%s177 + $0x600] sm:$0xff] %v562
                %v564 = vld [vmem:[%s176 + $0xc08] sm:$0xff]
                %565 = vst [vmem:[%s177 + $0x608] sm:$0xff] %v564
                %v566 = vld [vmem:[%s176 + $0xc20] sm:$0xff]
                %567 = vst [vmem:[%s177 + $0x610] sm:$0xff] %v566
                %v568 = vld [vmem:[%s176 + $0xc28] sm:$0xff]
                %569 = vst [vmem:[%s177 + $0x618] sm:$0xff] %v568
                %v570 = vld [vmem:[%s176 + $0xc40] sm:$0xff]
                %571 = vst [vmem:[%s177 + $0x620] sm:$0xff] %v570
                %v572 = vld [vmem:[%s176 + $0xc48] sm:$0xff]
                %573 = vst [vmem:[%s177 + $0x628] sm:$0xff] %v572
                %v574 = vld [vmem:[%s176 + $0xc60] sm:$0xff]
                %575 = vst [vmem:[%s177 + $0x630] sm:$0xff] %v574
                %v576 = vld [vmem:[%s176 + $0xc68] sm:$0xff]
                %577 = vst [vmem:[%s177 + $0x638] sm:$0xff] %v576
                %v578 = vld [vmem:[%s176 + $0xc80] sm:$0xff]
                %579 = vst [vmem:[%s177 + $0x640] sm:$0xff] %v578
                %v580 = vld [vmem:[%s176 + $0xc88] sm:$0xff]
                %581 = vst [vmem:[%s177 + $0x648] sm:$0xff] %v580
                %v582 = vld [vmem:[%s176 + $0xca0] sm:$0xff]
                %583 = vst [vmem:[%s177 + $0x650] sm:$0xff] %v582
                %v584 = vld [vmem:[%s176 + $0xca8] sm:$0xff]
                %585 = vst [vmem:[%s177 + $0x658] sm:$0xff] %v584
                %v586 = vld [vmem:[%s176 + $0xcc0] sm:$0xff]
                %587 = vst [vmem:[%s177 + $0x660] sm:$0xff] %v586
                %v588 = vld [vmem:[%s176 + $0xcc8] sm:$0xff]
                %589 = vst [vmem:[%s177 + $0x668] sm:$0xff] %v588
                %v590 = vld [vmem:[%s176 + $0xce0] sm:$0xff]
                %591 = vst [vmem:[%s177 + $0x670] sm:$0xff] %v590
                %v592 = vld [vmem:[%s176 + $0xce8] sm:$0xff]
                %593 = vst [vmem:[%s177 + $0x678] sm:$0xff] %v592
                %v594 = vld [vmem:[%s176 + $0xd00] sm:$0xff]
                %595 = vst [vmem:[%s177 + $0x680] sm:$0xff] %v594
                %v596 = vld [vmem:[%s176 + $0xd08] sm:$0xff]
                %597 = vst [vmem:[%s177 + $0x688] sm:$0xff] %v596
                %v598 = vld [vmem:[%s176 + $0xd20] sm:$0xff]
                %599 = vst [vmem:[%s177 + $0x690] sm:$0xff] %v598
                %v600 = vld [vmem:[%s176 + $0xd28] sm:$0xff]
                %601 = vst [vmem:[%s177 + $0x698] sm:$0xff] %v600
                %v602 = vld [vmem:[%s176 + $0xd40] sm:$0xff]
                %603 = vst [vmem:[%s177 + $0x6a0] sm:$0xff] %v602
                %v604 = vld [vmem:[%s176 + $0xd48] sm:$0xff]
                %605 = vst [vmem:[%s177 + $0x6a8] sm:$0xff] %v604
                %v606 = vld [vmem:[%s176 + $0xd60] sm:$0xff]
                %607 = vst [vmem:[%s177 + $0x6b0] sm:$0xff] %v606
                %v608 = vld [vmem:[%s176 + $0xd68] sm:$0xff]
                %609 = vst [vmem:[%s177 + $0x6b8] sm:$0xff] %v608
                %v610 = vld [vmem:[%s176 + $0xd80] sm:$0xff]
                %611 = vst [vmem:[%s177 + $0x6c0] sm:$0xff] %v610
                %v612 = vld [vmem:[%s176 + $0xd88] sm:$0xff]
                %613 = vst [vmem:[%s177 + $0x6c8] sm:$0xff] %v612
                %v614 = vld [vmem:[%s176 + $0xda0] sm:$0xff]
                %615 = vst [vmem:[%s177 + $0x6d0] sm:$0xff] %v614
                %v616 = vld [vmem:[%s176 + $0xda8] sm:$0xff]
                %617 = vst [vmem:[%s177 + $0x6d8] sm:$0xff] %v616
                %v618 = vld [vmem:[%s176 + $0xdc0] sm:$0xff]
                %619 = vst [vmem:[%s177 + $0x6e0] sm:$0xff] %v618
                %v620 = vld [vmem:[%s176 + $0xdc8] sm:$0xff]
                %621 = vst [vmem:[%s177 + $0x6e8] sm:$0xff] %v620
                %v622 = vld [vmem:[%s176 + $0xde0] sm:$0xff]
                %623 = vst [vmem:[%s177 + $0x6f0] sm:$0xff] %v622
                %v624 = vld [vmem:[%s176 + $0xde8] sm:$0xff]
                %625 = vst [vmem:[%s177 + $0x6f8] sm:$0xff] %v624
                %v626 = vld [vmem:[%s176 + $0xe00] sm:$0xff]
                %627 = vst [vmem:[%s177 + $0x700] sm:$0xff] %v626
                %v628 = vld [vmem:[%s176 + $0xe08] sm:$0xff]
                %629 = vst [vmem:[%s177 + $0x708] sm:$0xff] %v628
                %v630 = vld [vmem:[%s176 + $0xe20] sm:$0xff]
                %631 = vst [vmem:[%s177 + $0x710] sm:$0xff] %v630
                %v632 = vld [vmem:[%s176 + $0xe28] sm:$0xff]
                %633 = vst [vmem:[%s177 + $0x718] sm:$0xff] %v632
                %v634 = vld [vmem:[%s176 + $0xe40] sm:$0xff]
                %635 = vst [vmem:[%s177 + $0x720] sm:$0xff] %v634
                %v636 = vld [vmem:[%s176 + $0xe48] sm:$0xff]
                %637 = vst [vmem:[%s177 + $0x728] sm:$0xff] %v636
                %v638 = vld [vmem:[%s176 + $0xe60] sm:$0xff]
                %639 = vst [vmem:[%s177 + $0x730] sm:$0xff] %v638
                %v640 = vld [vmem:[%s176 + $0xe68] sm:$0xff]
                %641 = vst [vmem:[%s177 + $0x738] sm:$0xff] %v640
                %v642 = vld [vmem:[%s176 + $0xe80] sm:$0xff]
                %643 = vst [vmem:[%s177 + $0x740] sm:$0xff] %v642
                %v644 = vld [vmem:[%s176 + $0xe88] sm:$0xff]
                %645 = vst [vmem:[%s177 + $0x748] sm:$0xff] %v644
                %v646 = vld [vmem:[%s176 + $0xea0] sm:$0xff]
                %647 = vst [vmem:[%s177 + $0x750] sm:$0xff] %v646
                %v648 = vld [vmem:[%s176 + $0xea8] sm:$0xff]
                %649 = vst [vmem:[%s177 + $0x758] sm:$0xff] %v648
                %v650 = vld [vmem:[%s176 + $0xec0] sm:$0xff]
                %651 = vst [vmem:[%s177 + $0x760] sm:$0xff] %v650
                %v652 = vld [vmem:[%s176 + $0xec8] sm:$0xff]
                %653 = vst [vmem:[%s177 + $0x768] sm:$0xff] %v652
                %v654 = vld [vmem:[%s176 + $0xee0] sm:$0xff]
                %655 = vst [vmem:[%s177 + $0x770] sm:$0xff] %v654
                %v656 = vld [vmem:[%s176 + $0xee8] sm:$0xff]
                %657 = vst [vmem:[%s177 + $0x778] sm:$0xff] %v656
                %v658 = vld [vmem:[%s176 + $0xf00] sm:$0xff]
                %659 = vst [vmem:[%s177 + $0x780] sm:$0xff] %v658
                %v660 = vld [vmem:[%s176 + $0xf08] sm:$0xff]
                %661 = vst [vmem:[%s177 + $0x788] sm:$0xff] %v660
                %v662 = vld [vmem:[%s176 + $0xf20] sm:$0xff]
                %663 = vst [vmem:[%s177 + $0x790] sm:$0xff] %v662
                %v664 = vld [vmem:[%s176 + $0xf28] sm:$0xff]
                %665 = vst [vmem:[%s177 + $0x798] sm:$0xff] %v664
                %v666 = vld [vmem:[%s176 + $0xf40] sm:$0xff]
                %667 = vst [vmem:[%s177 + $0x7a0] sm:$0xff] %v666
                %v668 = vld [vmem:[%s176 + $0xf48] sm:$0xff]
                %669 = vst [vmem:[%s177 + $0x7a8] sm:$0xff] %v668
                %v670 = vld [vmem:[%s176 + $0xf60] sm:$0xff]
                %671 = vst [vmem:[%s177 + $0x7b0] sm:$0xff] %v670
                %v672 = vld [vmem:[%s176 + $0xf68] sm:$0xff]
                %673 = vst [vmem:[%s177 + $0x7b8] sm:$0xff] %v672
                %v674 = vld [vmem:[%s176 + $0xf80] sm:$0xff]
                %675 = vst [vmem:[%s177 + $0x7c0] sm:$0xff] %v674
                %v676 = vld [vmem:[%s176 + $0xf88] sm:$0xff]
                %677 = vst [vmem:[%s177 + $0x7c8] sm:$0xff] %v676
                %v678 = vld [vmem:[%s176 + $0xfa0] sm:$0xff]
                %679 = vst [vmem:[%s177 + $0x7d0] sm:$0xff] %v678
                %v680 = vld [vmem:[%s176 + $0xfa8] sm:$0xff]
                %681 = vst [vmem:[%s177 + $0x7d8] sm:$0xff] %v680
                %v682 = vld [vmem:[%s176 + $0xfc0] sm:$0xff]
                %683 = vst [vmem:[%s177 + $0x7e0] sm:$0xff] %v682
                %v684 = vld [vmem:[%s176 + $0xfc8] sm:$0xff]
                %685 = vst [vmem:[%s177 + $0x7e8] sm:$0xff] %v684
                %v686 = vld [vmem:[%s176 + $0xfe0] sm:$0xff]
                %687 = vst [vmem:[%s177 + $0x7f0] sm:$0xff] %v686
                %v688 = vld [vmem:[%s176 + $0xfe8] sm:$0xff]
                %689 = vst [vmem:[%s177 + $0x7f8] sm:$0xff] %v688
              $region37: #{decoder_forward_fused.6} parent=31 // loop_footer
                %s175 = sadd.s32 1, %s171
              $region38: #{decoder_forward_fused.6} parent=31 // loop_footer_branch
                %170 = sbr.rel target = $region34
              $region39: #{decoder_forward_fused.6} parent=31 // loop_exit
                _
            $region32: #{decoder_forward_fused.6} parent=27 // pred_fallthru
              _
            // Predicated region
            $region40: #{decoder_forward_fused.6} parent=27 // pred_check
              _
            $region41: #{decoder_forward_fused.6} parent=27 // pred_check_branch
              %691 = sbr.rel target = $region43
            $region42: #{decoder_forward_fused.6} parent=27 // pred_region
              _
            $region43: #{decoder_forward_fused.6} parent=27 // pred_fallthru
              _
          $region28: #{decoder_forward_fused.6} parent=23 // pred_fallthru
            _
          %692 = vnop
        $region24: #{decoder_forward_fused.6} parent=19 // pred_fallthru
          _
        // Predicated region
        $region44: #{decoder_forward_fused.6} parent=19 // pred_check
          %p693 = pneg %p93
        $region45: #{decoder_forward_fused.6} parent=19 // pred_check_branch
          %695 = sbr.rel (%p693) target = $region47
        $region46: #{decoder_forward_fused.6} parent=19 // pred_region
          %s696 = smul.u32 4, %s17
          %p697 = scmp.lt.s32.totalorder %s696, 7
          %s698 = scalar_select %p697, %s696, 7
          %s699 = scalar_lea.vmem %s2, %s698
          %s700 = smul.u32 4, %s17
        $region47: #{decoder_forward_fused.6} parent=19 // pred_fallthru
          _
      $region20: #{decoder_forward_fused.6} parent=5 // pred_fallthru
        _
      %p701 = scmp.le.s32.totalorder 1, %s9
      %p702 = scmp.lt.s32.totalorder %s9, 3
      %p703 = pnand %p701, %p702
      %p704 = pneg %p703
      // Predicated region
      $region48: #{decoder_forward_fused.6} parent=5 // pred_check
        _
      $region49: #{decoder_forward_fused.6} parent=5 // pred_check_branch
        %706 = sbr.rel (%p703) target = $region51
      $region50: #{decoder_forward_fused.6} parent=5 // pred_region
        %s707 = ssub.s32 %s9, 1
        %s708 = sand.u32 %s60, 1
        %s709 = sand.u32 %s60, 1
        %s710 = smul.addr %s709, 2048
        %s711 = scalar_lea.vmem [#allocation2], %s710
        // Predicated region
        $region52: #{decoder_forward_fused.6} parent=50 // pred_check
          %p712 = pneg %p73
        $region53: #{decoder_forward_fused.6} parent=50 // pred_check_branch
          %714 = sbr.rel (%p712) target = $region55
        $region54: #{decoder_forward_fused.6} parent=50 // pred_region
          _
        $region55: #{decoder_forward_fused.6} parent=50 // pred_fallthru
          _
        %s715 = smul.u32 4, %s18
        %p716 = scmp.lt.s32.totalorder %s715, 3
        %s717 = scalar_select %p716, %s715, 3
        %s718 = smul.addr %s717, 8
        %s719 = smul.addr %s718, 4
        %s720 = scalar_lea.vmem %s0, %s719
        %p721 = pneg %p47
        %p722 = pneg %p44
        %s723 = sand.u32 %s60, 1
        %s724 = sand.u32 %s60, 1
        %s725 = smul.addr %s724, 2048
        %s726 = scalar_lea.vmem [#allocation2], %s725
        %p727 = pneg %p73
        %p728 = pneg %p70
        %s729 = smul.u32 4, %s19
        %p730 = scmp.lt.s32.totalorder %s729, 7
        %s731 = scalar_select %p730, %s729, 7
        %s732 = scalar_lea.vmem %s2, %s731
        %p733 = pneg %p99
        %p734 = pneg %p96
        %p735 = pneg %p127
        %p736 = pneg %p124
        %s737 = sand.u32 %s114, 1
        %s738 = sand.u32 %s114, 1
        %s739 = smul.addr %s738, 128
        %s740 = scalar_lea.vmem [#allocation3], %s739
        %s741 = smul.u32 4, %s18
        %p742 = scmp.lt.s32.totalorder %s741, 3
        %s743 = scalar_select %p742, %s741, 3
        %s744 = smul.addr %s743, 8
        %s745 = smul.addr %s744, 4
        %s746 = scalar_lea.vmem %s0, %s745
        %s747 = smul.u32 4, %s18
        %s748 = smul.u32 4, %s19
        %s749 = smul.u32 4, %s19
        %p750 = scmp.lt.s32.totalorder %s749, 7
        %s751 = scalar_select %p750, %s749, 7
        %s752 = scalar_lea.vmem %s2, %s751
        %s753 = smul.u32 4, %s19
        %s754 = smul.u32 4, %s18
        %s755 = smul.u32 4, %s19
        %v756 = vld [vmem:[%s746] sm:$0xff]
        %v757 = vld [vmem:[%s746 + $0x8] sm:$0xff]
        %v758 = vld [vmem:[%s746 + $0x10] sm:$0xff]
        %v759 = vld [vmem:[%s746 + $0x18] sm:$0xff]
        %v760 = vld [vmem:[%s746 + $0x20] sm:$0xff]
        %v761 = vld [vmem:[%s746 + $0x28] sm:$0xff]
        %v762 = vld [vmem:[%s746 + $0x30] sm:$0xff]
        %v763 = vld [vmem:[%s746 + $0x38] sm:$0xff]
        %v764 = vld [vmem:[%s746 + $0x40] sm:$0xff]
        %v765 = vld [vmem:[%s746 + $0x48] sm:$0xff]
        %v766 = vld [vmem:[%s746 + $0x50] sm:$0xff]
        %v767 = vld [vmem:[%s746 + $0x58] sm:$0xff]
        %v768 = vld [vmem:[%s746 + $0x60] sm:$0xff]
        %v769 = vld [vmem:[%s746 + $0x68] sm:$0xff]
        %v770 = vld [vmem:[%s746 + $0x70] sm:$0xff]
        %v771 = vld [vmem:[%s746 + $0x78] sm:$0xff]
        %v772 = vld [vmem:[%s711] sm:$0xff]
        %v773 = vld [vmem:[%s711 + $0x8] sm:$0xff]
        %v774 = vld [vmem:[%s711 + $0x10] sm:$0xff]
        %v775 = vld [vmem:[%s711 + $0x18] sm:$0xff]
        %v776 = vld [vmem:[%s711 + $0x20] sm:$0xff]
        %v777 = vld [vmem:[%s711 + $0x28] sm:$0xff]
        %v778 = vld [vmem:[%s711 + $0x30] sm:$0xff]
        %v779 = vld [vmem:[%s711 + $0x38] sm:$0xff]
        %v780 = vld [vmem:[%s711 + $0x40] sm:$0xff]
        %v781 = vld [vmem:[%s711 + $0x48] sm:$0xff]
        %v782 = vld [vmem:[%s711 + $0x50] sm:$0xff]
        %v783 = vld [vmem:[%s711 + $0x58] sm:$0xff]
        %v784 = vld [vmem:[%s711 + $0x60] sm:$0xff]
        %v785 = vld [vmem:[%s711 + $0x68] sm:$0xff]
        %v786 = vld [vmem:[%s711 + $0x70] sm:$0xff]
        %v787 = vld [vmem:[%s711 + $0x78] sm:$0xff]
        %v788 = vld [vmem:[%s711 + $0x80] sm:$0xff]
        %v789 = vld [vmem:[%s711 + $0x88] sm:$0xff]
        %v790 = vld [vmem:[%s711 + $0x90] sm:$0xff]
        %v791 = vld [vmem:[%s711 + $0x98] sm:$0xff]
        %v792 = vld [vmem:[%s711 + $0xa0] sm:$0xff]
        %v793 = vld [vmem:[%s711 + $0xa8] sm:$0xff]
        %v794 = vld [vmem:[%s711 + $0xb0] sm:$0xff]
        %v795 = vld [vmem:[%s711 + $0xb8] sm:$0xff]
        %v796 = vld [vmem:[%s711 + $0xc0] sm:$0xff]
        %v797 = vld [vmem:[%s711 + $0xc8] sm:$0xff]
        %v798 = vld [vmem:[%s711 + $0xd0] sm:$0xff]
        %v799 = vld [vmem:[%s711 + $0xd8] sm:$0xff]
        %v800 = vld [vmem:[%s711 + $0xe0] sm:$0xff]
        %v801 = vld [vmem:[%s711 + $0xe8] sm:$0xff]
        %v802 = vld [vmem:[%s711 + $0xf0] sm:$0xff]
        %v803 = vld [vmem:[%s711 + $0xf8] sm:$0xff]
        %v804 = vld [vmem:[%s711 + $0x100] sm:$0xff]
        %v805 = vld [vmem:[%s711 + $0x108] sm:$0xff]
        %v806 = vld [vmem:[%s711 + $0x110] sm:$0xff]
        %v807 = vld [vmem:[%s711 + $0x118] sm:$0xff]
        %v808 = vld [vmem:[%s711 + $0x120] sm:$0xff]
        %v809 = vld [vmem:[%s711 + $0x128] sm:$0xff]
        %v810 = vld [vmem:[%s711 + $0x130] sm:$0xff]
        %v811 = vld [vmem:[%s711 + $0x138] sm:$0xff]
        %v812 = vld [vmem:[%s711 + $0x140] sm:$0xff]
        %v813 = vld [vmem:[%s711 + $0x148] sm:$0xff]
        %v814 = vld [vmem:[%s711 + $0x150] sm:$0xff]
        %v815 = vld [vmem:[%s711 + $0x158] sm:$0xff]
        %v816 = vld [vmem:[%s711 + $0x160] sm:$0xff]
        %v817 = vld [vmem:[%s711 + $0x168] sm:$0xff]
        %v818 = vld [vmem:[%s711 + $0x170] sm:$0xff]
        %v819 = vld [vmem:[%s711 + $0x178] sm:$0xff]
        %v820 = vld [vmem:[%s711 + $0x180] sm:$0xff]
        %v821 = vld [vmem:[%s711 + $0x188] sm:$0xff]
        %v822 = vld [vmem:[%s711 + $0x190] sm:$0xff]
        %v823 = vld [vmem:[%s711 + $0x198] sm:$0xff]
        %v824 = vld [vmem:[%s711 + $0x1a0] sm:$0xff]
        %v825 = vld [vmem:[%s711 + $0x1a8] sm:$0xff]
        %v826 = vld [vmem:[%s711 + $0x1b0] sm:$0xff]
        %v827 = vld [vmem:[%s711 + $0x1b8] sm:$0xff]
        %v828 = vld [vmem:[%s711 + $0x1c0] sm:$0xff]
        %v829 = vld [vmem:[%s711 + $0x1c8] sm:$0xff]
        %v830 = vld [vmem:[%s711 + $0x1d0] sm:$0xff]
        %v831 = vld [vmem:[%s711 + $0x1d8] sm:$0xff]
        %v832 = vld [vmem:[%s711 + $0x1e0] sm:$0xff]
        %v833 = vld [vmem:[%s711 + $0x1e8] sm:$0xff]
        %v834 = vld [vmem:[%s711 + $0x1f0] sm:$0xff]
        %v835 = vld [vmem:[%s711 + $0x1f8] sm:$0xff]
        %v836 = vld [vmem:[%s711 + $0x200] sm:$0xff]
        %v837 = vld [vmem:[%s711 + $0x208] sm:$0xff]
        %v838 = vld [vmem:[%s711 + $0x210] sm:$0xff]
        %v839 = vld [vmem:[%s711 + $0x218] sm:$0xff]
        %v840 = vld [vmem:[%s711 + $0x220] sm:$0xff]
        %v841 = vld [vmem:[%s711 + $0x228] sm:$0xff]
        %v842 = vld [vmem:[%s711 + $0x230] sm:$0xff]
        %v843 = vld [vmem:[%s711 + $0x238] sm:$0xff]
        %v844 = vld [vmem:[%s711 + $0x240] sm:$0xff]
        %v845 = vld [vmem:[%s711 + $0x248] sm:$0xff]
        %v846 = vld [vmem:[%s711 + $0x250] sm:$0xff]
        %v847 = vld [vmem:[%s711 + $0x258] sm:$0xff]
        %v848 = vld [vmem:[%s711 + $0x260] sm:$0xff]
        %v849 = vld [vmem:[%s711 + $0x268] sm:$0xff]
        %v850 = vld [vmem:[%s711 + $0x270] sm:$0xff]
        %v851 = vld [vmem:[%s711 + $0x278] sm:$0xff]
        %v852 = vld [vmem:[%s711 + $0x280] sm:$0xff]
        %v853 = vld [vmem:[%s711 + $0x288] sm:$0xff]
        %v854 = vld [vmem:[%s711 + $0x290] sm:$0xff]
        %v855 = vld [vmem:[%s711 + $0x298] sm:$0xff]
        %v856 = vld [vmem:[%s711 + $0x2a0] sm:$0xff]
        %v857 = vld [vmem:[%s711 + $0x2a8] sm:$0xff]
        %v858 = vld [vmem:[%s711 + $0x2b0] sm:$0xff]
        %v859 = vld [vmem:[%s711 + $0x2b8] sm:$0xff]
        %v860 = vld [vmem:[%s711 + $0x2c0] sm:$0xff]
        %v861 = vld [vmem:[%s711 + $0x2c8] sm:$0xff]
        %v862 = vld [vmem:[%s711 + $0x2d0] sm:$0xff]
        %v863 = vld [vmem:[%s711 + $0x2d8] sm:$0xff]
        %v864 = vld [vmem:[%s711 + $0x2e0] sm:$0xff]
        %v865 = vld [vmem:[%s711 + $0x2e8] sm:$0xff]
        %v866 = vld [vmem:[%s711 + $0x2f0] sm:$0xff]
        %v867 = vld [vmem:[%s711 + $0x2f8] sm:$0xff]
        %v868 = vld [vmem:[%s711 + $0x300] sm:$0xff]
        %v869 = vld [vmem:[%s711 + $0x308] sm:$0xff]
        %v870 = vld [vmem:[%s711 + $0x310] sm:$0xff]
        %v871 = vld [vmem:[%s711 + $0x318] sm:$0xff]
        %v872 = vld [vmem:[%s711 + $0x320] sm:$0xff]
        %v873 = vld [vmem:[%s711 + $0x328] sm:$0xff]
        %v874 = vld [vmem:[%s711 + $0x330] sm:$0xff]
        %v875 = vld [vmem:[%s711 + $0x338] sm:$0xff]
        %v876 = vld [vmem:[%s711 + $0x340] sm:$0xff]
        %v877 = vld [vmem:[%s711 + $0x348] sm:$0xff]
        %v878 = vld [vmem:[%s711 + $0x350] sm:$0xff]
        %v879 = vld [vmem:[%s711 + $0x358] sm:$0xff]
        %v880 = vld [vmem:[%s711 + $0x360] sm:$0xff]
        %v881 = vld [vmem:[%s711 + $0x368] sm:$0xff]
        %v882 = vld [vmem:[%s711 + $0x370] sm:$0xff]
        %v883 = vld [vmem:[%s711 + $0x378] sm:$0xff]
        %v884 = vld [vmem:[%s711 + $0x380] sm:$0xff]
        %v885 = vld [vmem:[%s711 + $0x388] sm:$0xff]
        %v886 = vld [vmem:[%s711 + $0x390] sm:$0xff]
        %v887 = vld [vmem:[%s711 + $0x398] sm:$0xff]
        %v888 = vld [vmem:[%s711 + $0x3a0] sm:$0xff]
        %v889 = vld [vmem:[%s711 + $0x3a8] sm:$0xff]
        %v890 = vld [vmem:[%s711 + $0x3b0] sm:$0xff]
        %v891 = vld [vmem:[%s711 + $0x3b8] sm:$0xff]
        %v892 = vld [vmem:[%s711 + $0x3c0] sm:$0xff]
        %v893 = vld [vmem:[%s711 + $0x3c8] sm:$0xff]
        %v894 = vld [vmem:[%s711 + $0x3d0] sm:$0xff]
        %v895 = vld [vmem:[%s711 + $0x3d8] sm:$0xff]
        %v896 = vld [vmem:[%s711 + $0x3e0] sm:$0xff]
        %v897 = vld [vmem:[%s711 + $0x3e8] sm:$0xff]
        %v898 = vld [vmem:[%s711 + $0x3f0] sm:$0xff]
        %v899 = vld [vmem:[%s711 + $0x3f8] sm:$0xff]
        %v900 = vld [vmem:[%s711 + $0x400] sm:$0xff]
        %v901 = vld [vmem:[%s711 + $0x408] sm:$0xff]
        %v902 = vld [vmem:[%s711 + $0x410] sm:$0xff]
        %v903 = vld [vmem:[%s711 + $0x418] sm:$0xff]
        %v904 = vld [vmem:[%s711 + $0x420] sm:$0xff]
        %v905 = vld [vmem:[%s711 + $0x428] sm:$0xff]
        %v906 = vld [vmem:[%s711 + $0x430] sm:$0xff]
        %v907 = vld [vmem:[%s711 + $0x438] sm:$0xff]
        %v908 = vld [vmem:[%s711 + $0x440] sm:$0xff]
        %v909 = vld [vmem:[%s711 + $0x448] sm:$0xff]
        %v910 = vld [vmem:[%s711 + $0x450] sm:$0xff]
        %v911 = vld [vmem:[%s711 + $0x458] sm:$0xff]
        %v912 = vld [vmem:[%s711 + $0x460] sm:$0xff]
        %v913 = vld [vmem:[%s711 + $0x468] sm:$0xff]
        %v914 = vld [vmem:[%s711 + $0x470] sm:$0xff]
        %v915 = vld [vmem:[%s711 + $0x478] sm:$0xff]
        %v916 = vld [vmem:[%s711 + $0x480] sm:$0xff]
        %v917 = vld [vmem:[%s711 + $0x488] sm:$0xff]
        %v918 = vld [vmem:[%s711 + $0x490] sm:$0xff]
        %v919 = vld [vmem:[%s711 + $0x498] sm:$0xff]
        %v920 = vld [vmem:[%s711 + $0x4a0] sm:$0xff]
        %v921 = vld [vmem:[%s711 + $0x4a8] sm:$0xff]
        %v922 = vld [vmem:[%s711 + $0x4b0] sm:$0xff]
        %v923 = vld [vmem:[%s711 + $0x4b8] sm:$0xff]
        %v924 = vld [vmem:[%s711 + $0x4c0] sm:$0xff]
        %v925 = vld [vmem:[%s711 + $0x4c8] sm:$0xff]
        %v926 = vld [vmem:[%s711 + $0x4d0] sm:$0xff]
        %v927 = vld [vmem:[%s711 + $0x4d8] sm:$0xff]
        %v928 = vld [vmem:[%s711 + $0x4e0] sm:$0xff]
        %v929 = vld [vmem:[%s711 + $0x4e8] sm:$0xff]
        %v930 = vld [vmem:[%s711 + $0x4f0] sm:$0xff]
        %v931 = vld [vmem:[%s711 + $0x4f8] sm:$0xff]
        %v932 = vld [vmem:[%s711 + $0x500] sm:$0xff]
        %v933 = vld [vmem:[%s711 + $0x508] sm:$0xff]
        %v934 = vld [vmem:[%s711 + $0x510] sm:$0xff]
        %v935 = vld [vmem:[%s711 + $0x518] sm:$0xff]
        %v936 = vld [vmem:[%s711 + $0x520] sm:$0xff]
        %v937 = vld [vmem:[%s711 + $0x528] sm:$0xff]
        %v938 = vld [vmem:[%s711 + $0x530] sm:$0xff]
        %v939 = vld [vmem:[%s711 + $0x538] sm:$0xff]
        %v940 = vld [vmem:[%s711 + $0x540] sm:$0xff]
        %v941 = vld [vmem:[%s711 + $0x548] sm:$0xff]
        %v942 = vld [vmem:[%s711 + $0x550] sm:$0xff]
        %v943 = vld [vmem:[%s711 + $0x558] sm:$0xff]
        %v944 = vld [vmem:[%s711 + $0x560] sm:$0xff]
        %v945 = vld [vmem:[%s711 + $0x568] sm:$0xff]
        %v946 = vld [vmem:[%s711 + $0x570] sm:$0xff]
        %v947 = vld [vmem:[%s711 + $0x578] sm:$0xff]
        %v948 = vld [vmem:[%s711 + $0x580] sm:$0xff]
        %v949 = vld [vmem:[%s711 + $0x588] sm:$0xff]
        %v950 = vld [vmem:[%s711 + $0x590] sm:$0xff]
        %v951 = vld [vmem:[%s711 + $0x598] sm:$0xff]
        %v952 = vld [vmem:[%s711 + $0x5a0] sm:$0xff]
        %v953 = vld [vmem:[%s711 + $0x5a8] sm:$0xff]
        %v954 = vld [vmem:[%s711 + $0x5b0] sm:$0xff]
        %v955 = vld [vmem:[%s711 + $0x5b8] sm:$0xff]
        %v956 = vld [vmem:[%s711 + $0x5c0] sm:$0xff]
        %v957 = vld [vmem:[%s711 + $0x5c8] sm:$0xff]
        %v958 = vld [vmem:[%s711 + $0x5d0] sm:$0xff]
        %v959 = vld [vmem:[%s711 + $0x5d8] sm:$0xff]
        %v960 = vld [vmem:[%s711 + $0x5e0] sm:$0xff]
        %v961 = vld [vmem:[%s711 + $0x5e8] sm:$0xff]
        %v962 = vld [vmem:[%s711 + $0x5f0] sm:$0xff]
        %v963 = vld [vmem:[%s711 + $0x5f8] sm:$0xff]
        %v964 = vld [vmem:[%s711 + $0x600] sm:$0xff]
        %v965 = vld [vmem:[%s711 + $0x608] sm:$0xff]
        %v966 = vld [vmem:[%s711 + $0x610] sm:$0xff]
        %v967 = vld [vmem:[%s711 + $0x618] sm:$0xff]
        %v968 = vld [vmem:[%s711 + $0x620] sm:$0xff]
        %v969 = vld [vmem:[%s711 + $0x628] sm:$0xff]
        %v970 = vld [vmem:[%s711 + $0x630] sm:$0xff]
        %v971 = vld [vmem:[%s711 + $0x638] sm:$0xff]
        %v972 = vld [vmem:[%s711 + $0x640] sm:$0xff]
        %v973 = vld [vmem:[%s711 + $0x648] sm:$0xff]
        %v974 = vld [vmem:[%s711 + $0x650] sm:$0xff]
        %v975 = vld [vmem:[%s711 + $0x658] sm:$0xff]
        %v976 = vld [vmem:[%s711 + $0x660] sm:$0xff]
        %v977 = vld [vmem:[%s711 + $0x668] sm:$0xff]
        %v978 = vld [vmem:[%s711 + $0x670] sm:$0xff]
        %v979 = vld [vmem:[%s711 + $0x678] sm:$0xff]
        %v980 = vld [vmem:[%s711 + $0x680] sm:$0xff]
        %v981 = vld [vmem:[%s711 + $0x688] sm:$0xff]
        %v982 = vld [vmem:[%s711 + $0x690] sm:$0xff]
        %v983 = vld [vmem:[%s711 + $0x698] sm:$0xff]
        %v984 = vld [vmem:[%s711 + $0x6a0] sm:$0xff]
        %v985 = vld [vmem:[%s711 + $0x6a8] sm:$0xff]
        %v986 = vld [vmem:[%s711 + $0x6b0] sm:$0xff]
        %v987 = vld [vmem:[%s711 + $0x6b8] sm:$0xff]
        %v988 = vld [vmem:[%s711 + $0x6c0] sm:$0xff]
        %v989 = vld [vmem:[%s711 + $0x6c8] sm:$0xff]
        %v990 = vld [vmem:[%s711 + $0x6d0] sm:$0xff]
        %v991 = vld [vmem:[%s711 + $0x6d8] sm:$0xff]
        %v992 = vld [vmem:[%s711 + $0x6e0] sm:$0xff]
        %v993 = vld [vmem:[%s711 + $0x6e8] sm:$0xff]
        %v994 = vld [vmem:[%s711 + $0x6f0] sm:$0xff]
        %v995 = vld [vmem:[%s711 + $0x6f8] sm:$0xff]
        %v996 = vld [vmem:[%s711 + $0x700] sm:$0xff]
        %v997 = vld [vmem:[%s711 + $0x708] sm:$0xff]
        %v998 = vld [vmem:[%s711 + $0x710] sm:$0xff]
        %v999 = vld [vmem:[%s711 + $0x718] sm:$0xff]
        %v1000 = vld [vmem:[%s711 + $0x720] sm:$0xff]
        %v1001 = vld [vmem:[%s711 + $0x728] sm:$0xff]
        %v1002 = vld [vmem:[%s711 + $0x730] sm:$0xff]
        %v1003 = vld [vmem:[%s711 + $0x738] sm:$0xff]
        %v1004 = vld [vmem:[%s711 + $0x740] sm:$0xff]
        %v1005 = vld [vmem:[%s711 + $0x748] sm:$0xff]
        %v1006 = vld [vmem:[%s711 + $0x750] sm:$0xff]
        %v1007 = vld [vmem:[%s711 + $0x758] sm:$0xff]
        %v1008 = vld [vmem:[%s711 + $0x760] sm:$0xff]
        %v1009 = vld [vmem:[%s711 + $0x768] sm:$0xff]
        %v1010 = vld [vmem:[%s711 + $0x770] sm:$0xff]
        %v1011 = vld [vmem:[%s711 + $0x778] sm:$0xff]
        %v1012 = vld [vmem:[%s711 + $0x780] sm:$0xff]
        %v1013 = vld [vmem:[%s711 + $0x788] sm:$0xff]
        %v1014 = vld [vmem:[%s711 + $0x790] sm:$0xff]
        %v1015 = vld [vmem:[%s711 + $0x798] sm:$0xff]
        %v1016 = vld [vmem:[%s711 + $0x7a0] sm:$0xff]
        %v1017 = vld [vmem:[%s711 + $0x7a8] sm:$0xff]
        %v1018 = vld [vmem:[%s711 + $0x7b0] sm:$0xff]
        %v1019 = vld [vmem:[%s711 + $0x7b8] sm:$0xff]
        %v1020 = vld [vmem:[%s711 + $0x7c0] sm:$0xff]
        %v1021 = vld [vmem:[%s711 + $0x7c8] sm:$0xff]
        %v1022 = vld [vmem:[%s711 + $0x7d0] sm:$0xff]
        %v1023 = vld [vmem:[%s711 + $0x7d8] sm:$0xff]
        %v1024 = vld [vmem:[%s711 + $0x7e0] sm:$0xff]
        %v1025 = vld [vmem:[%s711 + $0x7e8] sm:$0xff]
        %v1026 = vld [vmem:[%s711 + $0x7f0] sm:$0xff]
        %v1027 = vld [vmem:[%s711 + $0x7f8] sm:$0xff]
        %v1028 = vld [vmem:[%s752] sm:$0xf]
        %v1030 = vlaneseq
        %v1031 = vshrl.u32 %v1030, 7
        %v1032 = vsub.s32 0, %v1031
        %v1033 = vrot.slane %v1028, %v1032
        %v1034 = vlaneseq
        %v1035 = vshrl.u32 %v1034, 7
        %v1036 = vsub.s32 1, %v1035
        %v1037 = vrot.slane %v1028, %v1036
        %v1038 = vlaneseq
        %v1039 = vshrl.u32 %v1038, 7
        %v1040 = vsub.s32 2, %v1039
        %v1041 = vrot.slane %v1028, %v1040
        %v1042 = vlaneseq
        %v1043 = vshrl.u32 %v1042, 7
        %v1044 = vsub.s32 3, %v1043
        %v1045 = vrot.slane %v1028, %v1044
        %v1066 = vunpack.c.l.b16 %v756
        %v1067 = vunpack.c.h.b16 %v756
        %v1068 = vunpack.c.l.b16 %v757
        %v1069 = vunpack.c.h.b16 %v757
        %v1070 = vunpack.c.l.b16 %v758
        %v1071 = vunpack.c.h.b16 %v758
        %v1072 = vunpack.c.l.b16 %v759
        %v1073 = vunpack.c.h.b16 %v759
        %v1074 = vunpack.c.l.b16 %v760
        %v1075 = vunpack.c.h.b16 %v760
        %v1076 = vunpack.c.l.b16 %v761
        %v1077 = vunpack.c.h.b16 %v761
        %v1078 = vunpack.c.l.b16 %v762
        %v1079 = vunpack.c.h.b16 %v762
        %v1080 = vunpack.c.l.b16 %v763
        %v1081 = vunpack.c.h.b16 %v763
        %v1082 = vunpack.c.l.b16 %v764
        %v1083 = vunpack.c.h.b16 %v764
        %v1084 = vunpack.c.l.b16 %v765
        %v1085 = vunpack.c.h.b16 %v765
        %v1086 = vunpack.c.l.b16 %v766
        %v1087 = vunpack.c.h.b16 %v766
        %v1088 = vunpack.c.l.b16 %v767
        %v1089 = vunpack.c.h.b16 %v767
        %v1090 = vunpack.c.l.b16 %v768
        %v1091 = vunpack.c.h.b16 %v768
        %v1092 = vunpack.c.l.b16 %v769
        %v1093 = vunpack.c.h.b16 %v769
        %v1094 = vunpack.c.l.b16 %v770
        %v1095 = vunpack.c.h.b16 %v770
        %v1096 = vunpack.c.l.b16 %v771
        %v1097 = vunpack.c.h.b16 %v771
        %v1098 = vpack.c.b16 %v1074, %v1066
        %v1099 = vpack.c.b16 %v1075, %v1067
        %v1100 = vpack.c.b16 %v1076, %v1068
        %v1101 = vpack.c.b16 %v1077, %v1069
        %v1102 = vpack.c.b16 %v1078, %v1070
        %v1103 = vpack.c.b16 %v1079, %v1071
        %v1104 = vpack.c.b16 %v1080, %v1072
        %v1105 = vpack.c.b16 %v1081, %v1073
        %v1106 = vpack.c.b16 %v1090, %v1082
        %v1107 = vpack.c.b16 %v1091, %v1083
        %v1108 = vpack.c.b16 %v1092, %v1084
        %v1109 = vpack.c.b16 %v1093, %v1085
        %v1110 = vpack.c.b16 %v1094, %v1086
        %v1111 = vpack.c.b16 %v1095, %v1087
        %v1112 = vpack.c.b16 %v1096, %v1088
        %v1113 = vpack.c.b16 %v1097, %v1089
        %v1386 = vunpack.c.l.b16 %v772
        %v1387 = vunpack.c.h.b16 %v772
        %v1388 = vunpack.c.l.b16 %v773
        %v1389 = vunpack.c.h.b16 %v773
        %v1390 = vunpack.c.l.b16 %v774
        %v1391 = vunpack.c.h.b16 %v774
        %v1392 = vunpack.c.l.b16 %v775
        %v1393 = vunpack.c.h.b16 %v775
        %v1394 = vunpack.c.l.b16 %v776
        %v1395 = vunpack.c.h.b16 %v776
        %v1396 = vunpack.c.l.b16 %v777
        %v1397 = vunpack.c.h.b16 %v777
        %v1398 = vunpack.c.l.b16 %v778
        %v1399 = vunpack.c.h.b16 %v778
        %v1400 = vunpack.c.l.b16 %v779
        %v1401 = vunpack.c.h.b16 %v779
        %v1402 = vunpack.c.l.b16 %v780
        %v1403 = vunpack.c.h.b16 %v780
        %v1404 = vunpack.c.l.b16 %v781
        %v1405 = vunpack.c.h.b16 %v781
        %v1406 = vunpack.c.l.b16 %v782
        %v1407 = vunpack.c.h.b16 %v782
        %v1408 = vunpack.c.l.b16 %v783
        %v1409 = vunpack.c.h.b16 %v783
        %v1410 = vunpack.c.l.b16 %v784
        %v1411 = vunpack.c.h.b16 %v784
        %v1412 = vunpack.c.l.b16 %v785
        %v1413 = vunpack.c.h.b16 %v785
        %v1414 = vunpack.c.l.b16 %v786
        %v1415 = vunpack.c.h.b16 %v786
        %v1416 = vunpack.c.l.b16 %v787
        %v1417 = vunpack.c.h.b16 %v787
        %v1418 = vunpack.c.l.b16 %v788
        %v1419 = vunpack.c.h.b16 %v788
        %v1420 = vunpack.c.l.b16 %v789
        %v1421 = vunpack.c.h.b16 %v789
        %v1422 = vunpack.c.l.b16 %v790
        %v1423 = vunpack.c.h.b16 %v790
        %v1424 = vunpack.c.l.b16 %v791
        %v1425 = vunpack.c.h.b16 %v791
        %v1426 = vunpack.c.l.b16 %v792
        %v1427 = vunpack.c.h.b16 %v792
        %v1428 = vunpack.c.l.b16 %v793
        %v1429 = vunpack.c.h.b16 %v793
        %v1430 = vunpack.c.l.b16 %v794
        %v1431 = vunpack.c.h.b16 %v794
        %v1432 = vunpack.c.l.b16 %v795
        %v1433 = vunpack.c.h.b16 %v795
        %v1434 = vunpack.c.l.b16 %v796
        %v1435 = vunpack.c.h.b16 %v796
        %v1436 = vunpack.c.l.b16 %v797
        %v1437 = vunpack.c.h.b16 %v797
        %v1438 = vunpack.c.l.b16 %v798
        %v1439 = vunpack.c.h.b16 %v798
        %v1440 = vunpack.c.l.b16 %v799
        %v1441 = vunpack.c.h.b16 %v799
        %v1442 = vunpack.c.l.b16 %v800
        %v1443 = vunpack.c.h.b16 %v800
        %v1444 = vunpack.c.l.b16 %v801
        %v1445 = vunpack.c.h.b16 %v801
        %v1446 = vunpack.c.l.b16 %v802
        %v1447 = vunpack.c.h.b16 %v802
        %v1448 = vunpack.c.l.b16 %v803
        %v1449 = vunpack.c.h.b16 %v803
        %v1450 = vunpack.c.l.b16 %v804
        %v1451 = vunpack.c.h.b16 %v804
        %v1452 = vunpack.c.l.b16 %v805
        %v1453 = vunpack.c.h.b16 %v805
        %v1454 = vunpack.c.l.b16 %v806
        %v1455 = vunpack.c.h.b16 %v806
        %v1456 = vunpack.c.l.b16 %v807
        %v1457 = vunpack.c.h.b16 %v807
        %v1458 = vunpack.c.l.b16 %v808
        %v1459 = vunpack.c.h.b16 %v808
        %v1460 = vunpack.c.l.b16 %v809
        %v1461 = vunpack.c.h.b16 %v809
        %v1462 = vunpack.c.l.b16 %v810
        %v1463 = vunpack.c.h.b16 %v810
        %v1464 = vunpack.c.l.b16 %v811
        %v1465 = vunpack.c.h.b16 %v811
        %v1466 = vunpack.c.l.b16 %v812
        %v1467 = vunpack.c.h.b16 %v812
        %v1468 = vunpack.c.l.b16 %v813
        %v1469 = vunpack.c.h.b16 %v813
        %v1470 = vunpack.c.l.b16 %v814
        %v1471 = vunpack.c.h.b16 %v814
        %v1472 = vunpack.c.l.b16 %v815
        %v1473 = vunpack.c.h.b16 %v815
        %v1474 = vunpack.c.l.b16 %v816
        %v1475 = vunpack.c.h.b16 %v816
        %v1476 = vunpack.c.l.b16 %v817
        %v1477 = vunpack.c.h.b16 %v817
        %v1478 = vunpack.c.l.b16 %v818
        %v1479 = vunpack.c.h.b16 %v818
        %v1480 = vunpack.c.l.b16 %v819
        %v1481 = vunpack.c.h.b16 %v819
        %v1482 = vunpack.c.l.b16 %v820
        %v1483 = vunpack.c.h.b16 %v820
        %v1484 = vunpack.c.l.b16 %v821
        %v1485 = vunpack.c.h.b16 %v821
        %v1486 = vunpack.c.l.b16 %v822
        %v1487 = vunpack.c.h.b16 %v822
        %v1488 = vunpack.c.l.b16 %v823
        %v1489 = vunpack.c.h.b16 %v823
        %v1490 = vunpack.c.l.b16 %v824
        %v1491 = vunpack.c.h.b16 %v824
        %v1492 = vunpack.c.l.b16 %v825
        %v1493 = vunpack.c.h.b16 %v825
        %v1494 = vunpack.c.l.b16 %v826
        %v1495 = vunpack.c.h.b16 %v826
        %v1496 = vunpack.c.l.b16 %v827
        %v1497 = vunpack.c.h.b16 %v827
        %v1498 = vunpack.c.l.b16 %v828
        %v1499 = vunpack.c.h.b16 %v828
        %v1500 = vunpack.c.l.b16 %v829
        %v1501 = vunpack.c.h.b16 %v829
        %v1502 = vunpack.c.l.b16 %v830
        %v1503 = vunpack.c.h.b16 %v830
        %v1504 = vunpack.c.l.b16 %v831
        %v1505 = vunpack.c.h.b16 %v831
        %v1506 = vunpack.c.l.b16 %v832
        %v1507 = vunpack.c.h.b16 %v832
        %v1508 = vunpack.c.l.b16 %v833
        %v1509 = vunpack.c.h.b16 %v833
        %v1510 = vunpack.c.l.b16 %v834
        %v1511 = vunpack.c.h.b16 %v834
        %v1512 = vunpack.c.l.b16 %v835
        %v1513 = vunpack.c.h.b16 %v835
        %v1514 = vunpack.c.l.b16 %v836
        %v1515 = vunpack.c.h.b16 %v836
        %v1516 = vunpack.c.l.b16 %v837
        %v1517 = vunpack.c.h.b16 %v837
        %v1518 = vunpack.c.l.b16 %v838
        %v1519 = vunpack.c.h.b16 %v838
        %v1520 = vunpack.c.l.b16 %v839
        %v1521 = vunpack.c.h.b16 %v839
        %v1522 = vunpack.c.l.b16 %v840
        %v1523 = vunpack.c.h.b16 %v840
        %v1524 = vunpack.c.l.b16 %v841
        %v1525 = vunpack.c.h.b16 %v841
        %v1526 = vunpack.c.l.b16 %v842
        %v1527 = vunpack.c.h.b16 %v842
        %v1528 = vunpack.c.l.b16 %v843
        %v1529 = vunpack.c.h.b16 %v843
        %v1530 = vunpack.c.l.b16 %v844
        %v1531 = vunpack.c.h.b16 %v844
        %v1532 = vunpack.c.l.b16 %v845
        %v1533 = vunpack.c.h.b16 %v845
        %v1534 = vunpack.c.l.b16 %v846
        %v1535 = vunpack.c.h.b16 %v846
        %v1536 = vunpack.c.l.b16 %v847
        %v1537 = vunpack.c.h.b16 %v847
        %v1538 = vunpack.c.l.b16 %v848
        %v1539 = vunpack.c.h.b16 %v848
        %v1540 = vunpack.c.l.b16 %v849
        %v1541 = vunpack.c.h.b16 %v849
        %v1542 = vunpack.c.l.b16 %v850
        %v1543 = vunpack.c.h.b16 %v850
        %v1544 = vunpack.c.l.b16 %v851
        %v1545 = vunpack.c.h.b16 %v851
        %v1546 = vunpack.c.l.b16 %v852
        %v1547 = vunpack.c.h.b16 %v852
        %v1548 = vunpack.c.l.b16 %v853
        %v1549 = vunpack.c.h.b16 %v853
        %v1550 = vunpack.c.l.b16 %v854
        %v1551 = vunpack.c.h.b16 %v854
        %v1552 = vunpack.c.l.b16 %v855
        %v1553 = vunpack.c.h.b16 %v855
        %v1554 = vunpack.c.l.b16 %v856
        %v1555 = vunpack.c.h.b16 %v856
        %v1556 = vunpack.c.l.b16 %v857
        %v1557 = vunpack.c.h.b16 %v857
        %v1558 = vunpack.c.l.b16 %v858
        %v1559 = vunpack.c.h.b16 %v858
        %v1560 = vunpack.c.l.b16 %v859
        %v1561 = vunpack.c.h.b16 %v859
        %v1562 = vunpack.c.l.b16 %v860
        %v1563 = vunpack.c.h.b16 %v860
        %v1564 = vunpack.c.l.b16 %v861
        %v1565 = vunpack.c.h.b16 %v861
        %v1566 = vunpack.c.l.b16 %v862
        %v1567 = vunpack.c.h.b16 %v862
        %v1568 = vunpack.c.l.b16 %v863
        %v1569 = vunpack.c.h.b16 %v863
        %v1570 = vunpack.c.l.b16 %v864
        %v1571 = vunpack.c.h.b16 %v864
        %v1572 = vunpack.c.l.b16 %v865
        %v1573 = vunpack.c.h.b16 %v865
        %v1574 = vunpack.c.l.b16 %v866
        %v1575 = vunpack.c.h.b16 %v866
        %v1576 = vunpack.c.l.b16 %v867
        %v1577 = vunpack.c.h.b16 %v867
        %v1578 = vunpack.c.l.b16 %v868
        %v1579 = vunpack.c.h.b16 %v868
        %v1580 = vunpack.c.l.b16 %v869
        %v1581 = vunpack.c.h.b16 %v869
        %v1582 = vunpack.c.l.b16 %v870
        %v1583 = vunpack.c.h.b16 %v870
        %v1584 = vunpack.c.l.b16 %v871
        %v1585 = vunpack.c.h.b16 %v871
        %v1586 = vunpack.c.l.b16 %v872
        %v1587 = vunpack.c.h.b16 %v872
        %v1588 = vunpack.c.l.b16 %v873
        %v1589 = vunpack.c.h.b16 %v873
        %v1590 = vunpack.c.l.b16 %v874
        %v1591 = vunpack.c.h.b16 %v874
        %v1592 = vunpack.c.l.b16 %v875
        %v1593 = vunpack.c.h.b16 %v875
        %v1594 = vunpack.c.l.b16 %v876
        %v1595 = vunpack.c.h.b16 %v876
        %v1596 = vunpack.c.l.b16 %v877
        %v1597 = vunpack.c.h.b16 %v877
        %v1598 = vunpack.c.l.b16 %v878
        %v1599 = vunpack.c.h.b16 %v878
        %v1600 = vunpack.c.l.b16 %v879
        %v1601 = vunpack.c.h.b16 %v879
        %v1602 = vunpack.c.l.b16 %v880
        %v1603 = vunpack.c.h.b16 %v880
        %v1604 = vunpack.c.l.b16 %v881
        %v1605 = vunpack.c.h.b16 %v881
        %v1606 = vunpack.c.l.b16 %v882
        %v1607 = vunpack.c.h.b16 %v882
        %v1608 = vunpack.c.l.b16 %v883
        %v1609 = vunpack.c.h.b16 %v883
        %v1610 = vunpack.c.l.b16 %v884
        %v1611 = vunpack.c.h.b16 %v884
        %v1612 = vunpack.c.l.b16 %v885
        %v1613 = vunpack.c.h.b16 %v885
        %v1614 = vunpack.c.l.b16 %v886
        %v1615 = vunpack.c.h.b16 %v886
        %v1616 = vunpack.c.l.b16 %v887
        %v1617 = vunpack.c.h.b16 %v887
        %v1618 = vunpack.c.l.b16 %v888
        %v1619 = vunpack.c.h.b16 %v888
        %v1620 = vunpack.c.l.b16 %v889
        %v1621 = vunpack.c.h.b16 %v889
        %v1622 = vunpack.c.l.b16 %v890
        %v1623 = vunpack.c.h.b16 %v890
        %v1624 = vunpack.c.l.b16 %v891
        %v1625 = vunpack.c.h.b16 %v891
        %v1626 = vunpack.c.l.b16 %v892
        %v1627 = vunpack.c.h.b16 %v892
        %v1628 = vunpack.c.l.b16 %v893
        %v1629 = vunpack.c.h.b16 %v893
        %v1630 = vunpack.c.l.b16 %v894
        %v1631 = vunpack.c.h.b16 %v894
        %v1632 = vunpack.c.l.b16 %v895
        %v1633 = vunpack.c.h.b16 %v895
        %v1634 = vunpack.c.l.b16 %v896
        %v1635 = vunpack.c.h.b16 %v896
        %v1636 = vunpack.c.l.b16 %v897
        %v1637 = vunpack.c.h.b16 %v897
        %v1638 = vunpack.c.l.b16 %v898
        %v1639 = vunpack.c.h.b16 %v898
        %v1640 = vunpack.c.l.b16 %v899
        %v1641 = vunpack.c.h.b16 %v899
        %v1642 = vunpack.c.l.b16 %v900
        %v1643 = vunpack.c.h.b16 %v900
        %v1644 = vunpack.c.l.b16 %v901
        %v1645 = vunpack.c.h.b16 %v901
        %v1646 = vunpack.c.l.b16 %v902
        %v1647 = vunpack.c.h.b16 %v902
        %v1648 = vunpack.c.l.b16 %v903
        %v1649 = vunpack.c.h.b16 %v903
        %v1650 = vunpack.c.l.b16 %v904
        %v1651 = vunpack.c.h.b16 %v904
        %v1652 = vunpack.c.l.b16 %v905
        %v1653 = vunpack.c.h.b16 %v905
        %v1654 = vunpack.c.l.b16 %v906
        %v1655 = vunpack.c.h.b16 %v906
        %v1656 = vunpack.c.l.b16 %v907
        %v1657 = vunpack.c.h.b16 %v907
        %v1658 = vunpack.c.l.b16 %v908
        %v1659 = vunpack.c.h.b16 %v908
        %v1660 = vunpack.c.l.b16 %v909
        %v1661 = vunpack.c.h.b16 %v909
        %v1662 = vunpack.c.l.b16 %v910
        %v1663 = vunpack.c.h.b16 %v910
        %v1664 = vunpack.c.l.b16 %v911
        %v1665 = vunpack.c.h.b16 %v911
        %v1666 = vunpack.c.l.b16 %v912
        %v1667 = vunpack.c.h.b16 %v912
        %v1668 = vunpack.c.l.b16 %v913
        %v1669 = vunpack.c.h.b16 %v913
        %v1670 = vunpack.c.l.b16 %v914
        %v1671 = vunpack.c.h.b16 %v914
        %v1672 = vunpack.c.l.b16 %v915
        %v1673 = vunpack.c.h.b16 %v915
        %v1674 = vunpack.c.l.b16 %v916
        %v1675 = vunpack.c.h.b16 %v916
        %v1676 = vunpack.c.l.b16 %v917
        %v1677 = vunpack.c.h.b16 %v917
        %v1678 = vunpack.c.l.b16 %v918
        %v1679 = vunpack.c.h.b16 %v918
        %v1680 = vunpack.c.l.b16 %v919
        %v1681 = vunpack.c.h.b16 %v919
        %v1682 = vunpack.c.l.b16 %v920
        %v1683 = vunpack.c.h.b16 %v920
        %v1684 = vunpack.c.l.b16 %v921
        %v1685 = vunpack.c.h.b16 %v921
        %v1686 = vunpack.c.l.b16 %v922
        %v1687 = vunpack.c.h.b16 %v922
        %v1688 = vunpack.c.l.b16 %v923
        %v1689 = vunpack.c.h.b16 %v923
        %v1690 = vunpack.c.l.b16 %v924
        %v1691 = vunpack.c.h.b16 %v924
        %v1692 = vunpack.c.l.b16 %v925
        %v1693 = vunpack.c.h.b16 %v925
        %v1694 = vunpack.c.l.b16 %v926
        %v1695 = vunpack.c.h.b16 %v926
        %v1696 = vunpack.c.l.b16 %v927
        %v1697 = vunpack.c.h.b16 %v927
        %v1698 = vunpack.c.l.b16 %v928
        %v1699 = vunpack.c.h.b16 %v928
        %v1700 = vunpack.c.l.b16 %v929
        %v1701 = vunpack.c.h.b16 %v929
        %v1702 = vunpack.c.l.b16 %v930
        %v1703 = vunpack.c.h.b16 %v930
        %v1704 = vunpack.c.l.b16 %v931
        %v1705 = vunpack.c.h.b16 %v931
        %v1706 = vunpack.c.l.b16 %v932
        %v1707 = vunpack.c.h.b16 %v932
        %v1708 = vunpack.c.l.b16 %v933
        %v1709 = vunpack.c.h.b16 %v933
        %v1710 = vunpack.c.l.b16 %v934
        %v1711 = vunpack.c.h.b16 %v934
        %v1712 = vunpack.c.l.b16 %v935
        %v1713 = vunpack.c.h.b16 %v935
        %v1714 = vunpack.c.l.b16 %v936
        %v1715 = vunpack.c.h.b16 %v936
        %v1716 = vunpack.c.l.b16 %v937
        %v1717 = vunpack.c.h.b16 %v937
        %v1718 = vunpack.c.l.b16 %v938
        %v1719 = vunpack.c.h.b16 %v938
        %v1720 = vunpack.c.l.b16 %v939
        %v1721 = vunpack.c.h.b16 %v939
        %v1722 = vunpack.c.l.b16 %v940
        %v1723 = vunpack.c.h.b16 %v940
        %v1724 = vunpack.c.l.b16 %v941
        %v1725 = vunpack.c.h.b16 %v941
        %v1726 = vunpack.c.l.b16 %v942
        %v1727 = vunpack.c.h.b16 %v942
        %v1728 = vunpack.c.l.b16 %v943
        %v1729 = vunpack.c.h.b16 %v943
        %v1730 = vunpack.c.l.b16 %v944
        %v1731 = vunpack.c.h.b16 %v944
        %v1732 = vunpack.c.l.b16 %v945
        %v1733 = vunpack.c.h.b16 %v945
        %v1734 = vunpack.c.l.b16 %v946
        %v1735 = vunpack.c.h.b16 %v946
        %v1736 = vunpack.c.l.b16 %v947
        %v1737 = vunpack.c.h.b16 %v947
        %v1738 = vunpack.c.l.b16 %v948
        %v1739 = vunpack.c.h.b16 %v948
        %v1740 = vunpack.c.l.b16 %v949
        %v1741 = vunpack.c.h.b16 %v949
        %v1742 = vunpack.c.l.b16 %v950
        %v1743 = vunpack.c.h.b16 %v950
        %v1744 = vunpack.c.l.b16 %v951
        %v1745 = vunpack.c.h.b16 %v951
        %v1746 = vunpack.c.l.b16 %v952
        %v1747 = vunpack.c.h.b16 %v952
        %v1748 = vunpack.c.l.b16 %v953
        %v1749 = vunpack.c.h.b16 %v953
        %v1750 = vunpack.c.l.b16 %v954
        %v1751 = vunpack.c.h.b16 %v954
        %v1752 = vunpack.c.l.b16 %v955
        %v1753 = vunpack.c.h.b16 %v955
        %v1754 = vunpack.c.l.b16 %v956
        %v1755 = vunpack.c.h.b16 %v956
        %v1756 = vunpack.c.l.b16 %v957
        %v1757 = vunpack.c.h.b16 %v957
        %v1758 = vunpack.c.l.b16 %v958
        %v1759 = vunpack.c.h.b16 %v958
        %v1760 = vunpack.c.l.b16 %v959
        %v1761 = vunpack.c.h.b16 %v959
        %v1762 = vunpack.c.l.b16 %v960
        %v1763 = vunpack.c.h.b16 %v960
        %v1764 = vunpack.c.l.b16 %v961
        %v1765 = vunpack.c.h.b16 %v961
        %v1766 = vunpack.c.l.b16 %v962
        %v1767 = vunpack.c.h.b16 %v962
        %v1768 = vunpack.c.l.b16 %v963
        %v1769 = vunpack.c.h.b16 %v963
        %v1770 = vunpack.c.l.b16 %v964
        %v1771 = vunpack.c.h.b16 %v964
        %v1772 = vunpack.c.l.b16 %v965
        %v1773 = vunpack.c.h.b16 %v965
        %v1774 = vunpack.c.l.b16 %v966
        %v1775 = vunpack.c.h.b16 %v966
        %v1776 = vunpack.c.l.b16 %v967
        %v1777 = vunpack.c.h.b16 %v967
        %v1778 = vunpack.c.l.b16 %v968
        %v1779 = vunpack.c.h.b16 %v968
        %v1780 = vunpack.c.l.b16 %v969
        %v1781 = vunpack.c.h.b16 %v969
        %v1782 = vunpack.c.l.b16 %v970
        %v1783 = vunpack.c.h.b16 %v970
        %v1784 = vunpack.c.l.b16 %v971
        %v1785 = vunpack.c.h.b16 %v971
        %v1786 = vunpack.c.l.b16 %v972
        %v1787 = vunpack.c.h.b16 %v972
        %v1788 = vunpack.c.l.b16 %v973
        %v1789 = vunpack.c.h.b16 %v973
        %v1790 = vunpack.c.l.b16 %v974
        %v1791 = vunpack.c.h.b16 %v974
        %v1792 = vunpack.c.l.b16 %v975
        %v1793 = vunpack.c.h.b16 %v975
        %v1794 = vunpack.c.l.b16 %v976
        %v1795 = vunpack.c.h.b16 %v976
        %v1796 = vunpack.c.l.b16 %v977
        %v1797 = vunpack.c.h.b16 %v977
        %v1798 = vunpack.c.l.b16 %v978
        %v1799 = vunpack.c.h.b16 %v978
        %v1800 = vunpack.c.l.b16 %v979
        %v1801 = vunpack.c.h.b16 %v979
        %v1802 = vunpack.c.l.b16 %v980
        %v1803 = vunpack.c.h.b16 %v980
        %v1804 = vunpack.c.l.b16 %v981
        %v1805 = vunpack.c.h.b16 %v981
        %v1806 = vunpack.c.l.b16 %v982
        %v1807 = vunpack.c.h.b16 %v982
        %v1808 = vunpack.c.l.b16 %v983
        %v1809 = vunpack.c.h.b16 %v983
        %v1810 = vunpack.c.l.b16 %v984
        %v1811 = vunpack.c.h.b16 %v984
        %v1812 = vunpack.c.l.b16 %v985
        %v1813 = vunpack.c.h.b16 %v985
        %v1814 = vunpack.c.l.b16 %v986
        %v1815 = vunpack.c.h.b16 %v986
        %v1816 = vunpack.c.l.b16 %v987
        %v1817 = vunpack.c.h.b16 %v987
        %v1818 = vunpack.c.l.b16 %v988
        %v1819 = vunpack.c.h.b16 %v988
        %v1820 = vunpack.c.l.b16 %v989
        %v1821 = vunpack.c.h.b16 %v989
        %v1822 = vunpack.c.l.b16 %v990
        %v1823 = vunpack.c.h.b16 %v990
        %v1824 = vunpack.c.l.b16 %v991
        %v1825 = vunpack.c.h.b16 %v991
        %v1826 = vunpack.c.l.b16 %v992
        %v1827 = vunpack.c.h.b16 %v992
        %v1828 = vunpack.c.l.b16 %v993
        %v1829 = vunpack.c.h.b16 %v993
        %v1830 = vunpack.c.l.b16 %v994
        %v1831 = vunpack.c.h.b16 %v994
        %v1832 = vunpack.c.l.b16 %v995
        %v1833 = vunpack.c.h.b16 %v995
        %v1834 = vunpack.c.l.b16 %v996
        %v1835 = vunpack.c.h.b16 %v996
        %v1836 = vunpack.c.l.b16 %v997
        %v1837 = vunpack.c.h.b16 %v997
        %v1838 = vunpack.c.l.b16 %v998
        %v1839 = vunpack.c.h.b16 %v998
        %v1840 = vunpack.c.l.b16 %v999
        %v1841 = vunpack.c.h.b16 %v999
        %v1842 = vunpack.c.l.b16 %v1000
        %v1843 = vunpack.c.h.b16 %v1000
        %v1844 = vunpack.c.l.b16 %v1001
        %v1845 = vunpack.c.h.b16 %v1001
        %v1846 = vunpack.c.l.b16 %v1002
        %v1847 = vunpack.c.h.b16 %v1002
        %v1848 = vunpack.c.l.b16 %v1003
        %v1849 = vunpack.c.h.b16 %v1003
        %v1850 = vunpack.c.l.b16 %v1004
        %v1851 = vunpack.c.h.b16 %v1004
        %v1852 = vunpack.c.l.b16 %v1005
        %v1853 = vunpack.c.h.b16 %v1005
        %v1854 = vunpack.c.l.b16 %v1006
        %v1855 = vunpack.c.h.b16 %v1006
        %v1856 = vunpack.c.l.b16 %v1007
        %v1857 = vunpack.c.h.b16 %v1007
        %v1858 = vunpack.c.l.b16 %v1008
        %v1859 = vunpack.c.h.b16 %v1008
        %v1860 = vunpack.c.l.b16 %v1009
        %v1861 = vunpack.c.h.b16 %v1009
        %v1862 = vunpack.c.l.b16 %v1010
        %v1863 = vunpack.c.h.b16 %v1010
        %v1864 = vunpack.c.l.b16 %v1011
        %v1865 = vunpack.c.h.b16 %v1011
        %v1866 = vunpack.c.l.b16 %v1012
        %v1867 = vunpack.c.h.b16 %v1012
        %v1868 = vunpack.c.l.b16 %v1013
        %v1869 = vunpack.c.h.b16 %v1013
        %v1870 = vunpack.c.l.b16 %v1014
        %v1871 = vunpack.c.h.b16 %v1014
        %v1872 = vunpack.c.l.b16 %v1015
        %v1873 = vunpack.c.h.b16 %v1015
        %v1874 = vunpack.c.l.b16 %v1016
        %v1875 = vunpack.c.h.b16 %v1016
        %v1876 = vunpack.c.l.b16 %v1017
        %v1877 = vunpack.c.h.b16 %v1017
        %v1878 = vunpack.c.l.b16 %v1018
        %v1879 = vunpack.c.h.b16 %v1018
        %v1880 = vunpack.c.l.b16 %v1019
        %v1881 = vunpack.c.h.b16 %v1019
        %v1882 = vunpack.c.l.b16 %v1020
        %v1883 = vunpack.c.h.b16 %v1020
        %v1884 = vunpack.c.l.b16 %v1021
        %v1885 = vunpack.c.h.b16 %v1021
        %v1886 = vunpack.c.l.b16 %v1022
        %v1887 = vunpack.c.h.b16 %v1022
        %v1888 = vunpack.c.l.b16 %v1023
        %v1889 = vunpack.c.h.b16 %v1023
        %v1890 = vunpack.c.l.b16 %v1024
        %v1891 = vunpack.c.h.b16 %v1024
        %v1892 = vunpack.c.l.b16 %v1025
        %v1893 = vunpack.c.h.b16 %v1025
        %v1894 = vunpack.c.l.b16 %v1026
        %v1895 = vunpack.c.h.b16 %v1026
        %v1896 = vunpack.c.l.b16 %v1027
        %v1897 = vunpack.c.h.b16 %v1027
        %v1898 = vpack.c.b16 %v1390, %v1386
        %v1899 = vpack.c.b16 %v1391, %v1387
        %v1900 = vpack.c.b16 %v1392, %v1388
        %v1901 = vpack.c.b16 %v1393, %v1389
        %v1902 = vpack.c.b16 %v1398, %v1394
        %v1903 = vpack.c.b16 %v1399, %v1395
        %v1904 = vpack.c.b16 %v1400, %v1396
        %v1905 = vpack.c.b16 %v1401, %v1397
        %v1906 = vpack.c.b16 %v1406, %v1402
        %v1907 = vpack.c.b16 %v1407, %v1403
        %v1908 = vpack.c.b16 %v1408, %v1404
        %v1909 = vpack.c.b16 %v1409, %v1405
        %v1910 = vpack.c.b16 %v1414, %v1410
        %v1911 = vpack.c.b16 %v1415, %v1411
        %v1912 = vpack.c.b16 %v1416, %v1412
        %v1913 = vpack.c.b16 %v1417, %v1413
        %v1914 = vpack.c.b16 %v1422, %v1418
        %v1915 = vpack.c.b16 %v1423, %v1419
        %v1916 = vpack.c.b16 %v1424, %v1420
        %v1917 = vpack.c.b16 %v1425, %v1421
        %v1918 = vpack.c.b16 %v1430, %v1426
        %v1919 = vpack.c.b16 %v1431, %v1427
        %v1920 = vpack.c.b16 %v1432, %v1428
        %v1921 = vpack.c.b16 %v1433, %v1429
        %v1922 = vpack.c.b16 %v1438, %v1434
        %v1923 = vpack.c.b16 %v1439, %v1435
        %v1924 = vpack.c.b16 %v1440, %v1436
        %v1925 = vpack.c.b16 %v1441, %v1437
        %v1926 = vpack.c.b16 %v1446, %v1442
        %v1927 = vpack.c.b16 %v1447, %v1443
        %v1928 = vpack.c.b16 %v1448, %v1444
        %v1929 = vpack.c.b16 %v1449, %v1445
        %v1930 = vpack.c.b16 %v1454, %v1450
        %v1931 = vpack.c.b16 %v1455, %v1451
        %v1932 = vpack.c.b16 %v1456, %v1452
        %v1933 = vpack.c.b16 %v1457, %v1453
        %v1934 = vpack.c.b16 %v1462, %v1458
        %v1935 = vpack.c.b16 %v1463, %v1459
        %v1936 = vpack.c.b16 %v1464, %v1460
        %v1937 = vpack.c.b16 %v1465, %v1461
        %v1938 = vpack.c.b16 %v1470, %v1466
        %v1939 = vpack.c.b16 %v1471, %v1467
        %v1940 = vpack.c.b16 %v1472, %v1468
        %v1941 = vpack.c.b16 %v1473, %v1469
        %v1942 = vpack.c.b16 %v1478, %v1474
        %v1943 = vpack.c.b16 %v1479, %v1475
        %v1944 = vpack.c.b16 %v1480, %v1476
        %v1945 = vpack.c.b16 %v1481, %v1477
        %v1946 = vpack.c.b16 %v1486, %v1482
        %v1947 = vpack.c.b16 %v1487, %v1483
        %v1948 = vpack.c.b16 %v1488, %v1484
        %v1949 = vpack.c.b16 %v1489, %v1485
        %v1950 = vpack.c.b16 %v1494, %v1490
        %v1951 = vpack.c.b16 %v1495, %v1491
        %v1952 = vpack.c.b16 %v1496, %v1492
        %v1953 = vpack.c.b16 %v1497, %v1493
        %v1954 = vpack.c.b16 %v1502, %v1498
        %v1955 = vpack.c.b16 %v1503, %v1499
        %v1956 = vpack.c.b16 %v1504, %v1500
        %v1957 = vpack.c.b16 %v1505, %v1501
        %v1958 = vpack.c.b16 %v1510, %v1506
        %v1959 = vpack.c.b16 %v1511, %v1507
        %v1960 = vpack.c.b16 %v1512, %v1508
        %v1961 = vpack.c.b16 %v1513, %v1509
        %v1962 = vpack.c.b16 %v1518, %v1514
        %v1963 = vpack.c.b16 %v1519, %v1515
        %v1964 = vpack.c.b16 %v1520, %v1516
        %v1965 = vpack.c.b16 %v1521, %v1517
        %v1966 = vpack.c.b16 %v1526, %v1522
        %v1967 = vpack.c.b16 %v1527, %v1523
        %v1968 = vpack.c.b16 %v1528, %v1524
        %v1969 = vpack.c.b16 %v1529, %v1525
        %v1970 = vpack.c.b16 %v1534, %v1530
        %v1971 = vpack.c.b16 %v1535, %v1531
        %v1972 = vpack.c.b16 %v1536, %v1532
        %v1973 = vpack.c.b16 %v1537, %v1533
        %v1974 = vpack.c.b16 %v1542, %v1538
        %v1975 = vpack.c.b16 %v1543, %v1539
        %v1976 = vpack.c.b16 %v1544, %v1540
        %v1977 = vpack.c.b16 %v1545, %v1541
        %v1978 = vpack.c.b16 %v1550, %v1546
        %v1979 = vpack.c.b16 %v1551, %v1547
        %v1980 = vpack.c.b16 %v1552, %v1548
        %v1981 = vpack.c.b16 %v1553, %v1549
        %v1982 = vpack.c.b16 %v1558, %v1554
        %v1983 = vpack.c.b16 %v1559, %v1555
        %v1984 = vpack.c.b16 %v1560, %v1556
        %v1985 = vpack.c.b16 %v1561, %v1557
        %v1986 = vpack.c.b16 %v1566, %v1562
        %v1987 = vpack.c.b16 %v1567, %v1563
        %v1988 = vpack.c.b16 %v1568, %v1564
        %v1989 = vpack.c.b16 %v1569, %v1565
        %v1990 = vpack.c.b16 %v1574, %v1570
        %v1991 = vpack.c.b16 %v1575, %v1571
        %v1992 = vpack.c.b16 %v1576, %v1572
        %v1993 = vpack.c.b16 %v1577, %v1573
        %v1994 = vpack.c.b16 %v1582, %v1578
        %v1995 = vpack.c.b16 %v1583, %v1579
        %v1996 = vpack.c.b16 %v1584, %v1580
        %v1997 = vpack.c.b16 %v1585, %v1581
        %v1998 = vpack.c.b16 %v1590, %v1586
        %v1999 = vpack.c.b16 %v1591, %v1587
        %v2000 = vpack.c.b16 %v1592, %v1588
        %v2001 = vpack.c.b16 %v1593, %v1589
        %v2002 = vpack.c.b16 %v1598, %v1594
        %v2003 = vpack.c.b16 %v1599, %v1595
        %v2004 = vpack.c.b16 %v1600, %v1596
        %v2005 = vpack.c.b16 %v1601, %v1597
        %v2006 = vpack.c.b16 %v1606, %v1602
        %v2007 = vpack.c.b16 %v1607, %v1603
        %v2008 = vpack.c.b16 %v1608, %v1604
        %v2009 = vpack.c.b16 %v1609, %v1605
        %v2010 = vpack.c.b16 %v1614, %v1610
        %v2011 = vpack.c.b16 %v1615, %v1611
        %v2012 = vpack.c.b16 %v1616, %v1612
        %v2013 = vpack.c.b16 %v1617, %v1613
        %v2014 = vpack.c.b16 %v1622, %v1618
        %v2015 = vpack.c.b16 %v1623, %v1619
        %v2016 = vpack.c.b16 %v1624, %v1620
        %v2017 = vpack.c.b16 %v1625, %v1621
        %v2018 = vpack.c.b16 %v1630, %v1626
        %v2019 = vpack.c.b16 %v1631, %v1627
        %v2020 = vpack.c.b16 %v1632, %v1628
        %v2021 = vpack.c.b16 %v1633, %v1629
        %v2022 = vpack.c.b16 %v1638, %v1634
        %v2023 = vpack.c.b16 %v1639, %v1635
        %v2024 = vpack.c.b16 %v1640, %v1636
        %v2025 = vpack.c.b16 %v1641, %v1637
        %v2026 = vpack.c.b16 %v1646, %v1642
        %v2027 = vpack.c.b16 %v1647, %v1643
        %v2028 = vpack.c.b16 %v1648, %v1644
        %v2029 = vpack.c.b16 %v1649, %v1645
        %v2030 = vpack.c.b16 %v1654, %v1650
        %v2031 = vpack.c.b16 %v1655, %v1651
        %v2032 = vpack.c.b16 %v1656, %v1652
        %v2033 = vpack.c.b16 %v1657, %v1653
        %v2034 = vpack.c.b16 %v1662, %v1658
        %v2035 = vpack.c.b16 %v1663, %v1659
        %v2036 = vpack.c.b16 %v1664, %v1660
        %v2037 = vpack.c.b16 %v1665, %v1661
        %v2038 = vpack.c.b16 %v1670, %v1666
        %v2039 = vpack.c.b16 %v1671, %v1667
        %v2040 = vpack.c.b16 %v1672, %v1668
        %v2041 = vpack.c.b16 %v1673, %v1669
        %v2042 = vpack.c.b16 %v1678, %v1674
        %v2043 = vpack.c.b16 %v1679, %v1675
        %v2044 = vpack.c.b16 %v1680, %v1676
        %v2045 = vpack.c.b16 %v1681, %v1677
        %v2046 = vpack.c.b16 %v1686, %v1682
        %v2047 = vpack.c.b16 %v1687, %v1683
        %v2048 = vpack.c.b16 %v1688, %v1684
        %v2049 = vpack.c.b16 %v1689, %v1685
        %v2050 = vpack.c.b16 %v1694, %v1690
        %v2051 = vpack.c.b16 %v1695, %v1691
        %v2052 = vpack.c.b16 %v1696, %v1692
        %v2053 = vpack.c.b16 %v1697, %v1693
        %v2054 = vpack.c.b16 %v1702, %v1698
        %v2055 = vpack.c.b16 %v1703, %v1699
        %v2056 = vpack.c.b16 %v1704, %v1700
        %v2057 = vpack.c.b16 %v1705, %v1701
        %v2058 = vpack.c.b16 %v1710, %v1706
        %v2059 = vpack.c.b16 %v1711, %v1707
        %v2060 = vpack.c.b16 %v1712, %v1708
        %v2061 = vpack.c.b16 %v1713, %v1709
        %v2062 = vpack.c.b16 %v1718, %v1714
        %v2063 = vpack.c.b16 %v1719, %v1715
        %v2064 = vpack.c.b16 %v1720, %v1716
        %v2065 = vpack.c.b16 %v1721, %v1717
        %v2066 = vpack.c.b16 %v1726, %v1722
        %v2067 = vpack.c.b16 %v1727, %v1723
        %v2068 = vpack.c.b16 %v1728, %v1724
        %v2069 = vpack.c.b16 %v1729, %v1725
        %v2070 = vpack.c.b16 %v1734, %v1730
        %v2071 = vpack.c.b16 %v1735, %v1731
        %v2072 = vpack.c.b16 %v1736, %v1732
        %v2073 = vpack.c.b16 %v1737, %v1733
        %v2074 = vpack.c.b16 %v1742, %v1738
        %v2075 = vpack.c.b16 %v1743, %v1739
        %v2076 = vpack.c.b16 %v1744, %v1740
        %v2077 = vpack.c.b16 %v1745, %v1741
        %v2078 = vpack.c.b16 %v1750, %v1746
        %v2079 = vpack.c.b16 %v1751, %v1747
        %v2080 = vpack.c.b16 %v1752, %v1748
        %v2081 = vpack.c.b16 %v1753, %v1749
        %v2082 = vpack.c.b16 %v1758, %v1754
        %v2083 = vpack.c.b16 %v1759, %v1755
        %v2084 = vpack.c.b16 %v1760, %v1756
        %v2085 = vpack.c.b16 %v1761, %v1757
        %v2086 = vpack.c.b16 %v1766, %v1762
        %v2087 = vpack.c.b16 %v1767, %v1763
        %v2088 = vpack.c.b16 %v1768, %v1764
        %v2089 = vpack.c.b16 %v1769, %v1765
        %v2090 = vpack.c.b16 %v1774, %v1770
        %v2091 = vpack.c.b16 %v1775, %v1771
        %v2092 = vpack.c.b16 %v1776, %v1772
        %v2093 = vpack.c.b16 %v1777, %v1773
        %v2094 = vpack.c.b16 %v1782, %v1778
        %v2095 = vpack.c.b16 %v1783, %v1779
        %v2096 = vpack.c.b16 %v1784, %v1780
        %v2097 = vpack.c.b16 %v1785, %v1781
        %v2098 = vpack.c.b16 %v1790, %v1786
        %v2099 = vpack.c.b16 %v1791, %v1787
        %v2100 = vpack.c.b16 %v1792, %v1788
        %v2101 = vpack.c.b16 %v1793, %v1789
        %v2102 = vpack.c.b16 %v1798, %v1794
        %v2103 = vpack.c.b16 %v1799, %v1795
        %v2104 = vpack.c.b16 %v1800, %v1796
        %v2105 = vpack.c.b16 %v1801, %v1797
        %v2106 = vpack.c.b16 %v1806, %v1802
        %v2107 = vpack.c.b16 %v1807, %v1803
        %v2108 = vpack.c.b16 %v1808, %v1804
        %v2109 = vpack.c.b16 %v1809, %v1805
        %v2110 = vpack.c.b16 %v1814, %v1810
        %v2111 = vpack.c.b16 %v1815, %v1811
        %v2112 = vpack.c.b16 %v1816, %v1812
        %v2113 = vpack.c.b16 %v1817, %v1813
        %v2114 = vpack.c.b16 %v1822, %v1818
        %v2115 = vpack.c.b16 %v1823, %v1819
        %v2116 = vpack.c.b16 %v1824, %v1820
        %v2117 = vpack.c.b16 %v1825, %v1821
        %v2118 = vpack.c.b16 %v1830, %v1826
        %v2119 = vpack.c.b16 %v1831, %v1827
        %v2120 = vpack.c.b16 %v1832, %v1828
        %v2121 = vpack.c.b16 %v1833, %v1829
        %v2122 = vpack.c.b16 %v1838, %v1834
        %v2123 = vpack.c.b16 %v1839, %v1835
        %v2124 = vpack.c.b16 %v1840, %v1836
        %v2125 = vpack.c.b16 %v1841, %v1837
        %v2126 = vpack.c.b16 %v1846, %v1842
        %v2127 = vpack.c.b16 %v1847, %v1843
        %v2128 = vpack.c.b16 %v1848, %v1844
        %v2129 = vpack.c.b16 %v1849, %v1845
        %v2130 = vpack.c.b16 %v1854, %v1850
        %v2131 = vpack.c.b16 %v1855, %v1851
        %v2132 = vpack.c.b16 %v1856, %v1852
        %v2133 = vpack.c.b16 %v1857, %v1853
        %v2134 = vpack.c.b16 %v1862, %v1858
        %v2135 = vpack.c.b16 %v1863, %v1859
        %v2136 = vpack.c.b16 %v1864, %v1860
        %v2137 = vpack.c.b16 %v1865, %v1861
        %v2138 = vpack.c.b16 %v1870, %v1866
        %v2139 = vpack.c.b16 %v1871, %v1867
        %v2140 = vpack.c.b16 %v1872, %v1868
        %v2141 = vpack.c.b16 %v1873, %v1869
        %v2142 = vpack.c.b16 %v1878, %v1874
        %v2143 = vpack.c.b16 %v1879, %v1875
        %v2144 = vpack.c.b16 %v1880, %v1876
        %v2145 = vpack.c.b16 %v1881, %v1877
        %v2146 = vpack.c.b16 %v1886, %v1882
        %v2147 = vpack.c.b16 %v1887, %v1883
        %v2148 = vpack.c.b16 %v1888, %v1884
        %v2149 = vpack.c.b16 %v1889, %v1885
        %v2150 = vpack.c.b16 %v1894, %v1890
        %v2151 = vpack.c.b16 %v1895, %v1891
        %v2152 = vpack.c.b16 %v1896, %v1892
        %v2153 = vpack.c.b16 %v1897, %v1893
        %2410 = vmatprep.subr.bf16.mxu0 %v1899
        %2411 = vmatpush1.bf16.msra.mxu0 %v1898
        %2412 = vmatprep.subr.bf16.mxu0 %v1903
        %2413 = vmatpush1.bf16.msra.mxu0 %v1902
        %2414 = vmatprep.subr.bf16.mxu0 %v1907
        %2415 = vmatpush1.bf16.msra.mxu0 %v1906
        %2416 = vmatprep.subr.bf16.mxu0 %v1911
        %2417 = vmatpush1.bf16.msra.mxu0 %v1910
        %2418 = vmatprep.subr.bf16.mxu0 %v1915
        %2419 = vmatpush1.bf16.msra.mxu0 %v1914
        %2420 = vmatprep.subr.bf16.mxu0 %v1919
        %2421 = vmatpush1.bf16.msra.mxu0 %v1918
        %2422 = vmatprep.subr.bf16.mxu0 %v1923
        %2423 = vmatpush1.bf16.msra.mxu0 %v1922
        %2424 = vmatprep.subr.bf16.mxu0 %v1927
        %2425 = vmatpush1.bf16.msra.mxu0 %v1926
        %2426 = vmatprep.subr.bf16.mxu0 %v1931
        %2427 = vmatpush1.bf16.msra.mxu0 %v1930
        %2428 = vmatprep.subr.bf16.mxu0 %v1935
        %2429 = vmatpush1.bf16.msra.mxu0 %v1934
        %2430 = vmatprep.subr.bf16.mxu0 %v1939
        %2431 = vmatpush1.bf16.msra.mxu0 %v1938
        %2432 = vmatprep.subr.bf16.mxu0 %v1943
        %2433 = vmatpush1.bf16.msra.mxu0 %v1942
        %2434 = vmatprep.subr.bf16.mxu0 %v1947
        %2435 = vmatpush1.bf16.msra.mxu0 %v1946
        %2436 = vmatprep.subr.bf16.mxu0 %v1951
        %2437 = vmatpush1.bf16.msra.mxu0 %v1950
        %2438 = vmatprep.subr.bf16.mxu0 %v1955
        %2439 = vmatpush1.bf16.msra.mxu0 %v1954
        %2440 = vmatprep.subr.bf16.mxu0 %v1959
        %2441 = vmatpush1.bf16.msra.mxu0 %v1958
        %2442 = vmatprep.mubr.bf16.mxu0 %v1099
        %2443 = vmatmul.mubr.bf16.gmra.mrb[0].mxu0 %v1098
        %v2444 = vpop.f32.mrb[0].mxu0
        %v2445 = vadd.f32 %v1033, %v2444
        %v2446 = vpop.f32.mrb[0].mxu0
        %v2447 = vadd.f32 %v1037, %v2446
        %v2448 = vpop.f32.mrb[0].mxu0
        %v2449 = vadd.f32 %v1033, %v2448
        %v2450 = vpop.f32.mrb[0].mxu0
        %v2451 = vadd.f32 %v1037, %v2450
        %2452 = vmatprep.mubr.bf16.mxu0 %v1107
        %2453 = vmatmul.mubr.bf16.gmra.mrb[0].mxu0 %v1106
        %v2454 = vpop.f32.mrb[0].mxu0
        %v2455 = vadd.f32 %v1033, %v2454
        %v2456 = vpop.f32.mrb[0].mxu0
        %v2457 = vadd.f32 %v1037, %v2456
        %v2458 = vpop.f32.mrb[0].mxu0
        %v2459 = vadd.f32 %v1033, %v2458
        %v2460 = vpop.f32.mrb[0].mxu0
        %v2461 = vadd.f32 %v1037, %v2460
        %2462 = vdwg.mxu0
        %2463 = vmatprep.subr.bf16.mxu0 %v1963
        %2464 = vmatpush1.bf16.msra.mxu0 %v1962
        %2465 = vmatprep.subr.bf16.mxu0 %v1967
        %2466 = vmatpush1.bf16.msra.mxu0 %v1966
        %2467 = vmatprep.subr.bf16.mxu0 %v1971
        %2468 = vmatpush1.bf16.msra.mxu0 %v1970
        %2469 = vmatprep.subr.bf16.mxu0 %v1975
        %2470 = vmatpush1.bf16.msra.mxu0 %v1974
        %2471 = vmatprep.subr.bf16.mxu0 %v1979
        %2472 = vmatpush1.bf16.msra.mxu0 %v1978
        %2473 = vmatprep.subr.bf16.mxu0 %v1983
        %2474 = vmatpush1.bf16.msra.mxu0 %v1982
        %2475 = vmatprep.subr.bf16.mxu0 %v1987
        %2476 = vmatpush1.bf16.msra.mxu0 %v1986
        %2477 = vmatprep.subr.bf16.mxu0 %v1991
        %2478 = vmatpush1.bf16.msra.mxu0 %v1990
        %2479 = vmatprep.subr.bf16.mxu0 %v1995
        %2480 = vmatpush1.bf16.msra.mxu0 %v1994
        %2481 = vmatprep.subr.bf16.mxu0 %v1999
        %2482 = vmatpush1.bf16.msra.mxu0 %v1998
        %2483 = vmatprep.subr.bf16.mxu0 %v2003
        %2484 = vmatpush1.bf16.msra.mxu0 %v2002
        %2485 = vmatprep.subr.bf16.mxu0 %v2007
        %2486 = vmatpush1.bf16.msra.mxu0 %v2006
        %2487 = vmatprep.subr.bf16.mxu0 %v2011
        %2488 = vmatpush1.bf16.msra.mxu0 %v2010
        %2489 = vmatprep.subr.bf16.mxu0 %v2015
        %2490 = vmatpush1.bf16.msra.mxu0 %v2014
        %2491 = vmatprep.subr.bf16.mxu0 %v2019
        %2492 = vmatpush1.bf16.msra.mxu0 %v2018
        %2493 = vmatprep.subr.bf16.mxu0 %v2023
        %2494 = vmatpush1.bf16.msra.mxu0 %v2022
        %2495 = vmatprep.mubr.bf16.mxu0 %v1101
        %2496 = vmatmul.mubr.bf16.gmra.mrb[0].mxu0 %v1100
        %v2497 = vpop.f32.mrb[0].mxu0
        %v2498 = vadd.f32 %v2445, %v2497
        %v2499 = vpop.f32.mrb[0].mxu0
        %v2500 = vadd.f32 %v2447, %v2499
        %v2501 = vpop.f32.mrb[0].mxu0
        %v2502 = vadd.f32 %v2449, %v2501
        %v2503 = vpop.f32.mrb[0].mxu0
        %v2504 = vadd.f32 %v2451, %v2503
        %2505 = vmatprep.mubr.bf16.mxu0 %v1109
        %2506 = vmatmul.mubr.bf16.gmra.mrb[0].mxu0 %v1108
        %v2507 = vpop.f32.mrb[0].mxu0
        %v2508 = vadd.f32 %v2455, %v2507
        %v2509 = vpop.f32.mrb[0].mxu0
        %v2510 = vadd.f32 %v2457, %v2509
        %v2511 = vpop.f32.mrb[0].mxu0
        %v2512 = vadd.f32 %v2459, %v2511
        %v2513 = vpop.f32.mrb[0].mxu0
        %v2514 = vadd.f32 %v2461, %v2513
        %2515 = vdwg.mxu0
        %2516 = vmatprep.subr.bf16.mxu0 %v2027
        %2517 = vmatpush1.bf16.msra.mxu0 %v2026
        %2518 = vmatprep.subr.bf16.mxu0 %v2031
        %2519 = vmatpush1.bf16.msra.mxu0 %v2030
        %2520 = vmatprep.subr.bf16.mxu0 %v2035
        %2521 = vmatpush1.bf16.msra.mxu0 %v2034
        %2522 = vmatprep.subr.bf16.mxu0 %v2039
        %2523 = vmatpush1.bf16.msra.mxu0 %v2038
        %2524 = vmatprep.subr.bf16.mxu0 %v2043
        %2525 = vmatpush1.bf16.msra.mxu0 %v2042
        %2526 = vmatprep.subr.bf16.mxu0 %v2047
        %2527 = vmatpush1.bf16.msra.mxu0 %v2046
        %2528 = vmatprep.subr.bf16.mxu0 %v2051
        %2529 = vmatpush1.bf16.msra.mxu0 %v2050
        %2530 = vmatprep.subr.bf16.mxu0 %v2055
        %2531 = vmatpush1.bf16.msra.mxu0 %v2054
        %2532 = vmatprep.subr.bf16.mxu0 %v2059
        %2533 = vmatpush1.bf16.msra.mxu0 %v2058
        %2534 = vmatprep.subr.bf16.mxu0 %v2063
        %2535 = vmatpush1.bf16.msra.mxu0 %v2062
        %2536 = vmatprep.subr.bf16.mxu0 %v2067
        %2537 = vmatpush1.bf16.msra.mxu0 %v2066
        %2538 = vmatprep.subr.bf16.mxu0 %v2071
        %2539 = vmatpush1.bf16.msra.mxu0 %v2070
        %2540 = vmatprep.subr.bf16.mxu0 %v2075
        %2541 = vmatpush1.bf16.msra.mxu0 %v2074
        %2542 = vmatprep.subr.bf16.mxu0 %v2079
        %2543 = vmatpush1.bf16.msra.mxu0 %v2078
        %2544 = vmatprep.subr.bf16.mxu0 %v2083
        %2545 = vmatpush1.bf16.msra.mxu0 %v2082
        %2546 = vmatprep.subr.bf16.mxu0 %v2087
        %2547 = vmatpush1.bf16.msra.mxu0 %v2086
        %2548 = vmatprep.mubr.bf16.mxu0 %v1103
        %2549 = vmatmul.mubr.bf16.gmra.mrb[0].mxu0 %v1102
        %v2550 = vpop.f32.mrb[0].mxu0
        %v2551 = vadd.f32 %v2498, %v2550
        %v2552 = vpop.f32.mrb[0].mxu0
        %v2553 = vadd.f32 %v2500, %v2552
        %v2554 = vpop.f32.mrb[0].mxu0
        %v2555 = vadd.f32 %v2502, %v2554
        %v2556 = vpop.f32.mrb[0].mxu0
        %v2557 = vadd.f32 %v2504, %v2556
        %2558 = vmatprep.mubr.bf16.mxu0 %v1111
        %2559 = vmatmul.mubr.bf16.gmra.mrb[0].mxu0 %v1110
        %v2560 = vpop.f32.mrb[0].mxu0
        %v2561 = vadd.f32 %v2508, %v2560
        %v2562 = vpop.f32.mrb[0].mxu0
        %v2563 = vadd.f32 %v2510, %v2562
        %v2564 = vpop.f32.mrb[0].mxu0
        %v2565 = vadd.f32 %v2512, %v2564
        %v2566 = vpop.f32.mrb[0].mxu0
        %v2567 = vadd.f32 %v2514, %v2566
        %2568 = vdwg.mxu0
        %2569 = vmatprep.subr.bf16.mxu0 %v2091
        %2570 = vmatpush1.bf16.msra.mxu0 %v2090
        %2571 = vmatprep.subr.bf16.mxu0 %v2095
        %2572 = vmatpush1.bf16.msra.mxu0 %v2094
        %2573 = vmatprep.subr.bf16.mxu0 %v2099
        %2574 = vmatpush1.bf16.msra.mxu0 %v2098
        %2575 = vmatprep.subr.bf16.mxu0 %v2103
        %2576 = vmatpush1.bf16.msra.mxu0 %v2102
        %2577 = vmatprep.subr.bf16.mxu0 %v2107
        %2578 = vmatpush1.bf16.msra.mxu0 %v2106
        %2579 = vmatprep.subr.bf16.mxu0 %v2111
        %2580 = vmatpush1.bf16.msra.mxu0 %v2110
        %2581 = vmatprep.subr.bf16.mxu0 %v2115
        %2582 = vmatpush1.bf16.msra.mxu0 %v2114
        %2583 = vmatprep.subr.bf16.mxu0 %v2119
        %2584 = vmatpush1.bf16.msra.mxu0 %v2118
        %2585 = vmatprep.subr.bf16.mxu0 %v2123
        %2586 = vmatpush1.bf16.msra.mxu0 %v2122
        %2587 = vmatprep.subr.bf16.mxu0 %v2127
        %2588 = vmatpush1.bf16.msra.mxu0 %v2126
        %2589 = vmatprep.subr.bf16.mxu0 %v2131
        %2590 = vmatpush1.bf16.msra.mxu0 %v2130
        %2591 = vmatprep.subr.bf16.mxu0 %v2135
        %2592 = vmatpush1.bf16.msra.mxu0 %v2134
        %2593 = vmatprep.subr.bf16.mxu0 %v2139
        %2594 = vmatpush1.bf16.msra.mxu0 %v2138
        %2595 = vmatprep.subr.bf16.mxu0 %v2143
        %2596 = vmatpush1.bf16.msra.mxu0 %v2142
        %2597 = vmatprep.subr.bf16.mxu0 %v2147
        %2598 = vmatpush1.bf16.msra.mxu0 %v2146
        %2599 = vmatprep.subr.bf16.mxu0 %v2151
        %2600 = vmatpush1.bf16.msra.mxu0 %v2150
        %2601 = vmatprep.mubr.bf16.mxu0 %v1105
        %2602 = vmatmul.mubr.bf16.gmra.mrb[0].mxu0 %v1104
        %v2603 = vpop.f32.mrb[0].mxu0
        %v2604 = vadd.f32 %v2551, %v2603
        %v2605 = vpop.f32.mrb[0].mxu0
        %v2606 = vadd.f32 %v2553, %v2605
        %v2607 = vpop.f32.mrb[0].mxu0
        %v2608 = vadd.f32 %v2555, %v2607
        %v2609 = vpop.f32.mrb[0].mxu0
        %v2610 = vadd.f32 %v2557, %v2609
        %2611 = vmatprep.mubr.bf16.mxu0 %v1113
        %2612 = vmatmul.mubr.bf16.gmra.mrb[0].mxu0 %v1112
        %v2613 = vpop.f32.mrb[0].mxu0
        %v2614 = vadd.f32 %v2561, %v2613
        %v2615 = vpop.f32.mrb[0].mxu0
        %v2616 = vadd.f32 %v2563, %v2615
        %v2617 = vpop.f32.mrb[0].mxu0
        %v2618 = vadd.f32 %v2565, %v2617
        %v2619 = vpop.f32.mrb[0].mxu0
        %v2620 = vadd.f32 %v2567, %v2619
        %2621 = vdwg.mxu0
        %2622 = vmatprep.subr.bf16.mxu0 %v1901
        %2623 = vmatpush1.bf16.msra.mxu0 %v1900
        %2624 = vmatprep.subr.bf16.mxu0 %v1905
        %2625 = vmatpush1.bf16.msra.mxu0 %v1904
        %2626 = vmatprep.subr.bf16.mxu0 %v1909
        %2627 = vmatpush1.bf16.msra.mxu0 %v1908
        %2628 = vmatprep.subr.bf16.mxu0 %v1913
        %2629 = vmatpush1.bf16.msra.mxu0 %v1912
        %2630 = vmatprep.subr.bf16.mxu0 %v1917
        %2631 = vmatpush1.bf16.msra.mxu0 %v1916
        %2632 = vmatprep.subr.bf16.mxu0 %v1921
        %2633 = vmatpush1.bf16.msra.mxu0 %v1920
        %2634 = vmatprep.subr.bf16.mxu0 %v1925
        %2635 = vmatpush1.bf16.msra.mxu0 %v1924
        %2636 = vmatprep.subr.bf16.mxu0 %v1929
        %2637 = vmatpush1.bf16.msra.mxu0 %v1928
        %2638 = vmatprep.subr.bf16.mxu0 %v1933
        %2639 = vmatpush1.bf16.msra.mxu0 %v1932
        %2640 = vmatprep.subr.bf16.mxu0 %v1937
        %2641 = vmatpush1.bf16.msra.mxu0 %v1936
        %2642 = vmatprep.subr.bf16.mxu0 %v1941
        %2643 = vmatpush1.bf16.msra.mxu0 %v1940
        %2644 = vmatprep.subr.bf16.mxu0 %v1945
        %2645 = vmatpush1.bf16.msra.mxu0 %v1944
        %2646 = vmatprep.subr.bf16.mxu0 %v1949
        %2647 = vmatpush1.bf16.msra.mxu0 %v1948
        %2648 = vmatprep.subr.bf16.mxu0 %v1953
        %2649 = vmatpush1.bf16.msra.mxu0 %v1952
        %2650 = vmatprep.subr.bf16.mxu0 %v1957
        %2651 = vmatpush1.bf16.msra.mxu0 %v1956
        %2652 = vmatprep.subr.bf16.mxu0 %v1961
        %2653 = vmatpush1.bf16.msra.mxu0 %v1960
        %2654 = vmatprep.mubr.bf16.mxu0 %v1099
        %2655 = vmatmul.mubr.bf16.gmra.mrb[0].mxu0 %v1098
        %v2656 = vpop.f32.mrb[0].mxu0
        %v2657 = vadd.f32 %v1041, %v2656
        %v2658 = vpop.f32.mrb[0].mxu0
        %v2659 = vadd.f32 %v1045, %v2658
        %v2660 = vpop.f32.mrb[0].mxu0
        %v2661 = vadd.f32 %v1041, %v2660
        %v2662 = vpop.f32.mrb[0].mxu0
        %v2663 = vadd.f32 %v1045, %v2662
        %2664 = vmatprep.mubr.bf16.mxu0 %v1107
        %2665 = vmatmul.mubr.bf16.gmra.mrb[0].mxu0 %v1106
        %v2666 = vpop.f32.mrb[0].mxu0
        %v2667 = vadd.f32 %v1041, %v2666
        %v2668 = vpop.f32.mrb[0].mxu0
        %v2669 = vadd.f32 %v1045, %v2668
        %v2670 = vpop.f32.mrb[0].mxu0
        %v2671 = vadd.f32 %v1041, %v2670
        %v2672 = vpop.f32.mrb[0].mxu0
        %v2673 = vadd.f32 %v1045, %v2672
        %2674 = vdwg.mxu0
        %2675 = vmatprep.subr.bf16.mxu0 %v1965
        %2676 = vmatpush1.bf16.msra.mxu0 %v1964
        %2677 = vmatprep.subr.bf16.mxu0 %v1969
        %2678 = vmatpush1.bf16.msra.mxu0 %v1968
        %2679 = vmatprep.subr.bf16.mxu0 %v1973
        %2680 = vmatpush1.bf16.msra.mxu0 %v1972
        %2681 = vmatprep.subr.bf16.mxu0 %v1977
        %2682 = vmatpush1.bf16.msra.mxu0 %v1976
        %2683 = vmatprep.subr.bf16.mxu0 %v1981
        %2684 = vmatpush1.bf16.msra.mxu0 %v1980
        %2685 = vmatprep.subr.bf16.mxu0 %v1985
        %2686 = vmatpush1.bf16.msra.mxu0 %v1984
        %2687 = vmatprep.subr.bf16.mxu0 %v1989
        %2688 = vmatpush1.bf16.msra.mxu0 %v1988
        %2689 = vmatprep.subr.bf16.mxu0 %v1993
        %2690 = vmatpush1.bf16.msra.mxu0 %v1992
        %2691 = vmatprep.subr.bf16.mxu0 %v1997
        %2692 = vmatpush1.bf16.msra.mxu0 %v1996
        %2693 = vmatprep.subr.bf16.mxu0 %v2001
        %2694 = vmatpush1.bf16.msra.mxu0 %v2000
        %2695 = vmatprep.subr.bf16.mxu0 %v2005
        %2696 = vmatpush1.bf16.msra.mxu0 %v2004
        %2697 = vmatprep.subr.bf16.mxu0 %v2009
        %2698 = vmatpush1.bf16.msra.mxu0 %v2008
        %2699 = vmatprep.subr.bf16.mxu0 %v2013
        %2700 = vmatpush1.bf16.msra.mxu0 %v2012
        %2701 = vmatprep.subr.bf16.mxu0 %v2017
        %2702 = vmatpush1.bf16.msra.mxu0 %v2016
        %2703 = vmatprep.subr.bf16.mxu0 %v2021
        %2704 = vmatpush1.bf16.msra.mxu0 %v2020
        %2705 = vmatprep.subr.bf16.mxu0 %v2025
        %2706 = vmatpush1.bf16.msra.mxu0 %v2024
        %2707 = vmatprep.mubr.bf16.mxu0 %v1101
        %2708 = vmatmul.mubr.bf16.gmra.mrb[0].mxu0 %v1100
        %v2709 = vpop.f32.mrb[0].mxu0
        %v2710 = vadd.f32 %v2657, %v2709
        %v2711 = vpop.f32.mrb[0].mxu0
        %v2712 = vadd.f32 %v2659, %v2711
        %v2713 = vpop.f32.mrb[0].mxu0
        %v2714 = vadd.f32 %v2661, %v2713
        %v2715 = vpop.f32.mrb[0].mxu0
        %v2716 = vadd.f32 %v2663, %v2715
        %2717 = vmatprep.mubr.bf16.mxu0 %v1109
        %2718 = vmatmul.mubr.bf16.gmra.mrb[0].mxu0 %v1108
        %v2719 = vpop.f32.mrb[0].mxu0
        %v2720 = vadd.f32 %v2667, %v2719
        %v2721 = vpop.f32.mrb[0].mxu0
        %v2722 = vadd.f32 %v2669, %v2721
        %v2723 = vpop.f32.mrb[0].mxu0
        %v2724 = vadd.f32 %v2671, %v2723
        %v2725 = vpop.f32.mrb[0].mxu0
        %v2726 = vadd.f32 %v2673, %v2725
        %2727 = vdwg.mxu0
        %2728 = vmatprep.subr.bf16.mxu0 %v2029
        %2729 = vmatpush1.bf16.msra.mxu0 %v2028
        %2730 = vmatprep.subr.bf16.mxu0 %v2033
        %2731 = vmatpush1.bf16.msra.mxu0 %v2032
        %2732 = vmatprep.subr.bf16.mxu0 %v2037
        %2733 = vmatpush1.bf16.msra.mxu0 %v2036
        %2734 = vmatprep.subr.bf16.mxu0 %v2041
        %2735 = vmatpush1.bf16.msra.mxu0 %v2040
        %2736 = vmatprep.subr.bf16.mxu0 %v2045
        %2737 = vmatpush1.bf16.msra.mxu0 %v2044
        %2738 = vmatprep.subr.bf16.mxu0 %v2049
        %2739 = vmatpush1.bf16.msra.mxu0 %v2048
        %2740 = vmatprep.subr.bf16.mxu0 %v2053
        %2741 = vmatpush1.bf16.msra.mxu0 %v2052
        %2742 = vmatprep.subr.bf16.mxu0 %v2057
        %2743 = vmatpush1.bf16.msra.mxu0 %v2056
        %2744 = vmatprep.subr.bf16.mxu0 %v2061
        %2745 = vmatpush1.bf16.msra.mxu0 %v2060
        %2746 = vmatprep.subr.bf16.mxu0 %v2065
        %2747 = vmatpush1.bf16.msra.mxu0 %v2064
        %2748 = vmatprep.subr.bf16.mxu0 %v2069
        %2749 = vmatpush1.bf16.msra.mxu0 %v2068
        %2750 = vmatprep.subr.bf16.mxu0 %v2073
        %2751 = vmatpush1.bf16.msra.mxu0 %v2072
        %2752 = vmatprep.subr.bf16.mxu0 %v2077
        %2753 = vmatpush1.bf16.msra.mxu0 %v2076
        %2754 = vmatprep.subr.bf16.mxu0 %v2081
        %2755 = vmatpush1.bf16.msra.mxu0 %v2080
        %2756 = vmatprep.subr.bf16.mxu0 %v2085
        %2757 = vmatpush1.bf16.msra.mxu0 %v2084
        %2758 = vmatprep.subr.bf16.mxu0 %v2089
        %2759 = vmatpush1.bf16.msra.mxu0 %v2088
        %2760 = vmatprep.mubr.bf16.mxu0 %v1103
        %2761 = vmatmul.mubr.bf16.gmra.mrb[0].mxu0 %v1102
        %v2762 = vpop.f32.mrb[0].mxu0
        %v2763 = vadd.f32 %v2710, %v2762
        %v2764 = vpop.f32.mrb[0].mxu0
        %v2765 = vadd.f32 %v2712, %v2764
        %v2766 = vpop.f32.mrb[0].mxu0
        %v2767 = vadd.f32 %v2714, %v2766
        %v2768 = vpop.f32.mrb[0].mxu0
        %v2769 = vadd.f32 %v2716, %v2768
        %2770 = vmatprep.mubr.bf16.mxu0 %v1111
        %2771 = vmatmul.mubr.bf16.gmra.mrb[0].mxu0 %v1110
        %v2772 = vpop.f32.mrb[0].mxu0
        %v2773 = vadd.f32 %v2720, %v2772
        %v2774 = vpop.f32.mrb[0].mxu0
        %v2775 = vadd.f32 %v2722, %v2774
        %v2776 = vpop.f32.mrb[0].mxu0
        %v2777 = vadd.f32 %v2724, %v2776
        %v2778 = vpop.f32.mrb[0].mxu0
        %v2779 = vadd.f32 %v2726, %v2778
        %2780 = vdwg.mxu0
        %2781 = vmatprep.subr.bf16.mxu0 %v2093
        %2782 = vmatpush1.bf16.msra.mxu0 %v2092
        %2783 = vmatprep.subr.bf16.mxu0 %v2097
        %2784 = vmatpush1.bf16.msra.mxu0 %v2096
        %2785 = vmatprep.subr.bf16.mxu0 %v2101
        %2786 = vmatpush1.bf16.msra.mxu0 %v2100
        %2787 = vmatprep.subr.bf16.mxu0 %v2105
        %2788 = vmatpush1.bf16.msra.mxu0 %v2104
        %2789 = vmatprep.subr.bf16.mxu0 %v2109
        %2790 = vmatpush1.bf16.msra.mxu0 %v2108
        %2791 = vmatprep.subr.bf16.mxu0 %v2113
        %2792 = vmatpush1.bf16.msra.mxu0 %v2112
        %2793 = vmatprep.subr.bf16.mxu0 %v2117
        %2794 = vmatpush1.bf16.msra.mxu0 %v2116
        %2795 = vmatprep.subr.bf16.mxu0 %v2121
        %2796 = vmatpush1.bf16.msra.mxu0 %v2120
        %2797 = vmatprep.subr.bf16.mxu0 %v2125
        %2798 = vmatpush1.bf16.msra.mxu0 %v2124
        %2799 = vmatprep.subr.bf16.mxu0 %v2129
        %2800 = vmatpush1.bf16.msra.mxu0 %v2128
        %2801 = vmatprep.subr.bf16.mxu0 %v2133
        %2802 = vmatpush1.bf16.msra.mxu0 %v2132
        %2803 = vmatprep.subr.bf16.mxu0 %v2137
        %2804 = vmatpush1.bf16.msra.mxu0 %v2136
        %2805 = vmatprep.subr.bf16.mxu0 %v2141
        %2806 = vmatpush1.bf16.msra.mxu0 %v2140
        %2807 = vmatprep.subr.bf16.mxu0 %v2145
        %2808 = vmatpush1.bf16.msra.mxu0 %v2144
        %2809 = vmatprep.subr.bf16.mxu0 %v2149
        %2810 = vmatpush1.bf16.msra.mxu0 %v2148
        %2811 = vmatprep.subr.bf16.mxu0 %v2153
        %2812 = vmatpush1.bf16.msra.mxu0 %v2152
        %2813 = vmatprep.mubr.bf16.mxu0 %v1105
        %2814 = vmatmul.mubr.bf16.gmra.mrb[0].mxu0 %v1104
        %v2815 = vpop.f32.mrb[0].mxu0
        %v2816 = vadd.f32 %v2763, %v2815
        %v2817 = vpop.f32.mrb[0].mxu0
        %v2818 = vadd.f32 %v2765, %v2817
        %v2819 = vpop.f32.mrb[0].mxu0
        %v2820 = vadd.f32 %v2767, %v2819
        %v2821 = vpop.f32.mrb[0].mxu0
        %v2822 = vadd.f32 %v2769, %v2821
        %2823 = vmatprep.mubr.bf16.mxu0 %v1113
        %2824 = vmatmul.mubr.bf16.gmra.mrb[0].mxu0 %v1112
        %v2825 = vpop.f32.mrb[0].mxu0
        %v2826 = vadd.f32 %v2773, %v2825
        %v2827 = vpop.f32.mrb[0].mxu0
        %v2828 = vadd.f32 %v2775, %v2827
        %v2829 = vpop.f32.mrb[0].mxu0
        %v2830 = vadd.f32 %v2777, %v2829
        %v2831 = vpop.f32.mrb[0].mxu0
        %v2832 = vadd.f32 %v2779, %v2831
        %2833 = vdwg.mxu0
        %v2834 = vmax.f32 %v2604, 0.0
        %v2835 = vmax.f32 %v2606, 0.0
        %v2836 = vmax.f32 %v2816, 0.0
        %v2837 = vmax.f32 %v2818, 0.0
        %v2838 = vmax.f32 %v2608, 0.0
        %v2839 = vmax.f32 %v2610, 0.0
        %v2840 = vmax.f32 %v2820, 0.0
        %v2841 = vmax.f32 %v2822, 0.0
        %v2842 = vmax.f32 %v2614, 0.0
        %v2843 = vmax.f32 %v2616, 0.0
        %v2844 = vmax.f32 %v2826, 0.0
        %v2845 = vmax.f32 %v2828, 0.0
        %v2846 = vmax.f32 %v2618, 0.0
        %v2847 = vmax.f32 %v2620, 0.0
        %v2848 = vmax.f32 %v2830, 0.0
        %v2849 = vmax.f32 %v2832, 0.0
        %2850 = vst [vmem:[%s740] sm:$0xff] %v2834
        %2851 = vst [vmem:[%s740 + $0x8] sm:$0xff] %v2835
        %2852 = vst [vmem:[%s740 + $0x10] sm:$0xff] %v2836
        %2853 = vst [vmem:[%s740 + $0x18] sm:$0xff] %v2837
        %2854 = vst [vmem:[%s740 + $0x20] sm:$0xff] %v2838
        %2855 = vst [vmem:[%s740 + $0x28] sm:$0xff] %v2839
        %2856 = vst [vmem:[%s740 + $0x30] sm:$0xff] %v2840
        %2857 = vst [vmem:[%s740 + $0x38] sm:$0xff] %v2841
        %2858 = vst [vmem:[%s740 + $0x40] sm:$0xff] %v2842
        %2859 = vst [vmem:[%s740 + $0x48] sm:$0xff] %v2843
        %2860 = vst [vmem:[%s740 + $0x50] sm:$0xff] %v2844
        %2861 = vst [vmem:[%s740 + $0x58] sm:$0xff] %v2845
        %2862 = vst [vmem:[%s740 + $0x60] sm:$0xff] %v2846
        %2863 = vst [vmem:[%s740 + $0x68] sm:$0xff] %v2847
        %2864 = vst [vmem:[%s740 + $0x70] sm:$0xff] %v2848
        %2865 = vst [vmem:[%s740 + $0x78] sm:$0xff] %v2849
        %s2866 = sand.u32 %s114, 1
        %s2867 = sand.u32 %s114, 1
        %s2868 = smul.addr %s2867, 128
        %s2869 = scalar_lea.vmem [#allocation3], %s2868
        // Predicated region
        $region56: #{decoder_forward_fused.6} parent=50 // pred_check
          %p2870 = pneg %p124
        $region57: #{decoder_forward_fused.6} parent=50 // pred_check_branch
          %2872 = sbr.rel (%p2870) target = $region59
        $region58: #{decoder_forward_fused.6} parent=50 // pred_region
          %s2873 = smul.u32 4, %s18
          %s2874 = smul.u32 4, %s19
          %s2875 = smul.addr %s2873, 8
          %s2876 = sadd.s32 %s2874, %s2875
          %s2877 = smul.addr %s2876, 8
          %s2878 = scalar_lea.vmem %s3, %s2877
          // Predicated region
          $region60: #{decoder_forward_fused.6} parent=58 // pred_check
            _
          $region61: #{decoder_forward_fused.6} parent=58 // pred_check_branch
            %2880 = sbr.rel (0) target = $region63
          $region62: #{decoder_forward_fused.6} parent=58 // pred_region
            // Predicated region
            $region64: #{decoder_forward_fused.6} parent=62 // pred_check
              _
            $region65: #{decoder_forward_fused.6} parent=62 // pred_check_branch
              %2882 = sbr.rel (0) target = $region67
            $region66: #{decoder_forward_fused.6} parent=62 // pred_region
              loop: start=0, step=1, limit=1
              $region68: #{decoder_forward_fused.6} parent=66 // loop_pre_header
                _
              $region69: #{decoder_forward_fused.6} parent=66 // loop_header
                %s2884 = sphi 0, %s2888
                %p2885 = scmp.ge.s32.totalorder %s2884, 1
                %s2889 = sphi %s2869, %s2869
                %s2890 = sphi %s2878, %s2878
              $region70: #{decoder_forward_fused.6} parent=66 // loop_header_branch
                %2887 = sbr.rel (%p2885) target = $region74
              $region71: #{decoder_forward_fused.6} parent=66 // loop_body
                %v2891 = vld [vmem:[%s2889] sm:$0xff]
                %2892 = vst [vmem:[%s2890] sm:$0xff] %v2891
                %v2893 = vld [vmem:[%s2889 + $0x8] sm:$0xff]
                %2894 = vst [vmem:[%s2890 + $0x8] sm:$0xff] %v2893
                %v2895 = vld [vmem:[%s2889 + $0x10] sm:$0xff]
                %2896 = vst [vmem:[%s2890 + $0x10] sm:$0xff] %v2895
                %v2897 = vld [vmem:[%s2889 + $0x18] sm:$0xff]
                %2898 = vst [vmem:[%s2890 + $0x18] sm:$0xff] %v2897
                %v2899 = vld [vmem:[%s2889 + $0x20] sm:$0xff]
                %2900 = vst [vmem:[%s2890 + $0x40] sm:$0xff] %v2899
                %v2901 = vld [vmem:[%s2889 + $0x28] sm:$0xff]
                %2902 = vst [vmem:[%s2890 + $0x48] sm:$0xff] %v2901
                %v2903 = vld [vmem:[%s2889 + $0x30] sm:$0xff]
                %2904 = vst [vmem:[%s2890 + $0x50] sm:$0xff] %v2903
                %v2905 = vld [vmem:[%s2889 + $0x38] sm:$0xff]
                %2906 = vst [vmem:[%s2890 + $0x58] sm:$0xff] %v2905
                %v2907 = vld [vmem:[%s2889 + $0x40] sm:$0xff]
                %2908 = vst [vmem:[%s2890 + $0x80] sm:$0xff] %v2907
                %v2909 = vld [vmem:[%s2889 + $0x48] sm:$0xff]
                %2910 = vst [vmem:[%s2890 + $0x88] sm:$0xff] %v2909
                %v2911 = vld [vmem:[%s2889 + $0x50] sm:$0xff]
                %2912 = vst [vmem:[%s2890 + $0x90] sm:$0xff] %v2911
                %v2913 = vld [vmem:[%s2889 + $0x58] sm:$0xff]
                %2914 = vst [vmem:[%s2890 + $0x98] sm:$0xff] %v2913
                %v2915 = vld [vmem:[%s2889 + $0x60] sm:$0xff]
                %2916 = vst [vmem:[%s2890 + $0xc0] sm:$0xff] %v2915
                %v2917 = vld [vmem:[%s2889 + $0x68] sm:$0xff]
                %2918 = vst [vmem:[%s2890 + $0xc8] sm:$0xff] %v2917
                %v2919 = vld [vmem:[%s2889 + $0x70] sm:$0xff]
                %2920 = vst [vmem:[%s2890 + $0xd0] sm:$0xff] %v2919
                %v2921 = vld [vmem:[%s2889 + $0x78] sm:$0xff]
                %2922 = vst [vmem:[%s2890 + $0xd8] sm:$0xff] %v2921
              $region72: #{decoder_forward_fused.6} parent=66 // loop_footer
                %s2888 = sadd.s32 1, %s2884
              $region73: #{decoder_forward_fused.6} parent=66 // loop_footer_branch
                %2883 = sbr.rel target = $region69
              $region74: #{decoder_forward_fused.6} parent=66 // loop_exit
                _
            $region67: #{decoder_forward_fused.6} parent=62 // pred_fallthru
              _
            // Predicated region
            $region75: #{decoder_forward_fused.6} parent=62 // pred_check
              _
            $region76: #{decoder_forward_fused.6} parent=62 // pred_check_branch
              %2924 = sbr.rel target = $region78
            $region77: #{decoder_forward_fused.6} parent=62 // pred_region
              _
            $region78: #{decoder_forward_fused.6} parent=62 // pred_fallthru
              _
          $region63: #{decoder_forward_fused.6} parent=58 // pred_fallthru
            _
          %2925 = vnop
        $region59: #{decoder_forward_fused.6} parent=50 // pred_fallthru
          _
      $region51: #{decoder_forward_fused.6} parent=5 // pred_fallthru
        _
      %p2926 = scmp.le.s32.totalorder 2, %s9
      // Predicated region
      $region79: #{decoder_forward_fused.6} parent=5 // pred_check
        %p2927 = pneg %p2926
      $region80: #{decoder_forward_fused.6} parent=5 // pred_check_branch
        %2929 = sbr.rel (%p2927) target = $region82
      $region81: #{decoder_forward_fused.6} parent=5 // pred_region
        %s2930 = ssub.s32 %s9, 2
        // Predicated region
        $region83: #{decoder_forward_fused.6} parent=81 // pred_check
          %p2931 = pneg %p130
        $region84: #{decoder_forward_fused.6} parent=81 // pred_check_branch
          %2933 = sbr.rel (%p2931) target = $region86
        $region85: #{decoder_forward_fused.6} parent=81 // pred_region
          %s2934 = sand.u32 %s115, 1
          %s2935 = sand.u32 %s115, 1
          %s2936 = smul.addr %s2935, 128
          %s2937 = scalar_lea.vmem [#allocation3], %s2936
        $region86: #{decoder_forward_fused.6} parent=81 // pred_fallthru
          _
      $region82: #{decoder_forward_fused.6} parent=5 // pred_fallthru
        _
    $region6: #{decoder_forward_fused.6} parent=1 // loop_footer
      %s13 = sadd.s32 1, %s9
    $region7: #{decoder_forward_fused.6} parent=1 // loop_footer_branch
      %8 = sbr.rel target = $region3
    $region8: #{decoder_forward_fused.6} parent=1 // loop_exit
      _

// kernel: decoder_forward_fused.8
$region0: #{decoder_forward_fused.8}
  #allocation0 [shape = 'u32[]', space=smem, size = 0x4, offset = 0x4, fixed_abs, tag = 'smem constant byte address 0x4 - core index']
  #allocation1 [shape = 'u32[144,128]{1,0:T(1,128)}', space=vmem, size = 0x12000, scoped, tag = 'internal scratch']
  %s0 = inlined_call_operand.vmem [shape: bf16[512,256], index: 0, kind: input, shape index: {}]
  %s1 = inlined_call_operand.vmem [shape: bf16[256,256], index: 1, kind: input, shape index: {}]
  %s2 = inlined_call_operand.vmem [shape: f32[1,256], index: 2, kind: input, shape index: {}]
  %s3 = inlined_call_operand.vmem [shape: f32[512,256], index: 3, kind: output, shape index: {}]
  %s4 = sld [smem:[#allocation0]]
  $region45: #{decoder_forward_fused.8} parent=0
    _
  %s6 = ssub.s32 1, %s4
  %s7 = scalar_select 0, %s6, %s4
  loop: start=0, step=1, limit=4
  $region2: #{decoder_forward_fused.8} parent=0 // loop_pre_header
    _
  $region3: #{decoder_forward_fused.8} parent=0 // loop_header
    %s9 = sphi 0, %s13
    %p10 = scmp.ge.s32.totalorder %s9, 4
    %s16 = sphi 0, %s28
    %s17 = sphi 0, %s24
    %s18 = sphi 0, %s16
    %s19 = sphi 0, %s17
    %s20 = sphi 0, %s18
    %s21 = sphi 0, %s19
    %s31 = sphi 0, %s33
    %s34 = sphi 0, %s31
    %s35 = sphi 0, %s34
    %s51 = sphi 0, %s35
    %s57 = sphi 0, %s59
    %s60 = sphi 0, %s57
    %s61 = sphi 0, %s60
    %s77 = sphi 0, %s61
    %s83 = sphi 0, %s85
    %s86 = sphi 0, %s83
    %s87 = sphi 0, %s86
    %s103 = sphi 0, %s87
    %s111 = sphi 0, %s113
    %s114 = sphi 0, %s111
    %s115 = sphi 0, %s114
    %s131 = sphi 0, %s115
  $region4: #{decoder_forward_fused.8} parent=0 // loop_header_branch
    %12 = sbr.rel (%p10) target = $region8
  $region5: #{decoder_forward_fused.8} parent=0 // loop_body
    %s14 = ssub.s32 %s9, 1
    %s15 = ssub.s32 %s9, 2
    %s22 = sadd.s32 1, %s17
    %p23 = scmp.ge.s32.totalorder %s22, 1
    %s24 = scalar_select %p23, 0, %s22
    %s25 = sadd.s32 1, %s16
    %s26 = scalar_select %p23, %s25, %s16
    %p27 = scmp.ge.s32.totalorder %s26, 2
    %s28 = scalar_select %p27, 0, %s26
    %s29 = ssub.s32 %s16, %s28
    %p30 = scmp.eq.s32.totalorder %s29, 0
    %s32 = sadd.s32 %s31, 1
    %s33 = scalar_select %p30, %s31, %s32
    %p36 = pneg %p30
    %p37 = scmp.eq.s32.totalorder %s9, 1
    %p38 = por %p36, %p37
    %p39 = scmp.ne.s32.totalorder %s31, %s34
    %p40 = scmp.eq.s32.totalorder %s9, 0
    %p41 = por %p39, %p40
    %p42 = scmp.ne.s32.totalorder %s31, %s34
    %p43 = scmp.eq.s32.totalorder %s14, 1
    %p44 = por %p42, %p43
    %p45 = scmp.ne.s32.totalorder %s34, %s35
    %p46 = scmp.eq.s32.totalorder %s14, 0
    %p47 = por %p45, %p46
    %p48 = scmp.ne.s32.totalorder %s34, %s35
    %p49 = scmp.eq.s32.totalorder %s15, 1
    %p50 = por %p48, %p49
    %p52 = scmp.ne.s32.totalorder %s35, %s51
    %p53 = scmp.eq.s32.totalorder %s15, 0
    %p54 = por %p52, %p53
    %s55 = ssub.s32 %s17, %s24
    %p56 = scmp.eq.s32.totalorder %s55, 0
    %s58 = sadd.s32 %s57, 1
    %s59 = scalar_select %p56, %s57, %s58
    %p62 = pneg %p56
    %p63 = scmp.eq.s32.totalorder %s9, 1
    %p64 = por %p62, %p63
    %p65 = scmp.ne.s32.totalorder %s57, %s60
    %p66 = scmp.eq.s32.totalorder %s9, 0
    %p67 = por %p65, %p66
    %p68 = scmp.ne.s32.totalorder %s57, %s60
    %p69 = scmp.eq.s32.totalorder %s14, 1
    %p70 = por %p68, %p69
    %p71 = scmp.ne.s32.totalorder %s60, %s61
    %p72 = scmp.eq.s32.totalorder %s14, 0
    %p73 = por %p71, %p72
    %p74 = scmp.ne.s32.totalorder %s60, %s61
    %p75 = scmp.eq.s32.totalorder %s15, 1
    %p76 = por %p74, %p75
    %p78 = scmp.ne.s32.totalorder %s61, %s77
    %p79 = scmp.eq.s32.totalorder %s15, 0
    %p80 = por %p78, %p79
    %s81 = ssub.s32 %s17, %s24
    %p82 = scmp.eq.s32.totalorder %s81, 0
    %s84 = sadd.s32 %s83, 1
    %s85 = scalar_select %p82, %s83, %s84
    %p88 = pneg %p82
    %p89 = scmp.eq.s32.totalorder %s9, 1
    %p90 = por %p88, %p89
    %p91 = scmp.ne.s32.totalorder %s83, %s86
    %p92 = scmp.eq.s32.totalorder %s9, 0
    %p93 = por %p91, %p92
    %p94 = scmp.ne.s32.totalorder %s83, %s86
    %p95 = scmp.eq.s32.totalorder %s14, 1
    %p96 = por %p94, %p95
    %p97 = scmp.ne.s32.totalorder %s86, %s87
    %p98 = scmp.eq.s32.totalorder %s14, 0
    %p99 = por %p97, %p98
    %p100 = scmp.ne.s32.totalorder %s86, %s87
    %p101 = scmp.eq.s32.totalorder %s15, 1
    %p102 = por %p100, %p101
    %p104 = scmp.ne.s32.totalorder %s87, %s103
    %p105 = scmp.eq.s32.totalorder %s15, 0
    %p106 = por %p104, %p105
    %s107 = ssub.s32 %s16, %s28
    %s108 = ssub.s32 %s17, %s24
    %s109 = sor.u32 %s107, %s108
    %p110 = scmp.eq.s32.totalorder %s109, 0
    %s112 = sadd.s32 %s111, 1
    %s113 = scalar_select %p110, %s111, %s112
    %p116 = pneg %p110
    %p117 = scmp.eq.s32.totalorder %s9, 1
    %p118 = por %p116, %p117
    %p119 = scmp.ne.s32.totalorder %s111, %s114
    %p120 = scmp.eq.s32.totalorder %s9, 0
    %p121 = por %p119, %p120
    %p122 = scmp.ne.s32.totalorder %s111, %s114
    %p123 = scmp.eq.s32.totalorder %s14, 1
    %p124 = por %p122, %p123
    %p125 = scmp.ne.s32.totalorder %s114, %s115
    %p126 = scmp.eq.s32.totalorder %s14, 0
    %p127 = por %p125, %p126
    %p128 = scmp.ne.s32.totalorder %s114, %s115
    %p129 = scmp.eq.s32.totalorder %s15, 1
    %p130 = por %p128, %p129
    %p132 = scmp.ne.s32.totalorder %s115, %s131
    %p133 = scmp.eq.s32.totalorder %s15, 0
    %p134 = por %p132, %p133
    %p135 = scmp.le.s32.totalorder 1, %s9
    %p136 = scmp.lt.s32.totalorder %s9, 3
    %p137 = pnand %p135, %p136
    %p138 = pneg %p137
    // Predicated region
    $region9: #{decoder_forward_fused.8} parent=5 // pred_check
      _
    $region10: #{decoder_forward_fused.8} parent=5 // pred_check_branch
      %140 = sbr.rel (%p137) target = $region12
    $region11: #{decoder_forward_fused.8} parent=5 // pred_region
      %s141 = ssub.s32 %s9, 1
      // Predicated region
      $region13: #{decoder_forward_fused.8} parent=11 // pred_check
        %p142 = pneg %p73
      $region14: #{decoder_forward_fused.8} parent=11 // pred_check_branch
        %144 = sbr.rel (%p142) target = $region16
      $region15: #{decoder_forward_fused.8} parent=11 // pred_region
        %s145 = smul.u32 2, %s19
        %p146 = scmp.lt.s32.totalorder %s145, 1
        %s147 = scalar_select %p146, %s145, 1
        %s148 = smul.addr %s147, 4
        %s149 = scalar_lea.vmem %s1, %s148
        %s150 = smul.u32 2, %s19
      $region16: #{decoder_forward_fused.8} parent=11 // pred_fallthru
        _
      // Predicated region
      $region17: #{decoder_forward_fused.8} parent=11 // pred_check
        %p151 = pneg %p99
      $region18: #{decoder_forward_fused.8} parent=11 // pred_check_branch
        %153 = sbr.rel (%p151) target = $region20
      $region19: #{decoder_forward_fused.8} parent=11 // pred_region
        %s154 = smul.u32 2, %s19
        %p155 = scmp.lt.s32.totalorder %s154, 1
        %s156 = scalar_select %p155, %s154, 1
        %s157 = scalar_lea.vmem %s2, %s156
        %s158 = smul.u32 2, %s19
      $region20: #{decoder_forward_fused.8} parent=11 // pred_fallthru
        _
    $region12: #{decoder_forward_fused.8} parent=5 // pred_fallthru
      _
    %p159 = scmp.lt.s32.totalorder %s9, 2
    // Predicated region
    $region21: #{decoder_forward_fused.8} parent=5 // pred_check
      %p160 = pneg %p159
    $region22: #{decoder_forward_fused.8} parent=5 // pred_check_branch
      %162 = sbr.rel (%p160) target = $region24
    $region23: #{decoder_forward_fused.8} parent=5 // pred_region
      // Predicated region
      $region25: #{decoder_forward_fused.8} parent=23 // pred_check
        %p163 = pneg %p41
      $region26: #{decoder_forward_fused.8} parent=23 // pred_check_branch
        %165 = sbr.rel (%p163) target = $region28
      $region27: #{decoder_forward_fused.8} parent=23 // pred_region
        %s166 = smul.u32 32, %s16
        %p167 = scmp.lt.s32.totalorder %s166, 63
        %s168 = scalar_select %p167, %s166, 63
        %s169 = smul.addr %s168, 2
        %s170 = smul.addr %s169, 4
        %s171 = scalar_lea.vmem %s0, %s170
        %s172 = smul.u32 32, %s16
      $region28: #{decoder_forward_fused.8} parent=23 // pred_fallthru
        _
    $region24: #{decoder_forward_fused.8} parent=5 // pred_fallthru
      _
    %p173 = scmp.le.s32.totalorder 1, %s9
    %p174 = scmp.lt.s32.totalorder %s9, 3
    %p175 = pnand %p173, %p174
    %p176 = pneg %p175
    // Predicated region
    $region29: #{decoder_forward_fused.8} parent=5 // pred_check
      _
    $region30: #{decoder_forward_fused.8} parent=5 // pred_check_branch
      %178 = sbr.rel (%p175) target = $region32
    $region31: #{decoder_forward_fused.8} parent=5 // pred_region
      %s179 = ssub.s32 %s9, 1
      %s180 = smul.u32 32, %s18
      %p181 = scmp.lt.s32.totalorder %s180, 63
      %s182 = scalar_select %p181, %s180, 63
      %s183 = smul.addr %s182, 2
      %s184 = smul.addr %s183, 4
      %s185 = scalar_lea.vmem %s0, %s184
      %p186 = pneg %p47
      %p187 = pneg %p44
      %s188 = smul.u32 2, %s19
      %p189 = scmp.lt.s32.totalorder %s188, 1
      %s190 = scalar_select %p189, %s188, 1
      %s191 = smul.addr %s190, 4
      %s192 = scalar_lea.vmem %s1, %s191
      %p193 = pneg %p73
      %p194 = pneg %p70
      %s195 = smul.u32 2, %s19
      %p196 = scmp.lt.s32.totalorder %s195, 1
      %s197 = scalar_select %p196, %s195, 1
      %s198 = scalar_lea.vmem %s2, %s197
      %p199 = pneg %p99
      %p200 = pneg %p96
      %p201 = pneg %p127
      %p202 = pneg %p124
      %s203 = smul.u32 32, %s18
      %s204 = smul.u32 2, %s19
      %p205 = scmp.lt.s32.totalorder %s203, 63
      %s206 = scalar_select %p205, %s203, 63
      %p207 = scmp.lt.s32.totalorder %s204, 1
      %s208 = scalar_select %p207, %s204, 1
      %s209 = smul.addr %s206, 2
      %s210 = sadd.s32 %s208, %s209
      %s211 = smul.addr %s210, 8
      %s212 = scalar_lea.vmem %s3, %s211
      %s213 = smul.u32 32, %s18
      %p214 = scmp.lt.s32.totalorder %s213, 63
      %s215 = scalar_select %p214, %s213, 63
      %s216 = smul.addr %s215, 2
      %s217 = smul.addr %s216, 4
      %s218 = scalar_lea.vmem %s0, %s217
      %s219 = smul.u32 32, %s18
      %s220 = smul.u32 2, %s19
      %p221 = scmp.lt.s32.totalorder %s220, 1
      %s222 = scalar_select %p221, %s220, 1
      %s223 = smul.addr %s222, 4
      %s224 = scalar_lea.vmem %s1, %s223
      %s225 = smul.u32 2, %s19
      %s226 = smul.u32 2, %s19
      %p227 = scmp.lt.s32.totalorder %s226, 1
      %s228 = scalar_select %p227, %s226, 1
      %s229 = scalar_lea.vmem %s2, %s228
      %s230 = smul.u32 2, %s19
      %s231 = smul.u32 32, %s18
      %s232 = smul.u32 2, %s19
      %p233 = scmp.lt.s32.totalorder %s231, 63
      %s234 = scalar_select %p233, %s231, 63
      %p235 = scmp.lt.s32.totalorder %s232, 1
      %s236 = scalar_select %p235, %s232, 1
      %s237 = smul.addr %s234, 2
      %s238 = sadd.s32 %s236, %s237
      %s239 = smul.addr %s238, 8
      %s240 = scalar_lea.vmem %s3, %s239
      %s241 = smul.u32 32, %s18
      %s242 = smul.u32 2, %s19
      %v243 = vld [vmem:[%s218] sm:$0xff]
      %v244 = vld [vmem:[%s218 + $0x8] sm:$0xff]
      %v245 = vld [vmem:[%s218 + $0x10] sm:$0xff]
      %v246 = vld [vmem:[%s218 + $0x18] sm:$0xff]
      %v247 = vld [vmem:[%s218 + $0x20] sm:$0xff]
      %v248 = vld [vmem:[%s218 + $0x28] sm:$0xff]
      %v249 = vld [vmem:[%s218 + $0x30] sm:$0xff]
      %v250 = vld [vmem:[%s218 + $0x38] sm:$0xff]
      %v251 = vld [vmem:[%s218 + $0x40] sm:$0xff]
      %v252 = vld [vmem:[%s218 + $0x48] sm:$0xff]
      %v253 = vld [vmem:[%s218 + $0x50] sm:$0xff]
      %v254 = vld [vmem:[%s218 + $0x58] sm:$0xff]
      %v255 = vld [vmem:[%s218 + $0x60] sm:$0xff]
      %v256 = vld [vmem:[%s218 + $0x68] sm:$0xff]
      %v257 = vld [vmem:[%s218 + $0x70] sm:$0xff]
      %v258 = vld [vmem:[%s218 + $0x78] sm:$0xff]
      %v259 = vld [vmem:[%s218 + $0x80] sm:$0xff]
      %v260 = vld [vmem:[%s218 + $0x88] sm:$0xff]
      %v261 = vld [vmem:[%s218 + $0x90] sm:$0xff]
      %v262 = vld [vmem:[%s218 + $0x98] sm:$0xff]
      %v263 = vld [vmem:[%s218 + $0xa0] sm:$0xff]
      %v264 = vld [vmem:[%s218 + $0xa8] sm:$0xff]
      %v265 = vld [vmem:[%s218 + $0xb0] sm:$0xff]
      %v266 = vld [vmem:[%s218 + $0xb8] sm:$0xff]
      %v267 = vld [vmem:[%s218 + $0xc0] sm:$0xff]
      %v268 = vld [vmem:[%s218 + $0xc8] sm:$0xff]
      %v269 = vld [vmem:[%s218 + $0xd0] sm:$0xff]
      %v270 = vld [vmem:[%s218 + $0xd8] sm:$0xff]
      %v271 = vld [vmem:[%s218 + $0xe0] sm:$0xff]
      %v272 = vld [vmem:[%s218 + $0xe8] sm:$0xff]
      %v273 = vld [vmem:[%s218 + $0xf0] sm:$0xff]
      %v274 = vld [vmem:[%s218 + $0xf8] sm:$0xff]
      %v275 = vld [vmem:[%s224] sm:$0xff]
      %v276 = vld [vmem:[%s224 + $0x8] sm:$0xff]
      %v277 = vld [vmem:[%s224 + $0x10] sm:$0xff]
      %v278 = vld [vmem:[%s224 + $0x18] sm:$0xff]
      %v279 = vld [vmem:[%s224 + $0x20] sm:$0xff]
      %v280 = vld [vmem:[%s224 + $0x28] sm:$0xff]
      %v281 = vld [vmem:[%s224 + $0x30] sm:$0xff]
      %v282 = vld [vmem:[%s224 + $0x38] sm:$0xff]
      %v283 = vld [vmem:[%s224 + $0x40] sm:$0xff]
      %v284 = vld [vmem:[%s224 + $0x48] sm:$0xff]
      %v285 = vld [vmem:[%s224 + $0x50] sm:$0xff]
      %v286 = vld [vmem:[%s224 + $0x58] sm:$0xff]
      %v287 = vld [vmem:[%s224 + $0x60] sm:$0xff]
      %v288 = vld [vmem:[%s224 + $0x68] sm:$0xff]
      %v289 = vld [vmem:[%s224 + $0x70] sm:$0xff]
      %v290 = vld [vmem:[%s224 + $0x78] sm:$0xff]
      %v291 = vld [vmem:[%s224 + $0x80] sm:$0xff]
      %v292 = vld [vmem:[%s224 + $0x88] sm:$0xff]
      %v293 = vld [vmem:[%s224 + $0x90] sm:$0xff]
      %v294 = vld [vmem:[%s224 + $0x98] sm:$0xff]
      %v295 = vld [vmem:[%s224 + $0xa0] sm:$0xff]
      %v296 = vld [vmem:[%s224 + $0xa8] sm:$0xff]
      %v297 = vld [vmem:[%s224 + $0xb0] sm:$0xff]
      %v298 = vld [vmem:[%s224 + $0xb8] sm:$0xff]
      %v299 = vld [vmem:[%s224 + $0xc0] sm:$0xff]
      %v300 = vld [vmem:[%s224 + $0xc8] sm:$0xff]
      %v301 = vld [vmem:[%s224 + $0xd0] sm:$0xff]
      %v302 = vld [vmem:[%s224 + $0xd8] sm:$0xff]
      %v303 = vld [vmem:[%s224 + $0xe0] sm:$0xff]
      %v304 = vld [vmem:[%s224 + $0xe8] sm:$0xff]
      %v305 = vld [vmem:[%s224 + $0xf0] sm:$0xff]
      %v306 = vld [vmem:[%s224 + $0xf8] sm:$0xff]
      %v307 = vld [vmem:[%s229] sm:$0x3]
      %v309 = vlaneseq
      %v310 = vshrl.u32 %v309, 7
      %v311 = vsub.s32 0, %v310
      %v312 = vrot.slane %v307, %v311
      %v313 = vlaneseq
      %v314 = vshrl.u32 %v313, 7
      %v315 = vsub.s32 1, %v314
      %v316 = vrot.slane %v307, %v315
      %v351 = vunpack.c.l.b16 %v243
      %v352 = vunpack.c.h.b16 %v243
      %v353 = vunpack.c.l.b16 %v244
      %v354 = vunpack.c.h.b16 %v244
      %v355 = vunpack.c.l.b16 %v245
      %v356 = vunpack.c.h.b16 %v245
      %v357 = vunpack.c.l.b16 %v246
      %v358 = vunpack.c.h.b16 %v246
      %v359 = vunpack.c.l.b16 %v247
      %v360 = vunpack.c.h.b16 %v247
      %v361 = vunpack.c.l.b16 %v248
      %v362 = vunpack.c.h.b16 %v248
      %v363 = vunpack.c.l.b16 %v249
      %v364 = vunpack.c.h.b16 %v249
      %v365 = vunpack.c.l.b16 %v250
      %v366 = vunpack.c.h.b16 %v250
      %v367 = vunpack.c.l.b16 %v251
      %v368 = vunpack.c.h.b16 %v251
      %v369 = vunpack.c.l.b16 %v252
      %v370 = vunpack.c.h.b16 %v252
      %v371 = vunpack.c.l.b16 %v253
      %v372 = vunpack.c.h.b16 %v253
      %v373 = vunpack.c.l.b16 %v254
      %v374 = vunpack.c.h.b16 %v254
      %v375 = vunpack.c.l.b16 %v255
      %v376 = vunpack.c.h.b16 %v255
      %v377 = vunpack.c.l.b16 %v256
      %v378 = vunpack.c.h.b16 %v256
      %v379 = vunpack.c.l.b16 %v257
      %v380 = vunpack.c.h.b16 %v257
      %v381 = vunpack.c.l.b16 %v258
      %v382 = vunpack.c.h.b16 %v258
      %v383 = vunpack.c.l.b16 %v259
      %v384 = vunpack.c.h.b16 %v259
      %v385 = vunpack.c.l.b16 %v260
      %v386 = vunpack.c.h.b16 %v260
      %v387 = vunpack.c.l.b16 %v261
      %v388 = vunpack.c.h.b16 %v261
      %v389 = vunpack.c.l.b16 %v262
      %v390 = vunpack.c.h.b16 %v262
      %v391 = vunpack.c.l.b16 %v263
      %v392 = vunpack.c.h.b16 %v263
      %v393 = vunpack.c.l.b16 %v264
      %v394 = vunpack.c.h.b16 %v264
      %v395 = vunpack.c.l.b16 %v265
      %v396 = vunpack.c.h.b16 %v265
      %v397 = vunpack.c.l.b16 %v266
      %v398 = vunpack.c.h.b16 %v266
      %v399 = vunpack.c.l.b16 %v267
      %v400 = vunpack.c.h.b16 %v267
      %v401 = vunpack.c.l.b16 %v268
      %v402 = vunpack.c.h.b16 %v268
      %v403 = vunpack.c.l.b16 %v269
      %v404 = vunpack.c.h.b16 %v269
      %v405 = vunpack.c.l.b16 %v270
      %v406 = vunpack.c.h.b16 %v270
      %v407 = vunpack.c.l.b16 %v271
      %v408 = vunpack.c.h.b16 %v271
      %v409 = vunpack.c.l.b16 %v272
      %v410 = vunpack.c.h.b16 %v272
      %v411 = vunpack.c.l.b16 %v273
      %v412 = vunpack.c.h.b16 %v273
      %v413 = vunpack.c.l.b16 %v274
      %v414 = vunpack.c.h.b16 %v274
      %v415 = vpack.c.b16 %v353, %v351
      %v416 = vpack.c.b16 %v354, %v352
      %v417 = vpack.c.b16 %v357, %v355
      %v418 = vpack.c.b16 %v358, %v356
      %v419 = vpack.c.b16 %v361, %v359
      %v420 = vpack.c.b16 %v362, %v360
      %v421 = vpack.c.b16 %v365, %v363
      %v422 = vpack.c.b16 %v366, %v364
      %v423 = vpack.c.b16 %v369, %v367
      %v424 = vpack.c.b16 %v370, %v368
      %v425 = vpack.c.b16 %v373, %v371
      %v426 = vpack.c.b16 %v374, %v372
      %v427 = vpack.c.b16 %v377, %v375
      %v428 = vpack.c.b16 %v378, %v376
      %v429 = vpack.c.b16 %v381, %v379
      %v430 = vpack.c.b16 %v382, %v380
      %v431 = vpack.c.b16 %v385, %v383
      %v432 = vpack.c.b16 %v386, %v384
      %v433 = vpack.c.b16 %v389, %v387
      %v434 = vpack.c.b16 %v390, %v388
      %v435 = vpack.c.b16 %v393, %v391
      %v436 = vpack.c.b16 %v394, %v392
      %v437 = vpack.c.b16 %v397, %v395
      %v438 = vpack.c.b16 %v398, %v396
      %v439 = vpack.c.b16 %v401, %v399
      %v440 = vpack.c.b16 %v402, %v400
      %v441 = vpack.c.b16 %v405, %v403
      %v442 = vpack.c.b16 %v406, %v404
      %v443 = vpack.c.b16 %v409, %v407
      %v444 = vpack.c.b16 %v410, %v408
      %v445 = vpack.c.b16 %v413, %v411
      %v446 = vpack.c.b16 %v414, %v412
      %v511 = vunpack.c.l.b16 %v275
      %v512 = vunpack.c.h.b16 %v275
      %v513 = vunpack.c.l.b16 %v276
      %v514 = vunpack.c.h.b16 %v276
      %v515 = vunpack.c.l.b16 %v277
      %v516 = vunpack.c.h.b16 %v277
      %v517 = vunpack.c.l.b16 %v278
      %v518 = vunpack.c.h.b16 %v278
      %v519 = vunpack.c.l.b16 %v279
      %v520 = vunpack.c.h.b16 %v279
      %v521 = vunpack.c.l.b16 %v280
      %v522 = vunpack.c.h.b16 %v280
      %v523 = vunpack.c.l.b16 %v281
      %v524 = vunpack.c.h.b16 %v281
      %v525 = vunpack.c.l.b16 %v282
      %v526 = vunpack.c.h.b16 %v282
      %v527 = vunpack.c.l.b16 %v283
      %v528 = vunpack.c.h.b16 %v283
      %v529 = vunpack.c.l.b16 %v284
      %v530 = vunpack.c.h.b16 %v284
      %v531 = vunpack.c.l.b16 %v285
      %v532 = vunpack.c.h.b16 %v285
      %v533 = vunpack.c.l.b16 %v286
      %v534 = vunpack.c.h.b16 %v286
      %v535 = vunpack.c.l.b16 %v287
      %v536 = vunpack.c.h.b16 %v287
      %v537 = vunpack.c.l.b16 %v288
      %v538 = vunpack.c.h.b16 %v288
      %v539 = vunpack.c.l.b16 %v289
      %v540 = vunpack.c.h.b16 %v289
      %v541 = vunpack.c.l.b16 %v290
      %v542 = vunpack.c.h.b16 %v290
      %v543 = vunpack.c.l.b16 %v291
      %v544 = vunpack.c.h.b16 %v291
      %v545 = vunpack.c.l.b16 %v292
      %v546 = vunpack.c.h.b16 %v292
      %v547 = vunpack.c.l.b16 %v293
      %v548 = vunpack.c.h.b16 %v293
      %v549 = vunpack.c.l.b16 %v294
      %v550 = vunpack.c.h.b16 %v294
      %v551 = vunpack.c.l.b16 %v295
      %v552 = vunpack.c.h.b16 %v295
      %v553 = vunpack.c.l.b16 %v296
      %v554 = vunpack.c.h.b16 %v296
      %v555 = vunpack.c.l.b16 %v297
      %v556 = vunpack.c.h.b16 %v297
      %v557 = vunpack.c.l.b16 %v298
      %v558 = vunpack.c.h.b16 %v298
      %v559 = vunpack.c.l.b16 %v299
      %v560 = vunpack.c.h.b16 %v299
      %v561 = vunpack.c.l.b16 %v300
      %v562 = vunpack.c.h.b16 %v300
      %v563 = vunpack.c.l.b16 %v301
      %v564 = vunpack.c.h.b16 %v301
      %v565 = vunpack.c.l.b16 %v302
      %v566 = vunpack.c.h.b16 %v302
      %v567 = vunpack.c.l.b16 %v303
      %v568 = vunpack.c.h.b16 %v303
      %v569 = vunpack.c.l.b16 %v304
      %v570 = vunpack.c.h.b16 %v304
      %v571 = vunpack.c.l.b16 %v305
      %v572 = vunpack.c.h.b16 %v305
      %v573 = vunpack.c.l.b16 %v306
      %v574 = vunpack.c.h.b16 %v306
      %v575 = vpack.c.b16 %v513, %v511
      %v576 = vpack.c.b16 %v514, %v512
      %v577 = vpack.c.b16 %v517, %v515
      %v578 = vpack.c.b16 %v518, %v516
      %v579 = vpack.c.b16 %v521, %v519
      %v580 = vpack.c.b16 %v522, %v520
      %v581 = vpack.c.b16 %v525, %v523
      %v582 = vpack.c.b16 %v526, %v524
      %v583 = vpack.c.b16 %v529, %v527
      %v584 = vpack.c.b16 %v530, %v528
      %v585 = vpack.c.b16 %v533, %v531
      %v586 = vpack.c.b16 %v534, %v532
      %v587 = vpack.c.b16 %v537, %v535
      %v588 = vpack.c.b16 %v538, %v536
      %v589 = vpack.c.b16 %v541, %v539
      %v590 = vpack.c.b16 %v542, %v540
      %v591 = vpack.c.b16 %v545, %v543
      %v592 = vpack.c.b16 %v546, %v544
      %v593 = vpack.c.b16 %v549, %v547
      %v594 = vpack.c.b16 %v550, %v548
      %v595 = vpack.c.b16 %v553, %v551
      %v596 = vpack.c.b16 %v554, %v552
      %v597 = vpack.c.b16 %v557, %v555
      %v598 = vpack.c.b16 %v558, %v556
      %v599 = vpack.c.b16 %v561, %v559
      %v600 = vpack.c.b16 %v562, %v560
      %v601 = vpack.c.b16 %v565, %v563
      %v602 = vpack.c.b16 %v566, %v564
      %v603 = vpack.c.b16 %v569, %v567
      %v604 = vpack.c.b16 %v570, %v568
      %v605 = vpack.c.b16 %v573, %v571
      %v606 = vpack.c.b16 %v574, %v572
      %639 = vmatprep.subr.bf16.mxu0 %v576
      %640 = vmatpush1.bf16.msra.mxu0 %v575
      %641 = vmatprep.subr.bf16.mxu0 %v578
      %642 = vmatpush1.bf16.msra.mxu0 %v577
      %643 = vmatprep.subr.bf16.mxu0 %v580
      %644 = vmatpush1.bf16.msra.mxu0 %v579
      %645 = vmatprep.subr.bf16.mxu0 %v582
      %646 = vmatpush1.bf16.msra.mxu0 %v581
      %647 = vmatprep.subr.bf16.mxu0 %v584
      %648 = vmatpush1.bf16.msra.mxu0 %v583
      %649 = vmatprep.subr.bf16.mxu0 %v586
      %650 = vmatpush1.bf16.msra.mxu0 %v585
      %651 = vmatprep.subr.bf16.mxu0 %v588
      %652 = vmatpush1.bf16.msra.mxu0 %v587
      %653 = vmatprep.subr.bf16.mxu0 %v590
      %654 = vmatpush1.bf16.msra.mxu0 %v589
      %655 = vmatprep.subr.bf16.mxu0 %v592
      %656 = vmatpush1.bf16.msra.mxu0 %v591
      %657 = vmatprep.subr.bf16.mxu0 %v594
      %658 = vmatpush1.bf16.msra.mxu0 %v593
      %659 = vmatprep.subr.bf16.mxu0 %v596
      %660 = vmatpush1.bf16.msra.mxu0 %v595
      %661 = vmatprep.subr.bf16.mxu0 %v598
      %662 = vmatpush1.bf16.msra.mxu0 %v597
      %663 = vmatprep.subr.bf16.mxu0 %v600
      %664 = vmatpush1.bf16.msra.mxu0 %v599
      %665 = vmatprep.subr.bf16.mxu0 %v602
      %666 = vmatpush1.bf16.msra.mxu0 %v601
      %667 = vmatprep.subr.bf16.mxu0 %v604
      %668 = vmatpush1.bf16.msra.mxu0 %v603
      %669 = vmatprep.subr.bf16.mxu0 %v606
      %670 = vmatpush1.bf16.msra.mxu0 %v605
      %671 = vmatprep.mubr.bf16.mxu0 %v416
      %672 = vmatmul.mubr.bf16.gmra.mrb[0].mxu0 %v415
      %v673 = vpop.f32.mrb[0].mxu0
      %v674 = vadd.f32 %v312, %v673
      %v675 = vpop.f32.mrb[0].mxu0
      %v676 = vadd.f32 %v316, %v675
      %v677 = vpop.f32.mrb[0].mxu0
      %v678 = vadd.f32 %v312, %v677
      %v679 = vpop.f32.mrb[0].mxu0
      %v680 = vadd.f32 %v316, %v679
      %681 = vmatprep.mubr.bf16.mxu0 %v418
      %682 = vmatmul.mubr.bf16.gmra.mrb[0].mxu0 %v417
      %v683 = vpop.f32.mrb[0].mxu0
      %v684 = vadd.f32 %v312, %v683
      %v685 = vpop.f32.mrb[0].mxu0
      %v686 = vadd.f32 %v316, %v685
      %v687 = vpop.f32.mrb[0].mxu0
      %v688 = vadd.f32 %v312, %v687
      %v689 = vpop.f32.mrb[0].mxu0
      %v690 = vadd.f32 %v316, %v689
      %691 = vmatprep.mubr.bf16.mxu0 %v420
      %692 = vmatmul.mubr.bf16.gmra.mrb[0].mxu0 %v419
      %v693 = vpop.f32.mrb[0].mxu0
      %v694 = vadd.f32 %v312, %v693
      %v695 = vpop.f32.mrb[0].mxu0
      %v696 = vadd.f32 %v316, %v695
      %v697 = vpop.f32.mrb[0].mxu0
      %v698 = vadd.f32 %v312, %v697
      %v699 = vpop.f32.mrb[0].mxu0
      %v700 = vadd.f32 %v316, %v699
      %701 = vmatprep.mubr.bf16.mxu0 %v422
      %702 = vmatmul.mubr.bf16.gmra.mrb[0].mxu0 %v421
      %v703 = vpop.f32.mrb[0].mxu0
      %v704 = vadd.f32 %v312, %v703
      %v705 = vpop.f32.mrb[0].mxu0
      %v706 = vadd.f32 %v316, %v705
      %v707 = vpop.f32.mrb[0].mxu0
      %v708 = vadd.f32 %v312, %v707
      %v709 = vpop.f32.mrb[0].mxu0
      %v710 = vadd.f32 %v316, %v709
      %711 = vmatprep.mubr.bf16.mxu0 %v424
      %712 = vmatmul.mubr.bf16.gmra.mrb[0].mxu0 %v423
      %v713 = vpop.f32.mrb[0].mxu0
      %v714 = vadd.f32 %v312, %v713
      %v715 = vpop.f32.mrb[0].mxu0
      %v716 = vadd.f32 %v316, %v715
      %v717 = vpop.f32.mrb[0].mxu0
      %v718 = vadd.f32 %v312, %v717
      %v719 = vpop.f32.mrb[0].mxu0
      %v720 = vadd.f32 %v316, %v719
      %721 = vmatprep.mubr.bf16.mxu0 %v426
      %722 = vmatmul.mubr.bf16.gmra.mrb[0].mxu0 %v425
      %v723 = vpop.f32.mrb[0].mxu0
      %v724 = vadd.f32 %v312, %v723
      %v725 = vpop.f32.mrb[0].mxu0
      %v726 = vadd.f32 %v316, %v725
      %v727 = vpop.f32.mrb[0].mxu0
      %v728 = vadd.f32 %v312, %v727
      %v729 = vpop.f32.mrb[0].mxu0
      %v730 = vadd.f32 %v316, %v729
      %731 = vmatprep.mubr.bf16.mxu0 %v428
      %732 = vmatmul.mubr.bf16.gmra.mrb[0].mxu0 %v427
      %v733 = vpop.f32.mrb[0].mxu0
      %v734 = vadd.f32 %v312, %v733
      %v735 = vpop.f32.mrb[0].mxu0
      %v736 = vadd.f32 %v316, %v735
      %v737 = vpop.f32.mrb[0].mxu0
      %v738 = vadd.f32 %v312, %v737
      %v739 = vpop.f32.mrb[0].mxu0
      %v740 = vadd.f32 %v316, %v739
      %741 = vmatprep.mubr.bf16.mxu0 %v430
      %742 = vmatmul.mubr.bf16.gmra.mrb[0].mxu0 %v429
      %v743 = vpop.f32.mrb[0].mxu0
      %v744 = vadd.f32 %v312, %v743
      %v745 = vpop.f32.mrb[0].mxu0
      %v746 = vadd.f32 %v316, %v745
      %v747 = vpop.f32.mrb[0].mxu0
      %v748 = vadd.f32 %v312, %v747
      %v749 = vpop.f32.mrb[0].mxu0
      %v750 = vadd.f32 %v316, %v749
      %751 = vmatprep.mubr.bf16.mxu0 %v432
      %752 = vmatmul.mubr.bf16.gmra.mrb[0].mxu0 %v431
      %v753 = vpop.f32.mrb[0].mxu0
      %v754 = vadd.f32 %v312, %v753
      %v755 = vpop.f32.mrb[0].mxu0
      %v756 = vadd.f32 %v316, %v755
      %v757 = vpop.f32.mrb[0].mxu0
      %v758 = vadd.f32 %v312, %v757
      %v759 = vpop.f32.mrb[0].mxu0
      %v760 = vadd.f32 %v316, %v759
      %761 = vmatprep.mubr.bf16.mxu0 %v434
      %762 = vmatmul.mubr.bf16.gmra.mrb[0].mxu0 %v433
      %v763 = vpop.f32.mrb[0].mxu0
      %v764 = vadd.f32 %v312, %v763
      %v765 = vpop.f32.mrb[0].mxu0
      %v766 = vadd.f32 %v316, %v765
      %v767 = vpop.f32.mrb[0].mxu0
      %v768 = vadd.f32 %v312, %v767
      %v769 = vpop.f32.mrb[0].mxu0
      %v770 = vadd.f32 %v316, %v769
      %771 = vmatprep.mubr.bf16.mxu0 %v436
      %772 = vmatmul.mubr.bf16.gmra.mrb[0].mxu0 %v435
      %v773 = vpop.f32.mrb[0].mxu0
      %v774 = vadd.f32 %v312, %v773
      %v775 = vpop.f32.mrb[0].mxu0
      %v776 = vadd.f32 %v316, %v775
      %v777 = vpop.f32.mrb[0].mxu0
      %v778 = vadd.f32 %v312, %v777
      %v779 = vpop.f32.mrb[0].mxu0
      %v780 = vadd.f32 %v316, %v779
      %781 = vmatprep.mubr.bf16.mxu0 %v438
      %782 = vmatmul.mubr.bf16.gmra.mrb[0].mxu0 %v437
      %v783 = vpop.f32.mrb[0].mxu0
      %v784 = vadd.f32 %v312, %v783
      %v785 = vpop.f32.mrb[0].mxu0
      %v786 = vadd.f32 %v316, %v785
      %v787 = vpop.f32.mrb[0].mxu0
      %v788 = vadd.f32 %v312, %v787
      %v789 = vpop.f32.mrb[0].mxu0
      %v790 = vadd.f32 %v316, %v789
      %791 = vmatprep.mubr.bf16.mxu0 %v440
      %792 = vmatmul.mubr.bf16.gmra.mrb[0].mxu0 %v439
      %v793 = vpop.f32.mrb[0].mxu0
      %v794 = vadd.f32 %v312, %v793
      %v795 = vpop.f32.mrb[0].mxu0
      %v796 = vadd.f32 %v316, %v795
      %v797 = vpop.f32.mrb[0].mxu0
      %v798 = vadd.f32 %v312, %v797
      %v799 = vpop.f32.mrb[0].mxu0
      %v800 = vadd.f32 %v316, %v799
      %801 = vmatprep.mubr.bf16.mxu0 %v442
      %802 = vmatmul.mubr.bf16.gmra.mrb[0].mxu0 %v441
      %v803 = vpop.f32.mrb[0].mxu0
      %v804 = vadd.f32 %v312, %v803
      %v805 = vpop.f32.mrb[0].mxu0
      %v806 = vadd.f32 %v316, %v805
      %v807 = vpop.f32.mrb[0].mxu0
      %v808 = vadd.f32 %v312, %v807
      %v809 = vpop.f32.mrb[0].mxu0
      %v810 = vadd.f32 %v316, %v809
      %811 = vmatprep.mubr.bf16.mxu0 %v444
      %812 = vmatmul.mubr.bf16.gmra.mrb[0].mxu0 %v443
      %v813 = vpop.f32.mrb[0].mxu0
      %v814 = vadd.f32 %v312, %v813
      %v815 = vpop.f32.mrb[0].mxu0
      %v816 = vadd.f32 %v316, %v815
      %v817 = vpop.f32.mrb[0].mxu0
      %v818 = vadd.f32 %v312, %v817
      %v819 = vpop.f32.mrb[0].mxu0
      %v820 = vadd.f32 %v316, %v819
      %821 = vmatprep.mubr.bf16.mxu0 %v446
      %822 = vmatmul.mubr.bf16.gmra.mrb[0].mxu0 %v445
      %v823 = vpop.f32.mrb[0].mxu0
      %v824 = vadd.f32 %v312, %v823
      %v825 = vpop.f32.mrb[0].mxu0
      %v826 = vadd.f32 %v316, %v825
      %v827 = vpop.f32.mrb[0].mxu0
      %v828 = vadd.f32 %v312, %v827
      %v829 = vpop.f32.mrb[0].mxu0
      %v830 = vadd.f32 %v316, %v829
      %831 = vdwg.mxu0
      %v832 = vmax.f32 %v674, 0.0
      %v833 = vmax.f32 %v676, 0.0
      %v834 = vmax.f32 %v678, 0.0
      %v835 = vmax.f32 %v680, 0.0
      %v836 = vmax.f32 %v684, 0.0
      %v837 = vmax.f32 %v686, 0.0
      %v838 = vmax.f32 %v688, 0.0
      %v839 = vmax.f32 %v690, 0.0
      %v840 = vmax.f32 %v694, 0.0
      %v841 = vmax.f32 %v696, 0.0
      %v842 = vmax.f32 %v698, 0.0
      %v843 = vmax.f32 %v700, 0.0
      %v844 = vmax.f32 %v704, 0.0
      %v845 = vmax.f32 %v706, 0.0
      %v846 = vmax.f32 %v708, 0.0
      %v847 = vmax.f32 %v710, 0.0
      %v848 = vmax.f32 %v714, 0.0
      %v849 = vmax.f32 %v716, 0.0
      %v850 = vmax.f32 %v718, 0.0
      %v851 = vmax.f32 %v720, 0.0
      %v852 = vmax.f32 %v724, 0.0
      %v853 = vmax.f32 %v726, 0.0
      %v854 = vmax.f32 %v728, 0.0
      %v855 = vmax.f32 %v730, 0.0
      %v856 = vmax.f32 %v734, 0.0
      %v857 = vmax.f32 %v736, 0.0
      %v858 = vmax.f32 %v738, 0.0
      %v859 = vmax.f32 %v740, 0.0
      %v860 = vmax.f32 %v744, 0.0
      %v861 = vmax.f32 %v746, 0.0
      %v862 = vmax.f32 %v748, 0.0
      %v863 = vmax.f32 %v750, 0.0
      %v864 = vmax.f32 %v754, 0.0
      %v865 = vmax.f32 %v756, 0.0
      %v866 = vmax.f32 %v758, 0.0
      %v867 = vmax.f32 %v760, 0.0
      %v868 = vmax.f32 %v764, 0.0
      %v869 = vmax.f32 %v766, 0.0
      %v870 = vmax.f32 %v768, 0.0
      %v871 = vmax.f32 %v770, 0.0
      %v872 = vmax.f32 %v774, 0.0
      %v873 = vmax.f32 %v776, 0.0
      %v874 = vmax.f32 %v778, 0.0
      %v875 = vmax.f32 %v780, 0.0
      %v876 = vmax.f32 %v784, 0.0
      %v877 = vmax.f32 %v786, 0.0
      %v878 = vmax.f32 %v788, 0.0
      %v879 = vmax.f32 %v790, 0.0
      %v880 = vmax.f32 %v794, 0.0
      %v881 = vmax.f32 %v796, 0.0
      %v882 = vmax.f32 %v798, 0.0
      %v883 = vmax.f32 %v800, 0.0
      %v884 = vmax.f32 %v804, 0.0
      %v885 = vmax.f32 %v806, 0.0
      %v886 = vmax.f32 %v808, 0.0
      %v887 = vmax.f32 %v810, 0.0
      %v888 = vmax.f32 %v814, 0.0
      %v889 = vmax.f32 %v816, 0.0
      %v890 = vmax.f32 %v818, 0.0
      %v891 = vmax.f32 %v820, 0.0
      %v892 = vmax.f32 %v824, 0.0
      %v893 = vmax.f32 %v826, 0.0
      %v894 = vmax.f32 %v828, 0.0
      %v895 = vmax.f32 %v830, 0.0
      %896 = vst [vmem:[%s240] sm:$0xff] %v832
      %897 = vst [vmem:[%s240 + $0x8] sm:$0xff] %v833
      %898 = vst [vmem:[%s240 + $0x10] sm:$0xff] %v834
      %899 = vst [vmem:[%s240 + $0x18] sm:$0xff] %v835
      %900 = vst [vmem:[%s240 + $0x20] sm:$0xff] %v836
      %901 = vst [vmem:[%s240 + $0x28] sm:$0xff] %v837
      %902 = vst [vmem:[%s240 + $0x30] sm:$0xff] %v838
      %903 = vst [vmem:[%s240 + $0x38] sm:$0xff] %v839
      %904 = vst [vmem:[%s240 + $0x40] sm:$0xff] %v840
      %905 = vst [vmem:[%s240 + $0x48] sm:$0xff] %v841
      %906 = vst [vmem:[%s240 + $0x50] sm:$0xff] %v842
      %907 = vst [vmem:[%s240 + $0x58] sm:$0xff] %v843
      %908 = vst [vmem:[%s240 + $0x60] sm:$0xff] %v844
      %909 = vst [vmem:[%s240 + $0x68] sm:$0xff] %v845
      %910 = vst [vmem:[%s240 + $0x70] sm:$0xff] %v846
      %911 = vst [vmem:[%s240 + $0x78] sm:$0xff] %v847
      %912 = vst [vmem:[%s240 + $0x80] sm:$0xff] %v848
      %913 = vst [vmem:[%s240 + $0x88] sm:$0xff] %v849
      %914 = vst [vmem:[%s240 + $0x90] sm:$0xff] %v850
      %915 = vst [vmem:[%s240 + $0x98] sm:$0xff] %v851
      %916 = vst [vmem:[%s240 + $0xa0] sm:$0xff] %v852
      %917 = vst [vmem:[%s240 + $0xa8] sm:$0xff] %v853
      %918 = vst [vmem:[%s240 + $0xb0] sm:$0xff] %v854
      %919 = vst [vmem:[%s240 + $0xb8] sm:$0xff] %v855
      %920 = vst [vmem:[%s240 + $0xc0] sm:$0xff] %v856
      %921 = vst [vmem:[%s240 + $0xc8] sm:$0xff] %v857
      %922 = vst [vmem:[%s240 + $0xd0] sm:$0xff] %v858
      %923 = vst [vmem:[%s240 + $0xd8] sm:$0xff] %v859
      %924 = vst [vmem:[%s240 + $0xe0] sm:$0xff] %v860
      %925 = vst [vmem:[%s240 + $0xe8] sm:$0xff] %v861
      %926 = vst [vmem:[%s240 + $0xf0] sm:$0xff] %v862
      %927 = vst [vmem:[%s240 + $0xf8] sm:$0xff] %v863
      %928 = vst [vmem:[%s240 + $0x100] sm:$0xff] %v864
      %929 = vst [vmem:[%s240 + $0x108] sm:$0xff] %v865
      %930 = vst [vmem:[%s240 + $0x110] sm:$0xff] %v866
      %931 = vst [vmem:[%s240 + $0x118] sm:$0xff] %v867
      %932 = vst [vmem:[%s240 + $0x120] sm:$0xff] %v868
      %933 = vst [vmem:[%s240 + $0x128] sm:$0xff] %v869
      %934 = vst [vmem:[%s240 + $0x130] sm:$0xff] %v870
      %935 = vst [vmem:[%s240 + $0x138] sm:$0xff] %v871
      %936 = vst [vmem:[%s240 + $0x140] sm:$0xff] %v872
      %937 = vst [vmem:[%s240 + $0x148] sm:$0xff] %v873
      %938 = vst [vmem:[%s240 + $0x150] sm:$0xff] %v874
      %939 = vst [vmem:[%s240 + $0x158] sm:$0xff] %v875
      %940 = vst [vmem:[%s240 + $0x160] sm:$0xff] %v876
      %941 = vst [vmem:[%s240 + $0x168] sm:$0xff] %v877
      %942 = vst [vmem:[%s240 + $0x170] sm:$0xff] %v878
      %943 = vst [vmem:[%s240 + $0x178] sm:$0xff] %v879
      %944 = vst [vmem:[%s240 + $0x180] sm:$0xff] %v880
      %945 = vst [vmem:[%s240 + $0x188] sm:$0xff] %v881
      %946 = vst [vmem:[%s240 + $0x190] sm:$0xff] %v882
      %947 = vst [vmem:[%s240 + $0x198] sm:$0xff] %v883
      %948 = vst [vmem:[%s240 + $0x1a0] sm:$0xff] %v884
      %949 = vst [vmem:[%s240 + $0x1a8] sm:$0xff] %v885
      %950 = vst [vmem:[%s240 + $0x1b0] sm:$0xff] %v886
      %951 = vst [vmem:[%s240 + $0x1b8] sm:$0xff] %v887
      %952 = vst [vmem:[%s240 + $0x1c0] sm:$0xff] %v888
      %953 = vst [vmem:[%s240 + $0x1c8] sm:$0xff] %v889
      %954 = vst [vmem:[%s240 + $0x1d0] sm:$0xff] %v890
      %955 = vst [vmem:[%s240 + $0x1d8] sm:$0xff] %v891
      %956 = vst [vmem:[%s240 + $0x1e0] sm:$0xff] %v892
      %957 = vst [vmem:[%s240 + $0x1e8] sm:$0xff] %v893
      %958 = vst [vmem:[%s240 + $0x1f0] sm:$0xff] %v894
      %959 = vst [vmem:[%s240 + $0x1f8] sm:$0xff] %v895
      %s960 = smul.u32 32, %s18
      %s961 = smul.u32 2, %s19
      %p962 = scmp.lt.s32.totalorder %s960, 63
      %s963 = scalar_select %p962, %s960, 63
      %p964 = scmp.lt.s32.totalorder %s961, 1
      %s965 = scalar_select %p964, %s961, 1
      %s966 = smul.addr %s963, 2
      %s967 = sadd.s32 %s965, %s966
      %s968 = smul.addr %s967, 8
      %s969 = scalar_lea.vmem %s3, %s968
      // Predicated region
      $region33: #{decoder_forward_fused.8} parent=31 // pred_check
        %p970 = pneg %p124
      $region34: #{decoder_forward_fused.8} parent=31 // pred_check_branch
        %972 = sbr.rel (%p970) target = $region36
      $region35: #{decoder_forward_fused.8} parent=31 // pred_region
        %s973 = smul.u32 32, %s18
        %s974 = smul.u32 2, %s19
      $region36: #{decoder_forward_fused.8} parent=31 // pred_fallthru
        _
    $region32: #{decoder_forward_fused.8} parent=5 // pred_fallthru
      _
    %p975 = scmp.le.s32.totalorder 2, %s9
    // Predicated region
    $region37: #{decoder_forward_fused.8} parent=5 // pred_check
      %p976 = pneg %p975
    $region38: #{decoder_forward_fused.8} parent=5 // pred_check_branch
      %978 = sbr.rel (%p976) target = $region40
    $region39: #{decoder_forward_fused.8} parent=5 // pred_region
      %s979 = ssub.s32 %s9, 2
      // Predicated region
      $region41: #{decoder_forward_fused.8} parent=39 // pred_check
        %p980 = pneg %p130
      $region42: #{decoder_forward_fused.8} parent=39 // pred_check_branch
        %982 = sbr.rel (%p980) target = $region44
      $region43: #{decoder_forward_fused.8} parent=39 // pred_region
        %s983 = smul.u32 32, %s20
        %s984 = smul.u32 2, %s21
        %p985 = scmp.lt.s32.totalorder %s983, 63
        %s986 = scalar_select %p985, %s983, 63
        %p987 = scmp.lt.s32.totalorder %s984, 1
        %s988 = scalar_select %p987, %s984, 1
        %s989 = smul.addr %s986, 2
        %s990 = sadd.s32 %s988, %s989
        %s991 = smul.addr %s990, 8
        %s992 = scalar_lea.vmem %s3, %s991
      $region44: #{decoder_forward_fused.8} parent=39 // pred_fallthru
        _
    $region40: #{decoder_forward_fused.8} parent=5 // pred_fallthru
      _
  $region6: #{decoder_forward_fused.8} parent=0 // loop_footer
    %s13 = sadd.s32 1, %s9
  $region7: #{decoder_forward_fused.8} parent=0 // loop_footer_branch
    %8 = sbr.rel target = $region3
  $region8: #{decoder_forward_fused.8} parent=0 // loop_exit
    _

// kernel: decoder_forward_fused.5
$region0: #{decoder_forward_fused.5}
  #allocation0 [shape = 'u32[]', space=smem, size = 0x4, offset = 0x4, fixed_abs, tag = 'smem constant byte address 0x4 - core index']
  #allocation1 [shape = 'u32[144,128]{1,0:T(1,128)}', space=vmem, size = 0x12000, scoped, tag = 'internal scratch']
  %s0 = inlined_call_operand.vmem [shape: bf16[16,2048], index: 0, kind: input, shape index: {}]
  %s1 = inlined_call_operand.hbm [shape: bf16[2048,2048], index: 1, kind: input, shape index: {}]
  %s2 = inlined_call_operand.hbm [shape: f32[1,2048], index: 2, kind: input, shape index: {}]
  %s3 = inlined_call_operand.vmem [shape: f32[16,2048], index: 3, kind: output, shape index: {}]
  %s4 = sld [smem:[#allocation0]]
  $region72: #{decoder_forward_fused.5} parent=0
    _
  %s6 = ssub.s32 1, %s4
  %s7 = scalar_select 0, %s6, %s4
  $region1: #{decoder_forward_fused.5} parent=0
    #allocation2 [shape = 'u8[4194304]{0}', space=vmem, size = 0x400000, scoped, tag = 'input window, operand 1']
    #allocation3 [shape = 's32[2]{0}', space=sflag, size = 0x8, scoped, tag = 'scoped memory for decoder_forward_fused.5']
    #allocation4 [shape = 'u8[4096]{0}', space=vmem, size = 0x1000, scoped, tag = 'input window, operand 2']
    #allocation5 [shape = 's32[2]{0}', space=sflag, size = 0x8, scoped, tag = 'scoped memory for decoder_forward_fused.5']
    #allocation6 [shape = 'u8[65536]{0}', space=vmem, size = 0x10000, scoped, tag = 'output window, operand 0']
    %8 = vsyncpa [#allocation3], 0
    %s9 = scalar_lea.sflag [#allocation3], 1
    %10 = vsyncpa %s9, 0
    %11 = vsyncpa [#allocation5], 0
    %s12 = scalar_lea.sflag [#allocation5], 1
    %13 = vsyncpa %s12, 0
    loop: start=0, step=1, limit=6
    $region2: #{decoder_forward_fused.5} parent=1 // loop_pre_header
      _
    $region3: #{decoder_forward_fused.5} parent=1 // loop_header
      %s15 = sphi 0, %s19
      %p16 = scmp.ge.s32.totalorder %s15, 6
      %s22 = sphi 0, %s34
      %s23 = sphi 0, %s30
      %s24 = sphi 0, %s22
      %s25 = sphi 0, %s23
      %s26 = sphi 0, %s24
      %s27 = sphi 0, %s25
      %s37 = sphi 0, %s39
      %s40 = sphi 0, %s37
      %s41 = sphi 0, %s40
      %s57 = sphi 0, %s41
      %s63 = sphi 0, %s65
      %s66 = sphi 0, %s63
      %s67 = sphi 0, %s66
      %s83 = sphi 0, %s67
      %s89 = sphi 0, %s91
      %s92 = sphi 0, %s89
      %s93 = sphi 0, %s92
      %s109 = sphi 0, %s93
      %s117 = sphi 0, %s119
      %s120 = sphi 0, %s117
      %s121 = sphi 0, %s120
      %s137 = sphi 0, %s121
    $region4: #{decoder_forward_fused.5} parent=1 // loop_header_branch
      %18 = sbr.rel (%p16) target = $region8
    $region5: #{decoder_forward_fused.5} parent=1 // loop_body
      %s20 = ssub.s32 %s15, 1
      %s21 = ssub.s32 %s15, 2
      %s28 = sadd.s32 1, %s23
      %p29 = scmp.ge.s32.totalorder %s28, 4
      %s30 = scalar_select %p29, 0, %s28
      %s31 = sadd.s32 1, %s22
      %s32 = scalar_select %p29, %s31, %s22
      %p33 = scmp.ge.s32.totalorder %s32, 1
      %s34 = scalar_select %p33, 0, %s32
      %s35 = ssub.s32 %s22, %s34
      %p36 = scmp.eq.s32.totalorder %s35, 0
      %s38 = sadd.s32 %s37, 1
      %s39 = scalar_select %p36, %s37, %s38
      %p42 = pneg %p36
      %p43 = scmp.eq.s32.totalorder %s15, 3
      %p44 = por %p42, %p43
      %p45 = scmp.ne.s32.totalorder %s37, %s40
      %p46 = scmp.eq.s32.totalorder %s15, 0
      %p47 = por %p45, %p46
      %p48 = scmp.ne.s32.totalorder %s37, %s40
      %p49 = scmp.eq.s32.totalorder %s20, 3
      %p50 = por %p48, %p49
      %p51 = scmp.ne.s32.totalorder %s40, %s41
      %p52 = scmp.eq.s32.totalorder %s20, 0
      %p53 = por %p51, %p52
      %p54 = scmp.ne.s32.totalorder %s40, %s41
      %p55 = scmp.eq.s32.totalorder %s21, 3
      %p56 = por %p54, %p55
      %p58 = scmp.ne.s32.totalorder %s41, %s57
      %p59 = scmp.eq.s32.totalorder %s21, 0
      %p60 = por %p58, %p59
      %s61 = ssub.s32 %s23, %s30
      %p62 = scmp.eq.s32.totalorder %s61, 0
      %s64 = sadd.s32 %s63, 1
      %s65 = scalar_select %p62, %s63, %s64
      %p68 = pneg %p62
      %p69 = scmp.eq.s32.totalorder %s15, 3
      %p70 = por %p68, %p69
      %p71 = scmp.ne.s32.totalorder %s63, %s66
      %p72 = scmp.eq.s32.totalorder %s15, 0
      %p73 = por %p71, %p72
      %p74 = scmp.ne.s32.totalorder %s63, %s66
      %p75 = scmp.eq.s32.totalorder %s20, 3
      %p76 = por %p74, %p75
      %p77 = scmp.ne.s32.totalorder %s66, %s67
      %p78 = scmp.eq.s32.totalorder %s20, 0
      %p79 = por %p77, %p78
      %p80 = scmp.ne.s32.totalorder %s66, %s67
      %p81 = scmp.eq.s32.totalorder %s21, 3
      %p82 = por %p80, %p81
      %p84 = scmp.ne.s32.totalorder %s67, %s83
      %p85 = scmp.eq.s32.totalorder %s21, 0
      %p86 = por %p84, %p85
      %s87 = ssub.s32 %s23, %s30
      %p88 = scmp.eq.s32.totalorder %s87, 0
      %s90 = sadd.s32 %s89, 1
      %s91 = scalar_select %p88, %s89, %s90
      %p94 = pneg %p88
      %p95 = scmp.eq.s32.totalorder %s15, 3
      %p96 = por %p94, %p95
      %p97 = scmp.ne.s32.totalorder %s89, %s92
      %p98 = scmp.eq.s32.totalorder %s15, 0
      %p99 = por %p97, %p98
      %p100 = scmp.ne.s32.totalorder %s89, %s92
      %p101 = scmp.eq.s32.totalorder %s20, 3
      %p102 = por %p100, %p101
      %p103 = scmp.ne.s32.totalorder %s92, %s93
      %p104 = scmp.eq.s32.totalorder %s20, 0
      %p105 = por %p103, %p104
      %p106 = scmp.ne.s32.totalorder %s92, %s93
      %p107 = scmp.eq.s32.totalorder %s21, 3
      %p108 = por %p106, %p107
      %p110 = scmp.ne.s32.totalorder %s93, %s109
      %p111 = scmp.eq.s32.totalorder %s21, 0
      %p112 = por %p110, %p111
      %s113 = ssub.s32 %s22, %s34
      %s114 = ssub.s32 %s23, %s30
      %s115 = sor.u32 %s113, %s114
      %p116 = scmp.eq.s32.totalorder %s115, 0
      %s118 = sadd.s32 %s117, 1
      %s119 = scalar_select %p116, %s117, %s118
      %p122 = pneg %p116
      %p123 = scmp.eq.s32.totalorder %s15, 3
      %p124 = por %p122, %p123
      %p125 = scmp.ne.s32.totalorder %s117, %s120
      %p126 = scmp.eq.s32.totalorder %s15, 0
      %p127 = por %p125, %p126
      %p128 = scmp.ne.s32.totalorder %s117, %s120
      %p129 = scmp.eq.s32.totalorder %s20, 3
      %p130 = por %p128, %p129
      %p131 = scmp.ne.s32.totalorder %s120, %s121
      %p132 = scmp.eq.s32.totalorder %s20, 0
      %p133 = por %p131, %p132
      %p134 = scmp.ne.s32.totalorder %s120, %s121
      %p135 = scmp.eq.s32.totalorder %s21, 3
      %p136 = por %p134, %p135
      %p138 = scmp.ne.s32.totalorder %s121, %s137
      %p139 = scmp.eq.s32.totalorder %s21, 0
      %p140 = por %p138, %p139
      %p141 = scmp.le.s32.totalorder 1, %s15
      %p142 = scmp.lt.s32.totalorder %s15, 5
      %p143 = pnand %p141, %p142
      %p144 = pneg %p143
      // Predicated region
      $region9: #{decoder_forward_fused.5} parent=5 // pred_check
        _
      $region10: #{decoder_forward_fused.5} parent=5 // pred_check_branch
        %146 = sbr.rel (%p143) target = $region12
      $region11: #{decoder_forward_fused.5} parent=5 // pred_region
        %s147 = ssub.s32 %s15, 1
        // Predicated region
        $region13: #{decoder_forward_fused.5} parent=11 // pred_check
          %p148 = pneg %p53
        $region14: #{decoder_forward_fused.5} parent=11 // pred_check_branch
          %150 = sbr.rel (%p148) target = $region16
        $region15: #{decoder_forward_fused.5} parent=11 // pred_region
          %s151 = smul.u32 2, %s24
          %p152 = scmp.lt.s32.totalorder %s151, 1
          %s153 = scalar_select %p152, %s151, 1
          %s154 = smul.addr %s153, 16
          %s155 = smul.addr %s154, 4
          %s156 = scalar_lea.vmem %s0, %s155
          %s157 = smul.u32 2, %s24
        $region16: #{decoder_forward_fused.5} parent=11 // pred_fallthru
          _
      $region12: #{decoder_forward_fused.5} parent=5 // pred_fallthru
        _
      %p158 = scmp.lt.s32.totalorder %s15, 4
      // Predicated region
      $region17: #{decoder_forward_fused.5} parent=5 // pred_check
        %p159 = pneg %p158
      $region18: #{decoder_forward_fused.5} parent=5 // pred_check_branch
        %161 = sbr.rel (%p159) target = $region20
      $region19: #{decoder_forward_fused.5} parent=5 // pred_region
        // Predicated region
        $region21: #{decoder_forward_fused.5} parent=19 // pred_check
          %p162 = pneg %p73
        $region22: #{decoder_forward_fused.5} parent=19 // pred_check_branch
          %164 = sbr.rel (%p162) target = $region24
        $region23: #{decoder_forward_fused.5} parent=19 // pred_region
          %s165 = sand.u32 %s63, 1
          %s166 = scalar_lea.sflag [#allocation3], %s165
          %s167 = sand.u32 %s63, 1
          %s168 = smul.addr %s167, 4096
          %s169 = scalar_lea.vmem [#allocation2], %s168
          %s170 = smul.u32 4, %s23
          %s172 = ssub.s32 65536, 65536
          %173 = vsyncadd %s166, %s172
          %s174 = smul.addr %s170, 64
          %s175 = scalar_lea.hbm %s1, %s174
          %s176 = sshll.u32 %s169, 4
          %s177 = int_to_ptr.vmem [resolvable:$true] %s176
          %182 = dma.hbm_to_vmem [thread:$0]  %s175, 65536, %s177, %s166, 1024, 256, 16
        $region24: #{decoder_forward_fused.5} parent=19 // pred_fallthru
          _
        // Predicated region
        $region25: #{decoder_forward_fused.5} parent=19 // pred_check
          %p183 = pneg %p99
        $region26: #{decoder_forward_fused.5} parent=19 // pred_check_branch
          %185 = sbr.rel (%p183) target = $region28
        $region27: #{decoder_forward_fused.5} parent=19 // pred_region
          %s186 = sand.u32 %s89, 1
          %s187 = scalar_lea.sflag [#allocation5], %s186
          %s188 = sand.u32 %s89, 1
          %s189 = smul.addr %s188, 4
          %s190 = scalar_lea.vmem [#allocation4], %s189
          %s191 = smul.u32 4, %s23
          %s193 = ssub.s32 64, 64
          %194 = vsyncadd %s187, %s193
          %s195 = smul.addr %s191, 16
          %s196 = scalar_lea.hbm %s2, %s195
          %s198 = sshll.u32 %s190, 4
          %s199 = int_to_ptr.vmem [resolvable:$true] %s198
          %201 = dma.hbm_to_vmem [thread:$0]  %s196, 64, %s199, %s187
        $region28: #{decoder_forward_fused.5} parent=19 // pred_fallthru
          _
      $region20: #{decoder_forward_fused.5} parent=5 // pred_fallthru
        _
      %p202 = scmp.le.s32.totalorder 1, %s15
      %p203 = scmp.lt.s32.totalorder %s15, 5
      %p204 = pnand %p202, %p203
      %p205 = pneg %p204
      // Predicated region
      $region29: #{decoder_forward_fused.5} parent=5 // pred_check
        _
      $region30: #{decoder_forward_fused.5} parent=5 // pred_check_branch
        %207 = sbr.rel (%p204) target = $region32
      $region31: #{decoder_forward_fused.5} parent=5 // pred_region
        %s208 = ssub.s32 %s15, 1
        %s209 = sand.u32 %s66, 1
        %s210 = scalar_lea.sflag [#allocation3], %s209
        %s211 = sand.u32 %s66, 1
        %s212 = smul.addr %s211, 4096
        %s213 = scalar_lea.vmem [#allocation2], %s212
        // Predicated region
        $region33: #{decoder_forward_fused.5} parent=31 // pred_check
          %p214 = pneg %p79
        $region34: #{decoder_forward_fused.5} parent=31 // pred_check_branch
          %216 = sbr.rel (%p214) target = $region36
        $region35: #{decoder_forward_fused.5} parent=31 // pred_region
          %217 = dma.done %s210, 65536
        $region36: #{decoder_forward_fused.5} parent=31 // pred_fallthru
          _
        %s218 = sand.u32 %s92, 1
        %s219 = scalar_lea.sflag [#allocation5], %s218
        %s220 = sand.u32 %s92, 1
        %s221 = smul.addr %s220, 4
        %s222 = scalar_lea.vmem [#allocation4], %s221
        // Predicated region
        $region37: #{decoder_forward_fused.5} parent=31 // pred_check
          %p223 = pneg %p105
        $region38: #{decoder_forward_fused.5} parent=31 // pred_check_branch
          %225 = sbr.rel (%p223) target = $region40
        $region39: #{decoder_forward_fused.5} parent=31 // pred_region
          %226 = dma.done %s219, 64
        $region40: #{decoder_forward_fused.5} parent=31 // pred_fallthru
          _
        %s227 = smul.u32 2, %s24
        %p228 = scmp.lt.s32.totalorder %s227, 1
        %s229 = scalar_select %p228, %s227, 1
        %s230 = smul.addr %s229, 16
        %s231 = smul.addr %s230, 4
        %s232 = scalar_lea.vmem %s0, %s231
        %p233 = pneg %p53
        %p234 = pneg %p50
        %s235 = sand.u32 %s66, 1
        %s236 = scalar_lea.sflag [#allocation3], %s235
        %s237 = sand.u32 %s66, 1
        %s238 = smul.addr %s237, 4096
        %s239 = scalar_lea.vmem [#allocation2], %s238
        %p240 = pneg %p79
        %p241 = pneg %p76
        %s242 = sand.u32 %s92, 1
        %s243 = scalar_lea.sflag [#allocation5], %s242
        %s244 = sand.u32 %s92, 1
        %s245 = smul.addr %s244, 4
        %s246 = scalar_lea.vmem [#allocation4], %s245
        %p247 = pneg %p105
        %p248 = pneg %p102
        %p249 = pneg %p133
        %p250 = pneg %p130
        %s251 = sand.u32 %s120, 1
        %s252 = sand.u32 %s120, 1
        %s253 = smul.addr %s252, 64
        %s254 = scalar_lea.vmem [#allocation6], %s253
        %s255 = smul.u32 2, %s24
        %p256 = scmp.lt.s32.totalorder %s255, 1
        %s257 = scalar_select %p256, %s255, 1
        %s258 = smul.addr %s257, 16
        %s259 = smul.addr %s258, 4
        %s260 = scalar_lea.vmem %s0, %s259
        %s261 = smul.u32 2, %s24
        %s262 = smul.u32 4, %s25
        %s263 = smul.u32 4, %s25
        %s264 = smul.u32 2, %s24
        %s265 = smul.u32 4, %s25
        %v266 = vld [vmem:[%s260] sm:$0xff]
        %v267 = vld [vmem:[%s260 + $0x8] sm:$0xff]
        %v268 = vld [vmem:[%s260 + $0x10] sm:$0xff]
        %v269 = vld [vmem:[%s260 + $0x18] sm:$0xff]
        %v270 = vld [vmem:[%s260 + $0x20] sm:$0xff]
        %v271 = vld [vmem:[%s260 + $0x28] sm:$0xff]
        %v272 = vld [vmem:[%s260 + $0x30] sm:$0xff]
        %v273 = vld [vmem:[%s260 + $0x38] sm:$0xff]
        %v274 = vld [vmem:[%s260 + $0x40] sm:$0xff]
        %v275 = vld [vmem:[%s260 + $0x48] sm:$0xff]
        %v276 = vld [vmem:[%s260 + $0x50] sm:$0xff]
        %v277 = vld [vmem:[%s260 + $0x58] sm:$0xff]
        %v278 = vld [vmem:[%s260 + $0x60] sm:$0xff]
        %v279 = vld [vmem:[%s260 + $0x68] sm:$0xff]
        %v280 = vld [vmem:[%s260 + $0x70] sm:$0xff]
        %v281 = vld [vmem:[%s260 + $0x78] sm:$0xff]
        %v282 = vld [vmem:[%s213] sm:$0xff]
        %v283 = vld [vmem:[%s213 + $0x8] sm:$0xff]
        %v284 = vld [vmem:[%s213 + $0x10] sm:$0xff]
        %v285 = vld [vmem:[%s213 + $0x18] sm:$0xff]
        %v286 = vld [vmem:[%s213 + $0x20] sm:$0xff]
        %v287 = vld [vmem:[%s213 + $0x28] sm:$0xff]
        %v288 = vld [vmem:[%s213 + $0x30] sm:$0xff]
        %v289 = vld [vmem:[%s213 + $0x38] sm:$0xff]
        %v290 = vld [vmem:[%s213 + $0x40] sm:$0xff]
        %v291 = vld [vmem:[%s213 + $0x48] sm:$0xff]
        %v292 = vld [vmem:[%s213 + $0x50] sm:$0xff]
        %v293 = vld [vmem:[%s213 + $0x58] sm:$0xff]
        %v294 = vld [vmem:[%s213 + $0x60] sm:$0xff]
        %v295 = vld [vmem:[%s213 + $0x68] sm:$0xff]
        %v296 = vld [vmem:[%s213 + $0x70] sm:$0xff]
        %v297 = vld [vmem:[%s213 + $0x78] sm:$0xff]
        %v298 = vld [vmem:[%s213 + $0x80] sm:$0xff]
        %v299 = vld [vmem:[%s213 + $0x88] sm:$0xff]
        %v300 = vld [vmem:[%s213 + $0x90] sm:$0xff]
        %v301 = vld [vmem:[%s213 + $0x98] sm:$0xff]
        %v302 = vld [vmem:[%s213 + $0xa0] sm:$0xff]
        %v303 = vld [vmem:[%s213 + $0xa8] sm:$0xff]
        %v304 = vld [vmem:[%s213 + $0xb0] sm:$0xff]
        %v305 = vld [vmem:[%s213 + $0xb8] sm:$0xff]
        %v306 = vld [vmem:[%s213 + $0xc0] sm:$0xff]
        %v307 = vld [vmem:[%s213 + $0xc8] sm:$0xff]
        %v308 = vld [vmem:[%s213 + $0xd0] sm:$0xff]
        %v309 = vld [vmem:[%s213 + $0xd8] sm:$0xff]
        %v310 = vld [vmem:[%s213 + $0xe0] sm:$0xff]
        %v311 = vld [vmem:[%s213 + $0xe8] sm:$0xff]
        %v312 = vld [vmem:[%s213 + $0xf0] sm:$0xff]
        %v313 = vld [vmem:[%s213 + $0xf8] sm:$0xff]
        %v314 = vld [vmem:[%s213 + $0x100] sm:$0xff]
        %v315 = vld [vmem:[%s213 + $0x108] sm:$0xff]
        %v316 = vld [vmem:[%s213 + $0x110] sm:$0xff]
        %v317 = vld [vmem:[%s213 + $0x118] sm:$0xff]
        %v318 = vld [vmem:[%s213 + $0x120] sm:$0xff]
        %v319 = vld [vmem:[%s213 + $0x128] sm:$0xff]
        %v320 = vld [vmem:[%s213 + $0x130] sm:$0xff]
        %v321 = vld [vmem:[%s213 + $0x138] sm:$0xff]
        %v322 = vld [vmem:[%s213 + $0x140] sm:$0xff]
        %v323 = vld [vmem:[%s213 + $0x148] sm:$0xff]
        %v324 = vld [vmem:[%s213 + $0x150] sm:$0xff]
        %v325 = vld [vmem:[%s213 + $0x158] sm:$0xff]
        %v326 = vld [vmem:[%s213 + $0x160] sm:$0xff]
        %v327 = vld [vmem:[%s213 + $0x168] sm:$0xff]
        %v328 = vld [vmem:[%s213 + $0x170] sm:$0xff]
        %v329 = vld [vmem:[%s213 + $0x178] sm:$0xff]
        %v330 = vld [vmem:[%s213 + $0x180] sm:$0xff]
        %v331 = vld [vmem:[%s213 + $0x188] sm:$0xff]
        %v332 = vld [vmem:[%s213 + $0x190] sm:$0xff]
        %v333 = vld [vmem:[%s213 + $0x198] sm:$0xff]
        %v334 = vld [vmem:[%s213 + $0x1a0] sm:$0xff]
        %v335 = vld [vmem:[%s213 + $0x1a8] sm:$0xff]
        %v336 = vld [vmem:[%s213 + $0x1b0] sm:$0xff]
        %v337 = vld [vmem:[%s213 + $0x1b8] sm:$0xff]
        %v338 = vld [vmem:[%s213 + $0x1c0] sm:$0xff]
        %v339 = vld [vmem:[%s213 + $0x1c8] sm:$0xff]
        %v340 = vld [vmem:[%s213 + $0x1d0] sm:$0xff]
        %v341 = vld [vmem:[%s213 + $0x1d8] sm:$0xff]
        %v342 = vld [vmem:[%s213 + $0x1e0] sm:$0xff]
        %v343 = vld [vmem:[%s213 + $0x1e8] sm:$0xff]
        %v344 = vld [vmem:[%s213 + $0x1f0] sm:$0xff]
        %v345 = vld [vmem:[%s213 + $0x1f8] sm:$0xff]
        %v346 = vld [vmem:[%s213 + $0x200] sm:$0xff]
        %v347 = vld [vmem:[%s213 + $0x208] sm:$0xff]
        %v348 = vld [vmem:[%s213 + $0x210] sm:$0xff]
        %v349 = vld [vmem:[%s213 + $0x218] sm:$0xff]
        %v350 = vld [vmem:[%s213 + $0x220] sm:$0xff]
        %v351 = vld [vmem:[%s213 + $0x228] sm:$0xff]
        %v352 = vld [vmem:[%s213 + $0x230] sm:$0xff]
        %v353 = vld [vmem:[%s213 + $0x238] sm:$0xff]
        %v354 = vld [vmem:[%s213 + $0x240] sm:$0xff]
        %v355 = vld [vmem:[%s213 + $0x248] sm:$0xff]
        %v356 = vld [vmem:[%s213 + $0x250] sm:$0xff]
        %v357 = vld [vmem:[%s213 + $0x258] sm:$0xff]
        %v358 = vld [vmem:[%s213 + $0x260] sm:$0xff]
        %v359 = vld [vmem:[%s213 + $0x268] sm:$0xff]
        %v360 = vld [vmem:[%s213 + $0x270] sm:$0xff]
        %v361 = vld [vmem:[%s213 + $0x278] sm:$0xff]
        %v362 = vld [vmem:[%s213 + $0x280] sm:$0xff]
        %v363 = vld [vmem:[%s213 + $0x288] sm:$0xff]
        %v364 = vld [vmem:[%s213 + $0x290] sm:$0xff]
        %v365 = vld [vmem:[%s213 + $0x298] sm:$0xff]
        %v366 = vld [vmem:[%s213 + $0x2a0] sm:$0xff]
        %v367 = vld [vmem:[%s213 + $0x2a8] sm:$0xff]
        %v368 = vld [vmem:[%s213 + $0x2b0] sm:$0xff]
        %v369 = vld [vmem:[%s213 + $0x2b8] sm:$0xff]
        %v370 = vld [vmem:[%s213 + $0x2c0] sm:$0xff]
        %v371 = vld [vmem:[%s213 + $0x2c8] sm:$0xff]
        %v372 = vld [vmem:[%s213 + $0x2d0] sm:$0xff]
        %v373 = vld [vmem:[%s213 + $0x2d8] sm:$0xff]
        %v374 = vld [vmem:[%s213 + $0x2e0] sm:$0xff]
        %v375 = vld [vmem:[%s213 + $0x2e8] sm:$0xff]
        %v376 = vld [vmem:[%s213 + $0x2f0] sm:$0xff]
        %v377 = vld [vmem:[%s213 + $0x2f8] sm:$0xff]
        %v378 = vld [vmem:[%s213 + $0x300] sm:$0xff]
        %v379 = vld [vmem:[%s213 + $0x308] sm:$0xff]
        %v380 = vld [vmem:[%s213 + $0x310] sm:$0xff]
        %v381 = vld [vmem:[%s213 + $0x318] sm:$0xff]
        %v382 = vld [vmem:[%s213 + $0x320] sm:$0xff]
        %v383 = vld [vmem:[%s213 + $0x328] sm:$0xff]
        %v384 = vld [vmem:[%s213 + $0x330] sm:$0xff]
        %v385 = vld [vmem:[%s213 + $0x338] sm:$0xff]
        %v386 = vld [vmem:[%s213 + $0x340] sm:$0xff]
        %v387 = vld [vmem:[%s213 + $0x348] sm:$0xff]
        %v388 = vld [vmem:[%s213 + $0x350] sm:$0xff]
        %v389 = vld [vmem:[%s213 + $0x358] sm:$0xff]
        %v390 = vld [vmem:[%s213 + $0x360] sm:$0xff]
        %v391 = vld [vmem:[%s213 + $0x368] sm:$0xff]
        %v392 = vld [vmem:[%s213 + $0x370] sm:$0xff]
        %v393 = vld [vmem:[%s213 + $0x378] sm:$0xff]
        %v394 = vld [vmem:[%s213 + $0x380] sm:$0xff]
        %v395 = vld [vmem:[%s213 + $0x388] sm:$0xff]
        %v396 = vld [vmem:[%s213 + $0x390] sm:$0xff]
        %v397 = vld [vmem:[%s213 + $0x398] sm:$0xff]
        %v398 = vld [vmem:[%s213 + $0x3a0] sm:$0xff]
        %v399 = vld [vmem:[%s213 + $0x3a8] sm:$0xff]
        %v400 = vld [vmem:[%s213 + $0x3b0] sm:$0xff]
        %v401 = vld [vmem:[%s213 + $0x3b8] sm:$0xff]
        %v402 = vld [vmem:[%s213 + $0x3c0] sm:$0xff]
        %v403 = vld [vmem:[%s213 + $0x3c8] sm:$0xff]
        %v404 = vld [vmem:[%s213 + $0x3d0] sm:$0xff]
        %v405 = vld [vmem:[%s213 + $0x3d8] sm:$0xff]
        %v406 = vld [vmem:[%s213 + $0x3e0] sm:$0xff]
        %v407 = vld [vmem:[%s213 + $0x3e8] sm:$0xff]
        %v408 = vld [vmem:[%s213 + $0x3f0] sm:$0xff]
        %v409 = vld [vmem:[%s213 + $0x3f8] sm:$0xff]
        %v410 = vld [vmem:[%s213 + $0x400] sm:$0xff]
        %v411 = vld [vmem:[%s213 + $0x408] sm:$0xff]
        %v412 = vld [vmem:[%s213 + $0x410] sm:$0xff]
        %v413 = vld [vmem:[%s213 + $0x418] sm:$0xff]
        %v414 = vld [vmem:[%s213 + $0x420] sm:$0xff]
        %v415 = vld [vmem:[%s213 + $0x428] sm:$0xff]
        %v416 = vld [vmem:[%s213 + $0x430] sm:$0xff]
        %v417 = vld [vmem:[%s213 + $0x438] sm:$0xff]
        %v418 = vld [vmem:[%s213 + $0x440] sm:$0xff]
        %v419 = vld [vmem:[%s213 + $0x448] sm:$0xff]
        %v420 = vld [vmem:[%s213 + $0x450] sm:$0xff]
        %v421 = vld [vmem:[%s213 + $0x458] sm:$0xff]
        %v422 = vld [vmem:[%s213 + $0x460] sm:$0xff]
        %v423 = vld [vmem:[%s213 + $0x468] sm:$0xff]
        %v424 = vld [vmem:[%s213 + $0x470] sm:$0xff]
        %v425 = vld [vmem:[%s213 + $0x478] sm:$0xff]
        %v426 = vld [vmem:[%s213 + $0x480] sm:$0xff]
        %v427 = vld [vmem:[%s213 + $0x488] sm:$0xff]
        %v428 = vld [vmem:[%s213 + $0x490] sm:$0xff]
        %v429 = vld [vmem:[%s213 + $0x498] sm:$0xff]
        %v430 = vld [vmem:[%s213 + $0x4a0] sm:$0xff]
        %v431 = vld [vmem:[%s213 + $0x4a8] sm:$0xff]
        %v432 = vld [vmem:[%s213 + $0x4b0] sm:$0xff]
        %v433 = vld [vmem:[%s213 + $0x4b8] sm:$0xff]
        %v434 = vld [vmem:[%s213 + $0x4c0] sm:$0xff]
        %v435 = vld [vmem:[%s213 + $0x4c8] sm:$0xff]
        %v436 = vld [vmem:[%s213 + $0x4d0] sm:$0xff]
        %v437 = vld [vmem:[%s213 + $0x4d8] sm:$0xff]
        %v438 = vld [vmem:[%s213 + $0x4e0] sm:$0xff]
        %v439 = vld [vmem:[%s213 + $0x4e8] sm:$0xff]
        %v440 = vld [vmem:[%s213 + $0x4f0] sm:$0xff]
        %v441 = vld [vmem:[%s213 + $0x4f8] sm:$0xff]
        %v442 = vld [vmem:[%s213 + $0x500] sm:$0xff]
        %v443 = vld [vmem:[%s213 + $0x508] sm:$0xff]
        %v444 = vld [vmem:[%s213 + $0x510] sm:$0xff]
        %v445 = vld [vmem:[%s213 + $0x518] sm:$0xff]
        %v446 = vld [vmem:[%s213 + $0x520] sm:$0xff]
        %v447 = vld [vmem:[%s213 + $0x528] sm:$0xff]
        %v448 = vld [vmem:[%s213 + $0x530] sm:$0xff]
        %v449 = vld [vmem:[%s213 + $0x538] sm:$0xff]
        %v450 = vld [vmem:[%s213 + $0x540] sm:$0xff]
        %v451 = vld [vmem:[%s213 + $0x548] sm:$0xff]
        %v452 = vld [vmem:[%s213 + $0x550] sm:$0xff]
        %v453 = vld [vmem:[%s213 + $0x558] sm:$0xff]
        %v454 = vld [vmem:[%s213 + $0x560] sm:$0xff]
        %v455 = vld [vmem:[%s213 + $0x568] sm:$0xff]
        %v456 = vld [vmem:[%s213 + $0x570] sm:$0xff]
        %v457 = vld [vmem:[%s213 + $0x578] sm:$0xff]
        %v458 = vld [vmem:[%s213 + $0x580] sm:$0xff]
        %v459 = vld [vmem:[%s213 + $0x588] sm:$0xff]
        %v460 = vld [vmem:[%s213 + $0x590] sm:$0xff]
        %v461 = vld [vmem:[%s213 + $0x598] sm:$0xff]
        %v462 = vld [vmem:[%s213 + $0x5a0] sm:$0xff]
        %v463 = vld [vmem:[%s213 + $0x5a8] sm:$0xff]
        %v464 = vld [vmem:[%s213 + $0x5b0] sm:$0xff]
        %v465 = vld [vmem:[%s213 + $0x5b8] sm:$0xff]
        %v466 = vld [vmem:[%s213 + $0x5c0] sm:$0xff]
        %v467 = vld [vmem:[%s213 + $0x5c8] sm:$0xff]
        %v468 = vld [vmem:[%s213 + $0x5d0] sm:$0xff]
        %v469 = vld [vmem:[%s213 + $0x5d8] sm:$0xff]
        %v470 = vld [vmem:[%s213 + $0x5e0] sm:$0xff]
        %v471 = vld [vmem:[%s213 + $0x5e8] sm:$0xff]
        %v472 = vld [vmem:[%s213 + $0x5f0] sm:$0xff]
        %v473 = vld [vmem:[%s213 + $0x5f8] sm:$0xff]
        %v474 = vld [vmem:[%s213 + $0x600] sm:$0xff]
        %v475 = vld [vmem:[%s213 + $0x608] sm:$0xff]
        %v476 = vld [vmem:[%s213 + $0x610] sm:$0xff]
        %v477 = vld [vmem:[%s213 + $0x618] sm:$0xff]
        %v478 = vld [vmem:[%s213 + $0x620] sm:$0xff]
        %v479 = vld [vmem:[%s213 + $0x628] sm:$0xff]
        %v480 = vld [vmem:[%s213 + $0x630] sm:$0xff]
        %v481 = vld [vmem:[%s213 + $0x638] sm:$0xff]
        %v482 = vld [vmem:[%s213 + $0x640] sm:$0xff]
        %v483 = vld [vmem:[%s213 + $0x648] sm:$0xff]
        %v484 = vld [vmem:[%s213 + $0x650] sm:$0xff]
        %v485 = vld [vmem:[%s213 + $0x658] sm:$0xff]
        %v486 = vld [vmem:[%s213 + $0x660] sm:$0xff]
        %v487 = vld [vmem:[%s213 + $0x668] sm:$0xff]
        %v488 = vld [vmem:[%s213 + $0x670] sm:$0xff]
        %v489 = vld [vmem:[%s213 + $0x678] sm:$0xff]
        %v490 = vld [vmem:[%s213 + $0x680] sm:$0xff]
        %v491 = vld [vmem:[%s213 + $0x688] sm:$0xff]
        %v492 = vld [vmem:[%s213 + $0x690] sm:$0xff]
        %v493 = vld [vmem:[%s213 + $0x698] sm:$0xff]
        %v494 = vld [vmem:[%s213 + $0x6a0] sm:$0xff]
        %v495 = vld [vmem:[%s213 + $0x6a8] sm:$0xff]
        %v496 = vld [vmem:[%s213 + $0x6b0] sm:$0xff]
        %v497 = vld [vmem:[%s213 + $0x6b8] sm:$0xff]
        %v498 = vld [vmem:[%s213 + $0x6c0] sm:$0xff]
        %v499 = vld [vmem:[%s213 + $0x6c8] sm:$0xff]
        %v500 = vld [vmem:[%s213 + $0x6d0] sm:$0xff]
        %v501 = vld [vmem:[%s213 + $0x6d8] sm:$0xff]
        %v502 = vld [vmem:[%s213 + $0x6e0] sm:$0xff]
        %v503 = vld [vmem:[%s213 + $0x6e8] sm:$0xff]
        %v504 = vld [vmem:[%s213 + $0x6f0] sm:$0xff]
        %v505 = vld [vmem:[%s213 + $0x6f8] sm:$0xff]
        %v506 = vld [vmem:[%s213 + $0x700] sm:$0xff]
        %v507 = vld [vmem:[%s213 + $0x708] sm:$0xff]
        %v508 = vld [vmem:[%s213 + $0x710] sm:$0xff]
        %v509 = vld [vmem:[%s213 + $0x718] sm:$0xff]
        %v510 = vld [vmem:[%s213 + $0x720] sm:$0xff]
        %v511 = vld [vmem:[%s213 + $0x728] sm:$0xff]
        %v512 = vld [vmem:[%s213 + $0x730] sm:$0xff]
        %v513 = vld [vmem:[%s213 + $0x738] sm:$0xff]
        %v514 = vld [vmem:[%s213 + $0x740] sm:$0xff]
        %v515 = vld [vmem:[%s213 + $0x748] sm:$0xff]
        %v516 = vld [vmem:[%s213 + $0x750] sm:$0xff]
        %v517 = vld [vmem:[%s213 + $0x758] sm:$0xff]
        %v518 = vld [vmem:[%s213 + $0x760] sm:$0xff]
        %v519 = vld [vmem:[%s213 + $0x768] sm:$0xff]
        %v520 = vld [vmem:[%s213 + $0x770] sm:$0xff]
        %v521 = vld [vmem:[%s213 + $0x778] sm:$0xff]
        %v522 = vld [vmem:[%s213 + $0x780] sm:$0xff]
        %v523 = vld [vmem:[%s213 + $0x788] sm:$0xff]
        %v524 = vld [vmem:[%s213 + $0x790] sm:$0xff]
        %v525 = vld [vmem:[%s213 + $0x798] sm:$0xff]
        %v526 = vld [vmem:[%s213 + $0x7a0] sm:$0xff]
        %v527 = vld [vmem:[%s213 + $0x7a8] sm:$0xff]
        %v528 = vld [vmem:[%s213 + $0x7b0] sm:$0xff]
        %v529 = vld [vmem:[%s213 + $0x7b8] sm:$0xff]
        %v530 = vld [vmem:[%s213 + $0x7c0] sm:$0xff]
        %v531 = vld [vmem:[%s213 + $0x7c8] sm:$0xff]
        %v532 = vld [vmem:[%s213 + $0x7d0] sm:$0xff]
        %v533 = vld [vmem:[%s213 + $0x7d8] sm:$0xff]
        %v534 = vld [vmem:[%s213 + $0x7e0] sm:$0xff]
        %v535 = vld [vmem:[%s213 + $0x7e8] sm:$0xff]
        %v536 = vld [vmem:[%s213 + $0x7f0] sm:$0xff]
        %v537 = vld [vmem:[%s213 + $0x7f8] sm:$0xff]
        %v538 = vld [vmem:[%s213 + $0x800] sm:$0xff]
        %v539 = vld [vmem:[%s213 + $0x808] sm:$0xff]
        %v540 = vld [vmem:[%s213 + $0x810] sm:$0xff]
        %v541 = vld [vmem:[%s213 + $0x818] sm:$0xff]
        %v542 = vld [vmem:[%s213 + $0x820] sm:$0xff]
        %v543 = vld [vmem:[%s213 + $0x828] sm:$0xff]
        %v544 = vld [vmem:[%s213 + $0x830] sm:$0xff]
        %v545 = vld [vmem:[%s213 + $0x838] sm:$0xff]
        %v546 = vld [vmem:[%s213 + $0x840] sm:$0xff]
        %v547 = vld [vmem:[%s213 + $0x848] sm:$0xff]
        %v548 = vld [vmem:[%s213 + $0x850] sm:$0xff]
        %v549 = vld [vmem:[%s213 + $0x858] sm:$0xff]
        %v550 = vld [vmem:[%s213 + $0x860] sm:$0xff]
        %v551 = vld [vmem:[%s213 + $0x868] sm:$0xff]
        %v552 = vld [vmem:[%s213 + $0x870] sm:$0xff]
        %v553 = vld [vmem:[%s213 + $0x878] sm:$0xff]
        %v554 = vld [vmem:[%s213 + $0x880] sm:$0xff]
        %v555 = vld [vmem:[%s213 + $0x888] sm:$0xff]
        %v556 = vld [vmem:[%s213 + $0x890] sm:$0xff]
        %v557 = vld [vmem:[%s213 + $0x898] sm:$0xff]
        %v558 = vld [vmem:[%s213 + $0x8a0] sm:$0xff]
        %v559 = vld [vmem:[%s213 + $0x8a8] sm:$0xff]
        %v560 = vld [vmem:[%s213 + $0x8b0] sm:$0xff]
        %v561 = vld [vmem:[%s213 + $0x8b8] sm:$0xff]
        %v562 = vld [vmem:[%s213 + $0x8c0] sm:$0xff]
        %v563 = vld [vmem:[%s213 + $0x8c8] sm:$0xff]
        %v564 = vld [vmem:[%s213 + $0x8d0] sm:$0xff]
        %v565 = vld [vmem:[%s213 + $0x8d8] sm:$0xff]
        %v566 = vld [vmem:[%s213 + $0x8e0] sm:$0xff]
        %v567 = vld [vmem:[%s213 + $0x8e8] sm:$0xff]
        %v568 = vld [vmem:[%s213 + $0x8f0] sm:$0xff]
        %v569 = vld [vmem:[%s213 + $0x8f8] sm:$0xff]
        %v570 = vld [vmem:[%s213 + $0x900] sm:$0xff]
        %v571 = vld [vmem:[%s213 + $0x908] sm:$0xff]
        %v572 = vld [vmem:[%s213 + $0x910] sm:$0xff]
        %v573 = vld [vmem:[%s213 + $0x918] sm:$0xff]
        %v574 = vld [vmem:[%s213 + $0x920] sm:$0xff]
        %v575 = vld [vmem:[%s213 + $0x928] sm:$0xff]
        %v576 = vld [vmem:[%s213 + $0x930] sm:$0xff]
        %v577 = vld [vmem:[%s213 + $0x938] sm:$0xff]
        %v578 = vld [vmem:[%s213 + $0x940] sm:$0xff]
        %v579 = vld [vmem:[%s213 + $0x948] sm:$0xff]
        %v580 = vld [vmem:[%s213 + $0x950] sm:$0xff]
        %v581 = vld [vmem:[%s213 + $0x958] sm:$0xff]
        %v582 = vld [vmem:[%s213 + $0x960] sm:$0xff]
        %v583 = vld [vmem:[%s213 + $0x968] sm:$0xff]
        %v584 = vld [vmem:[%s213 + $0x970] sm:$0xff]
        %v585 = vld [vmem:[%s213 + $0x978] sm:$0xff]
        %v586 = vld [vmem:[%s213 + $0x980] sm:$0xff]
        %v587 = vld [vmem:[%s213 + $0x988] sm:$0xff]
        %v588 = vld [vmem:[%s213 + $0x990] sm:$0xff]
        %v589 = vld [vmem:[%s213 + $0x998] sm:$0xff]
        %v590 = vld [vmem:[%s213 + $0x9a0] sm:$0xff]
        %v591 = vld [vmem:[%s213 + $0x9a8] sm:$0xff]
        %v592 = vld [vmem:[%s213 + $0x9b0] sm:$0xff]
        %v593 = vld [vmem:[%s213 + $0x9b8] sm:$0xff]
        %v594 = vld [vmem:[%s213 + $0x9c0] sm:$0xff]
        %v595 = vld [vmem:[%s213 + $0x9c8] sm:$0xff]
        %v596 = vld [vmem:[%s213 + $0x9d0] sm:$0xff]
        %v597 = vld [vmem:[%s213 + $0x9d8] sm:$0xff]
        %v598 = vld [vmem:[%s213 + $0x9e0] sm:$0xff]
        %v599 = vld [vmem:[%s213 + $0x9e8] sm:$0xff]
        %v600 = vld [vmem:[%s213 + $0x9f0] sm:$0xff]
        %v601 = vld [vmem:[%s213 + $0x9f8] sm:$0xff]
        %v602 = vld [vmem:[%s213 + $0xa00] sm:$0xff]
        %v603 = vld [vmem:[%s213 + $0xa08] sm:$0xff]
        %v604 = vld [vmem:[%s213 + $0xa10] sm:$0xff]
        %v605 = vld [vmem:[%s213 + $0xa18] sm:$0xff]
        %v606 = vld [vmem:[%s213 + $0xa20] sm:$0xff]
        %v607 = vld [vmem:[%s213 + $0xa28] sm:$0xff]
        %v608 = vld [vmem:[%s213 + $0xa30] sm:$0xff]
        %v609 = vld [vmem:[%s213 + $0xa38] sm:$0xff]
        %v610 = vld [vmem:[%s213 + $0xa40] sm:$0xff]
        %v611 = vld [vmem:[%s213 + $0xa48] sm:$0xff]
        %v612 = vld [vmem:[%s213 + $0xa50] sm:$0xff]
        %v613 = vld [vmem:[%s213 + $0xa58] sm:$0xff]
        %v614 = vld [vmem:[%s213 + $0xa60] sm:$0xff]
        %v615 = vld [vmem:[%s213 + $0xa68] sm:$0xff]
        %v616 = vld [vmem:[%s213 + $0xa70] sm:$0xff]
        %v617 = vld [vmem:[%s213 + $0xa78] sm:$0xff]
        %v618 = vld [vmem:[%s213 + $0xa80] sm:$0xff]
        %v619 = vld [vmem:[%s213 + $0xa88] sm:$0xff]
        %v620 = vld [vmem:[%s213 + $0xa90] sm:$0xff]
        %v621 = vld [vmem:[%s213 + $0xa98] sm:$0xff]
        %v622 = vld [vmem:[%s213 + $0xaa0] sm:$0xff]
        %v623 = vld [vmem:[%s213 + $0xaa8] sm:$0xff]
        %v624 = vld [vmem:[%s213 + $0xab0] sm:$0xff]
        %v625 = vld [vmem:[%s213 + $0xab8] sm:$0xff]
        %v626 = vld [vmem:[%s213 + $0xac0] sm:$0xff]
        %v627 = vld [vmem:[%s213 + $0xac8] sm:$0xff]
        %v628 = vld [vmem:[%s213 + $0xad0] sm:$0xff]
        %v629 = vld [vmem:[%s213 + $0xad8] sm:$0xff]
        %v630 = vld [vmem:[%s213 + $0xae0] sm:$0xff]
        %v631 = vld [vmem:[%s213 + $0xae8] sm:$0xff]
        %v632 = vld [vmem:[%s213 + $0xaf0] sm:$0xff]
        %v633 = vld [vmem:[%s213 + $0xaf8] sm:$0xff]
        %v634 = vld [vmem:[%s213 + $0xb00] sm:$0xff]
        %v635 = vld [vmem:[%s213 + $0xb08] sm:$0xff]
        %v636 = vld [vmem:[%s213 + $0xb10] sm:$0xff]
        %v637 = vld [vmem:[%s213 + $0xb18] sm:$0xff]
        %v638 = vld [vmem:[%s213 + $0xb20] sm:$0xff]
        %v639 = vld [vmem:[%s213 + $0xb28] sm:$0xff]
        %v640 = vld [vmem:[%s213 + $0xb30] sm:$0xff]
        %v641 = vld [vmem:[%s213 + $0xb38] sm:$0xff]
        %v642 = vld [vmem:[%s213 + $0xb40] sm:$0xff]
        %v643 = vld [vmem:[%s213 + $0xb48] sm:$0xff]
        %v644 = vld [vmem:[%s213 + $0xb50] sm:$0xff]
        %v645 = vld [vmem:[%s213 + $0xb58] sm:$0xff]
        %v646 = vld [vmem:[%s213 + $0xb60] sm:$0xff]
        %v647 = vld [vmem:[%s213 + $0xb68] sm:$0xff]
        %v648 = vld [vmem:[%s213 + $0xb70] sm:$0xff]
        %v649 = vld [vmem:[%s213 + $0xb78] sm:$0xff]
        %v650 = vld [vmem:[%s213 + $0xb80] sm:$0xff]
        %v651 = vld [vmem:[%s213 + $0xb88] sm:$0xff]
        %v652 = vld [vmem:[%s213 + $0xb90] sm:$0xff]
        %v653 = vld [vmem:[%s213 + $0xb98] sm:$0xff]
        %v654 = vld [vmem:[%s213 + $0xba0] sm:$0xff]
        %v655 = vld [vmem:[%s213 + $0xba8] sm:$0xff]
        %v656 = vld [vmem:[%s213 + $0xbb0] sm:$0xff]
        %v657 = vld [vmem:[%s213 + $0xbb8] sm:$0xff]
        %v658 = vld [vmem:[%s213 + $0xbc0] sm:$0xff]
        %v659 = vld [vmem:[%s213 + $0xbc8] sm:$0xff]
        %v660 = vld [vmem:[%s213 + $0xbd0] sm:$0xff]
        %v661 = vld [vmem:[%s213 + $0xbd8] sm:$0xff]
        %v662 = vld [vmem:[%s213 + $0xbe0] sm:$0xff]
        %v663 = vld [vmem:[%s213 + $0xbe8] sm:$0xff]
        %v664 = vld [vmem:[%s213 + $0xbf0] sm:$0xff]
        %v665 = vld [vmem:[%s213 + $0xbf8] sm:$0xff]
        %v666 = vld [vmem:[%s213 + $0xc00] sm:$0xff]
        %v667 = vld [vmem:[%s213 + $0xc08] sm:$0xff]
        %v668 = vld [vmem:[%s213 + $0xc10] sm:$0xff]
        %v669 = vld [vmem:[%s213 + $0xc18] sm:$0xff]
        %v670 = vld [vmem:[%s213 + $0xc20] sm:$0xff]
        %v671 = vld [vmem:[%s213 + $0xc28] sm:$0xff]
        %v672 = vld [vmem:[%s213 + $0xc30] sm:$0xff]
        %v673 = vld [vmem:[%s213 + $0xc38] sm:$0xff]
        %v674 = vld [vmem:[%s213 + $0xc40] sm:$0xff]
        %v675 = vld [vmem:[%s213 + $0xc48] sm:$0xff]
        %v676 = vld [vmem:[%s213 + $0xc50] sm:$0xff]
        %v677 = vld [vmem:[%s213 + $0xc58] sm:$0xff]
        %v678 = vld [vmem:[%s213 + $0xc60] sm:$0xff]
        %v679 = vld [vmem:[%s213 + $0xc68] sm:$0xff]
        %v680 = vld [vmem:[%s213 + $0xc70] sm:$0xff]
        %v681 = vld [vmem:[%s213 + $0xc78] sm:$0xff]
        %v682 = vld [vmem:[%s213 + $0xc80] sm:$0xff]
        %v683 = vld [vmem:[%s213 + $0xc88] sm:$0xff]
        %v684 = vld [vmem:[%s213 + $0xc90] sm:$0xff]
        %v685 = vld [vmem:[%s213 + $0xc98] sm:$0xff]
        %v686 = vld [vmem:[%s213 + $0xca0] sm:$0xff]
        %v687 = vld [vmem:[%s213 + $0xca8] sm:$0xff]
        %v688 = vld [vmem:[%s213 + $0xcb0] sm:$0xff]
        %v689 = vld [vmem:[%s213 + $0xcb8] sm:$0xff]
        %v690 = vld [vmem:[%s213 + $0xcc0] sm:$0xff]
        %v691 = vld [vmem:[%s213 + $0xcc8] sm:$0xff]
        %v692 = vld [vmem:[%s213 + $0xcd0] sm:$0xff]
        %v693 = vld [vmem:[%s213 + $0xcd8] sm:$0xff]
        %v694 = vld [vmem:[%s213 + $0xce0] sm:$0xff]
        %v695 = vld [vmem:[%s213 + $0xce8] sm:$0xff]
        %v696 = vld [vmem:[%s213 + $0xcf0] sm:$0xff]
        %v697 = vld [vmem:[%s213 + $0xcf8] sm:$0xff]
        %v698 = vld [vmem:[%s213 + $0xd00] sm:$0xff]
        %v699 = vld [vmem:[%s213 + $0xd08] sm:$0xff]
        %v700 = vld [vmem:[%s213 + $0xd10] sm:$0xff]
        %v701 = vld [vmem:[%s213 + $0xd18] sm:$0xff]
        %v702 = vld [vmem:[%s213 + $0xd20] sm:$0xff]
        %v703 = vld [vmem:[%s213 + $0xd28] sm:$0xff]
        %v704 = vld [vmem:[%s213 + $0xd30] sm:$0xff]
        %v705 = vld [vmem:[%s213 + $0xd38] sm:$0xff]
        %v706 = vld [vmem:[%s213 + $0xd40] sm:$0xff]
        %v707 = vld [vmem:[%s213 + $0xd48] sm:$0xff]
        %v708 = vld [vmem:[%s213 + $0xd50] sm:$0xff]
        %v709 = vld [vmem:[%s213 + $0xd58] sm:$0xff]
        %v710 = vld [vmem:[%s213 + $0xd60] sm:$0xff]
        %v711 = vld [vmem:[%s213 + $0xd68] sm:$0xff]
        %v712 = vld [vmem:[%s213 + $0xd70] sm:$0xff]
        %v713 = vld [vmem:[%s213 + $0xd78] sm:$0xff]
        %v714 = vld [vmem:[%s213 + $0xd80] sm:$0xff]
        %v715 = vld [vmem:[%s213 + $0xd88] sm:$0xff]
        %v716 = vld [vmem:[%s213 + $0xd90] sm:$0xff]
        %v717 = vld [vmem:[%s213 + $0xd98] sm:$0xff]
        %v718 = vld [vmem:[%s213 + $0xda0] sm:$0xff]
        %v719 = vld [vmem:[%s213 + $0xda8] sm:$0xff]
        %v720 = vld [vmem:[%s213 + $0xdb0] sm:$0xff]
        %v721 = vld [vmem:[%s213 + $0xdb8] sm:$0xff]
        %v722 = vld [vmem:[%s213 + $0xdc0] sm:$0xff]
        %v723 = vld [vmem:[%s213 + $0xdc8] sm:$0xff]
        %v724 = vld [vmem:[%s213 + $0xdd0] sm:$0xff]
        %v725 = vld [vmem:[%s213 + $0xdd8] sm:$0xff]
        %v726 = vld [vmem:[%s213 + $0xde0] sm:$0xff]
        %v727 = vld [vmem:[%s213 + $0xde8] sm:$0xff]
        %v728 = vld [vmem:[%s213 + $0xdf0] sm:$0xff]
        %v729 = vld [vmem:[%s213 + $0xdf8] sm:$0xff]
        %v730 = vld [vmem:[%s213 + $0xe00] sm:$0xff]
        %v731 = vld [vmem:[%s213 + $0xe08] sm:$0xff]
        %v732 = vld [vmem:[%s213 + $0xe10] sm:$0xff]
        %v733 = vld [vmem:[%s213 + $0xe18] sm:$0xff]
        %v734 = vld [vmem:[%s213 + $0xe20] sm:$0xff]
        %v735 = vld [vmem:[%s213 + $0xe28] sm:$0xff]
        %v736 = vld [vmem:[%s213 + $0xe30] sm:$0xff]
        %v737 = vld [vmem:[%s213 + $0xe38] sm:$0xff]
        %v738 = vld [vmem:[%s213 + $0xe40] sm:$0xff]
        %v739 = vld [vmem:[%s213 + $0xe48] sm:$0xff]
        %v740 = vld [vmem:[%s213 + $0xe50] sm:$0xff]
        %v741 = vld [vmem:[%s213 + $0xe58] sm:$0xff]
        %v742 = vld [vmem:[%s213 + $0xe60] sm:$0xff]
        %v743 = vld [vmem:[%s213 + $0xe68] sm:$0xff]
        %v744 = vld [vmem:[%s213 + $0xe70] sm:$0xff]
        %v745 = vld [vmem:[%s213 + $0xe78] sm:$0xff]
        %v746 = vld [vmem:[%s213 + $0xe80] sm:$0xff]
        %v747 = vld [vmem:[%s213 + $0xe88] sm:$0xff]
        %v748 = vld [vmem:[%s213 + $0xe90] sm:$0xff]
        %v749 = vld [vmem:[%s213 + $0xe98] sm:$0xff]
        %v750 = vld [vmem:[%s213 + $0xea0] sm:$0xff]
        %v751 = vld [vmem:[%s213 + $0xea8] sm:$0xff]
        %v752 = vld [vmem:[%s213 + $0xeb0] sm:$0xff]
        %v753 = vld [vmem:[%s213 + $0xeb8] sm:$0xff]
        %v754 = vld [vmem:[%s213 + $0xec0] sm:$0xff]
        %v755 = vld [vmem:[%s213 + $0xec8] sm:$0xff]
        %v756 = vld [vmem:[%s213 + $0xed0] sm:$0xff]
        %v757 = vld [vmem:[%s213 + $0xed8] sm:$0xff]
        %v758 = vld [vmem:[%s213 + $0xee0] sm:$0xff]
        %v759 = vld [vmem:[%s213 + $0xee8] sm:$0xff]
        %v760 = vld [vmem:[%s213 + $0xef0] sm:$0xff]
        %v761 = vld [vmem:[%s213 + $0xef8] sm:$0xff]
        %v762 = vld [vmem:[%s213 + $0xf00] sm:$0xff]
        %v763 = vld [vmem:[%s213 + $0xf08] sm:$0xff]
        %v764 = vld [vmem:[%s213 + $0xf10] sm:$0xff]
        %v765 = vld [vmem:[%s213 + $0xf18] sm:$0xff]
        %v766 = vld [vmem:[%s213 + $0xf20] sm:$0xff]
        %v767 = vld [vmem:[%s213 + $0xf28] sm:$0xff]
        %v768 = vld [vmem:[%s213 + $0xf30] sm:$0xff]
        %v769 = vld [vmem:[%s213 + $0xf38] sm:$0xff]
        %v770 = vld [vmem:[%s213 + $0xf40] sm:$0xff]
        %v771 = vld [vmem:[%s213 + $0xf48] sm:$0xff]
        %v772 = vld [vmem:[%s213 + $0xf50] sm:$0xff]
        %v773 = vld [vmem:[%s213 + $0xf58] sm:$0xff]
        %v774 = vld [vmem:[%s213 + $0xf60] sm:$0xff]
        %v775 = vld [vmem:[%s213 + $0xf68] sm:$0xff]
        %v776 = vld [vmem:[%s213 + $0xf70] sm:$0xff]
        %v777 = vld [vmem:[%s213 + $0xf78] sm:$0xff]
        %v778 = vld [vmem:[%s213 + $0xf80] sm:$0xff]
        %v779 = vld [vmem:[%s213 + $0xf88] sm:$0xff]
        %v780 = vld [vmem:[%s213 + $0xf90] sm:$0xff]
        %v781 = vld [vmem:[%s213 + $0xf98] sm:$0xff]
        %v782 = vld [vmem:[%s213 + $0xfa0] sm:$0xff]
        %v783 = vld [vmem:[%s213 + $0xfa8] sm:$0xff]
        %v784 = vld [vmem:[%s213 + $0xfb0] sm:$0xff]
        %v785 = vld [vmem:[%s213 + $0xfb8] sm:$0xff]
        %v786 = vld [vmem:[%s213 + $0xfc0] sm:$0xff]
        %v787 = vld [vmem:[%s213 + $0xfc8] sm:$0xff]
        %v788 = vld [vmem:[%s213 + $0xfd0] sm:$0xff]
        %v789 = vld [vmem:[%s213 + $0xfd8] sm:$0xff]
        %v790 = vld [vmem:[%s213 + $0xfe0] sm:$0xff]
        %v791 = vld [vmem:[%s213 + $0xfe8] sm:$0xff]
        %v792 = vld [vmem:[%s213 + $0xff0] sm:$0xff]
        %v793 = vld [vmem:[%s213 + $0xff8] sm:$0xff]
        %v794 = vld [vmem:[%s222] sm:$0xf]
        %v796 = vlaneseq
        %v797 = vshrl.u32 %v796, 7
        %v798 = vsub.s32 0, %v797
        %v799 = vrot.slane %v794, %v798
        %v800 = vlaneseq
        %v801 = vshrl.u32 %v800, 7
        %v802 = vsub.s32 1, %v801
        %v803 = vrot.slane %v794, %v802
        %v804 = vlaneseq
        %v805 = vshrl.u32 %v804, 7
        %v806 = vsub.s32 2, %v805
        %v807 = vrot.slane %v794, %v806
        %v808 = vlaneseq
        %v809 = vshrl.u32 %v808, 7
        %v810 = vsub.s32 3, %v809
        %v811 = vrot.slane %v794, %v810
        %v832 = vunpack.c.l.b16 %v266
        %v833 = vunpack.c.h.b16 %v266
        %v834 = vunpack.c.l.b16 %v267
        %v835 = vunpack.c.h.b16 %v267
        %v836 = vunpack.c.l.b16 %v268
        %v837 = vunpack.c.h.b16 %v268
        %v838 = vunpack.c.l.b16 %v269
        %v839 = vunpack.c.h.b16 %v269
        %v840 = vunpack.c.l.b16 %v270
        %v841 = vunpack.c.h.b16 %v270
        %v842 = vunpack.c.l.b16 %v271
        %v843 = vunpack.c.h.b16 %v271
        %v844 = vunpack.c.l.b16 %v272
        %v845 = vunpack.c.h.b16 %v272
        %v846 = vunpack.c.l.b16 %v273
        %v847 = vunpack.c.h.b16 %v273
        %v848 = vunpack.c.l.b16 %v274
        %v849 = vunpack.c.h.b16 %v274
        %v850 = vunpack.c.l.b16 %v275
        %v851 = vunpack.c.h.b16 %v275
        %v852 = vunpack.c.l.b16 %v276
        %v853 = vunpack.c.h.b16 %v276
        %v854 = vunpack.c.l.b16 %v277
        %v855 = vunpack.c.h.b16 %v277
        %v856 = vunpack.c.l.b16 %v278
        %v857 = vunpack.c.h.b16 %v278
        %v858 = vunpack.c.l.b16 %v279
        %v859 = vunpack.c.h.b16 %v279
        %v860 = vunpack.c.l.b16 %v280
        %v861 = vunpack.c.h.b16 %v280
        %v862 = vunpack.c.l.b16 %v281
        %v863 = vunpack.c.h.b16 %v281
        %v864 = vpack.c.b16 %v848, %v832
        %v865 = vpack.c.b16 %v849, %v833
        %v866 = vpack.c.b16 %v850, %v834
        %v867 = vpack.c.b16 %v851, %v835
        %v868 = vpack.c.b16 %v852, %v836
        %v869 = vpack.c.b16 %v853, %v837
        %v870 = vpack.c.b16 %v854, %v838
        %v871 = vpack.c.b16 %v855, %v839
        %v872 = vpack.c.b16 %v856, %v840
        %v873 = vpack.c.b16 %v857, %v841
        %v874 = vpack.c.b16 %v858, %v842
        %v875 = vpack.c.b16 %v859, %v843
        %v876 = vpack.c.b16 %v860, %v844
        %v877 = vpack.c.b16 %v861, %v845
        %v878 = vpack.c.b16 %v862, %v846
        %v879 = vpack.c.b16 %v863, %v847
        %v1408 = vunpack.c.l.b16 %v282
        %v1409 = vunpack.c.h.b16 %v282
        %v1410 = vunpack.c.l.b16 %v283
        %v1411 = vunpack.c.h.b16 %v283
        %v1412 = vunpack.c.l.b16 %v284
        %v1413 = vunpack.c.h.b16 %v284
        %v1414 = vunpack.c.l.b16 %v285
        %v1415 = vunpack.c.h.b16 %v285
        %v1416 = vunpack.c.l.b16 %v286
        %v1417 = vunpack.c.h.b16 %v286
        %v1418 = vunpack.c.l.b16 %v287
        %v1419 = vunpack.c.h.b16 %v287
        %v1420 = vunpack.c.l.b16 %v288
        %v1421 = vunpack.c.h.b16 %v288
        %v1422 = vunpack.c.l.b16 %v289
        %v1423 = vunpack.c.h.b16 %v289
        %v1424 = vunpack.c.l.b16 %v290
        %v1425 = vunpack.c.h.b16 %v290
        %v1426 = vunpack.c.l.b16 %v291
        %v1427 = vunpack.c.h.b16 %v291
        %v1428 = vunpack.c.l.b16 %v292
        %v1429 = vunpack.c.h.b16 %v292
        %v1430 = vunpack.c.l.b16 %v293
        %v1431 = vunpack.c.h.b16 %v293
        %v1432 = vunpack.c.l.b16 %v294
        %v1433 = vunpack.c.h.b16 %v294
        %v1434 = vunpack.c.l.b16 %v295
        %v1435 = vunpack.c.h.b16 %v295
        %v1436 = vunpack.c.l.b16 %v296
        %v1437 = vunpack.c.h.b16 %v296
        %v1438 = vunpack.c.l.b16 %v297
        %v1439 = vunpack.c.h.b16 %v297
        %v1440 = vunpack.c.l.b16 %v298
        %v1441 = vunpack.c.h.b16 %v298
        %v1442 = vunpack.c.l.b16 %v299
        %v1443 = vunpack.c.h.b16 %v299
        %v1444 = vunpack.c.l.b16 %v300
        %v1445 = vunpack.c.h.b16 %v300
        %v1446 = vunpack.c.l.b16 %v301
        %v1447 = vunpack.c.h.b16 %v301
        %v1448 = vunpack.c.l.b16 %v302
        %v1449 = vunpack.c.h.b16 %v302
        %v1450 = vunpack.c.l.b16 %v303
        %v1451 = vunpack.c.h.b16 %v303
        %v1452 = vunpack.c.l.b16 %v304
        %v1453 = vunpack.c.h.b16 %v304
        %v1454 = vunpack.c.l.b16 %v305
        %v1455 = vunpack.c.h.b16 %v305
        %v1456 = vunpack.c.l.b16 %v306
        %v1457 = vunpack.c.h.b16 %v306
        %v1458 = vunpack.c.l.b16 %v307
        %v1459 = vunpack.c.h.b16 %v307
        %v1460 = vunpack.c.l.b16 %v308
        %v1461 = vunpack.c.h.b16 %v308
        %v1462 = vunpack.c.l.b16 %v309
        %v1463 = vunpack.c.h.b16 %v309
        %v1464 = vunpack.c.l.b16 %v310
        %v1465 = vunpack.c.h.b16 %v310
        %v1466 = vunpack.c.l.b16 %v311
        %v1467 = vunpack.c.h.b16 %v311
        %v1468 = vunpack.c.l.b16 %v312
        %v1469 = vunpack.c.h.b16 %v312
        %v1470 = vunpack.c.l.b16 %v313
        %v1471 = vunpack.c.h.b16 %v313
        %v1472 = vunpack.c.l.b16 %v314
        %v1473 = vunpack.c.h.b16 %v314
        %v1474 = vunpack.c.l.b16 %v315
        %v1475 = vunpack.c.h.b16 %v315
        %v1476 = vunpack.c.l.b16 %v316
        %v1477 = vunpack.c.h.b16 %v316
        %v1478 = vunpack.c.l.b16 %v317
        %v1479 = vunpack.c.h.b16 %v317
        %v1480 = vunpack.c.l.b16 %v318
        %v1481 = vunpack.c.h.b16 %v318
        %v1482 = vunpack.c.l.b16 %v319
        %v1483 = vunpack.c.h.b16 %v319
        %v1484 = vunpack.c.l.b16 %v320
        %v1485 = vunpack.c.h.b16 %v320
        %v1486 = vunpack.c.l.b16 %v321
        %v1487 = vunpack.c.h.b16 %v321
        %v1488 = vunpack.c.l.b16 %v322
        %v1489 = vunpack.c.h.b16 %v322
        %v1490 = vunpack.c.l.b16 %v323
        %v1491 = vunpack.c.h.b16 %v323
        %v1492 = vunpack.c.l.b16 %v324
        %v1493 = vunpack.c.h.b16 %v324
        %v1494 = vunpack.c.l.b16 %v325
        %v1495 = vunpack.c.h.b16 %v325
        %v1496 = vunpack.c.l.b16 %v326
        %v1497 = vunpack.c.h.b16 %v326
        %v1498 = vunpack.c.l.b16 %v327
        %v1499 = vunpack.c.h.b16 %v327
        %v1500 = vunpack.c.l.b16 %v328
        %v1501 = vunpack.c.h.b16 %v328
        %v1502 = vunpack.c.l.b16 %v329
        %v1503 = vunpack.c.h.b16 %v329
        %v1504 = vunpack.c.l.b16 %v330
        %v1505 = vunpack.c.h.b16 %v330
        %v1506 = vunpack.c.l.b16 %v331
        %v1507 = vunpack.c.h.b16 %v331
        %v1508 = vunpack.c.l.b16 %v332
        %v1509 = vunpack.c.h.b16 %v332
        %v1510 = vunpack.c.l.b16 %v333
        %v1511 = vunpack.c.h.b16 %v333
        %v1512 = vunpack.c.l.b16 %v334
        %v1513 = vunpack.c.h.b16 %v334
        %v1514 = vunpack.c.l.b16 %v335
        %v1515 = vunpack.c.h.b16 %v335
        %v1516 = vunpack.c.l.b16 %v336
        %v1517 = vunpack.c.h.b16 %v336
        %v1518 = vunpack.c.l.b16 %v337
        %v1519 = vunpack.c.h.b16 %v337
        %v1520 = vunpack.c.l.b16 %v338
        %v1521 = vunpack.c.h.b16 %v338
        %v1522 = vunpack.c.l.b16 %v339
        %v1523 = vunpack.c.h.b16 %v339
        %v1524 = vunpack.c.l.b16 %v340
        %v1525 = vunpack.c.h.b16 %v340
        %v1526 = vunpack.c.l.b16 %v341
        %v1527 = vunpack.c.h.b16 %v341
        %v1528 = vunpack.c.l.b16 %v342
        %v1529 = vunpack.c.h.b16 %v342
        %v1530 = vunpack.c.l.b16 %v343
        %v1531 = vunpack.c.h.b16 %v343
        %v1532 = vunpack.c.l.b16 %v344
        %v1533 = vunpack.c.h.b16 %v344
        %v1534 = vunpack.c.l.b16 %v345
        %v1535 = vunpack.c.h.b16 %v345
        %v1536 = vunpack.c.l.b16 %v346
        %v1537 = vunpack.c.h.b16 %v346
        %v1538 = vunpack.c.l.b16 %v347
        %v1539 = vunpack.c.h.b16 %v347
        %v1540 = vunpack.c.l.b16 %v348
        %v1541 = vunpack.c.h.b16 %v348
        %v1542 = vunpack.c.l.b16 %v349
        %v1543 = vunpack.c.h.b16 %v349
        %v1544 = vunpack.c.l.b16 %v350
        %v1545 = vunpack.c.h.b16 %v350
        %v1546 = vunpack.c.l.b16 %v351
        %v1547 = vunpack.c.h.b16 %v351
        %v1548 = vunpack.c.l.b16 %v352
        %v1549 = vunpack.c.h.b16 %v352
        %v1550 = vunpack.c.l.b16 %v353
        %v1551 = vunpack.c.h.b16 %v353
        %v1552 = vunpack.c.l.b16 %v354
        %v1553 = vunpack.c.h.b16 %v354
        %v1554 = vunpack.c.l.b16 %v355
        %v1555 = vunpack.c.h.b16 %v355
        %v1556 = vunpack.c.l.b16 %v356
        %v1557 = vunpack.c.h.b16 %v356
        %v1558 = vunpack.c.l.b16 %v357
        %v1559 = vunpack.c.h.b16 %v357
        %v1560 = vunpack.c.l.b16 %v358
        %v1561 = vunpack.c.h.b16 %v358
        %v1562 = vunpack.c.l.b16 %v359
        %v1563 = vunpack.c.h.b16 %v359
        %v1564 = vunpack.c.l.b16 %v360
        %v1565 = vunpack.c.h.b16 %v360
        %v1566 = vunpack.c.l.b16 %v361
        %v1567 = vunpack.c.h.b16 %v361
        %v1568 = vunpack.c.l.b16 %v362
        %v1569 = vunpack.c.h.b16 %v362
        %v1570 = vunpack.c.l.b16 %v363
        %v1571 = vunpack.c.h.b16 %v363
        %v1572 = vunpack.c.l.b16 %v364
        %v1573 = vunpack.c.h.b16 %v364
        %v1574 = vunpack.c.l.b16 %v365
        %v1575 = vunpack.c.h.b16 %v365
        %v1576 = vunpack.c.l.b16 %v366
        %v1577 = vunpack.c.h.b16 %v366
        %v1578 = vunpack.c.l.b16 %v367
        %v1579 = vunpack.c.h.b16 %v367
        %v1580 = vunpack.c.l.b16 %v368
        %v1581 = vunpack.c.h.b16 %v368
        %v1582 = vunpack.c.l.b16 %v369
        %v1583 = vunpack.c.h.b16 %v369
        %v1584 = vunpack.c.l.b16 %v370
        %v1585 = vunpack.c.h.b16 %v370
        %v1586 = vunpack.c.l.b16 %v371
        %v1587 = vunpack.c.h.b16 %v371
        %v1588 = vunpack.c.l.b16 %v372
        %v1589 = vunpack.c.h.b16 %v372
        %v1590 = vunpack.c.l.b16 %v373
        %v1591 = vunpack.c.h.b16 %v373
        %v1592 = vunpack.c.l.b16 %v374
        %v1593 = vunpack.c.h.b16 %v374
        %v1594 = vunpack.c.l.b16 %v375
        %v1595 = vunpack.c.h.b16 %v375
        %v1596 = vunpack.c.l.b16 %v376
        %v1597 = vunpack.c.h.b16 %v376
        %v1598 = vunpack.c.l.b16 %v377
        %v1599 = vunpack.c.h.b16 %v377
        %v1600 = vunpack.c.l.b16 %v378
        %v1601 = vunpack.c.h.b16 %v378
        %v1602 = vunpack.c.l.b16 %v379
        %v1603 = vunpack.c.h.b16 %v379
        %v1604 = vunpack.c.l.b16 %v380
        %v1605 = vunpack.c.h.b16 %v380
        %v1606 = vunpack.c.l.b16 %v381
        %v1607 = vunpack.c.h.b16 %v381
        %v1608 = vunpack.c.l.b16 %v382
        %v1609 = vunpack.c.h.b16 %v382
        %v1610 = vunpack.c.l.b16 %v383
        %v1611 = vunpack.c.h.b16 %v383
        %v1612 = vunpack.c.l.b16 %v384
        %v1613 = vunpack.c.h.b16 %v384
        %v1614 = vunpack.c.l.b16 %v385
        %v1615 = vunpack.c.h.b16 %v385
        %v1616 = vunpack.c.l.b16 %v386
        %v1617 = vunpack.c.h.b16 %v386
        %v1618 = vunpack.c.l.b16 %v387
        %v1619 = vunpack.c.h.b16 %v387
        %v1620 = vunpack.c.l.b16 %v388
        %v1621 = vunpack.c.h.b16 %v388
        %v1622 = vunpack.c.l.b16 %v389
        %v1623 = vunpack.c.h.b16 %v389
        %v1624 = vunpack.c.l.b16 %v390
        %v1625 = vunpack.c.h.b16 %v390
        %v1626 = vunpack.c.l.b16 %v391
        %v1627 = vunpack.c.h.b16 %v391
        %v1628 = vunpack.c.l.b16 %v392
        %v1629 = vunpack.c.h.b16 %v392
        %v1630 = vunpack.c.l.b16 %v393
        %v1631 = vunpack.c.h.b16 %v393
        %v1632 = vunpack.c.l.b16 %v394
        %v1633 = vunpack.c.h.b16 %v394
        %v1634 = vunpack.c.l.b16 %v395
        %v1635 = vunpack.c.h.b16 %v395
        %v1636 = vunpack.c.l.b16 %v396
        %v1637 = vunpack.c.h.b16 %v396
        %v1638 = vunpack.c.l.b16 %v397
        %v1639 = vunpack.c.h.b16 %v397
        %v1640 = vunpack.c.l.b16 %v398
        %v1641 = vunpack.c.h.b16 %v398
        %v1642 = vunpack.c.l.b16 %v399
        %v1643 = vunpack.c.h.b16 %v399
        %v1644 = vunpack.c.l.b16 %v400
        %v1645 = vunpack.c.h.b16 %v400
        %v1646 = vunpack.c.l.b16 %v401
        %v1647 = vunpack.c.h.b16 %v401
        %v1648 = vunpack.c.l.b16 %v402
        %v1649 = vunpack.c.h.b16 %v402
        %v1650 = vunpack.c.l.b16 %v403
        %v1651 = vunpack.c.h.b16 %v403
        %v1652 = vunpack.c.l.b16 %v404
        %v1653 = vunpack.c.h.b16 %v404
        %v1654 = vunpack.c.l.b16 %v405
        %v1655 = vunpack.c.h.b16 %v405
        %v1656 = vunpack.c.l.b16 %v406
        %v1657 = vunpack.c.h.b16 %v406
        %v1658 = vunpack.c.l.b16 %v407
        %v1659 = vunpack.c.h.b16 %v407
        %v1660 = vunpack.c.l.b16 %v408
        %v1661 = vunpack.c.h.b16 %v408
        %v1662 = vunpack.c.l.b16 %v409
        %v1663 = vunpack.c.h.b16 %v409
        %v1664 = vunpack.c.l.b16 %v410
        %v1665 = vunpack.c.h.b16 %v410
        %v1666 = vunpack.c.l.b16 %v411
        %v1667 = vunpack.c.h.b16 %v411
        %v1668 = vunpack.c.l.b16 %v412
        %v1669 = vunpack.c.h.b16 %v412
        %v1670 = vunpack.c.l.b16 %v413
        %v1671 = vunpack.c.h.b16 %v413
        %v1672 = vunpack.c.l.b16 %v414
        %v1673 = vunpack.c.h.b16 %v414
        %v1674 = vunpack.c.l.b16 %v415
        %v1675 = vunpack.c.h.b16 %v415
        %v1676 = vunpack.c.l.b16 %v416
        %v1677 = vunpack.c.h.b16 %v416
        %v1678 = vunpack.c.l.b16 %v417
        %v1679 = vunpack.c.h.b16 %v417
        %v1680 = vunpack.c.l.b16 %v418
        %v1681 = vunpack.c.h.b16 %v418
        %v1682 = vunpack.c.l.b16 %v419
        %v1683 = vunpack.c.h.b16 %v419
        %v1684 = vunpack.c.l.b16 %v420
        %v1685 = vunpack.c.h.b16 %v420
        %v1686 = vunpack.c.l.b16 %v421
        %v1687 = vunpack.c.h.b16 %v421
        %v1688 = vunpack.c.l.b16 %v422
        %v1689 = vunpack.c.h.b16 %v422
        %v1690 = vunpack.c.l.b16 %v423
        %v1691 = vunpack.c.h.b16 %v423
        %v1692 = vunpack.c.l.b16 %v424
        %v1693 = vunpack.c.h.b16 %v424
        %v1694 = vunpack.c.l.b16 %v425
        %v1695 = vunpack.c.h.b16 %v425
        %v1696 = vunpack.c.l.b16 %v426
        %v1697 = vunpack.c.h.b16 %v426
        %v1698 = vunpack.c.l.b16 %v427
        %v1699 = vunpack.c.h.b16 %v427
        %v1700 = vunpack.c.l.b16 %v428
        %v1701 = vunpack.c.h.b16 %v428
        %v1702 = vunpack.c.l.b16 %v429
        %v1703 = vunpack.c.h.b16 %v429
        %v1704 = vunpack.c.l.b16 %v430
        %v1705 = vunpack.c.h.b16 %v430
        %v1706 = vunpack.c.l.b16 %v431
        %v1707 = vunpack.c.h.b16 %v431
        %v1708 = vunpack.c.l.b16 %v432
        %v1709 = vunpack.c.h.b16 %v432
        %v1710 = vunpack.c.l.b16 %v433
        %v1711 = vunpack.c.h.b16 %v433
        %v1712 = vunpack.c.l.b16 %v434
        %v1713 = vunpack.c.h.b16 %v434
        %v1714 = vunpack.c.l.b16 %v435
        %v1715 = vunpack.c.h.b16 %v435
        %v1716 = vunpack.c.l.b16 %v436
        %v1717 = vunpack.c.h.b16 %v436
        %v1718 = vunpack.c.l.b16 %v437
        %v1719 = vunpack.c.h.b16 %v437
        %v1720 = vunpack.c.l.b16 %v438
        %v1721 = vunpack.c.h.b16 %v438
        %v1722 = vunpack.c.l.b16 %v439
        %v1723 = vunpack.c.h.b16 %v439
        %v1724 = vunpack.c.l.b16 %v440
        %v1725 = vunpack.c.h.b16 %v440
        %v1726 = vunpack.c.l.b16 %v441
        %v1727 = vunpack.c.h.b16 %v441
        %v1728 = vunpack.c.l.b16 %v442
        %v1729 = vunpack.c.h.b16 %v442
        %v1730 = vunpack.c.l.b16 %v443
        %v1731 = vunpack.c.h.b16 %v443
        %v1732 = vunpack.c.l.b16 %v444
        %v1733 = vunpack.c.h.b16 %v444
        %v1734 = vunpack.c.l.b16 %v445
        %v1735 = vunpack.c.h.b16 %v445
        %v1736 = vunpack.c.l.b16 %v446
        %v1737 = vunpack.c.h.b16 %v446
        %v1738 = vunpack.c.l.b16 %v447
        %v1739 = vunpack.c.h.b16 %v447
        %v1740 = vunpack.c.l.b16 %v448
        %v1741 = vunpack.c.h.b16 %v448
        %v1742 = vunpack.c.l.b16 %v449
        %v1743 = vunpack.c.h.b16 %v449
        %v1744 = vunpack.c.l.b16 %v450
        %v1745 = vunpack.c.h.b16 %v450
        %v1746 = vunpack.c.l.b16 %v451
        %v1747 = vunpack.c.h.b16 %v451
        %v1748 = vunpack.c.l.b16 %v452
        %v1749 = vunpack.c.h.b16 %v452
        %v1750 = vunpack.c.l.b16 %v453
        %v1751 = vunpack.c.h.b16 %v453
        %v1752 = vunpack.c.l.b16 %v454
        %v1753 = vunpack.c.h.b16 %v454
        %v1754 = vunpack.c.l.b16 %v455
        %v1755 = vunpack.c.h.b16 %v455
        %v1756 = vunpack.c.l.b16 %v456
        %v1757 = vunpack.c.h.b16 %v456
        %v1758 = vunpack.c.l.b16 %v457
        %v1759 = vunpack.c.h.b16 %v457
        %v1760 = vunpack.c.l.b16 %v458
        %v1761 = vunpack.c.h.b16 %v458
        %v1762 = vunpack.c.l.b16 %v459
        %v1763 = vunpack.c.h.b16 %v459
        %v1764 = vunpack.c.l.b16 %v460
        %v1765 = vunpack.c.h.b16 %v460
        %v1766 = vunpack.c.l.b16 %v461
        %v1767 = vunpack.c.h.b16 %v461
        %v1768 = vunpack.c.l.b16 %v462
        %v1769 = vunpack.c.h.b16 %v462
        %v1770 = vunpack.c.l.b16 %v463
        %v1771 = vunpack.c.h.b16 %v463
        %v1772 = vunpack.c.l.b16 %v464
        %v1773 = vunpack.c.h.b16 %v464
        %v1774 = vunpack.c.l.b16 %v465
        %v1775 = vunpack.c.h.b16 %v465
        %v1776 = vunpack.c.l.b16 %v466
        %v1777 = vunpack.c.h.b16 %v466
        %v1778 = vunpack.c.l.b16 %v467
        %v1779 = vunpack.c.h.b16 %v467
        %v1780 = vunpack.c.l.b16 %v468
        %v1781 = vunpack.c.h.b16 %v468
        %v1782 = vunpack.c.l.b16 %v469
        %v1783 = vunpack.c.h.b16 %v469
        %v1784 = vunpack.c.l.b16 %v470
        %v1785 = vunpack.c.h.b16 %v470
        %v1786 = vunpack.c.l.b16 %v471
        %v1787 = vunpack.c.h.b16 %v471
        %v1788 = vunpack.c.l.b16 %v472
        %v1789 = vunpack.c.h.b16 %v472
        %v1790 = vunpack.c.l.b16 %v473
        %v1791 = vunpack.c.h.b16 %v473
        %v1792 = vunpack.c.l.b16 %v474
        %v1793 = vunpack.c.h.b16 %v474
        %v1794 = vunpack.c.l.b16 %v475
        %v1795 = vunpack.c.h.b16 %v475
        %v1796 = vunpack.c.l.b16 %v476
        %v1797 = vunpack.c.h.b16 %v476
        %v1798 = vunpack.c.l.b16 %v477
        %v1799 = vunpack.c.h.b16 %v477
        %v1800 = vunpack.c.l.b16 %v478
        %v1801 = vunpack.c.h.b16 %v478
        %v1802 = vunpack.c.l.b16 %v479
        %v1803 = vunpack.c.h.b16 %v479
        %v1804 = vunpack.c.l.b16 %v480
        %v1805 = vunpack.c.h.b16 %v480
        %v1806 = vunpack.c.l.b16 %v481
        %v1807 = vunpack.c.h.b16 %v481
        %v1808 = vunpack.c.l.b16 %v482
        %v1809 = vunpack.c.h.b16 %v482
        %v1810 = vunpack.c.l.b16 %v483
        %v1811 = vunpack.c.h.b16 %v483
        %v1812 = vunpack.c.l.b16 %v484
        %v1813 = vunpack.c.h.b16 %v484
        %v1814 = vunpack.c.l.b16 %v485
        %v1815 = vunpack.c.h.b16 %v485
        %v1816 = vunpack.c.l.b16 %v486
        %v1817 = vunpack.c.h.b16 %v486
        %v1818 = vunpack.c.l.b16 %v487
        %v1819 = vunpack.c.h.b16 %v487
        %v1820 = vunpack.c.l.b16 %v488
        %v1821 = vunpack.c.h.b16 %v488
        %v1822 = vunpack.c.l.b16 %v489
        %v1823 = vunpack.c.h.b16 %v489
        %v1824 = vunpack.c.l.b16 %v490
        %v1825 = vunpack.c.h.b16 %v490
        %v1826 = vunpack.c.l.b16 %v491
        %v1827 = vunpack.c.h.b16 %v491
        %v1828 = vunpack.c.l.b16 %v492
        %v1829 = vunpack.c.h.b16 %v492
        %v1830 = vunpack.c.l.b16 %v493
        %v1831 = vunpack.c.h.b16 %v493
        %v1832 = vunpack.c.l.b16 %v494
        %v1833 = vunpack.c.h.b16 %v494
        %v1834 = vunpack.c.l.b16 %v495
        %v1835 = vunpack.c.h.b16 %v495
        %v1836 = vunpack.c.l.b16 %v496
        %v1837 = vunpack.c.h.b16 %v496
        %v1838 = vunpack.c.l.b16 %v497
        %v1839 = vunpack.c.h.b16 %v497
        %v1840 = vunpack.c.l.b16 %v498
        %v1841 = vunpack.c.h.b16 %v498
        %v1842 = vunpack.c.l.b16 %v499
        %v1843 = vunpack.c.h.b16 %v499
        %v1844 = vunpack.c.l.b16 %v500
        %v1845 = vunpack.c.h.b16 %v500
        %v1846 = vunpack.c.l.b16 %v501
        %v1847 = vunpack.c.h.b16 %v501
        %v1848 = vunpack.c.l.b16 %v502
        %v1849 = vunpack.c.h.b16 %v502
        %v1850 = vunpack.c.l.b16 %v503
        %v1851 = vunpack.c.h.b16 %v503
        %v1852 = vunpack.c.l.b16 %v504
        %v1853 = vunpack.c.h.b16 %v504
        %v1854 = vunpack.c.l.b16 %v505
        %v1855 = vunpack.c.h.b16 %v505
        %v1856 = vunpack.c.l.b16 %v506
        %v1857 = vunpack.c.h.b16 %v506
        %v1858 = vunpack.c.l.b16 %v507
        %v1859 = vunpack.c.h.b16 %v507
        %v1860 = vunpack.c.l.b16 %v508
        %v1861 = vunpack.c.h.b16 %v508
        %v1862 = vunpack.c.l.b16 %v509
        %v1863 = vunpack.c.h.b16 %v509
        %v1864 = vunpack.c.l.b16 %v510
        %v1865 = vunpack.c.h.b16 %v510
        %v1866 = vunpack.c.l.b16 %v511
        %v1867 = vunpack.c.h.b16 %v511
        %v1868 = vunpack.c.l.b16 %v512
        %v1869 = vunpack.c.h.b16 %v512
        %v1870 = vunpack.c.l.b16 %v513
        %v1871 = vunpack.c.h.b16 %v513
        %v1872 = vunpack.c.l.b16 %v514
        %v1873 = vunpack.c.h.b16 %v514
        %v1874 = vunpack.c.l.b16 %v515
        %v1875 = vunpack.c.h.b16 %v515
        %v1876 = vunpack.c.l.b16 %v516
        %v1877 = vunpack.c.h.b16 %v516
        %v1878 = vunpack.c.l.b16 %v517
        %v1879 = vunpack.c.h.b16 %v517
        %v1880 = vunpack.c.l.b16 %v518
        %v1881 = vunpack.c.h.b16 %v518
        %v1882 = vunpack.c.l.b16 %v519
        %v1883 = vunpack.c.h.b16 %v519
        %v1884 = vunpack.c.l.b16 %v520
        %v1885 = vunpack.c.h.b16 %v520
        %v1886 = vunpack.c.l.b16 %v521
        %v1887 = vunpack.c.h.b16 %v521
        %v1888 = vunpack.c.l.b16 %v522
        %v1889 = vunpack.c.h.b16 %v522
        %v1890 = vunpack.c.l.b16 %v523
        %v1891 = vunpack.c.h.b16 %v523
        %v1892 = vunpack.c.l.b16 %v524
        %v1893 = vunpack.c.h.b16 %v524
        %v1894 = vunpack.c.l.b16 %v525
        %v1895 = vunpack.c.h.b16 %v525
        %v1896 = vunpack.c.l.b16 %v526
        %v1897 = vunpack.c.h.b16 %v526
        %v1898 = vunpack.c.l.b16 %v527
        %v1899 = vunpack.c.h.b16 %v527
        %v1900 = vunpack.c.l.b16 %v528
        %v1901 = vunpack.c.h.b16 %v528
        %v1902 = vunpack.c.l.b16 %v529
        %v1903 = vunpack.c.h.b16 %v529
        %v1904 = vunpack.c.l.b16 %v530
        %v1905 = vunpack.c.h.b16 %v530
        %v1906 = vunpack.c.l.b16 %v531
        %v1907 = vunpack.c.h.b16 %v531
        %v1908 = vunpack.c.l.b16 %v532
        %v1909 = vunpack.c.h.b16 %v532
        %v1910 = vunpack.c.l.b16 %v533
        %v1911 = vunpack.c.h.b16 %v533
        %v1912 = vunpack.c.l.b16 %v534
        %v1913 = vunpack.c.h.b16 %v534
        %v1914 = vunpack.c.l.b16 %v535
        %v1915 = vunpack.c.h.b16 %v535
        %v1916 = vunpack.c.l.b16 %v536
        %v1917 = vunpack.c.h.b16 %v536
        %v1918 = vunpack.c.l.b16 %v537
        %v1919 = vunpack.c.h.b16 %v537
        %v1920 = vunpack.c.l.b16 %v538
        %v1921 = vunpack.c.h.b16 %v538
        %v1922 = vunpack.c.l.b16 %v539
        %v1923 = vunpack.c.h.b16 %v539
        %v1924 = vunpack.c.l.b16 %v540
        %v1925 = vunpack.c.h.b16 %v540
        %v1926 = vunpack.c.l.b16 %v541
        %v1927 = vunpack.c.h.b16 %v541
        %v1928 = vunpack.c.l.b16 %v542
        %v1929 = vunpack.c.h.b16 %v542
        %v1930 = vunpack.c.l.b16 %v543
        %v1931 = vunpack.c.h.b16 %v543
        %v1932 = vunpack.c.l.b16 %v544
        %v1933 = vunpack.c.h.b16 %v544
        %v1934 = vunpack.c.l.b16 %v545
        %v1935 = vunpack.c.h.b16 %v545
        %v1936 = vunpack.c.l.b16 %v546
        %v1937 = vunpack.c.h.b16 %v546
        %v1938 = vunpack.c.l.b16 %v547
        %v1939 = vunpack.c.h.b16 %v547
        %v1940 = vunpack.c.l.b16 %v548
        %v1941 = vunpack.c.h.b16 %v548
        %v1942 = vunpack.c.l.b16 %v549
        %v1943 = vunpack.c.h.b16 %v549
        %v1944 = vunpack.c.l.b16 %v550
        %v1945 = vunpack.c.h.b16 %v550
        %v1946 = vunpack.c.l.b16 %v551
        %v1947 = vunpack.c.h.b16 %v551
        %v1948 = vunpack.c.l.b16 %v552
        %v1949 = vunpack.c.h.b16 %v552
        %v1950 = vunpack.c.l.b16 %v553
        %v1951 = vunpack.c.h.b16 %v553
        %v1952 = vunpack.c.l.b16 %v554
        %v1953 = vunpack.c.h.b16 %v554
        %v1954 = vunpack.c.l.b16 %v555
        %v1955 = vunpack.c.h.b16 %v555
        %v1956 = vunpack.c.l.b16 %v556
        %v1957 = vunpack.c.h.b16 %v556
        %v1958 = vunpack.c.l.b16 %v557
        %v1959 = vunpack.c.h.b16 %v557
        %v1960 = vunpack.c.l.b16 %v558
        %v1961 = vunpack.c.h.b16 %v558
        %v1962 = vunpack.c.l.b16 %v559
        %v1963 = vunpack.c.h.b16 %v559
        %v1964 = vunpack.c.l.b16 %v560
        %v1965 = vunpack.c.h.b16 %v560
        %v1966 = vunpack.c.l.b16 %v561
        %v1967 = vunpack.c.h.b16 %v561
        %v1968 = vunpack.c.l.b16 %v562
        %v1969 = vunpack.c.h.b16 %v562
        %v1970 = vunpack.c.l.b16 %v563
        %v1971 = vunpack.c.h.b16 %v563
        %v1972 = vunpack.c.l.b16 %v564
        %v1973 = vunpack.c.h.b16 %v564
        %v1974 = vunpack.c.l.b16 %v565
        %v1975 = vunpack.c.h.b16 %v565
        %v1976 = vunpack.c.l.b16 %v566
        %v1977 = vunpack.c.h.b16 %v566
        %v1978 = vunpack.c.l.b16 %v567
        %v1979 = vunpack.c.h.b16 %v567
        %v1980 = vunpack.c.l.b16 %v568
        %v1981 = vunpack.c.h.b16 %v568
        %v1982 = vunpack.c.l.b16 %v569
        %v1983 = vunpack.c.h.b16 %v569
        %v1984 = vunpack.c.l.b16 %v570
        %v1985 = vunpack.c.h.b16 %v570
        %v1986 = vunpack.c.l.b16 %v571
        %v1987 = vunpack.c.h.b16 %v571
        %v1988 = vunpack.c.l.b16 %v572
        %v1989 = vunpack.c.h.b16 %v572
        %v1990 = vunpack.c.l.b16 %v573
        %v1991 = vunpack.c.h.b16 %v573
        %v1992 = vunpack.c.l.b16 %v574
        %v1993 = vunpack.c.h.b16 %v574
        %v1994 = vunpack.c.l.b16 %v575
        %v1995 = vunpack.c.h.b16 %v575
        %v1996 = vunpack.c.l.b16 %v576
        %v1997 = vunpack.c.h.b16 %v576
        %v1998 = vunpack.c.l.b16 %v577
        %v1999 = vunpack.c.h.b16 %v577
        %v2000 = vunpack.c.l.b16 %v578
        %v2001 = vunpack.c.h.b16 %v578
        %v2002 = vunpack.c.l.b16 %v579
        %v2003 = vunpack.c.h.b16 %v579
        %v2004 = vunpack.c.l.b16 %v580
        %v2005 = vunpack.c.h.b16 %v580
        %v2006 = vunpack.c.l.b16 %v581
        %v2007 = vunpack.c.h.b16 %v581
        %v2008 = vunpack.c.l.b16 %v582
        %v2009 = vunpack.c.h.b16 %v582
        %v2010 = vunpack.c.l.b16 %v583
        %v2011 = vunpack.c.h.b16 %v583
        %v2012 = vunpack.c.l.b16 %v584
        %v2013 = vunpack.c.h.b16 %v584
        %v2014 = vunpack.c.l.b16 %v585
        %v2015 = vunpack.c.h.b16 %v585
        %v2016 = vunpack.c.l.b16 %v586
        %v2017 = vunpack.c.h.b16 %v586
        %v2018 = vunpack.c.l.b16 %v587
        %v2019 = vunpack.c.h.b16 %v587
        %v2020 = vunpack.c.l.b16 %v588
        %v2021 = vunpack.c.h.b16 %v588
        %v2022 = vunpack.c.l.b16 %v589
        %v2023 = vunpack.c.h.b16 %v589
        %v2024 = vunpack.c.l.b16 %v590
        %v2025 = vunpack.c.h.b16 %v590
        %v2026 = vunpack.c.l.b16 %v591
        %v2027 = vunpack.c.h.b16 %v591
        %v2028 = vunpack.c.l.b16 %v592
        %v2029 = vunpack.c.h.b16 %v592
        %v2030 = vunpack.c.l.b16 %v593
        %v2031 = vunpack.c.h.b16 %v593
        %v2032 = vunpack.c.l.b16 %v594
        %v2033 = vunpack.c.h.b16 %v594
        %v2034 = vunpack.c.l.b16 %v595
        %v2035 = vunpack.c.h.b16 %v595
        %v2036 = vunpack.c.l.b16 %v596
        %v2037 = vunpack.c.h.b16 %v596
        %v2038 = vunpack.c.l.b16 %v597
        %v2039 = vunpack.c.h.b16 %v597
        %v2040 = vunpack.c.l.b16 %v598
        %v2041 = vunpack.c.h.b16 %v598
        %v2042 = vunpack.c.l.b16 %v599
        %v2043 = vunpack.c.h.b16 %v599
        %v2044 = vunpack.c.l.b16 %v600
        %v2045 = vunpack.c.h.b16 %v600
        %v2046 = vunpack.c.l.b16 %v601
        %v2047 = vunpack.c.h.b16 %v601
        %v2048 = vunpack.c.l.b16 %v602
        %v2049 = vunpack.c.h.b16 %v602
        %v2050 = vunpack.c.l.b16 %v603
        %v2051 = vunpack.c.h.b16 %v603
        %v2052 = vunpack.c.l.b16 %v604
        %v2053 = vunpack.c.h.b16 %v604
        %v2054 = vunpack.c.l.b16 %v605
        %v2055 = vunpack.c.h.b16 %v605
        %v2056 = vunpack.c.l.b16 %v606
        %v2057 = vunpack.c.h.b16 %v606
        %v2058 = vunpack.c.l.b16 %v607
        %v2059 = vunpack.c.h.b16 %v607
        %v2060 = vunpack.c.l.b16 %v608
        %v2061 = vunpack.c.h.b16 %v608
        %v2062 = vunpack.c.l.b16 %v609
        %v2063 = vunpack.c.h.b16 %v609
        %v2064 = vunpack.c.l.b16 %v610
        %v2065 = vunpack.c.h.b16 %v610
        %v2066 = vunpack.c.l.b16 %v611
        %v2067 = vunpack.c.h.b16 %v611
        %v2068 = vunpack.c.l.b16 %v612
        %v2069 = vunpack.c.h.b16 %v612
        %v2070 = vunpack.c.l.b16 %v613
        %v2071 = vunpack.c.h.b16 %v613
        %v2072 = vunpack.c.l.b16 %v614
        %v2073 = vunpack.c.h.b16 %v614
        %v2074 = vunpack.c.l.b16 %v615
        %v2075 = vunpack.c.h.b16 %v615
        %v2076 = vunpack.c.l.b16 %v616
        %v2077 = vunpack.c.h.b16 %v616
        %v2078 = vunpack.c.l.b16 %v617
        %v2079 = vunpack.c.h.b16 %v617
        %v2080 = vunpack.c.l.b16 %v618
        %v2081 = vunpack.c.h.b16 %v618
        %v2082 = vunpack.c.l.b16 %v619
        %v2083 = vunpack.c.h.b16 %v619
        %v2084 = vunpack.c.l.b16 %v620
        %v2085 = vunpack.c.h.b16 %v620
        %v2086 = vunpack.c.l.b16 %v621
        %v2087 = vunpack.c.h.b16 %v621
        %v2088 = vunpack.c.l.b16 %v622
        %v2089 = vunpack.c.h.b16 %v622
        %v2090 = vunpack.c.l.b16 %v623
        %v2091 = vunpack.c.h.b16 %v623
        %v2092 = vunpack.c.l.b16 %v624
        %v2093 = vunpack.c.h.b16 %v624
        %v2094 = vunpack.c.l.b16 %v625
        %v2095 = vunpack.c.h.b16 %v625
        %v2096 = vunpack.c.l.b16 %v626
        %v2097 = vunpack.c.h.b16 %v626
        %v2098 = vunpack.c.l.b16 %v627
        %v2099 = vunpack.c.h.b16 %v627
        %v2100 = vunpack.c.l.b16 %v628
        %v2101 = vunpack.c.h.b16 %v628
        %v2102 = vunpack.c.l.b16 %v629
        %v2103 = vunpack.c.h.b16 %v629
        %v2104 = vunpack.c.l.b16 %v630
        %v2105 = vunpack.c.h.b16 %v630
        %v2106 = vunpack.c.l.b16 %v631
        %v2107 = vunpack.c.h.b16 %v631
        %v2108 = vunpack.c.l.b16 %v632
        %v2109 = vunpack.c.h.b16 %v632
        %v2110 = vunpack.c.l.b16 %v633
        %v2111 = vunpack.c.h.b16 %v633
        %v2112 = vunpack.c.l.b16 %v634
        %v2113 = vunpack.c.h.b16 %v634
        %v2114 = vunpack.c.l.b16 %v635
        %v2115 = vunpack.c.h.b16 %v635
        %v2116 = vunpack.c.l.b16 %v636
        %v2117 = vunpack.c.h.b16 %v636
        %v2118 = vunpack.c.l.b16 %v637
        %v2119 = vunpack.c.h.b16 %v637
        %v2120 = vunpack.c.l.b16 %v638
        %v2121 = vunpack.c.h.b16 %v638
        %v2122 = vunpack.c.l.b16 %v639
        %v2123 = vunpack.c.h.b16 %v639
        %v2124 = vunpack.c.l.b16 %v640
        %v2125 = vunpack.c.h.b16 %v640
        %v2126 = vunpack.c.l.b16 %v641
        %v2127 = vunpack.c.h.b16 %v641
        %v2128 = vunpack.c.l.b16 %v642
        %v2129 = vunpack.c.h.b16 %v642
        %v2130 = vunpack.c.l.b16 %v643
        %v2131 = vunpack.c.h.b16 %v643
        %v2132 = vunpack.c.l.b16 %v644
        %v2133 = vunpack.c.h.b16 %v644
        %v2134 = vunpack.c.l.b16 %v645
        %v2135 = vunpack.c.h.b16 %v645
        %v2136 = vunpack.c.l.b16 %v646
        %v2137 = vunpack.c.h.b16 %v646
        %v2138 = vunpack.c.l.b16 %v647
        %v2139 = vunpack.c.h.b16 %v647
        %v2140 = vunpack.c.l.b16 %v648
        %v2141 = vunpack.c.h.b16 %v648
        %v2142 = vunpack.c.l.b16 %v649
        %v2143 = vunpack.c.h.b16 %v649
        %v2144 = vunpack.c.l.b16 %v650
        %v2145 = vunpack.c.h.b16 %v650
        %v2146 = vunpack.c.l.b16 %v651
        %v2147 = vunpack.c.h.b16 %v651
        %v2148 = vunpack.c.l.b16 %v652
        %v2149 = vunpack.c.h.b16 %v652
        %v2150 = vunpack.c.l.b16 %v653
        %v2151 = vunpack.c.h.b16 %v653
        %v2152 = vunpack.c.l.b16 %v654
        %v2153 = vunpack.c.h.b16 %v654
        %v2154 = vunpack.c.l.b16 %v655
        %v2155 = vunpack.c.h.b16 %v655
        %v2156 = vunpack.c.l.b16 %v656
        %v2157 = vunpack.c.h.b16 %v656
        %v2158 = vunpack.c.l.b16 %v657
        %v2159 = vunpack.c.h.b16 %v657
        %v2160 = vunpack.c.l.b16 %v658
        %v2161 = vunpack.c.h.b16 %v658
        %v2162 = vunpack.c.l.b16 %v659
        %v2163 = vunpack.c.h.b16 %v659
        %v2164 = vunpack.c.l.b16 %v660
        %v2165 = vunpack.c.h.b16 %v660
        %v2166 = vunpack.c.l.b16 %v661
        %v2167 = vunpack.c.h.b16 %v661
        %v2168 = vunpack.c.l.b16 %v662
        %v2169 = vunpack.c.h.b16 %v662
        %v2170 = vunpack.c.l.b16 %v663
        %v2171 = vunpack.c.h.b16 %v663
        %v2172 = vunpack.c.l.b16 %v664
        %v2173 = vunpack.c.h.b16 %v664
        %v2174 = vunpack.c.l.b16 %v665
        %v2175 = vunpack.c.h.b16 %v665
        %v2176 = vunpack.c.l.b16 %v666
        %v2177 = vunpack.c.h.b16 %v666
        %v2178 = vunpack.c.l.b16 %v667
        %v2179 = vunpack.c.h.b16 %v667
        %v2180 = vunpack.c.l.b16 %v668
        %v2181 = vunpack.c.h.b16 %v668
        %v2182 = vunpack.c.l.b16 %v669
        %v2183 = vunpack.c.h.b16 %v669
        %v2184 = vunpack.c.l.b16 %v670
        %v2185 = vunpack.c.h.b16 %v670
        %v2186 = vunpack.c.l.b16 %v671
        %v2187 = vunpack.c.h.b16 %v671
        %v2188 = vunpack.c.l.b16 %v672
        %v2189 = vunpack.c.h.b16 %v672
        %v2190 = vunpack.c.l.b16 %v673
        %v2191 = vunpack.c.h.b16 %v673
        %v2192 = vunpack.c.l.b16 %v674
        %v2193 = vunpack.c.h.b16 %v674
        %v2194 = vunpack.c.l.b16 %v675
        %v2195 = vunpack.c.h.b16 %v675
        %v2196 = vunpack.c.l.b16 %v676
        %v2197 = vunpack.c.h.b16 %v676
        %v2198 = vunpack.c.l.b16 %v677
        %v2199 = vunpack.c.h.b16 %v677
        %v2200 = vunpack.c.l.b16 %v678
        %v2201 = vunpack.c.h.b16 %v678
        %v2202 = vunpack.c.l.b16 %v679
        %v2203 = vunpack.c.h.b16 %v679
        %v2204 = vunpack.c.l.b16 %v680
        %v2205 = vunpack.c.h.b16 %v680
        %v2206 = vunpack.c.l.b16 %v681
        %v2207 = vunpack.c.h.b16 %v681
        %v2208 = vunpack.c.l.b16 %v682
        %v2209 = vunpack.c.h.b16 %v682
        %v2210 = vunpack.c.l.b16 %v683
        %v2211 = vunpack.c.h.b16 %v683
        %v2212 = vunpack.c.l.b16 %v684
        %v2213 = vunpack.c.h.b16 %v684
        %v2214 = vunpack.c.l.b16 %v685
        %v2215 = vunpack.c.h.b16 %v685
        %v2216 = vunpack.c.l.b16 %v686
        %v2217 = vunpack.c.h.b16 %v686
        %v2218 = vunpack.c.l.b16 %v687
        %v2219 = vunpack.c.h.b16 %v687
        %v2220 = vunpack.c.l.b16 %v688
        %v2221 = vunpack.c.h.b16 %v688
        %v2222 = vunpack.c.l.b16 %v689
        %v2223 = vunpack.c.h.b16 %v689
        %v2224 = vunpack.c.l.b16 %v690
        %v2225 = vunpack.c.h.b16 %v690
        %v2226 = vunpack.c.l.b16 %v691
        %v2227 = vunpack.c.h.b16 %v691
        %v2228 = vunpack.c.l.b16 %v692
        %v2229 = vunpack.c.h.b16 %v692
        %v2230 = vunpack.c.l.b16 %v693
        %v2231 = vunpack.c.h.b16 %v693
        %v2232 = vunpack.c.l.b16 %v694
        %v2233 = vunpack.c.h.b16 %v694
        %v2234 = vunpack.c.l.b16 %v695
        %v2235 = vunpack.c.h.b16 %v695
        %v2236 = vunpack.c.l.b16 %v696
        %v2237 = vunpack.c.h.b16 %v696
        %v2238 = vunpack.c.l.b16 %v697
        %v2239 = vunpack.c.h.b16 %v697
        %v2240 = vunpack.c.l.b16 %v698
        %v2241 = vunpack.c.h.b16 %v698
        %v2242 = vunpack.c.l.b16 %v699
        %v2243 = vunpack.c.h.b16 %v699
        %v2244 = vunpack.c.l.b16 %v700
        %v2245 = vunpack.c.h.b16 %v700
        %v2246 = vunpack.c.l.b16 %v701
        %v2247 = vunpack.c.h.b16 %v701
        %v2248 = vunpack.c.l.b16 %v702
        %v2249 = vunpack.c.h.b16 %v702
        %v2250 = vunpack.c.l.b16 %v703
        %v2251 = vunpack.c.h.b16 %v703
        %v2252 = vunpack.c.l.b16 %v704
        %v2253 = vunpack.c.h.b16 %v704
        %v2254 = vunpack.c.l.b16 %v705
        %v2255 = vunpack.c.h.b16 %v705
        %v2256 = vunpack.c.l.b16 %v706
        %v2257 = vunpack.c.h.b16 %v706
        %v2258 = vunpack.c.l.b16 %v707
        %v2259 = vunpack.c.h.b16 %v707
        %v2260 = vunpack.c.l.b16 %v708
        %v2261 = vunpack.c.h.b16 %v708
        %v2262 = vunpack.c.l.b16 %v709
        %v2263 = vunpack.c.h.b16 %v709
        %v2264 = vunpack.c.l.b16 %v710
        %v2265 = vunpack.c.h.b16 %v710
        %v2266 = vunpack.c.l.b16 %v711
        %v2267 = vunpack.c.h.b16 %v711
        %v2268 = vunpack.c.l.b16 %v712
        %v2269 = vunpack.c.h.b16 %v712
        %v2270 = vunpack.c.l.b16 %v713
        %v2271 = vunpack.c.h.b16 %v713
        %v2272 = vunpack.c.l.b16 %v714
        %v2273 = vunpack.c.h.b16 %v714
        %v2274 = vunpack.c.l.b16 %v715
        %v2275 = vunpack.c.h.b16 %v715
        %v2276 = vunpack.c.l.b16 %v716
        %v2277 = vunpack.c.h.b16 %v716
        %v2278 = vunpack.c.l.b16 %v717
        %v2279 = vunpack.c.h.b16 %v717
        %v2280 = vunpack.c.l.b16 %v718
        %v2281 = vunpack.c.h.b16 %v718
        %v2282 = vunpack.c.l.b16 %v719
        %v2283 = vunpack.c.h.b16 %v719
        %v2284 = vunpack.c.l.b16 %v720
        %v2285 = vunpack.c.h.b16 %v720
        %v2286 = vunpack.c.l.b16 %v721
        %v2287 = vunpack.c.h.b16 %v721
        %v2288 = vunpack.c.l.b16 %v722
        %v2289 = vunpack.c.h.b16 %v722
        %v2290 = vunpack.c.l.b16 %v723
        %v2291 = vunpack.c.h.b16 %v723
        %v2292 = vunpack.c.l.b16 %v724
        %v2293 = vunpack.c.h.b16 %v724
        %v2294 = vunpack.c.l.b16 %v725
        %v2295 = vunpack.c.h.b16 %v725
        %v2296 = vunpack.c.l.b16 %v726
        %v2297 = vunpack.c.h.b16 %v726
        %v2298 = vunpack.c.l.b16 %v727
        %v2299 = vunpack.c.h.b16 %v727
        %v2300 = vunpack.c.l.b16 %v728
        %v2301 = vunpack.c.h.b16 %v728
        %v2302 = vunpack.c.l.b16 %v729
        %v2303 = vunpack.c.h.b16 %v729
        %v2304 = vunpack.c.l.b16 %v730
        %v2305 = vunpack.c.h.b16 %v730
        %v2306 = vunpack.c.l.b16 %v731
        %v2307 = vunpack.c.h.b16 %v731
        %v2308 = vunpack.c.l.b16 %v732
        %v2309 = vunpack.c.h.b16 %v732
        %v2310 = vunpack.c.l.b16 %v733
        %v2311 = vunpack.c.h.b16 %v733
        %v2312 = vunpack.c.l.b16 %v734
        %v2313 = vunpack.c.h.b16 %v734
        %v2314 = vunpack.c.l.b16 %v735
        %v2315 = vunpack.c.h.b16 %v735
        %v2316 = vunpack.c.l.b16 %v736
        %v2317 = vunpack.c.h.b16 %v736
        %v2318 = vunpack.c.l.b16 %v737
        %v2319 = vunpack.c.h.b16 %v737
        %v2320 = vunpack.c.l.b16 %v738
        %v2321 = vunpack.c.h.b16 %v738
        %v2322 = vunpack.c.l.b16 %v739
        %v2323 = vunpack.c.h.b16 %v739
        %v2324 = vunpack.c.l.b16 %v740
        %v2325 = vunpack.c.h.b16 %v740
        %v2326 = vunpack.c.l.b16 %v741
        %v2327 = vunpack.c.h.b16 %v741
        %v2328 = vunpack.c.l.b16 %v742
        %v2329 = vunpack.c.h.b16 %v742
        %v2330 = vunpack.c.l.b16 %v743
        %v2331 = vunpack.c.h.b16 %v743
        %v2332 = vunpack.c.l.b16 %v744
        %v2333 = vunpack.c.h.b16 %v744
        %v2334 = vunpack.c.l.b16 %v745
        %v2335 = vunpack.c.h.b16 %v745
        %v2336 = vunpack.c.l.b16 %v746
        %v2337 = vunpack.c.h.b16 %v746
        %v2338 = vunpack.c.l.b16 %v747
        %v2339 = vunpack.c.h.b16 %v747
        %v2340 = vunpack.c.l.b16 %v748
        %v2341 = vunpack.c.h.b16 %v748
        %v2342 = vunpack.c.l.b16 %v749
        %v2343 = vunpack.c.h.b16 %v749
        %v2344 = vunpack.c.l.b16 %v750
        %v2345 = vunpack.c.h.b16 %v750
        %v2346 = vunpack.c.l.b16 %v751
        %v2347 = vunpack.c.h.b16 %v751
        %v2348 = vunpack.c.l.b16 %v752
        %v2349 = vunpack.c.h.b16 %v752
        %v2350 = vunpack.c.l.b16 %v753
        %v2351 = vunpack.c.h.b16 %v753
        %v2352 = vunpack.c.l.b16 %v754
        %v2353 = vunpack.c.h.b16 %v754
        %v2354 = vunpack.c.l.b16 %v755
        %v2355 = vunpack.c.h.b16 %v755
        %v2356 = vunpack.c.l.b16 %v756
        %v2357 = vunpack.c.h.b16 %v756
        %v2358 = vunpack.c.l.b16 %v757
        %v2359 = vunpack.c.h.b16 %v757
        %v2360 = vunpack.c.l.b16 %v758
        %v2361 = vunpack.c.h.b16 %v758
        %v2362 = vunpack.c.l.b16 %v759
        %v2363 = vunpack.c.h.b16 %v759
        %v2364 = vunpack.c.l.b16 %v760
        %v2365 = vunpack.c.h.b16 %v760
        %v2366 = vunpack.c.l.b16 %v761
        %v2367 = vunpack.c.h.b16 %v761
        %v2368 = vunpack.c.l.b16 %v762
        %v2369 = vunpack.c.h.b16 %v762
        %v2370 = vunpack.c.l.b16 %v763
        %v2371 = vunpack.c.h.b16 %v763
        %v2372 = vunpack.c.l.b16 %v764
        %v2373 = vunpack.c.h.b16 %v764
        %v2374 = vunpack.c.l.b16 %v765
        %v2375 = vunpack.c.h.b16 %v765
        %v2376 = vunpack.c.l.b16 %v766
        %v2377 = vunpack.c.h.b16 %v766
        %v2378 = vunpack.c.l.b16 %v767
        %v2379 = vunpack.c.h.b16 %v767
        %v2380 = vunpack.c.l.b16 %v768
        %v2381 = vunpack.c.h.b16 %v768
        %v2382 = vunpack.c.l.b16 %v769
        %v2383 = vunpack.c.h.b16 %v769
        %v2384 = vunpack.c.l.b16 %v770
        %v2385 = vunpack.c.h.b16 %v770
        %v2386 = vunpack.c.l.b16 %v771
        %v2387 = vunpack.c.h.b16 %v771
        %v2388 = vunpack.c.l.b16 %v772
        %v2389 = vunpack.c.h.b16 %v772
        %v2390 = vunpack.c.l.b16 %v773
        %v2391 = vunpack.c.h.b16 %v773
        %v2392 = vunpack.c.l.b16 %v774
        %v2393 = vunpack.c.h.b16 %v774
        %v2394 = vunpack.c.l.b16 %v775
        %v2395 = vunpack.c.h.b16 %v775
        %v2396 = vunpack.c.l.b16 %v776
        %v2397 = vunpack.c.h.b16 %v776
        %v2398 = vunpack.c.l.b16 %v777
        %v2399 = vunpack.c.h.b16 %v777
        %v2400 = vunpack.c.l.b16 %v778
        %v2401 = vunpack.c.h.b16 %v778
        %v2402 = vunpack.c.l.b16 %v779
        %v2403 = vunpack.c.h.b16 %v779
        %v2404 = vunpack.c.l.b16 %v780
        %v2405 = vunpack.c.h.b16 %v780
        %v2406 = vunpack.c.l.b16 %v781
        %v2407 = vunpack.c.h.b16 %v781
        %v2408 = vunpack.c.l.b16 %v782
        %v2409 = vunpack.c.h.b16 %v782
        %v2410 = vunpack.c.l.b16 %v783
        %v2411 = vunpack.c.h.b16 %v783
        %v2412 = vunpack.c.l.b16 %v784
        %v2413 = vunpack.c.h.b16 %v784
        %v2414 = vunpack.c.l.b16 %v785
        %v2415 = vunpack.c.h.b16 %v785
        %v2416 = vunpack.c.l.b16 %v786
        %v2417 = vunpack.c.h.b16 %v786
        %v2418 = vunpack.c.l.b16 %v787
        %v2419 = vunpack.c.h.b16 %v787
        %v2420 = vunpack.c.l.b16 %v788
        %v2421 = vunpack.c.h.b16 %v788
        %v2422 = vunpack.c.l.b16 %v789
        %v2423 = vunpack.c.h.b16 %v789
        %v2424 = vunpack.c.l.b16 %v790
        %v2425 = vunpack.c.h.b16 %v790
        %v2426 = vunpack.c.l.b16 %v791
        %v2427 = vunpack.c.h.b16 %v791
        %v2428 = vunpack.c.l.b16 %v792
        %v2429 = vunpack.c.h.b16 %v792
        %v2430 = vunpack.c.l.b16 %v793
        %v2431 = vunpack.c.h.b16 %v793
        %v2432 = vpack.c.b16 %v1412, %v1408
        %v2433 = vpack.c.b16 %v1413, %v1409
        %v2434 = vpack.c.b16 %v1414, %v1410
        %v2435 = vpack.c.b16 %v1415, %v1411
        %v2436 = vpack.c.b16 %v1420, %v1416
        %v2437 = vpack.c.b16 %v1421, %v1417
        %v2438 = vpack.c.b16 %v1422, %v1418
        %v2439 = vpack.c.b16 %v1423, %v1419
        %v2440 = vpack.c.b16 %v1428, %v1424
        %v2441 = vpack.c.b16 %v1429, %v1425
        %v2442 = vpack.c.b16 %v1430, %v1426
        %v2443 = vpack.c.b16 %v1431, %v1427
        %v2444 = vpack.c.b16 %v1436, %v1432
        %v2445 = vpack.c.b16 %v1437, %v1433
        %v2446 = vpack.c.b16 %v1438, %v1434
        %v2447 = vpack.c.b16 %v1439, %v1435
        %v2448 = vpack.c.b16 %v1444, %v1440
        %v2449 = vpack.c.b16 %v1445, %v1441
        %v2450 = vpack.c.b16 %v1446, %v1442
        %v2451 = vpack.c.b16 %v1447, %v1443
        %v2452 = vpack.c.b16 %v1452, %v1448
        %v2453 = vpack.c.b16 %v1453, %v1449
        %v2454 = vpack.c.b16 %v1454, %v1450
        %v2455 = vpack.c.b16 %v1455, %v1451
        %v2456 = vpack.c.b16 %v1460, %v1456
        %v2457 = vpack.c.b16 %v1461, %v1457
        %v2458 = vpack.c.b16 %v1462, %v1458
        %v2459 = vpack.c.b16 %v1463, %v1459
        %v2460 = vpack.c.b16 %v1468, %v1464
        %v2461 = vpack.c.b16 %v1469, %v1465
        %v2462 = vpack.c.b16 %v1470, %v1466
        %v2463 = vpack.c.b16 %v1471, %v1467
        %v2464 = vpack.c.b16 %v1476, %v1472
        %v2465 = vpack.c.b16 %v1477, %v1473
        %v2466 = vpack.c.b16 %v1478, %v1474
        %v2467 = vpack.c.b16 %v1479, %v1475
        %v2468 = vpack.c.b16 %v1484, %v1480
        %v2469 = vpack.c.b16 %v1485, %v1481
        %v2470 = vpack.c.b16 %v1486, %v1482
        %v2471 = vpack.c.b16 %v1487, %v1483
        %v2472 = vpack.c.b16 %v1492, %v1488
        %v2473 = vpack.c.b16 %v1493, %v1489
        %v2474 = vpack.c.b16 %v1494, %v1490
        %v2475 = vpack.c.b16 %v1495, %v1491
        %v2476 = vpack.c.b16 %v1500, %v1496
        %v2477 = vpack.c.b16 %v1501, %v1497
        %v2478 = vpack.c.b16 %v1502, %v1498
        %v2479 = vpack.c.b16 %v1503, %v1499
        %v2480 = vpack.c.b16 %v1508, %v1504
        %v2481 = vpack.c.b16 %v1509, %v1505
        %v2482 = vpack.c.b16 %v1510, %v1506
        %v2483 = vpack.c.b16 %v1511, %v1507
        %v2484 = vpack.c.b16 %v1516, %v1512
        %v2485 = vpack.c.b16 %v1517, %v1513
        %v2486 = vpack.c.b16 %v1518, %v1514
        %v2487 = vpack.c.b16 %v1519, %v1515
        %v2488 = vpack.c.b16 %v1524, %v1520
        %v2489 = vpack.c.b16 %v1525, %v1521
        %v2490 = vpack.c.b16 %v1526, %v1522
        %v2491 = vpack.c.b16 %v1527, %v1523
        %v2492 = vpack.c.b16 %v1532, %v1528
        %v2493 = vpack.c.b16 %v1533, %v1529
        %v2494 = vpack.c.b16 %v1534, %v1530
        %v2495 = vpack.c.b16 %v1535, %v1531
        %v2496 = vpack.c.b16 %v1540, %v1536
        %v2497 = vpack.c.b16 %v1541, %v1537
        %v2498 = vpack.c.b16 %v1542, %v1538
        %v2499 = vpack.c.b16 %v1543, %v1539
        %v2500 = vpack.c.b16 %v1548, %v1544
        %v2501 = vpack.c.b16 %v1549, %v1545
        %v2502 = vpack.c.b16 %v1550, %v1546
        %v2503 = vpack.c.b16 %v1551, %v1547
        %v2504 = vpack.c.b16 %v1556, %v1552
        %v2505 = vpack.c.b16 %v1557, %v1553
        %v2506 = vpack.c.b16 %v1558, %v1554
        %v2507 = vpack.c.b16 %v1559, %v1555
        %v2508 = vpack.c.b16 %v1564, %v1560
        %v2509 = vpack.c.b16 %v1565, %v1561
        %v2510 = vpack.c.b16 %v1566, %v1562
        %v2511 = vpack.c.b16 %v1567, %v1563
        %v2512 = vpack.c.b16 %v1572, %v1568
        %v2513 = vpack.c.b16 %v1573, %v1569
        %v2514 = vpack.c.b16 %v1574, %v1570
        %v2515 = vpack.c.b16 %v1575, %v1571
        %v2516 = vpack.c.b16 %v1580, %v1576
        %v2517 = vpack.c.b16 %v1581, %v1577
        %v2518 = vpack.c.b16 %v1582, %v1578
        %v2519 = vpack.c.b16 %v1583, %v1579
        %v2520 = vpack.c.b16 %v1588, %v1584
        %v2521 = vpack.c.b16 %v1589, %v1585
        %v2522 = vpack.c.b16 %v1590, %v1586
        %v2523 = vpack.c.b16 %v1591, %v1587
        %v2524 = vpack.c.b16 %v1596, %v1592
        %v2525 = vpack.c.b16 %v1597, %v1593
        %v2526 = vpack.c.b16 %v1598, %v1594
        %v2527 = vpack.c.b16 %v1599, %v1595
        %v2528 = vpack.c.b16 %v1604, %v1600
        %v2529 = vpack.c.b16 %v1605, %v1601
        %v2530 = vpack.c.b16 %v1606, %v1602
        %v2531 = vpack.c.b16 %v1607, %v1603
        %v2532 = vpack.c.b16 %v1612, %v1608
        %v2533 = vpack.c.b16 %v1613, %v1609
        %v2534 = vpack.c.b16 %v1614, %v1610
        %v2535 = vpack.c.b16 %v1615, %v1611
        %v2536 = vpack.c.b16 %v1620, %v1616
        %v2537 = vpack.c.b16 %v1621, %v1617
        %v2538 = vpack.c.b16 %v1622, %v1618
        %v2539 = vpack.c.b16 %v1623, %v1619
        %v2540 = vpack.c.b16 %v1628, %v1624
        %v2541 = vpack.c.b16 %v1629, %v1625
        %v2542 = vpack.c.b16 %v1630, %v1626
        %v2543 = vpack.c.b16 %v1631, %v1627
        %v2544 = vpack.c.b16 %v1636, %v1632
        %v2545 = vpack.c.b16 %v1637, %v1633
        %v2546 = vpack.c.b16 %v1638, %v1634
        %v2547 = vpack.c.b16 %v1639, %v1635
        %v2548 = vpack.c.b16 %v1644, %v1640
        %v2549 = vpack.c.b16 %v1645, %v1641
        %v2550 = vpack.c.b16 %v1646, %v1642
        %v2551 = vpack.c.b16 %v1647, %v1643
        %v2552 = vpack.c.b16 %v1652, %v1648
        %v2553 = vpack.c.b16 %v1653, %v1649
        %v2554 = vpack.c.b16 %v1654, %v1650
        %v2555 = vpack.c.b16 %v1655, %v1651
        %v2556 = vpack.c.b16 %v1660, %v1656
        %v2557 = vpack.c.b16 %v1661, %v1657
        %v2558 = vpack.c.b16 %v1662, %v1658
        %v2559 = vpack.c.b16 %v1663, %v1659
        %v2560 = vpack.c.b16 %v1668, %v1664
        %v2561 = vpack.c.b16 %v1669, %v1665
        %v2562 = vpack.c.b16 %v1670, %v1666
        %v2563 = vpack.c.b16 %v1671, %v1667
        %v2564 = vpack.c.b16 %v1676, %v1672
        %v2565 = vpack.c.b16 %v1677, %v1673
        %v2566 = vpack.c.b16 %v1678, %v1674
        %v2567 = vpack.c.b16 %v1679, %v1675
        %v2568 = vpack.c.b16 %v1684, %v1680
        %v2569 = vpack.c.b16 %v1685, %v1681
        %v2570 = vpack.c.b16 %v1686, %v1682
        %v2571 = vpack.c.b16 %v1687, %v1683
        %v2572 = vpack.c.b16 %v1692, %v1688
        %v2573 = vpack.c.b16 %v1693, %v1689
        %v2574 = vpack.c.b16 %v1694, %v1690
        %v2575 = vpack.c.b16 %v1695, %v1691
        %v2576 = vpack.c.b16 %v1700, %v1696
        %v2577 = vpack.c.b16 %v1701, %v1697
        %v2578 = vpack.c.b16 %v1702, %v1698
        %v2579 = vpack.c.b16 %v1703, %v1699
        %v2580 = vpack.c.b16 %v1708, %v1704
        %v2581 = vpack.c.b16 %v1709, %v1705
        %v2582 = vpack.c.b16 %v1710, %v1706
        %v2583 = vpack.c.b16 %v1711, %v1707
        %v2584 = vpack.c.b16 %v1716, %v1712
        %v2585 = vpack.c.b16 %v1717, %v1713
        %v2586 = vpack.c.b16 %v1718, %v1714
        %v2587 = vpack.c.b16 %v1719, %v1715
        %v2588 = vpack.c.b16 %v1724, %v1720
        %v2589 = vpack.c.b16 %v1725, %v1721
        %v2590 = vpack.c.b16 %v1726, %v1722
        %v2591 = vpack.c.b16 %v1727, %v1723
        %v2592 = vpack.c.b16 %v1732, %v1728
        %v2593 = vpack.c.b16 %v1733, %v1729
        %v2594 = vpack.c.b16 %v1734, %v1730
        %v2595 = vpack.c.b16 %v1735, %v1731
        %v2596 = vpack.c.b16 %v1740, %v1736
        %v2597 = vpack.c.b16 %v1741, %v1737
        %v2598 = vpack.c.b16 %v1742, %v1738
        %v2599 = vpack.c.b16 %v1743, %v1739
        %v2600 = vpack.c.b16 %v1748, %v1744
        %v2601 = vpack.c.b16 %v1749, %v1745
        %v2602 = vpack.c.b16 %v1750, %v1746
        %v2603 = vpack.c.b16 %v1751, %v1747
        %v2604 = vpack.c.b16 %v1756, %v1752
        %v2605 = vpack.c.b16 %v1757, %v1753
        %v2606 = vpack.c.b16 %v1758, %v1754
        %v2607 = vpack.c.b16 %v1759, %v1755
        %v2608 = vpack.c.b16 %v1764, %v1760
        %v2609 = vpack.c.b16 %v1765, %v1761
        %v2610 = vpack.c.b16 %v1766, %v1762
        %v2611 = vpack.c.b16 %v1767, %v1763
        %v2612 = vpack.c.b16 %v1772, %v1768
        %v2613 = vpack.c.b16 %v1773, %v1769
        %v2614 = vpack.c.b16 %v1774, %v1770
        %v2615 = vpack.c.b16 %v1775, %v1771
        %v2616 = vpack.c.b16 %v1780, %v1776
        %v2617 = vpack.c.b16 %v1781, %v1777
        %v2618 = vpack.c.b16 %v1782, %v1778
        %v2619 = vpack.c.b16 %v1783, %v1779
        %v2620 = vpack.c.b16 %v1788, %v1784
        %v2621 = vpack.c.b16 %v1789, %v1785
        %v2622 = vpack.c.b16 %v1790, %v1786
        %v2623 = vpack.c.b16 %v1791, %v1787
        %v2624 = vpack.c.b16 %v1796, %v1792
        %v2625 = vpack.c.b16 %v1797, %v1793
        %v2626 = vpack.c.b16 %v1798, %v1794
        %v2627 = vpack.c.b16 %v1799, %v1795
        %v2628 = vpack.c.b16 %v1804, %v1800
        %v2629 = vpack.c.b16 %v1805, %v1801
        %v2630 = vpack.c.b16 %v1806, %v1802
        %v2631 = vpack.c.b16 %v1807, %v1803
        %v2632 = vpack.c.b16 %v1812, %v1808
        %v2633 = vpack.c.b16 %v1813, %v1809
        %v2634 = vpack.c.b16 %v1814, %v1810
        %v2635 = vpack.c.b16 %v1815, %v1811
        %v2636 = vpack.c.b16 %v1820, %v1816
        %v2637 = vpack.c.b16 %v1821, %v1817
        %v2638 = vpack.c.b16 %v1822, %v1818
        %v2639 = vpack.c.b16 %v1823, %v1819
        %v2640 = vpack.c.b16 %v1828, %v1824
        %v2641 = vpack.c.b16 %v1829, %v1825
        %v2642 = vpack.c.b16 %v1830, %v1826
        %v2643 = vpack.c.b16 %v1831, %v1827
        %v2644 = vpack.c.b16 %v1836, %v1832
        %v2645 = vpack.c.b16 %v1837, %v1833
        %v2646 = vpack.c.b16 %v1838, %v1834
        %v2647 = vpack.c.b16 %v1839, %v1835
        %v2648 = vpack.c.b16 %v1844, %v1840
        %v2649 = vpack.c.b16 %v1845, %v1841
        %v2650 = vpack.c.b16 %v1846, %v1842
        %v2651 = vpack.c.b16 %v1847, %v1843
        %v2652 = vpack.c.b16 %v1852, %v1848
        %v2653 = vpack.c.b16 %v1853, %v1849
        %v2654 = vpack.c.b16 %v1854, %v1850
        %v2655 = vpack.c.b16 %v1855, %v1851
        %v2656 = vpack.c.b16 %v1860, %v1856
        %v2657 = vpack.c.b16 %v1861, %v1857
        %v2658 = vpack.c.b16 %v1862, %v1858
        %v2659 = vpack.c.b16 %v1863, %v1859
        %v2660 = vpack.c.b16 %v1868, %v1864
        %v2661 = vpack.c.b16 %v1869, %v1865
        %v2662 = vpack.c.b16 %v1870, %v1866
        %v2663 = vpack.c.b16 %v1871, %v1867
        %v2664 = vpack.c.b16 %v1876, %v1872
        %v2665 = vpack.c.b16 %v1877, %v1873
        %v2666 = vpack.c.b16 %v1878, %v1874
        %v2667 = vpack.c.b16 %v1879, %v1875
        %v2668 = vpack.c.b16 %v1884, %v1880
        %v2669 = vpack.c.b16 %v1885, %v1881
        %v2670 = vpack.c.b16 %v1886, %v1882
        %v2671 = vpack.c.b16 %v1887, %v1883
        %v2672 = vpack.c.b16 %v1892, %v1888
        %v2673 = vpack.c.b16 %v1893, %v1889
        %v2674 = vpack.c.b16 %v1894, %v1890
        %v2675 = vpack.c.b16 %v1895, %v1891
        %v2676 = vpack.c.b16 %v1900, %v1896
        %v2677 = vpack.c.b16 %v1901, %v1897
        %v2678 = vpack.c.b16 %v1902, %v1898
        %v2679 = vpack.c.b16 %v1903, %v1899
        %v2680 = vpack.c.b16 %v1908, %v1904
        %v2681 = vpack.c.b16 %v1909, %v1905
        %v2682 = vpack.c.b16 %v1910, %v1906
        %v2683 = vpack.c.b16 %v1911, %v1907
        %v2684 = vpack.c.b16 %v1916, %v1912
        %v2685 = vpack.c.b16 %v1917, %v1913
        %v2686 = vpack.c.b16 %v1918, %v1914
        %v2687 = vpack.c.b16 %v1919, %v1915
        %v2688 = vpack.c.b16 %v1924, %v1920
        %v2689 = vpack.c.b16 %v1925, %v1921
        %v2690 = vpack.c.b16 %v1926, %v1922
        %v2691 = vpack.c.b16 %v1927, %v1923
        %v2692 = vpack.c.b16 %v1932, %v1928
        %v2693 = vpack.c.b16 %v1933, %v1929
        %v2694 = vpack.c.b16 %v1934, %v1930
        %v2695 = vpack.c.b16 %v1935, %v1931
        %v2696 = vpack.c.b16 %v1940, %v1936
        %v2697 = vpack.c.b16 %v1941, %v1937
        %v2698 = vpack.c.b16 %v1942, %v1938
        %v2699 = vpack.c.b16 %v1943, %v1939
        %v2700 = vpack.c.b16 %v1948, %v1944
        %v2701 = vpack.c.b16 %v1949, %v1945
        %v2702 = vpack.c.b16 %v1950, %v1946
        %v2703 = vpack.c.b16 %v1951, %v1947
        %v2704 = vpack.c.b16 %v1956, %v1952
        %v2705 = vpack.c.b16 %v1957, %v1953
        %v2706 = vpack.c.b16 %v1958, %v1954
        %v2707 = vpack.c.b16 %v1959, %v1955
        %v2708 = vpack.c.b16 %v1964, %v1960
        %v2709 = vpack.c.b16 %v1965, %v1961
        %v2710 = vpack.c.b16 %v1966, %v1962
        %v2711 = vpack.c.b16 %v1967, %v1963
        %v2712 = vpack.c.b16 %v1972, %v1968
        %v2713 = vpack.c.b16 %v1973, %v1969
        %v2714 = vpack.c.b16 %v1974, %v1970
        %v2715 = vpack.c.b16 %v1975, %v1971
        %v2716 = vpack.c.b16 %v1980, %v1976
        %v2717 = vpack.c.b16 %v1981, %v1977
        %v2718 = vpack.c.b16 %v1982, %v1978
        %v2719 = vpack.c.b16 %v1983, %v1979
        %v2720 = vpack.c.b16 %v1988, %v1984
        %v2721 = vpack.c.b16 %v1989, %v1985
        %v2722 = vpack.c.b16 %v1990, %v1986
        %v2723 = vpack.c.b16 %v1991, %v1987
        %v2724 = vpack.c.b16 %v1996, %v1992
        %v2725 = vpack.c.b16 %v1997, %v1993
        %v2726 = vpack.c.b16 %v1998, %v1994
        %v2727 = vpack.c.b16 %v1999, %v1995
        %v2728 = vpack.c.b16 %v2004, %v2000
        %v2729 = vpack.c.b16 %v2005, %v2001
        %v2730 = vpack.c.b16 %v2006, %v2002
        %v2731 = vpack.c.b16 %v2007, %v2003
        %v2732 = vpack.c.b16 %v2012, %v2008
        %v2733 = vpack.c.b16 %v2013, %v2009
        %v2734 = vpack.c.b16 %v2014, %v2010
        %v2735 = vpack.c.b16 %v2015, %v2011
        %v2736 = vpack.c.b16 %v2020, %v2016
        %v2737 = vpack.c.b16 %v2021, %v2017
        %v2738 = vpack.c.b16 %v2022, %v2018
        %v2739 = vpack.c.b16 %v2023, %v2019
        %v2740 = vpack.c.b16 %v2028, %v2024
        %v2741 = vpack.c.b16 %v2029, %v2025
        %v2742 = vpack.c.b16 %v2030, %v2026
        %v2743 = vpack.c.b16 %v2031, %v2027
        %v2744 = vpack.c.b16 %v2036, %v2032
        %v2745 = vpack.c.b16 %v2037, %v2033
        %v2746 = vpack.c.b16 %v2038, %v2034
        %v2747 = vpack.c.b16 %v2039, %v2035
        %v2748 = vpack.c.b16 %v2044, %v2040
        %v2749 = vpack.c.b16 %v2045, %v2041
        %v2750 = vpack.c.b16 %v2046, %v2042
        %v2751 = vpack.c.b16 %v2047, %v2043
        %v2752 = vpack.c.b16 %v2052, %v2048
        %v2753 = vpack.c.b16 %v2053, %v2049
        %v2754 = vpack.c.b16 %v2054, %v2050
        %v2755 = vpack.c.b16 %v2055, %v2051
        %v2756 = vpack.c.b16 %v2060, %v2056
        %v2757 = vpack.c.b16 %v2061, %v2057
        %v2758 = vpack.c.b16 %v2062, %v2058
        %v2759 = vpack.c.b16 %v2063, %v2059
        %v2760 = vpack.c.b16 %v2068, %v2064
        %v2761 = vpack.c.b16 %v2069, %v2065
        %v2762 = vpack.c.b16 %v2070, %v2066
        %v2763 = vpack.c.b16 %v2071, %v2067
        %v2764 = vpack.c.b16 %v2076, %v2072
        %v2765 = vpack.c.b16 %v2077, %v2073
        %v2766 = vpack.c.b16 %v2078, %v2074
        %v2767 = vpack.c.b16 %v2079, %v2075
        %v2768 = vpack.c.b16 %v2084, %v2080
        %v2769 = vpack.c.b16 %v2085, %v2081
        %v2770 = vpack.c.b16 %v2086, %v2082
        %v2771 = vpack.c.b16 %v2087, %v2083
        %v2772 = vpack.c.b16 %v2092, %v2088
        %v2773 = vpack.c.b16 %v2093, %v2089
        %v2774 = vpack.c.b16 %v2094, %v2090
        %v2775 = vpack.c.b16 %v2095, %v2091
        %v2776 = vpack.c.b16 %v2100, %v2096
        %v2777 = vpack.c.b16 %v2101, %v2097
        %v2778 = vpack.c.b16 %v2102, %v2098
        %v2779 = vpack.c.b16 %v2103, %v2099
        %v2780 = vpack.c.b16 %v2108, %v2104
        %v2781 = vpack.c.b16 %v2109, %v2105
        %v2782 = vpack.c.b16 %v2110, %v2106
        %v2783 = vpack.c.b16 %v2111, %v2107
        %v2784 = vpack.c.b16 %v2116, %v2112
        %v2785 = vpack.c.b16 %v2117, %v2113
        %v2786 = vpack.c.b16 %v2118, %v2114
        %v2787 = vpack.c.b16 %v2119, %v2115
        %v2788 = vpack.c.b16 %v2124, %v2120
        %v2789 = vpack.c.b16 %v2125, %v2121
        %v2790 = vpack.c.b16 %v2126, %v2122
        %v2791 = vpack.c.b16 %v2127, %v2123
        %v2792 = vpack.c.b16 %v2132, %v2128
        %v2793 = vpack.c.b16 %v2133, %v2129
        %v2794 = vpack.c.b16 %v2134, %v2130
        %v2795 = vpack.c.b16 %v2135, %v2131
        %v2796 = vpack.c.b16 %v2140, %v2136
        %v2797 = vpack.c.b16 %v2141, %v2137
        %v2798 = vpack.c.b16 %v2142, %v2138
        %v2799 = vpack.c.b16 %v2143, %v2139
        %v2800 = vpack.c.b16 %v2148, %v2144
        %v2801 = vpack.c.b16 %v2149, %v2145
        %v2802 = vpack.c.b16 %v2150, %v2146
        %v2803 = vpack.c.b16 %v2151, %v2147
        %v2804 = vpack.c.b16 %v2156, %v2152
        %v2805 = vpack.c.b16 %v2157, %v2153
        %v2806 = vpack.c.b16 %v2158, %v2154
        %v2807 = vpack.c.b16 %v2159, %v2155
        %v2808 = vpack.c.b16 %v2164, %v2160
        %v2809 = vpack.c.b16 %v2165, %v2161
        %v2810 = vpack.c.b16 %v2166, %v2162
        %v2811 = vpack.c.b16 %v2167, %v2163
        %v2812 = vpack.c.b16 %v2172, %v2168
        %v2813 = vpack.c.b16 %v2173, %v2169
        %v2814 = vpack.c.b16 %v2174, %v2170
        %v2815 = vpack.c.b16 %v2175, %v2171
        %v2816 = vpack.c.b16 %v2180, %v2176
        %v2817 = vpack.c.b16 %v2181, %v2177
        %v2818 = vpack.c.b16 %v2182, %v2178
        %v2819 = vpack.c.b16 %v2183, %v2179
        %v2820 = vpack.c.b16 %v2188, %v2184
        %v2821 = vpack.c.b16 %v2189, %v2185
        %v2822 = vpack.c.b16 %v2190, %v2186
        %v2823 = vpack.c.b16 %v2191, %v2187
        %v2824 = vpack.c.b16 %v2196, %v2192
        %v2825 = vpack.c.b16 %v2197, %v2193
        %v2826 = vpack.c.b16 %v2198, %v2194
        %v2827 = vpack.c.b16 %v2199, %v2195
        %v2828 = vpack.c.b16 %v2204, %v2200
        %v2829 = vpack.c.b16 %v2205, %v2201
        %v2830 = vpack.c.b16 %v2206, %v2202
        %v2831 = vpack.c.b16 %v2207, %v2203
        %v2832 = vpack.c.b16 %v2212, %v2208
        %v2833 = vpack.c.b16 %v2213, %v2209
        %v2834 = vpack.c.b16 %v2214, %v2210
        %v2835 = vpack.c.b16 %v2215, %v2211
        %v2836 = vpack.c.b16 %v2220, %v2216
        %v2837 = vpack.c.b16 %v2221, %v2217
        %v2838 = vpack.c.b16 %v2222, %v2218
        %v2839 = vpack.c.b16 %v2223, %v2219
        %v2840 = vpack.c.b16 %v2228, %v2224
        %v2841 = vpack.c.b16 %v2229, %v2225
        %v2842 = vpack.c.b16 %v2230, %v2226
        %v2843 = vpack.c.b16 %v2231, %v2227
        %v2844 = vpack.c.b16 %v2236, %v2232
        %v2845 = vpack.c.b16 %v2237, %v2233
        %v2846 = vpack.c.b16 %v2238, %v2234
        %v2847 = vpack.c.b16 %v2239, %v2235
        %v2848 = vpack.c.b16 %v2244, %v2240
        %v2849 = vpack.c.b16 %v2245, %v2241
        %v2850 = vpack.c.b16 %v2246, %v2242
        %v2851 = vpack.c.b16 %v2247, %v2243
        %v2852 = vpack.c.b16 %v2252, %v2248
        %v2853 = vpack.c.b16 %v2253, %v2249
        %v2854 = vpack.c.b16 %v2254, %v2250
        %v2855 = vpack.c.b16 %v2255, %v2251
        %v2856 = vpack.c.b16 %v2260, %v2256
        %v2857 = vpack.c.b16 %v2261, %v2257
        %v2858 = vpack.c.b16 %v2262, %v2258
        %v2859 = vpack.c.b16 %v2263, %v2259
        %v2860 = vpack.c.b16 %v2268, %v2264
        %v2861 = vpack.c.b16 %v2269, %v2265
        %v2862 = vpack.c.b16 %v2270, %v2266
        %v2863 = vpack.c.b16 %v2271, %v2267
        %v2864 = vpack.c.b16 %v2276, %v2272
        %v2865 = vpack.c.b16 %v2277, %v2273
        %v2866 = vpack.c.b16 %v2278, %v2274
        %v2867 = vpack.c.b16 %v2279, %v2275
        %v2868 = vpack.c.b16 %v2284, %v2280
        %v2869 = vpack.c.b16 %v2285, %v2281
        %v2870 = vpack.c.b16 %v2286, %v2282
        %v2871 = vpack.c.b16 %v2287, %v2283
        %v2872 = vpack.c.b16 %v2292, %v2288
        %v2873 = vpack.c.b16 %v2293, %v2289
        %v2874 = vpack.c.b16 %v2294, %v2290
        %v2875 = vpack.c.b16 %v2295, %v2291
        %v2876 = vpack.c.b16 %v2300, %v2296
        %v2877 = vpack.c.b16 %v2301, %v2297
        %v2878 = vpack.c.b16 %v2302, %v2298
        %v2879 = vpack.c.b16 %v2303, %v2299
        %v2880 = vpack.c.b16 %v2308, %v2304
        %v2881 = vpack.c.b16 %v2309, %v2305
        %v2882 = vpack.c.b16 %v2310, %v2306
        %v2883 = vpack.c.b16 %v2311, %v2307
        %v2884 = vpack.c.b16 %v2316, %v2312
        %v2885 = vpack.c.b16 %v2317, %v2313
        %v2886 = vpack.c.b16 %v2318, %v2314
        %v2887 = vpack.c.b16 %v2319, %v2315
        %v2888 = vpack.c.b16 %v2324, %v2320
        %v2889 = vpack.c.b16 %v2325, %v2321
        %v2890 = vpack.c.b16 %v2326, %v2322
        %v2891 = vpack.c.b16 %v2327, %v2323
        %v2892 = vpack.c.b16 %v2332, %v2328
        %v2893 = vpack.c.b16 %v2333, %v2329
        %v2894 = vpack.c.b16 %v2334, %v2330
        %v2895 = vpack.c.b16 %v2335, %v2331
        %v2896 = vpack.c.b16 %v2340, %v2336
        %v2897 = vpack.c.b16 %v2341, %v2337
        %v2898 = vpack.c.b16 %v2342, %v2338
        %v2899 = vpack.c.b16 %v2343, %v2339
        %v2900 = vpack.c.b16 %v2348, %v2344
        %v2901 = vpack.c.b16 %v2349, %v2345
        %v2902 = vpack.c.b16 %v2350, %v2346
        %v2903 = vpack.c.b16 %v2351, %v2347
        %v2904 = vpack.c.b16 %v2356, %v2352
        %v2905 = vpack.c.b16 %v2357, %v2353
        %v2906 = vpack.c.b16 %v2358, %v2354
        %v2907 = vpack.c.b16 %v2359, %v2355
        %v2908 = vpack.c.b16 %v2364, %v2360
        %v2909 = vpack.c.b16 %v2365, %v2361
        %v2910 = vpack.c.b16 %v2366, %v2362
        %v2911 = vpack.c.b16 %v2367, %v2363
        %v2912 = vpack.c.b16 %v2372, %v2368
        %v2913 = vpack.c.b16 %v2373, %v2369
        %v2914 = vpack.c.b16 %v2374, %v2370
        %v2915 = vpack.c.b16 %v2375, %v2371
        %v2916 = vpack.c.b16 %v2380, %v2376
        %v2917 = vpack.c.b16 %v2381, %v2377
        %v2918 = vpack.c.b16 %v2382, %v2378
        %v2919 = vpack.c.b16 %v2383, %v2379
        %v2920 = vpack.c.b16 %v2388, %v2384
        %v2921 = vpack.c.b16 %v2389, %v2385
        %v2922 = vpack.c.b16 %v2390, %v2386
        %v2923 = vpack.c.b16 %v2391, %v2387
        %v2924 = vpack.c.b16 %v2396, %v2392
        %v2925 = vpack.c.b16 %v2397, %v2393
        %v2926 = vpack.c.b16 %v2398, %v2394
        %v2927 = vpack.c.b16 %v2399, %v2395
        %v2928 = vpack.c.b16 %v2404, %v2400
        %v2929 = vpack.c.b16 %v2405, %v2401
        %v2930 = vpack.c.b16 %v2406, %v2402
        %v2931 = vpack.c.b16 %v2407, %v2403
        %v2932 = vpack.c.b16 %v2412, %v2408
        %v2933 = vpack.c.b16 %v2413, %v2409
        %v2934 = vpack.c.b16 %v2414, %v2410
        %v2935 = vpack.c.b16 %v2415, %v2411
        %v2936 = vpack.c.b16 %v2420, %v2416
        %v2937 = vpack.c.b16 %v2421, %v2417
        %v2938 = vpack.c.b16 %v2422, %v2418
        %v2939 = vpack.c.b16 %v2423, %v2419
        %v2940 = vpack.c.b16 %v2428, %v2424
        %v2941 = vpack.c.b16 %v2429, %v2425
        %v2942 = vpack.c.b16 %v2430, %v2426
        %v2943 = vpack.c.b16 %v2431, %v2427
        %3456 = vmatprep.subr.bf16.mxu0 %v2433
        %3457 = vmatpush1.bf16.msra.mxu0 %v2432
        %3458 = vmatprep.subr.bf16.mxu0 %v2437
        %3459 = vmatpush1.bf16.msra.mxu0 %v2436
        %3460 = vmatprep.subr.bf16.mxu0 %v2441
        %3461 = vmatpush1.bf16.msra.mxu0 %v2440
        %3462 = vmatprep.subr.bf16.mxu0 %v2445
        %3463 = vmatpush1.bf16.msra.mxu0 %v2444
        %3464 = vmatprep.subr.bf16.mxu0 %v2449
        %3465 = vmatpush1.bf16.msra.mxu0 %v2448
        %3466 = vmatprep.subr.bf16.mxu0 %v2453
        %3467 = vmatpush1.bf16.msra.mxu0 %v2452
        %3468 = vmatprep.subr.bf16.mxu0 %v2457
        %3469 = vmatpush1.bf16.msra.mxu0 %v2456
        %3470 = vmatprep.subr.bf16.mxu0 %v2461
        %3471 = vmatpush1.bf16.msra.mxu0 %v2460
        %3472 = vmatprep.subr.bf16.mxu0 %v2465
        %3473 = vmatpush1.bf16.msra.mxu0 %v2464
        %3474 = vmatprep.subr.bf16.mxu0 %v2469
        %3475 = vmatpush1.bf16.msra.mxu0 %v2468
        %3476 = vmatprep.subr.bf16.mxu0 %v2473
        %3477 = vmatpush1.bf16.msra.mxu0 %v2472
        %3478 = vmatprep.subr.bf16.mxu0 %v2477
        %3479 = vmatpush1.bf16.msra.mxu0 %v2476
        %3480 = vmatprep.subr.bf16.mxu0 %v2481
        %3481 = vmatpush1.bf16.msra.mxu0 %v2480
        %3482 = vmatprep.subr.bf16.mxu0 %v2485
        %3483 = vmatpush1.bf16.msra.mxu0 %v2484
        %3484 = vmatprep.subr.bf16.mxu0 %v2489
        %3485 = vmatpush1.bf16.msra.mxu0 %v2488
        %3486 = vmatprep.subr.bf16.mxu0 %v2493
        %3487 = vmatpush1.bf16.msra.mxu0 %v2492
        %3488 = vmatprep.mubr.bf16.mxu0 %v865
        %3489 = vmatmul.mubr.bf16.gmra.mrb[0].mxu0 %v864
        %v3490 = vpop.f32.mrb[0].mxu0
        %v3491 = vadd.f32 %v799, %v3490
        %v3492 = vpop.f32.mrb[0].mxu0
        %v3493 = vadd.f32 %v803, %v3492
        %v3494 = vpop.f32.mrb[0].mxu0
        %v3495 = vadd.f32 %v799, %v3494
        %v3496 = vpop.f32.mrb[0].mxu0
        %v3497 = vadd.f32 %v803, %v3496
        %3498 = vdwg.mxu0
        %3499 = vmatprep.subr.bf16.mxu0 %v2497
        %3500 = vmatpush1.bf16.msra.mxu0 %v2496
        %3501 = vmatprep.subr.bf16.mxu0 %v2501
        %3502 = vmatpush1.bf16.msra.mxu0 %v2500
        %3503 = vmatprep.subr.bf16.mxu0 %v2505
        %3504 = vmatpush1.bf16.msra.mxu0 %v2504
        %3505 = vmatprep.subr.bf16.mxu0 %v2509
        %3506 = vmatpush1.bf16.msra.mxu0 %v2508
        %3507 = vmatprep.subr.bf16.mxu0 %v2513
        %3508 = vmatpush1.bf16.msra.mxu0 %v2512
        %3509 = vmatprep.subr.bf16.mxu0 %v2517
        %3510 = vmatpush1.bf16.msra.mxu0 %v2516
        %3511 = vmatprep.subr.bf16.mxu0 %v2521
        %3512 = vmatpush1.bf16.msra.mxu0 %v2520
        %3513 = vmatprep.subr.bf16.mxu0 %v2525
        %3514 = vmatpush1.bf16.msra.mxu0 %v2524
        %3515 = vmatprep.subr.bf16.mxu0 %v2529
        %3516 = vmatpush1.bf16.msra.mxu0 %v2528
        %3517 = vmatprep.subr.bf16.mxu0 %v2533
        %3518 = vmatpush1.bf16.msra.mxu0 %v2532
        %3519 = vmatprep.subr.bf16.mxu0 %v2537
        %3520 = vmatpush1.bf16.msra.mxu0 %v2536
        %3521 = vmatprep.subr.bf16.mxu0 %v2541
        %3522 = vmatpush1.bf16.msra.mxu0 %v2540
        %3523 = vmatprep.subr.bf16.mxu0 %v2545
        %3524 = vmatpush1.bf16.msra.mxu0 %v2544
        %3525 = vmatprep.subr.bf16.mxu0 %v2549
        %3526 = vmatpush1.bf16.msra.mxu0 %v2548
        %3527 = vmatprep.subr.bf16.mxu0 %v2553
        %3528 = vmatpush1.bf16.msra.mxu0 %v2552
        %3529 = vmatprep.subr.bf16.mxu0 %v2557
        %3530 = vmatpush1.bf16.msra.mxu0 %v2556
        %3531 = vmatprep.mubr.bf16.mxu0 %v867
        %3532 = vmatmul.mubr.bf16.gmra.mrb[0].mxu0 %v866
        %v3533 = vpop.f32.mrb[0].mxu0
        %v3534 = vadd.f32 %v3491, %v3533
        %v3535 = vpop.f32.mrb[0].mxu0
        %v3536 = vadd.f32 %v3493, %v3535
        %v3537 = vpop.f32.mrb[0].mxu0
        %v3538 = vadd.f32 %v3495, %v3537
        %v3539 = vpop.f32.mrb[0].mxu0
        %v3540 = vadd.f32 %v3497, %v3539
        %3541 = vdwg.mxu0
        %3542 = vmatprep.subr.bf16.mxu0 %v2561
        %3543 = vmatpush1.bf16.msra.mxu0 %v2560
        %3544 = vmatprep.subr.bf16.mxu0 %v2565
        %3545 = vmatpush1.bf16.msra.mxu0 %v2564
        %3546 = vmatprep.subr.bf16.mxu0 %v2569
        %3547 = vmatpush1.bf16.msra.mxu0 %v2568
        %3548 = vmatprep.subr.bf16.mxu0 %v2573
        %3549 = vmatpush1.bf16.msra.mxu0 %v2572
        %3550 = vmatprep.subr.bf16.mxu0 %v2577
        %3551 = vmatpush1.bf16.msra.mxu0 %v2576
        %3552 = vmatprep.subr.bf16.mxu0 %v2581
        %3553 = vmatpush1.bf16.msra.mxu0 %v2580
        %3554 = vmatprep.subr.bf16.mxu0 %v2585
        %3555 = vmatpush1.bf16.msra.mxu0 %v2584
        %3556 = vmatprep.subr.bf16.mxu0 %v2589
        %3557 = vmatpush1.bf16.msra.mxu0 %v2588
        %3558 = vmatprep.subr.bf16.mxu0 %v2593
        %3559 = vmatpush1.bf16.msra.mxu0 %v2592
        %3560 = vmatprep.subr.bf16.mxu0 %v2597
        %3561 = vmatpush1.bf16.msra.mxu0 %v2596
        %3562 = vmatprep.subr.bf16.mxu0 %v2601
        %3563 = vmatpush1.bf16.msra.mxu0 %v2600
        %3564 = vmatprep.subr.bf16.mxu0 %v2605
        %3565 = vmatpush1.bf16.msra.mxu0 %v2604
        %3566 = vmatprep.subr.bf16.mxu0 %v2609
        %3567 = vmatpush1.bf16.msra.mxu0 %v2608
        %3568 = vmatprep.subr.bf16.mxu0 %v2613
        %3569 = vmatpush1.bf16.msra.mxu0 %v2612
        %3570 = vmatprep.subr.bf16.mxu0 %v2617
        %3571 = vmatpush1.bf16.msra.mxu0 %v2616
        %3572 = vmatprep.subr.bf16.mxu0 %v2621
        %3573 = vmatpush1.bf16.msra.mxu0 %v2620
        %3574 = vmatprep.mubr.bf16.mxu0 %v869
        %3575 = vmatmul.mubr.bf16.gmra.mrb[0].mxu0 %v868
        %v3576 = vpop.f32.mrb[0].mxu0
        %v3577 = vadd.f32 %v3534, %v3576
        %v3578 = vpop.f32.mrb[0].mxu0
        %v3579 = vadd.f32 %v3536, %v3578
        %v3580 = vpop.f32.mrb[0].mxu0
        %v3581 = vadd.f32 %v3538, %v3580
        %v3582 = vpop.f32.mrb[0].mxu0
        %v3583 = vadd.f32 %v3540, %v3582
        %3584 = vdwg.mxu0
        %3585 = vmatprep.subr.bf16.mxu0 %v2625
        %3586 = vmatpush1.bf16.msra.mxu0 %v2624
        %3587 = vmatprep.subr.bf16.mxu0 %v2629
        %3588 = vmatpush1.bf16.msra.mxu0 %v2628
        %3589 = vmatprep.subr.bf16.mxu0 %v2633
        %3590 = vmatpush1.bf16.msra.mxu0 %v2632
        %3591 = vmatprep.subr.bf16.mxu0 %v2637
        %3592 = vmatpush1.bf16.msra.mxu0 %v2636
        %3593 = vmatprep.subr.bf16.mxu0 %v2641
        %3594 = vmatpush1.bf16.msra.mxu0 %v2640
        %3595 = vmatprep.subr.bf16.mxu0 %v2645
        %3596 = vmatpush1.bf16.msra.mxu0 %v2644
        %3597 = vmatprep.subr.bf16.mxu0 %v2649
        %3598 = vmatpush1.bf16.msra.mxu0 %v2648
        %3599 = vmatprep.subr.bf16.mxu0 %v2653
        %3600 = vmatpush1.bf16.msra.mxu0 %v2652
        %3601 = vmatprep.subr.bf16.mxu0 %v2657
        %3602 = vmatpush1.bf16.msra.mxu0 %v2656
        %3603 = vmatprep.subr.bf16.mxu0 %v2661
        %3604 = vmatpush1.bf16.msra.mxu0 %v2660
        %3605 = vmatprep.subr.bf16.mxu0 %v2665
        %3606 = vmatpush1.bf16.msra.mxu0 %v2664
        %3607 = vmatprep.subr.bf16.mxu0 %v2669
        %3608 = vmatpush1.bf16.msra.mxu0 %v2668
        %3609 = vmatprep.subr.bf16.mxu0 %v2673
        %3610 = vmatpush1.bf16.msra.mxu0 %v2672
        %3611 = vmatprep.subr.bf16.mxu0 %v2677
        %3612 = vmatpush1.bf16.msra.mxu0 %v2676
        %3613 = vmatprep.subr.bf16.mxu0 %v2681
        %3614 = vmatpush1.bf16.msra.mxu0 %v2680
        %3615 = vmatprep.subr.bf16.mxu0 %v2685
        %3616 = vmatpush1.bf16.msra.mxu0 %v2684
        %3617 = vmatprep.mubr.bf16.mxu0 %v871
        %3618 = vmatmul.mubr.bf16.gmra.mrb[0].mxu0 %v870
        %v3619 = vpop.f32.mrb[0].mxu0
        %v3620 = vadd.f32 %v3577, %v3619
        %v3621 = vpop.f32.mrb[0].mxu0
        %v3622 = vadd.f32 %v3579, %v3621
        %v3623 = vpop.f32.mrb[0].mxu0
        %v3624 = vadd.f32 %v3581, %v3623
        %v3625 = vpop.f32.mrb[0].mxu0
        %v3626 = vadd.f32 %v3583, %v3625
        %3627 = vdwg.mxu0
        %3628 = vmatprep.subr.bf16.mxu0 %v2689
        %3629 = vmatpush1.bf16.msra.mxu0 %v2688
        %3630 = vmatprep.subr.bf16.mxu0 %v2693
        %3631 = vmatpush1.bf16.msra.mxu0 %v2692
        %3632 = vmatprep.subr.bf16.mxu0 %v2697
        %3633 = vmatpush1.bf16.msra.mxu0 %v2696
        %3634 = vmatprep.subr.bf16.mxu0 %v2701
        %3635 = vmatpush1.bf16.msra.mxu0 %v2700
        %3636 = vmatprep.subr.bf16.mxu0 %v2705
        %3637 = vmatpush1.bf16.msra.mxu0 %v2704
        %3638 = vmatprep.subr.bf16.mxu0 %v2709
        %3639 = vmatpush1.bf16.msra.mxu0 %v2708
        %3640 = vmatprep.subr.bf16.mxu0 %v2713
        %3641 = vmatpush1.bf16.msra.mxu0 %v2712
        %3642 = vmatprep.subr.bf16.mxu0 %v2717
        %3643 = vmatpush1.bf16.msra.mxu0 %v2716
        %3644 = vmatprep.subr.bf16.mxu0 %v2721
        %3645 = vmatpush1.bf16.msra.mxu0 %v2720
        %3646 = vmatprep.subr.bf16.mxu0 %v2725
        %3647 = vmatpush1.bf16.msra.mxu0 %v2724
        %3648 = vmatprep.subr.bf16.mxu0 %v2729
        %3649 = vmatpush1.bf16.msra.mxu0 %v2728
        %3650 = vmatprep.subr.bf16.mxu0 %v2733
        %3651 = vmatpush1.bf16.msra.mxu0 %v2732
        %3652 = vmatprep.subr.bf16.mxu0 %v2737
        %3653 = vmatpush1.bf16.msra.mxu0 %v2736
        %3654 = vmatprep.subr.bf16.mxu0 %v2741
        %3655 = vmatpush1.bf16.msra.mxu0 %v2740
        %3656 = vmatprep.subr.bf16.mxu0 %v2745
        %3657 = vmatpush1.bf16.msra.mxu0 %v2744
        %3658 = vmatprep.subr.bf16.mxu0 %v2749
        %3659 = vmatpush1.bf16.msra.mxu0 %v2748
        %3660 = vmatprep.mubr.bf16.mxu0 %v873
        %3661 = vmatmul.mubr.bf16.gmra.mrb[0].mxu0 %v872
        %v3662 = vpop.f32.mrb[0].mxu0
        %v3663 = vadd.f32 %v3620, %v3662
        %v3664 = vpop.f32.mrb[0].mxu0
        %v3665 = vadd.f32 %v3622, %v3664
        %v3666 = vpop.f32.mrb[0].mxu0
        %v3667 = vadd.f32 %v3624, %v3666
        %v3668 = vpop.f32.mrb[0].mxu0
        %v3669 = vadd.f32 %v3626, %v3668
        %3670 = vdwg.mxu0
        %3671 = vmatprep.subr.bf16.mxu0 %v2753
        %3672 = vmatpush1.bf16.msra.mxu0 %v2752
        %3673 = vmatprep.subr.bf16.mxu0 %v2757
        %3674 = vmatpush1.bf16.msra.mxu0 %v2756
        %3675 = vmatprep.subr.bf16.mxu0 %v2761
        %3676 = vmatpush1.bf16.msra.mxu0 %v2760
        %3677 = vmatprep.subr.bf16.mxu0 %v2765
        %3678 = vmatpush1.bf16.msra.mxu0 %v2764
        %3679 = vmatprep.subr.bf16.mxu0 %v2769
        %3680 = vmatpush1.bf16.msra.mxu0 %v2768
        %3681 = vmatprep.subr.bf16.mxu0 %v2773
        %3682 = vmatpush1.bf16.msra.mxu0 %v2772
        %3683 = vmatprep.subr.bf16.mxu0 %v2777
        %3684 = vmatpush1.bf16.msra.mxu0 %v2776
        %3685 = vmatprep.subr.bf16.mxu0 %v2781
        %3686 = vmatpush1.bf16.msra.mxu0 %v2780
        %3687 = vmatprep.subr.bf16.mxu0 %v2785
        %3688 = vmatpush1.bf16.msra.mxu0 %v2784
        %3689 = vmatprep.subr.bf16.mxu0 %v2789
        %3690 = vmatpush1.bf16.msra.mxu0 %v2788
        %3691 = vmatprep.subr.bf16.mxu0 %v2793
        %3692 = vmatpush1.bf16.msra.mxu0 %v2792
        %3693 = vmatprep.subr.bf16.mxu0 %v2797
        %3694 = vmatpush1.bf16.msra.mxu0 %v2796
        %3695 = vmatprep.subr.bf16.mxu0 %v2801
        %3696 = vmatpush1.bf16.msra.mxu0 %v2800
        %3697 = vmatprep.subr.bf16.mxu0 %v2805
        %3698 = vmatpush1.bf16.msra.mxu0 %v2804
        %3699 = vmatprep.subr.bf16.mxu0 %v2809
        %3700 = vmatpush1.bf16.msra.mxu0 %v2808
        %3701 = vmatprep.subr.bf16.mxu0 %v2813
        %3702 = vmatpush1.bf16.msra.mxu0 %v2812
        %3703 = vmatprep.mubr.bf16.mxu0 %v875
        %3704 = vmatmul.mubr.bf16.gmra.mrb[0].mxu0 %v874
        %v3705 = vpop.f32.mrb[0].mxu0
        %v3706 = vadd.f32 %v3663, %v3705
        %v3707 = vpop.f32.mrb[0].mxu0
        %v3708 = vadd.f32 %v3665, %v3707
        %v3709 = vpop.f32.mrb[0].mxu0
        %v3710 = vadd.f32 %v3667, %v3709
        %v3711 = vpop.f32.mrb[0].mxu0
        %v3712 = vadd.f32 %v3669, %v3711
        %3713 = vdwg.mxu0
        %3714 = vmatprep.subr.bf16.mxu0 %v2817
        %3715 = vmatpush1.bf16.msra.mxu0 %v2816
        %3716 = vmatprep.subr.bf16.mxu0 %v2821
        %3717 = vmatpush1.bf16.msra.mxu0 %v2820
        %3718 = vmatprep.subr.bf16.mxu0 %v2825
        %3719 = vmatpush1.bf16.msra.mxu0 %v2824
        %3720 = vmatprep.subr.bf16.mxu0 %v2829
        %3721 = vmatpush1.bf16.msra.mxu0 %v2828
        %3722 = vmatprep.subr.bf16.mxu0 %v2833
        %3723 = vmatpush1.bf16.msra.mxu0 %v2832
        %3724 = vmatprep.subr.bf16.mxu0 %v2837
        %3725 = vmatpush1.bf16.msra.mxu0 %v2836
        %3726 = vmatprep.subr.bf16.mxu0 %v2841
        %3727 = vmatpush1.bf16.msra.mxu0 %v2840
        %3728 = vmatprep.subr.bf16.mxu0 %v2845
        %3729 = vmatpush1.bf16.msra.mxu0 %v2844
        %3730 = vmatprep.subr.bf16.mxu0 %v2849
        %3731 = vmatpush1.bf16.msra.mxu0 %v2848
        %3732 = vmatprep.subr.bf16.mxu0 %v2853
        %3733 = vmatpush1.bf16.msra.mxu0 %v2852
        %3734 = vmatprep.subr.bf16.mxu0 %v2857
        %3735 = vmatpush1.bf16.msra.mxu0 %v2856
        %3736 = vmatprep.subr.bf16.mxu0 %v2861
        %3737 = vmatpush1.bf16.msra.mxu0 %v2860
        %3738 = vmatprep.subr.bf16.mxu0 %v2865
        %3739 = vmatpush1.bf16.msra.mxu0 %v2864
        %3740 = vmatprep.subr.bf16.mxu0 %v2869
        %3741 = vmatpush1.bf16.msra.mxu0 %v2868
        %3742 = vmatprep.subr.bf16.mxu0 %v2873
        %3743 = vmatpush1.bf16.msra.mxu0 %v2872
        %3744 = vmatprep.subr.bf16.mxu0 %v2877
        %3745 = vmatpush1.bf16.msra.mxu0 %v2876
        %3746 = vmatprep.mubr.bf16.mxu0 %v877
        %3747 = vmatmul.mubr.bf16.gmra.mrb[0].mxu0 %v876
        %v3748 = vpop.f32.mrb[0].mxu0
        %v3749 = vadd.f32 %v3706, %v3748
        %v3750 = vpop.f32.mrb[0].mxu0
        %v3751 = vadd.f32 %v3708, %v3750
        %v3752 = vpop.f32.mrb[0].mxu0
        %v3753 = vadd.f32 %v3710, %v3752
        %v3754 = vpop.f32.mrb[0].mxu0
        %v3755 = vadd.f32 %v3712, %v3754
        %3756 = vdwg.mxu0
        %3757 = vmatprep.subr.bf16.mxu0 %v2881
        %3758 = vmatpush1.bf16.msra.mxu0 %v2880
        %3759 = vmatprep.subr.bf16.mxu0 %v2885
        %3760 = vmatpush1.bf16.msra.mxu0 %v2884
        %3761 = vmatprep.subr.bf16.mxu0 %v2889
        %3762 = vmatpush1.bf16.msra.mxu0 %v2888
        %3763 = vmatprep.subr.bf16.mxu0 %v2893
        %3764 = vmatpush1.bf16.msra.mxu0 %v2892
        %3765 = vmatprep.subr.bf16.mxu0 %v2897
        %3766 = vmatpush1.bf16.msra.mxu0 %v2896
        %3767 = vmatprep.subr.bf16.mxu0 %v2901
        %3768 = vmatpush1.bf16.msra.mxu0 %v2900
        %3769 = vmatprep.subr.bf16.mxu0 %v2905
        %3770 = vmatpush1.bf16.msra.mxu0 %v2904
        %3771 = vmatprep.subr.bf16.mxu0 %v2909
        %3772 = vmatpush1.bf16.msra.mxu0 %v2908
        %3773 = vmatprep.subr.bf16.mxu0 %v2913
        %3774 = vmatpush1.bf16.msra.mxu0 %v2912
        %3775 = vmatprep.subr.bf16.mxu0 %v2917
        %3776 = vmatpush1.bf16.msra.mxu0 %v2916
        %3777 = vmatprep.subr.bf16.mxu0 %v2921
        %3778 = vmatpush1.bf16.msra.mxu0 %v2920
        %3779 = vmatprep.subr.bf16.mxu0 %v2925
        %3780 = vmatpush1.bf16.msra.mxu0 %v2924
        %3781 = vmatprep.subr.bf16.mxu0 %v2929
        %3782 = vmatpush1.bf16.msra.mxu0 %v2928
        %3783 = vmatprep.subr.bf16.mxu0 %v2933
        %3784 = vmatpush1.bf16.msra.mxu0 %v2932
        %3785 = vmatprep.subr.bf16.mxu0 %v2937
        %3786 = vmatpush1.bf16.msra.mxu0 %v2936
        %3787 = vmatprep.subr.bf16.mxu0 %v2941
        %3788 = vmatpush1.bf16.msra.mxu0 %v2940
        %3789 = vmatprep.mubr.bf16.mxu0 %v879
        %3790 = vmatmul.mubr.bf16.gmra.mrb[0].mxu0 %v878
        %v3791 = vpop.f32.mrb[0].mxu0
        %v3792 = vadd.f32 %v3749, %v3791
        %v3793 = vpop.f32.mrb[0].mxu0
        %v3794 = vadd.f32 %v3751, %v3793
        %v3795 = vpop.f32.mrb[0].mxu0
        %v3796 = vadd.f32 %v3753, %v3795
        %v3797 = vpop.f32.mrb[0].mxu0
        %v3798 = vadd.f32 %v3755, %v3797
        %3799 = vdwg.mxu0
        %3800 = vmatprep.subr.bf16.mxu0 %v2435
        %3801 = vmatpush1.bf16.msra.mxu0 %v2434
        %3802 = vmatprep.subr.bf16.mxu0 %v2439
        %3803 = vmatpush1.bf16.msra.mxu0 %v2438
        %3804 = vmatprep.subr.bf16.mxu0 %v2443
        %3805 = vmatpush1.bf16.msra.mxu0 %v2442
        %3806 = vmatprep.subr.bf16.mxu0 %v2447
        %3807 = vmatpush1.bf16.msra.mxu0 %v2446
        %3808 = vmatprep.subr.bf16.mxu0 %v2451
        %3809 = vmatpush1.bf16.msra.mxu0 %v2450
        %3810 = vmatprep.subr.bf16.mxu0 %v2455
        %3811 = vmatpush1.bf16.msra.mxu0 %v2454
        %3812 = vmatprep.subr.bf16.mxu0 %v2459
        %3813 = vmatpush1.bf16.msra.mxu0 %v2458
        %3814 = vmatprep.subr.bf16.mxu0 %v2463
        %3815 = vmatpush1.bf16.msra.mxu0 %v2462
        %3816 = vmatprep.subr.bf16.mxu0 %v2467
        %3817 = vmatpush1.bf16.msra.mxu0 %v2466
        %3818 = vmatprep.subr.bf16.mxu0 %v2471
        %3819 = vmatpush1.bf16.msra.mxu0 %v2470
        %3820 = vmatprep.subr.bf16.mxu0 %v2475
        %3821 = vmatpush1.bf16.msra.mxu0 %v2474
        %3822 = vmatprep.subr.bf16.mxu0 %v2479
        %3823 = vmatpush1.bf16.msra.mxu0 %v2478
        %3824 = vmatprep.subr.bf16.mxu0 %v2483
        %3825 = vmatpush1.bf16.msra.mxu0 %v2482
        %3826 = vmatprep.subr.bf16.mxu0 %v2487
        %3827 = vmatpush1.bf16.msra.mxu0 %v2486
        %3828 = vmatprep.subr.bf16.mxu0 %v2491
        %3829 = vmatpush1.bf16.msra.mxu0 %v2490
        %3830 = vmatprep.subr.bf16.mxu0 %v2495
        %3831 = vmatpush1.bf16.msra.mxu0 %v2494
        %3832 = vmatprep.mubr.bf16.mxu0 %v865
        %3833 = vmatmul.mubr.bf16.gmra.mrb[0].mxu0 %v864
        %v3834 = vpop.f32.mrb[0].mxu0
        %v3835 = vadd.f32 %v807, %v3834
        %v3836 = vpop.f32.mrb[0].mxu0
        %v3837 = vadd.f32 %v811, %v3836
        %v3838 = vpop.f32.mrb[0].mxu0
        %v3839 = vadd.f32 %v807, %v3838
        %v3840 = vpop.f32.mrb[0].mxu0
        %v3841 = vadd.f32 %v811, %v3840
        %3842 = vdwg.mxu0
        %3843 = vmatprep.subr.bf16.mxu0 %v2499
        %3844 = vmatpush1.bf16.msra.mxu0 %v2498
        %3845 = vmatprep.subr.bf16.mxu0 %v2503
        %3846 = vmatpush1.bf16.msra.mxu0 %v2502
        %3847 = vmatprep.subr.bf16.mxu0 %v2507
        %3848 = vmatpush1.bf16.msra.mxu0 %v2506
        %3849 = vmatprep.subr.bf16.mxu0 %v2511
        %3850 = vmatpush1.bf16.msra.mxu0 %v2510
        %3851 = vmatprep.subr.bf16.mxu0 %v2515
        %3852 = vmatpush1.bf16.msra.mxu0 %v2514
        %3853 = vmatprep.subr.bf16.mxu0 %v2519
        %3854 = vmatpush1.bf16.msra.mxu0 %v2518
        %3855 = vmatprep.subr.bf16.mxu0 %v2523
        %3856 = vmatpush1.bf16.msra.mxu0 %v2522
        %3857 = vmatprep.subr.bf16.mxu0 %v2527
        %3858 = vmatpush1.bf16.msra.mxu0 %v2526
        %3859 = vmatprep.subr.bf16.mxu0 %v2531
        %3860 = vmatpush1.bf16.msra.mxu0 %v2530
        %3861 = vmatprep.subr.bf16.mxu0 %v2535
        %3862 = vmatpush1.bf16.msra.mxu0 %v2534
        %3863 = vmatprep.subr.bf16.mxu0 %v2539
        %3864 = vmatpush1.bf16.msra.mxu0 %v2538
        %3865 = vmatprep.subr.bf16.mxu0 %v2543
        %3866 = vmatpush1.bf16.msra.mxu0 %v2542
        %3867 = vmatprep.subr.bf16.mxu0 %v2547
        %3868 = vmatpush1.bf16.msra.mxu0 %v2546
        %3869 = vmatprep.subr.bf16.mxu0 %v2551
        %3870 = vmatpush1.bf16.msra.mxu0 %v2550
        %3871 = vmatprep.subr.bf16.mxu0 %v2555
        %3872 = vmatpush1.bf16.msra.mxu0 %v2554
        %3873 = vmatprep.subr.bf16.mxu0 %v2559
        %3874 = vmatpush1.bf16.msra.mxu0 %v2558
        %3875 = vmatprep.mubr.bf16.mxu0 %v867
        %3876 = vmatmul.mubr.bf16.gmra.mrb[0].mxu0 %v866
        %v3877 = vpop.f32.mrb[0].mxu0
        %v3878 = vadd.f32 %v3835, %v3877
        %v3879 = vpop.f32.mrb[0].mxu0
        %v3880 = vadd.f32 %v3837, %v3879
        %v3881 = vpop.f32.mrb[0].mxu0
        %v3882 = vadd.f32 %v3839, %v3881
        %v3883 = vpop.f32.mrb[0].mxu0
        %v3884 = vadd.f32 %v3841, %v3883
        %3885 = vdwg.mxu0
        %3886 = vmatprep.subr.bf16.mxu0 %v2563
        %3887 = vmatpush1.bf16.msra.mxu0 %v2562
        %3888 = vmatprep.subr.bf16.mxu0 %v2567
        %3889 = vmatpush1.bf16.msra.mxu0 %v2566
        %3890 = vmatprep.subr.bf16.mxu0 %v2571
        %3891 = vmatpush1.bf16.msra.mxu0 %v2570
        %3892 = vmatprep.subr.bf16.mxu0 %v2575
        %3893 = vmatpush1.bf16.msra.mxu0 %v2574
        %3894 = vmatprep.subr.bf16.mxu0 %v2579
        %3895 = vmatpush1.bf16.msra.mxu0 %v2578
        %3896 = vmatprep.subr.bf16.mxu0 %v2583
        %3897 = vmatpush1.bf16.msra.mxu0 %v2582
        %3898 = vmatprep.subr.bf16.mxu0 %v2587
        %3899 = vmatpush1.bf16.msra.mxu0 %v2586
        %3900 = vmatprep.subr.bf16.mxu0 %v2591
        %3901 = vmatpush1.bf16.msra.mxu0 %v2590
        %3902 = vmatprep.subr.bf16.mxu0 %v2595
        %3903 = vmatpush1.bf16.msra.mxu0 %v2594
        %3904 = vmatprep.subr.bf16.mxu0 %v2599
        %3905 = vmatpush1.bf16.msra.mxu0 %v2598
        %3906 = vmatprep.subr.bf16.mxu0 %v2603
        %3907 = vmatpush1.bf16.msra.mxu0 %v2602
        %3908 = vmatprep.subr.bf16.mxu0 %v2607
        %3909 = vmatpush1.bf16.msra.mxu0 %v2606
        %3910 = vmatprep.subr.bf16.mxu0 %v2611
        %3911 = vmatpush1.bf16.msra.mxu0 %v2610
        %3912 = vmatprep.subr.bf16.mxu0 %v2615
        %3913 = vmatpush1.bf16.msra.mxu0 %v2614
        %3914 = vmatprep.subr.bf16.mxu0 %v2619
        %3915 = vmatpush1.bf16.msra.mxu0 %v2618
        %3916 = vmatprep.subr.bf16.mxu0 %v2623
        %3917 = vmatpush1.bf16.msra.mxu0 %v2622
        %3918 = vmatprep.mubr.bf16.mxu0 %v869
        %3919 = vmatmul.mubr.bf16.gmra.mrb[0].mxu0 %v868
        %v3920 = vpop.f32.mrb[0].mxu0
        %v3921 = vadd.f32 %v3878, %v3920
        %v3922 = vpop.f32.mrb[0].mxu0
        %v3923 = vadd.f32 %v3880, %v3922
        %v3924 = vpop.f32.mrb[0].mxu0
        %v3925 = vadd.f32 %v3882, %v3924
        %v3926 = vpop.f32.mrb[0].mxu0
        %v3927 = vadd.f32 %v3884, %v3926
        %3928 = vdwg.mxu0
        %3929 = vmatprep.subr.bf16.mxu0 %v2627
        %3930 = vmatpush1.bf16.msra.mxu0 %v2626
        %3931 = vmatprep.subr.bf16.mxu0 %v2631
        %3932 = vmatpush1.bf16.msra.mxu0 %v2630
        %3933 = vmatprep.subr.bf16.mxu0 %v2635
        %3934 = vmatpush1.bf16.msra.mxu0 %v2634
        %3935 = vmatprep.subr.bf16.mxu0 %v2639
        %3936 = vmatpush1.bf16.msra.mxu0 %v2638
        %3937 = vmatprep.subr.bf16.mxu0 %v2643
        %3938 = vmatpush1.bf16.msra.mxu0 %v2642
        %3939 = vmatprep.subr.bf16.mxu0 %v2647
        %3940 = vmatpush1.bf16.msra.mxu0 %v2646
        %3941 = vmatprep.subr.bf16.mxu0 %v2651
        %3942 = vmatpush1.bf16.msra.mxu0 %v2650
        %3943 = vmatprep.subr.bf16.mxu0 %v2655
        %3944 = vmatpush1.bf16.msra.mxu0 %v2654
        %3945 = vmatprep.subr.bf16.mxu0 %v2659
        %3946 = vmatpush1.bf16.msra.mxu0 %v2658
        %3947 = vmatprep.subr.bf16.mxu0 %v2663
        %3948 = vmatpush1.bf16.msra.mxu0 %v2662
        %3949 = vmatprep.subr.bf16.mxu0 %v2667
        %3950 = vmatpush1.bf16.msra.mxu0 %v2666
        %3951 = vmatprep.subr.bf16.mxu0 %v2671
        %3952 = vmatpush1.bf16.msra.mxu0 %v2670
        %3953 = vmatprep.subr.bf16.mxu0 %v2675
        %3954 = vmatpush1.bf16.msra.mxu0 %v2674
        %3955 = vmatprep.subr.bf16.mxu0 %v2679
        %3956 = vmatpush1.bf16.msra.mxu0 %v2678
        %3957 = vmatprep.subr.bf16.mxu0 %v2683
        %3958 = vmatpush1.bf16.msra.mxu0 %v2682
        %3959 = vmatprep.subr.bf16.mxu0 %v2687
        %3960 = vmatpush1.bf16.msra.mxu0 %v2686
        %3961 = vmatprep.mubr.bf16.mxu0 %v871
        %3962 = vmatmul.mubr.bf16.gmra.mrb[0].mxu0 %v870
        %v3963 = vpop.f32.mrb[0].mxu0
        %v3964 = vadd.f32 %v3921, %v3963
        %v3965 = vpop.f32.mrb[0].mxu0
        %v3966 = vadd.f32 %v3923, %v3965
        %v3967 = vpop.f32.mrb[0].mxu0
        %v3968 = vadd.f32 %v3925, %v3967
        %v3969 = vpop.f32.mrb[0].mxu0
        %v3970 = vadd.f32 %v3927, %v3969
        %3971 = vdwg.mxu0
        %3972 = vmatprep.subr.bf16.mxu0 %v2691
        %3973 = vmatpush1.bf16.msra.mxu0 %v2690
        %3974 = vmatprep.subr.bf16.mxu0 %v2695
        %3975 = vmatpush1.bf16.msra.mxu0 %v2694
        %3976 = vmatprep.subr.bf16.mxu0 %v2699
        %3977 = vmatpush1.bf16.msra.mxu0 %v2698
        %3978 = vmatprep.subr.bf16.mxu0 %v2703
        %3979 = vmatpush1.bf16.msra.mxu0 %v2702
        %3980 = vmatprep.subr.bf16.mxu0 %v2707
        %3981 = vmatpush1.bf16.msra.mxu0 %v2706
        %3982 = vmatprep.subr.bf16.mxu0 %v2711
        %3983 = vmatpush1.bf16.msra.mxu0 %v2710
        %3984 = vmatprep.subr.bf16.mxu0 %v2715
        %3985 = vmatpush1.bf16.msra.mxu0 %v2714
        %3986 = vmatprep.subr.bf16.mxu0 %v2719
        %3987 = vmatpush1.bf16.msra.mxu0 %v2718
        %3988 = vmatprep.subr.bf16.mxu0 %v2723
        %3989 = vmatpush1.bf16.msra.mxu0 %v2722
        %3990 = vmatprep.subr.bf16.mxu0 %v2727
        %3991 = vmatpush1.bf16.msra.mxu0 %v2726
        %3992 = vmatprep.subr.bf16.mxu0 %v2731
        %3993 = vmatpush1.bf16.msra.mxu0 %v2730
        %3994 = vmatprep.subr.bf16.mxu0 %v2735
        %3995 = vmatpush1.bf16.msra.mxu0 %v2734
        %3996 = vmatprep.subr.bf16.mxu0 %v2739
        %3997 = vmatpush1.bf16.msra.mxu0 %v2738
        %3998 = vmatprep.subr.bf16.mxu0 %v2743
        %3999 = vmatpush1.bf16.msra.mxu0 %v2742
        %4000 = vmatprep.subr.bf16.mxu0 %v2747
        %4001 = vmatpush1.bf16.msra.mxu0 %v2746
        %4002 = vmatprep.subr.bf16.mxu0 %v2751
        %4003 = vmatpush1.bf16.msra.mxu0 %v2750
        %4004 = vmatprep.mubr.bf16.mxu0 %v873
        %4005 = vmatmul.mubr.bf16.gmra.mrb[0].mxu0 %v872
        %v4006 = vpop.f32.mrb[0].mxu0
        %v4007 = vadd.f32 %v3964, %v4006
        %v4008 = vpop.f32.mrb[0].mxu0
        %v4009 = vadd.f32 %v3966, %v4008
        %v4010 = vpop.f32.mrb[0].mxu0
        %v4011 = vadd.f32 %v3968, %v4010
        %v4012 = vpop.f32.mrb[0].mxu0
        %v4013 = vadd.f32 %v3970, %v4012
        %4014 = vdwg.mxu0
        %4015 = vmatprep.subr.bf16.mxu0 %v2755
        %4016 = vmatpush1.bf16.msra.mxu0 %v2754
        %4017 = vmatprep.subr.bf16.mxu0 %v2759
        %4018 = vmatpush1.bf16.msra.mxu0 %v2758
        %4019 = vmatprep.subr.bf16.mxu0 %v2763
        %4020 = vmatpush1.bf16.msra.mxu0 %v2762
        %4021 = vmatprep.subr.bf16.mxu0 %v2767
        %4022 = vmatpush1.bf16.msra.mxu0 %v2766
        %4023 = vmatprep.subr.bf16.mxu0 %v2771
        %4024 = vmatpush1.bf16.msra.mxu0 %v2770
        %4025 = vmatprep.subr.bf16.mxu0 %v2775
        %4026 = vmatpush1.bf16.msra.mxu0 %v2774
        %4027 = vmatprep.subr.bf16.mxu0 %v2779
        %4028 = vmatpush1.bf16.msra.mxu0 %v2778
        %4029 = vmatprep.subr.bf16.mxu0 %v2783
        %4030 = vmatpush1.bf16.msra.mxu0 %v2782
        %4031 = vmatprep.subr.bf16.mxu0 %v2787
        %4032 = vmatpush1.bf16.msra.mxu0 %v2786
        %4033 = vmatprep.subr.bf16.mxu0 %v2791
        %4034 = vmatpush1.bf16.msra.mxu0 %v2790
        %4035 = vmatprep.subr.bf16.mxu0 %v2795
        %4036 = vmatpush1.bf16.msra.mxu0 %v2794
        %4037 = vmatprep.subr.bf16.mxu0 %v2799
        %4038 = vmatpush1.bf16.msra.mxu0 %v2798
        %4039 = vmatprep.subr.bf16.mxu0 %v2803
        %4040 = vmatpush1.bf16.msra.mxu0 %v2802
        %4041 = vmatprep.subr.bf16.mxu0 %v2807
        %4042 = vmatpush1.bf16.msra.mxu0 %v2806
        %4043 = vmatprep.subr.bf16.mxu0 %v2811
        %4044 = vmatpush1.bf16.msra.mxu0 %v2810
        %4045 = vmatprep.subr.bf16.mxu0 %v2815
        %4046 = vmatpush1.bf16.msra.mxu0 %v2814
        %4047 = vmatprep.mubr.bf16.mxu0 %v875
        %4048 = vmatmul.mubr.bf16.gmra.mrb[0].mxu0 %v874
        %v4049 = vpop.f32.mrb[0].mxu0
        %v4050 = vadd.f32 %v4007, %v4049
        %v4051 = vpop.f32.mrb[0].mxu0
        %v4052 = vadd.f32 %v4009, %v4051
        %v4053 = vpop.f32.mrb[0].mxu0
        %v4054 = vadd.f32 %v4011, %v4053
        %v4055 = vpop.f32.mrb[0].mxu0
        %v4056 = vadd.f32 %v4013, %v4055
        %4057 = vdwg.mxu0
        %4058 = vmatprep.subr.bf16.mxu0 %v2819
        %4059 = vmatpush1.bf16.msra.mxu0 %v2818
        %4060 = vmatprep.subr.bf16.mxu0 %v2823
        %4061 = vmatpush1.bf16.msra.mxu0 %v2822
        %4062 = vmatprep.subr.bf16.mxu0 %v2827
        %4063 = vmatpush1.bf16.msra.mxu0 %v2826
        %4064 = vmatprep.subr.bf16.mxu0 %v2831
        %4065 = vmatpush1.bf16.msra.mxu0 %v2830
        %4066 = vmatprep.subr.bf16.mxu0 %v2835
        %4067 = vmatpush1.bf16.msra.mxu0 %v2834
        %4068 = vmatprep.subr.bf16.mxu0 %v2839
        %4069 = vmatpush1.bf16.msra.mxu0 %v2838
        %4070 = vmatprep.subr.bf16.mxu0 %v2843
        %4071 = vmatpush1.bf16.msra.mxu0 %v2842
        %4072 = vmatprep.subr.bf16.mxu0 %v2847
        %4073 = vmatpush1.bf16.msra.mxu0 %v2846
        %4074 = vmatprep.subr.bf16.mxu0 %v2851
        %4075 = vmatpush1.bf16.msra.mxu0 %v2850
        %4076 = vmatprep.subr.bf16.mxu0 %v2855
        %4077 = vmatpush1.bf16.msra.mxu0 %v2854
        %4078 = vmatprep.subr.bf16.mxu0 %v2859
        %4079 = vmatpush1.bf16.msra.mxu0 %v2858
        %4080 = vmatprep.subr.bf16.mxu0 %v2863
        %4081 = vmatpush1.bf16.msra.mxu0 %v2862
        %4082 = vmatprep.subr.bf16.mxu0 %v2867
        %4083 = vmatpush1.bf16.msra.mxu0 %v2866
        %4084 = vmatprep.subr.bf16.mxu0 %v2871
        %4085 = vmatpush1.bf16.msra.mxu0 %v2870
        %4086 = vmatprep.subr.bf16.mxu0 %v2875
        %4087 = vmatpush1.bf16.msra.mxu0 %v2874
        %4088 = vmatprep.subr.bf16.mxu0 %v2879
        %4089 = vmatpush1.bf16.msra.mxu0 %v2878
        %4090 = vmatprep.mubr.bf16.mxu0 %v877
        %4091 = vmatmul.mubr.bf16.gmra.mrb[0].mxu0 %v876
        %v4092 = vpop.f32.mrb[0].mxu0
        %v4093 = vadd.f32 %v4050, %v4092
        %v4094 = vpop.f32.mrb[0].mxu0
        %v4095 = vadd.f32 %v4052, %v4094
        %v4096 = vpop.f32.mrb[0].mxu0
        %v4097 = vadd.f32 %v4054, %v4096
        %v4098 = vpop.f32.mrb[0].mxu0
        %v4099 = vadd.f32 %v4056, %v4098
        %4100 = vdwg.mxu0
        %4101 = vmatprep.subr.bf16.mxu0 %v2883
        %4102 = vmatpush1.bf16.msra.mxu0 %v2882
        %4103 = vmatprep.subr.bf16.mxu0 %v2887
        %4104 = vmatpush1.bf16.msra.mxu0 %v2886
        %4105 = vmatprep.subr.bf16.mxu0 %v2891
        %4106 = vmatpush1.bf16.msra.mxu0 %v2890
        %4107 = vmatprep.subr.bf16.mxu0 %v2895
        %4108 = vmatpush1.bf16.msra.mxu0 %v2894
        %4109 = vmatprep.subr.bf16.mxu0 %v2899
        %4110 = vmatpush1.bf16.msra.mxu0 %v2898
        %4111 = vmatprep.subr.bf16.mxu0 %v2903
        %4112 = vmatpush1.bf16.msra.mxu0 %v2902
        %4113 = vmatprep.subr.bf16.mxu0 %v2907
        %4114 = vmatpush1.bf16.msra.mxu0 %v2906
        %4115 = vmatprep.subr.bf16.mxu0 %v2911
        %4116 = vmatpush1.bf16.msra.mxu0 %v2910
        %4117 = vmatprep.subr.bf16.mxu0 %v2915
        %4118 = vmatpush1.bf16.msra.mxu0 %v2914
        %4119 = vmatprep.subr.bf16.mxu0 %v2919
        %4120 = vmatpush1.bf16.msra.mxu0 %v2918
        %4121 = vmatprep.subr.bf16.mxu0 %v2923
        %4122 = vmatpush1.bf16.msra.mxu0 %v2922
        %4123 = vmatprep.subr.bf16.mxu0 %v2927
        %4124 = vmatpush1.bf16.msra.mxu0 %v2926
        %4125 = vmatprep.subr.bf16.mxu0 %v2931
        %4126 = vmatpush1.bf16.msra.mxu0 %v2930
        %4127 = vmatprep.subr.bf16.mxu0 %v2935
        %4128 = vmatpush1.bf16.msra.mxu0 %v2934
        %4129 = vmatprep.subr.bf16.mxu0 %v2939
        %4130 = vmatpush1.bf16.msra.mxu0 %v2938
        %4131 = vmatprep.subr.bf16.mxu0 %v2943
        %4132 = vmatpush1.bf16.msra.mxu0 %v2942
        %4133 = vmatprep.mubr.bf16.mxu0 %v879
        %4134 = vmatmul.mubr.bf16.gmra.mrb[0].mxu0 %v878
        %v4135 = vpop.f32.mrb[0].mxu0
        %v4136 = vadd.f32 %v4093, %v4135
        %v4137 = vpop.f32.mrb[0].mxu0
        %v4138 = vadd.f32 %v4095, %v4137
        %v4139 = vpop.f32.mrb[0].mxu0
        %v4140 = vadd.f32 %v4097, %v4139
        %v4141 = vpop.f32.mrb[0].mxu0
        %v4142 = vadd.f32 %v4099, %v4141
        %4143 = vdwg.mxu0
        %v4144 = vmax.f32 %v3792, 0.0
        %v4145 = vmax.f32 %v3794, 0.0
        %v4146 = vmax.f32 %v4136, 0.0
        %v4147 = vmax.f32 %v4138, 0.0
        %v4148 = vmax.f32 %v3796, 0.0
        %v4149 = vmax.f32 %v3798, 0.0
        %v4150 = vmax.f32 %v4140, 0.0
        %v4151 = vmax.f32 %v4142, 0.0
        %4152 = vst [vmem:[%s254] sm:$0xff] %v4144
        %4153 = vst [vmem:[%s254 + $0x8] sm:$0xff] %v4145
        %4154 = vst [vmem:[%s254 + $0x10] sm:$0xff] %v4146
        %4155 = vst [vmem:[%s254 + $0x18] sm:$0xff] %v4147
        %4156 = vst [vmem:[%s254 + $0x20] sm:$0xff] %v4148
        %4157 = vst [vmem:[%s254 + $0x28] sm:$0xff] %v4149
        %4158 = vst [vmem:[%s254 + $0x30] sm:$0xff] %v4150
        %4159 = vst [vmem:[%s254 + $0x38] sm:$0xff] %v4151
        %s4160 = sand.u32 %s120, 1
        %s4161 = sand.u32 %s120, 1
        %s4162 = smul.addr %s4161, 64
        %s4163 = scalar_lea.vmem [#allocation6], %s4162
        // Predicated region
        $region41: #{decoder_forward_fused.5} parent=31 // pred_check
          %p4164 = pneg %p130
        $region42: #{decoder_forward_fused.5} parent=31 // pred_check_branch
          %4166 = sbr.rel (%p4164) target = $region44
        $region43: #{decoder_forward_fused.5} parent=31 // pred_region
          %s4167 = smul.u32 2, %s24
          %s4168 = smul.u32 4, %s25
          %s4169 = smul.addr %s4167, 16
          %s4170 = sadd.s32 %s4168, %s4169
          %s4171 = smul.addr %s4170, 8
          %s4172 = scalar_lea.vmem %s3, %s4171
          // Predicated region
          $region45: #{decoder_forward_fused.5} parent=43 // pred_check
            _
          $region46: #{decoder_forward_fused.5} parent=43 // pred_check_branch
            %4174 = sbr.rel (0) target = $region48
          $region47: #{decoder_forward_fused.5} parent=43 // pred_region
            // Predicated region
            $region49: #{decoder_forward_fused.5} parent=47 // pred_check
              _
            $region50: #{decoder_forward_fused.5} parent=47 // pred_check_branch
              %4176 = sbr.rel (0) target = $region52
            $region51: #{decoder_forward_fused.5} parent=47 // pred_region
              loop: start=0, step=1, limit=1
              $region53: #{decoder_forward_fused.5} parent=51 // loop_pre_header
                _
              $region54: #{decoder_forward_fused.5} parent=51 // loop_header
                %s4178 = sphi 0, %s4182
                %p4179 = scmp.ge.s32.totalorder %s4178, 1
                %s4183 = sphi %s4163, %s4163
                %s4184 = sphi %s4172, %s4172
              $region55: #{decoder_forward_fused.5} parent=51 // loop_header_branch
                %4181 = sbr.rel (%p4179) target = $region59
              $region56: #{decoder_forward_fused.5} parent=51 // loop_body
                %v4185 = vld [vmem:[%s4183] sm:$0xff]
                %4186 = vst [vmem:[%s4184] sm:$0xff] %v4185
                %v4187 = vld [vmem:[%s4183 + $0x8] sm:$0xff]
                %4188 = vst [vmem:[%s4184 + $0x8] sm:$0xff] %v4187
                %v4189 = vld [vmem:[%s4183 + $0x10] sm:$0xff]
                %4190 = vst [vmem:[%s4184 + $0x10] sm:$0xff] %v4189
                %v4191 = vld [vmem:[%s4183 + $0x18] sm:$0xff]
                %4192 = vst [vmem:[%s4184 + $0x18] sm:$0xff] %v4191
                %v4193 = vld [vmem:[%s4183 + $0x20] sm:$0xff]
                %4194 = vst [vmem:[%s4184 + $0x80] sm:$0xff] %v4193
                %v4195 = vld [vmem:[%s4183 + $0x28] sm:$0xff]
                %4196 = vst [vmem:[%s4184 + $0x88] sm:$0xff] %v4195
                %v4197 = vld [vmem:[%s4183 + $0x30] sm:$0xff]
                %4198 = vst [vmem:[%s4184 + $0x90] sm:$0xff] %v4197
                %v4199 = vld [vmem:[%s4183 + $0x38] sm:$0xff]
                %4200 = vst [vmem:[%s4184 + $0x98] sm:$0xff] %v4199
              $region57: #{decoder_forward_fused.5} parent=51 // loop_footer
                %s4182 = sadd.s32 1, %s4178
              $region58: #{decoder_forward_fused.5} parent=51 // loop_footer_branch
                %4177 = sbr.rel target = $region54
              $region59: #{decoder_forward_fused.5} parent=51 // loop_exit
                _
            $region52: #{decoder_forward_fused.5} parent=47 // pred_fallthru
              _
            // Predicated region
            $region60: #{decoder_forward_fused.5} parent=47 // pred_check
              _
            $region61: #{decoder_forward_fused.5} parent=47 // pred_check_branch
              %4202 = sbr.rel target = $region63
            $region62: #{decoder_forward_fused.5} parent=47 // pred_region
              _
            $region63: #{decoder_forward_fused.5} parent=47 // pred_fallthru
              _
          $region48: #{decoder_forward_fused.5} parent=43 // pred_fallthru
            _
          %4203 = vnop
        $region44: #{decoder_forward_fused.5} parent=31 // pred_fallthru
          _
      $region32: #{decoder_forward_fused.5} parent=5 // pred_fallthru
        _
      %p4204 = scmp.le.s32.totalorder 2, %s15
      // Predicated region
      $region64: #{decoder_forward_fused.5} parent=5 // pred_check
        %p4205 = pneg %p4204
      $region65: #{decoder_forward_fused.5} parent=5 // pred_check_branch
        %4207 = sbr.rel (%p4205) target = $region67
      $region66: #{decoder_forward_fused.5} parent=5 // pred_region
        %s4208 = ssub.s32 %s15, 2
        // Predicated region
        $region68: #{decoder_forward_fused.5} parent=66 // pred_check
          %p4209 = pneg %p136
        $region69: #{decoder_forward_fused.5} parent=66 // pred_check_branch
          %4211 = sbr.rel (%p4209) target = $region71
        $region70: #{decoder_forward_fused.5} parent=66 // pred_region
          %s4212 = sand.u32 %s121, 1
          %s4213 = sand.u32 %s121, 1
          %s4214 = smul.addr %s4213, 64
          %s4215 = scalar_lea.vmem [#allocation6], %s4214
        $region71: #{decoder_forward_fused.5} parent=66 // pred_fallthru
          _
      $region67: #{decoder_forward_fused.5} parent=5 // pred_fallthru
        _
    $region6: #{decoder_forward_fused.5} parent=1 // loop_footer
      %s19 = sadd.s32 1, %s15
    $region7: #{decoder_forward_fused.5} parent=1 // loop_footer_branch
      %14 = sbr.rel target = $region3
    $region8: #{decoder_forward_fused.5} parent=1 // loop_exit
      _
    %4216 = vsyncpa [#allocation3], 1
    %s4217 = scalar_lea.sflag [#allocation3], 1
    %4218 = vsyncpa %s4217, 1
    %4219 = vsyncpa [#allocation5], 1
    %s4220 = scalar_lea.sflag [#allocation5], 1
    %4221 = vsyncpa %s4220, 1

// kernel: decoder_forward_fused.9
$region0: #{decoder_forward_fused.9}
  #allocation0 [shape = 'u32[]', space=smem, size = 0x4, offset = 0x4, fixed_abs, tag = 'smem constant byte address 0x4 - core index']
  #allocation1 [shape = 'u32[144,128]{1,0:T(1,128)}', space=vmem, size = 0x12000, scoped, tag = 'internal scratch']
  %s0 = inlined_call_operand.vmem [shape: bf16[2048,128], index: 0, kind: input, shape index: {}]
  %s1 = inlined_call_operand.vmem [shape: bf16[128,128], index: 1, kind: input, shape index: {}]
  %s2 = inlined_call_operand.vmem [shape: f32[1,128], index: 2, kind: input, shape index: {}]
  %s3 = inlined_call_operand.vmem [shape: f32[2048,128], index: 3, kind: output, shape index: {}]
  %s4 = sld [smem:[#allocation0]]
  $region45: #{decoder_forward_fused.9} parent=0
    _
  %s6 = ssub.s32 1, %s4
  %s7 = scalar_select 0, %s6, %s4
  loop: start=0, step=1, limit=10
  $region2: #{decoder_forward_fused.9} parent=0 // loop_pre_header
    _
  $region3: #{decoder_forward_fused.9} parent=0 // loop_header
    %s9 = sphi 0, %s13
    %p10 = scmp.ge.s32.totalorder %s9, 10
    %s16 = sphi 0, %s28
    %s17 = sphi 0, %s24
    %s18 = sphi 0, %s16
    %s19 = sphi 0, %s17
    %s20 = sphi 0, %s18
    %s21 = sphi 0, %s19
    %s31 = sphi 0, %s33
    %s34 = sphi 0, %s31
    %s35 = sphi 0, %s34
    %s51 = sphi 0, %s35
    %s57 = sphi 0, %s59
    %s60 = sphi 0, %s57
    %s61 = sphi 0, %s60
    %s77 = sphi 0, %s61
    %s83 = sphi 0, %s85
    %s86 = sphi 0, %s83
    %s87 = sphi 0, %s86
    %s103 = sphi 0, %s87
    %s111 = sphi 0, %s113
    %s114 = sphi 0, %s111
    %s115 = sphi 0, %s114
    %s131 = sphi 0, %s115
  $region4: #{decoder_forward_fused.9} parent=0 // loop_header_branch
    %12 = sbr.rel (%p10) target = $region8
  $region5: #{decoder_forward_fused.9} parent=0 // loop_body
    %s14 = ssub.s32 %s9, 1
    %s15 = ssub.s32 %s9, 2
    %s22 = sadd.s32 1, %s17
    %p23 = scmp.ge.s32.totalorder %s22, 1
    %s24 = scalar_select %p23, 0, %s22
    %s25 = sadd.s32 1, %s16
    %s26 = scalar_select %p23, %s25, %s16
    %p27 = scmp.ge.s32.totalorder %s26, 8
    %s28 = scalar_select %p27, 0, %s26
    %s29 = ssub.s32 %s16, %s28
    %p30 = scmp.eq.s32.totalorder %s29, 0
    %s32 = sadd.s32 %s31, 1
    %s33 = scalar_select %p30, %s31, %s32
    %p36 = pneg %p30
    %p37 = scmp.eq.s32.totalorder %s9, 7
    %p38 = por %p36, %p37
    %p39 = scmp.ne.s32.totalorder %s31, %s34
    %p40 = scmp.eq.s32.totalorder %s9, 0
    %p41 = por %p39, %p40
    %p42 = scmp.ne.s32.totalorder %s31, %s34
    %p43 = scmp.eq.s32.totalorder %s14, 7
    %p44 = por %p42, %p43
    %p45 = scmp.ne.s32.totalorder %s34, %s35
    %p46 = scmp.eq.s32.totalorder %s14, 0
    %p47 = por %p45, %p46
    %p48 = scmp.ne.s32.totalorder %s34, %s35
    %p49 = scmp.eq.s32.totalorder %s15, 7
    %p50 = por %p48, %p49
    %p52 = scmp.ne.s32.totalorder %s35, %s51
    %p53 = scmp.eq.s32.totalorder %s15, 0
    %p54 = por %p52, %p53
    %s55 = ssub.s32 %s17, %s24
    %p56 = scmp.eq.s32.totalorder %s55, 0
    %s58 = sadd.s32 %s57, 1
    %s59 = scalar_select %p56, %s57, %s58
    %p62 = pneg %p56
    %p63 = scmp.eq.s32.totalorder %s9, 7
    %p64 = por %p62, %p63
    %p65 = scmp.ne.s32.totalorder %s57, %s60
    %p66 = scmp.eq.s32.totalorder %s9, 0
    %p67 = por %p65, %p66
    %p68 = scmp.ne.s32.totalorder %s57, %s60
    %p69 = scmp.eq.s32.totalorder %s14, 7
    %p70 = por %p68, %p69
    %p71 = scmp.ne.s32.totalorder %s60, %s61
    %p72 = scmp.eq.s32.totalorder %s14, 0
    %p73 = por %p71, %p72
    %p74 = scmp.ne.s32.totalorder %s60, %s61
    %p75 = scmp.eq.s32.totalorder %s15, 7
    %p76 = por %p74, %p75
    %p78 = scmp.ne.s32.totalorder %s61, %s77
    %p79 = scmp.eq.s32.totalorder %s15, 0
    %p80 = por %p78, %p79
    %s81 = ssub.s32 %s17, %s24
    %p82 = scmp.eq.s32.totalorder %s81, 0
    %s84 = sadd.s32 %s83, 1
    %s85 = scalar_select %p82, %s83, %s84
    %p88 = pneg %p82
    %p89 = scmp.eq.s32.totalorder %s9, 7
    %p90 = por %p88, %p89
    %p91 = scmp.ne.s32.totalorder %s83, %s86
    %p92 = scmp.eq.s32.totalorder %s9, 0
    %p93 = por %p91, %p92
    %p94 = scmp.ne.s32.totalorder %s83, %s86
    %p95 = scmp.eq.s32.totalorder %s14, 7
    %p96 = por %p94, %p95
    %p97 = scmp.ne.s32.totalorder %s86, %s87
    %p98 = scmp.eq.s32.totalorder %s14, 0
    %p99 = por %p97, %p98
    %p100 = scmp.ne.s32.totalorder %s86, %s87
    %p101 = scmp.eq.s32.totalorder %s15, 7
    %p102 = por %p100, %p101
    %p104 = scmp.ne.s32.totalorder %s87, %s103
    %p105 = scmp.eq.s32.totalorder %s15, 0
    %p106 = por %p104, %p105
    %s107 = ssub.s32 %s16, %s28
    %s108 = ssub.s32 %s17, %s24
    %s109 = sor.u32 %s107, %s108
    %p110 = scmp.eq.s32.totalorder %s109, 0
    %s112 = sadd.s32 %s111, 1
    %s113 = scalar_select %p110, %s111, %s112
    %p116 = pneg %p110
    %p117 = scmp.eq.s32.totalorder %s9, 7
    %p118 = por %p116, %p117
    %p119 = scmp.ne.s32.totalorder %s111, %s114
    %p120 = scmp.eq.s32.totalorder %s9, 0
    %p121 = por %p119, %p120
    %p122 = scmp.ne.s32.totalorder %s111, %s114
    %p123 = scmp.eq.s32.totalorder %s14, 7
    %p124 = por %p122, %p123
    %p125 = scmp.ne.s32.totalorder %s114, %s115
    %p126 = scmp.eq.s32.totalorder %s14, 0
    %p127 = por %p125, %p126
    %p128 = scmp.ne.s32.totalorder %s114, %s115
    %p129 = scmp.eq.s32.totalorder %s15, 7
    %p130 = por %p128, %p129
    %p132 = scmp.ne.s32.totalorder %s115, %s131
    %p133 = scmp.eq.s32.totalorder %s15, 0
    %p134 = por %p132, %p133
    %p135 = scmp.le.s32.totalorder 1, %s9
    %p136 = scmp.lt.s32.totalorder %s9, 9
    %p137 = pnand %p135, %p136
    %p138 = pneg %p137
    // Predicated region
    $region9: #{decoder_forward_fused.9} parent=5 // pred_check
      _
    $region10: #{decoder_forward_fused.9} parent=5 // pred_check_branch
      %140 = sbr.rel (%p137) target = $region12
    $region11: #{decoder_forward_fused.9} parent=5 // pred_region
      %s141 = ssub.s32 %s9, 1
      // Predicated region
      $region13: #{decoder_forward_fused.9} parent=11 // pred_check
        %p142 = pneg %p73
      $region14: #{decoder_forward_fused.9} parent=11 // pred_check_branch
        %144 = sbr.rel (%p142) target = $region16
      $region15: #{decoder_forward_fused.9} parent=11 // pred_region
        %p145 = scmp.lt.s32.totalorder %s19, 0
        %s146 = scalar_select %p145, %s19, 0
        %s147 = smul.addr %s146, 4
        %s148 = scalar_lea.vmem %s1, %s147
      $region16: #{decoder_forward_fused.9} parent=11 // pred_fallthru
        _
      // Predicated region
      $region17: #{decoder_forward_fused.9} parent=11 // pred_check
        %p149 = pneg %p99
      $region18: #{decoder_forward_fused.9} parent=11 // pred_check_branch
        %151 = sbr.rel (%p149) target = $region20
      $region19: #{decoder_forward_fused.9} parent=11 // pred_region
        %p152 = scmp.lt.s32.totalorder %s19, 0
        %s153 = scalar_select %p152, %s19, 0
        %s154 = scalar_lea.vmem %s2, %s153
      $region20: #{decoder_forward_fused.9} parent=11 // pred_fallthru
        _
    $region12: #{decoder_forward_fused.9} parent=5 // pred_fallthru
      _
    %p155 = scmp.lt.s32.totalorder %s9, 8
    // Predicated region
    $region21: #{decoder_forward_fused.9} parent=5 // pred_check
      %p156 = pneg %p155
    $region22: #{decoder_forward_fused.9} parent=5 // pred_check_branch
      %158 = sbr.rel (%p156) target = $region24
    $region23: #{decoder_forward_fused.9} parent=5 // pred_region
      // Predicated region
      $region25: #{decoder_forward_fused.9} parent=23 // pred_check
        %p159 = pneg %p41
      $region26: #{decoder_forward_fused.9} parent=23 // pred_check_branch
        %161 = sbr.rel (%p159) target = $region28
      $region27: #{decoder_forward_fused.9} parent=23 // pred_region
        %s162 = smul.u32 32, %s16
        %p163 = scmp.lt.s32.totalorder %s162, 255
        %s164 = scalar_select %p163, %s162, 255
        %s165 = smul.addr %s164, 4
        %s166 = scalar_lea.vmem %s0, %s165
        %s167 = smul.u32 32, %s16
      $region28: #{decoder_forward_fused.9} parent=23 // pred_fallthru
        _
    $region24: #{decoder_forward_fused.9} parent=5 // pred_fallthru
      _
    %p168 = scmp.le.s32.totalorder 1, %s9
    %p169 = scmp.lt.s32.totalorder %s9, 9
    %p170 = pnand %p168, %p169
    %p171 = pneg %p170
    // Predicated region
    $region29: #{decoder_forward_fused.9} parent=5 // pred_check
      _
    $region30: #{decoder_forward_fused.9} parent=5 // pred_check_branch
      %173 = sbr.rel (%p170) target = $region32
    $region31: #{decoder_forward_fused.9} parent=5 // pred_region
      %s174 = ssub.s32 %s9, 1
      %s175 = smul.u32 32, %s18
      %p176 = scmp.lt.s32.totalorder %s175, 255
      %s177 = scalar_select %p176, %s175, 255
      %s178 = smul.addr %s177, 4
      %s179 = scalar_lea.vmem %s0, %s178
      %p180 = pneg %p47
      %p181 = pneg %p44
      %p182 = scmp.lt.s32.totalorder %s19, 0
      %s183 = scalar_select %p182, %s19, 0
      %s184 = smul.addr %s183, 4
      %s185 = scalar_lea.vmem %s1, %s184
      %p186 = pneg %p73
      %p187 = pneg %p70
      %p188 = scmp.lt.s32.totalorder %s19, 0
      %s189 = scalar_select %p188, %s19, 0
      %s190 = scalar_lea.vmem %s2, %s189
      %p191 = pneg %p99
      %p192 = pneg %p96
      %p193 = pneg %p127
      %p194 = pneg %p124
      %s195 = smul.u32 32, %s18
      %p196 = scmp.lt.s32.totalorder %s195, 255
      %s197 = scalar_select %p196, %s195, 255
      %p198 = scmp.lt.s32.totalorder %s19, 0
      %s199 = scalar_select %p198, %s19, 0
      %s200 = sadd.s32 %s199, %s197
      %s201 = smul.addr %s200, 8
      %s202 = scalar_lea.vmem %s3, %s201
      %s203 = smul.u32 32, %s18
      %p204 = scmp.lt.s32.totalorder %s203, 255
      %s205 = scalar_select %p204, %s203, 255
      %s206 = smul.addr %s205, 4
      %s207 = scalar_lea.vmem %s0, %s206
      %s208 = smul.u32 32, %s18
      %p209 = scmp.lt.s32.totalorder %s19, 0
      %s210 = scalar_select %p209, %s19, 0
      %s211 = smul.addr %s210, 4
      %s212 = scalar_lea.vmem %s1, %s211
      %p213 = scmp.lt.s32.totalorder %s19, 0
      %s214 = scalar_select %p213, %s19, 0
      %s215 = scalar_lea.vmem %s2, %s214
      %s216 = smul.u32 32, %s18
      %p217 = scmp.lt.s32.totalorder %s216, 255
      %s218 = scalar_select %p217, %s216, 255
      %p219 = scmp.lt.s32.totalorder %s19, 0
      %s220 = scalar_select %p219, %s19, 0
      %s221 = sadd.s32 %s220, %s218
      %s222 = smul.addr %s221, 8
      %s223 = scalar_lea.vmem %s3, %s222
      %s224 = smul.u32 32, %s18
      %v226 = vld [vmem:[%s207] sm:$0xf]
      %v227 = vld [vmem:[%s207 + $0x4] sm:$0xf]
      %v228 = vld [vmem:[%s207 + $0x8] sm:$0xf]
      %v229 = vld [vmem:[%s207 + $0xc] sm:$0xf]
      %v230 = vld [vmem:[%s207 + $0x10] sm:$0xf]
      %v231 = vld [vmem:[%s207 + $0x14] sm:$0xf]
      %v232 = vld [vmem:[%s207 + $0x18] sm:$0xf]
      %v233 = vld [vmem:[%s207 + $0x1c] sm:$0xf]
      %v234 = vld [vmem:[%s207 + $0x20] sm:$0xf]
      %v235 = vld [vmem:[%s207 + $0x24] sm:$0xf]
      %v236 = vld [vmem:[%s207 + $0x28] sm:$0xf]
      %v237 = vld [vmem:[%s207 + $0x2c] sm:$0xf]
      %v238 = vld [vmem:[%s207 + $0x30] sm:$0xf]
      %v239 = vld [vmem:[%s207 + $0x34] sm:$0xf]
      %v240 = vld [vmem:[%s207 + $0x38] sm:$0xf]
      %v241 = vld [vmem:[%s207 + $0x3c] sm:$0xf]
      %v242 = vld [vmem:[%s207 + $0x40] sm:$0xf]
      %v243 = vld [vmem:[%s207 + $0x44] sm:$0xf]
      %v244 = vld [vmem:[%s207 + $0x48] sm:$0xf]
      %v245 = vld [vmem:[%s207 + $0x4c] sm:$0xf]
      %v246 = vld [vmem:[%s207 + $0x50] sm:$0xf]
      %v247 = vld [vmem:[%s207 + $0x54] sm:$0xf]
      %v248 = vld [vmem:[%s207 + $0x58] sm:$0xf]
      %v249 = vld [vmem:[%s207 + $0x5c] sm:$0xf]
      %v250 = vld [vmem:[%s207 + $0x60] sm:$0xf]
      %v251 = vld [vmem:[%s207 + $0x64] sm:$0xf]
      %v252 = vld [vmem:[%s207 + $0x68] sm:$0xf]
      %v253 = vld [vmem:[%s207 + $0x6c] sm:$0xf]
      %v254 = vld [vmem:[%s207 + $0x70] sm:$0xf]
      %v255 = vld [vmem:[%s207 + $0x74] sm:$0xf]
      %v256 = vld [vmem:[%s207 + $0x78] sm:$0xf]
      %v257 = vld [vmem:[%s207 + $0x7c] sm:$0xf]
      %v258 = vld [vmem:[%s212] sm:$0xf]
      %v259 = vld [vmem:[%s212 + $0x4] sm:$0xf]
      %v260 = vld [vmem:[%s212 + $0x8] sm:$0xf]
      %v261 = vld [vmem:[%s212 + $0xc] sm:$0xf]
      %v262 = vld [vmem:[%s212 + $0x10] sm:$0xf]
      %v263 = vld [vmem:[%s212 + $0x14] sm:$0xf]
      %v264 = vld [vmem:[%s212 + $0x18] sm:$0xf]
      %v265 = vld [vmem:[%s212 + $0x1c] sm:$0xf]
      %v266 = vld [vmem:[%s212 + $0x20] sm:$0xf]
      %v267 = vld [vmem:[%s212 + $0x24] sm:$0xf]
      %v268 = vld [vmem:[%s212 + $0x28] sm:$0xf]
      %v269 = vld [vmem:[%s212 + $0x2c] sm:$0xf]
      %v270 = vld [vmem:[%s212 + $0x30] sm:$0xf]
      %v271 = vld [vmem:[%s212 + $0x34] sm:$0xf]
      %v272 = vld [vmem:[%s212 + $0x38] sm:$0xf]
      %v273 = vld [vmem:[%s212 + $0x3c] sm:$0xf]
      %v274 = vld [vmem:[%s215] sm:$0x1]
      %v276 = vlaneseq
      %v277 = vshrl.u32 %v276, 7
      %v278 = vsub.s32 0, %v277
      %v279 = vrot.slane %v274, %v278
      %v313 = vunpack.c.l.b16 %v226
      %v314 = vunpack.c.l.b16 %v227
      %v315 = vunpack.c.l.b16 %v228
      %v316 = vunpack.c.l.b16 %v229
      %v317 = vunpack.c.l.b16 %v230
      %v318 = vunpack.c.l.b16 %v231
      %v319 = vunpack.c.l.b16 %v232
      %v320 = vunpack.c.l.b16 %v233
      %v321 = vunpack.c.l.b16 %v234
      %v322 = vunpack.c.l.b16 %v235
      %v323 = vunpack.c.l.b16 %v236
      %v324 = vunpack.c.l.b16 %v237
      %v325 = vunpack.c.l.b16 %v238
      %v326 = vunpack.c.l.b16 %v239
      %v327 = vunpack.c.l.b16 %v240
      %v328 = vunpack.c.l.b16 %v241
      %v329 = vunpack.c.l.b16 %v242
      %v330 = vunpack.c.l.b16 %v243
      %v331 = vunpack.c.l.b16 %v244
      %v332 = vunpack.c.l.b16 %v245
      %v333 = vunpack.c.l.b16 %v246
      %v334 = vunpack.c.l.b16 %v247
      %v335 = vunpack.c.l.b16 %v248
      %v336 = vunpack.c.l.b16 %v249
      %v337 = vunpack.c.l.b16 %v250
      %v338 = vunpack.c.l.b16 %v251
      %v339 = vunpack.c.l.b16 %v252
      %v340 = vunpack.c.l.b16 %v253
      %v341 = vunpack.c.l.b16 %v254
      %v342 = vunpack.c.l.b16 %v255
      %v343 = vunpack.c.l.b16 %v256
      %v344 = vunpack.c.l.b16 %v257
      %v345 = vpack.c.b16 %v314, %v313
      %v346 = vpack.c.b16 %v316, %v315
      %v347 = vpack.c.b16 %v318, %v317
      %v348 = vpack.c.b16 %v320, %v319
      %v349 = vpack.c.b16 %v322, %v321
      %v350 = vpack.c.b16 %v324, %v323
      %v351 = vpack.c.b16 %v326, %v325
      %v352 = vpack.c.b16 %v328, %v327
      %v353 = vpack.c.b16 %v330, %v329
      %v354 = vpack.c.b16 %v332, %v331
      %v355 = vpack.c.b16 %v334, %v333
      %v356 = vpack.c.b16 %v336, %v335
      %v357 = vpack.c.b16 %v338, %v337
      %v358 = vpack.c.b16 %v340, %v339
      %v359 = vpack.c.b16 %v342, %v341
      %v360 = vpack.c.b16 %v344, %v343
      %v393 = vunpack.c.l.b16 %v258
      %v394 = vunpack.c.l.b16 %v259
      %v395 = vunpack.c.l.b16 %v260
      %v396 = vunpack.c.l.b16 %v261
      %v397 = vunpack.c.l.b16 %v262
      %v398 = vunpack.c.l.b16 %v263
      %v399 = vunpack.c.l.b16 %v264
      %v400 = vunpack.c.l.b16 %v265
      %v401 = vunpack.c.l.b16 %v266
      %v402 = vunpack.c.l.b16 %v267
      %v403 = vunpack.c.l.b16 %v268
      %v404 = vunpack.c.l.b16 %v269
      %v405 = vunpack.c.l.b16 %v270
      %v406 = vunpack.c.l.b16 %v271
      %v407 = vunpack.c.l.b16 %v272
      %v408 = vunpack.c.l.b16 %v273
      %v409 = vpack.c.b16 %v394, %v393
      %v410 = vpack.c.b16 %v396, %v395
      %v411 = vpack.c.b16 %v398, %v397
      %v412 = vpack.c.b16 %v400, %v399
      %v413 = vpack.c.b16 %v402, %v401
      %v414 = vpack.c.b16 %v404, %v403
      %v415 = vpack.c.b16 %v406, %v405
      %v416 = vpack.c.b16 %v408, %v407
      %425 = vmatprep.subr.bf16.mxu0 0
      %426 = vmatpush1.bf16.msra.mxu0 %v409
      %427 = vmatprep.subr.bf16.mxu0 0
      %428 = vmatpush1.bf16.msra.mxu0 %v410
      %429 = vmatprep.subr.bf16.mxu0 0
      %430 = vmatpush1.bf16.msra.mxu0 %v411
      %431 = vmatprep.subr.bf16.mxu0 0
      %432 = vmatpush1.bf16.msra.mxu0 %v412
      %433 = vmatprep.subr.bf16.mxu0 0
      %434 = vmatpush1.bf16.msra.mxu0 %v413
      %435 = vmatprep.subr.bf16.mxu0 0
      %436 = vmatpush1.bf16.msra.mxu0 %v414
      %437 = vmatprep.subr.bf16.mxu0 0
      %438 = vmatpush1.bf16.msra.mxu0 %v415
      %439 = vmatprep.subr.bf16.mxu0 0
      %440 = vmatpush1.bf16.msra.mxu0 %v416
      %441 = vmatprep.subr.bf16.mxu0 0
      %442 = vmatpush1.bf16.msra.mxu0 0
      %443 = vmatprep.subr.bf16.mxu0 0
      %444 = vmatpush1.bf16.msra.mxu0 0
      %445 = vmatprep.subr.bf16.mxu0 0
      %446 = vmatpush1.bf16.msra.mxu0 0
      %447 = vmatprep.subr.bf16.mxu0 0
      %448 = vmatpush1.bf16.msra.mxu0 0
      %449 = vmatprep.subr.bf16.mxu0 0
      %450 = vmatpush1.bf16.msra.mxu0 0
      %451 = vmatprep.subr.bf16.mxu0 0
      %452 = vmatpush1.bf16.msra.mxu0 0
      %453 = vmatprep.subr.bf16.mxu0 0
      %454 = vmatpush1.bf16.msra.mxu0 0
      %455 = vmatprep.subr.bf16.mxu0 0
      %456 = vmatpush1.bf16.msra.mxu0 0
      %457 = vmatprep.mubr.bf16.mxu0 0
      %458 = vmatmul.mubr.bf16.gmra.mrb[0].mxu0 %v345
      %v459 = vpop.f32.mrb[0].mxu0
      %v460 = vadd.f32 %v279, %v459
      %v461 = vpop.f32.mrb[0].mxu0
      %v462 = vpop.f32.mrb[0].mxu0
      %v463 = vadd.f32 %v279, %v462
      %v464 = vpop.f32.mrb[0].mxu0
      %465 = vmatprep.mubr.bf16.mxu0 0
      %466 = vmatmul.mubr.bf16.gmra.mrb[0].mxu0 %v346
      %v467 = vpop.f32.mrb[0].mxu0
      %v468 = vadd.f32 %v279, %v467
      %v469 = vpop.f32.mrb[0].mxu0
      %v470 = vpop.f32.mrb[0].mxu0
      %v471 = vadd.f32 %v279, %v470
      %v472 = vpop.f32.mrb[0].mxu0
      %473 = vmatprep.mubr.bf16.mxu0 0
      %474 = vmatmul.mubr.bf16.gmra.mrb[0].mxu0 %v347
      %v475 = vpop.f32.mrb[0].mxu0
      %v476 = vadd.f32 %v279, %v475
      %v477 = vpop.f32.mrb[0].mxu0
      %v478 = vpop.f32.mrb[0].mxu0
      %v479 = vadd.f32 %v279, %v478
      %v480 = vpop.f32.mrb[0].mxu0
      %481 = vmatprep.mubr.bf16.mxu0 0
      %482 = vmatmul.mubr.bf16.gmra.mrb[0].mxu0 %v348
      %v483 = vpop.f32.mrb[0].mxu0
      %v484 = vadd.f32 %v279, %v483
      %v485 = vpop.f32.mrb[0].mxu0
      %v486 = vpop.f32.mrb[0].mxu0
      %v487 = vadd.f32 %v279, %v486
      %v488 = vpop.f32.mrb[0].mxu0
      %489 = vmatprep.mubr.bf16.mxu0 0
      %490 = vmatmul.mubr.bf16.gmra.mrb[0].mxu0 %v349
      %v491 = vpop.f32.mrb[0].mxu0
      %v492 = vadd.f32 %v279, %v491
      %v493 = vpop.f32.mrb[0].mxu0
      %v494 = vpop.f32.mrb[0].mxu0
      %v495 = vadd.f32 %v279, %v494
      %v496 = vpop.f32.mrb[0].mxu0
      %497 = vmatprep.mubr.bf16.mxu0 0
      %498 = vmatmul.mubr.bf16.gmra.mrb[0].mxu0 %v350
      %v499 = vpop.f32.mrb[0].mxu0
      %v500 = vadd.f32 %v279, %v499
      %v501 = vpop.f32.mrb[0].mxu0
      %v502 = vpop.f32.mrb[0].mxu0
      %v503 = vadd.f32 %v279, %v502
      %v504 = vpop.f32.mrb[0].mxu0
      %505 = vmatprep.mubr.bf16.mxu0 0
      %506 = vmatmul.mubr.bf16.gmra.mrb[0].mxu0 %v351
      %v507 = vpop.f32.mrb[0].mxu0
      %v508 = vadd.f32 %v279, %v507
      %v509 = vpop.f32.mrb[0].mxu0
      %v510 = vpop.f32.mrb[0].mxu0
      %v511 = vadd.f32 %v279, %v510
      %v512 = vpop.f32.mrb[0].mxu0
      %513 = vmatprep.mubr.bf16.mxu0 0
      %514 = vmatmul.mubr.bf16.gmra.mrb[0].mxu0 %v352
      %v515 = vpop.f32.mrb[0].mxu0
      %v516 = vadd.f32 %v279, %v515
      %v517 = vpop.f32.mrb[0].mxu0
      %v518 = vpop.f32.mrb[0].mxu0
      %v519 = vadd.f32 %v279, %v518
      %v520 = vpop.f32.mrb[0].mxu0
      %521 = vmatprep.mubr.bf16.mxu0 0
      %522 = vmatmul.mubr.bf16.gmra.mrb[0].mxu0 %v353
      %v523 = vpop.f32.mrb[0].mxu0
      %v524 = vadd.f32 %v279, %v523
      %v525 = vpop.f32.mrb[0].mxu0
      %v526 = vpop.f32.mrb[0].mxu0
      %v527 = vadd.f32 %v279, %v526
      %v528 = vpop.f32.mrb[0].mxu0
      %529 = vmatprep.mubr.bf16.mxu0 0
      %530 = vmatmul.mubr.bf16.gmra.mrb[0].mxu0 %v354
      %v531 = vpop.f32.mrb[0].mxu0
      %v532 = vadd.f32 %v279, %v531
      %v533 = vpop.f32.mrb[0].mxu0
      %v534 = vpop.f32.mrb[0].mxu0
      %v535 = vadd.f32 %v279, %v534
      %v536 = vpop.f32.mrb[0].mxu0
      %537 = vmatprep.mubr.bf16.mxu0 0
      %538 = vmatmul.mubr.bf16.gmra.mrb[0].mxu0 %v355
      %v539 = vpop.f32.mrb[0].mxu0
      %v540 = vadd.f32 %v279, %v539
      %v541 = vpop.f32.mrb[0].mxu0
      %v542 = vpop.f32.mrb[0].mxu0
      %v543 = vadd.f32 %v279, %v542
      %v544 = vpop.f32.mrb[0].mxu0
      %545 = vmatprep.mubr.bf16.mxu0 0
      %546 = vmatmul.mubr.bf16.gmra.mrb[0].mxu0 %v356
      %v547 = vpop.f32.mrb[0].mxu0
      %v548 = vadd.f32 %v279, %v547
      %v549 = vpop.f32.mrb[0].mxu0
      %v550 = vpop.f32.mrb[0].mxu0
      %v551 = vadd.f32 %v279, %v550
      %v552 = vpop.f32.mrb[0].mxu0
      %553 = vmatprep.mubr.bf16.mxu0 0
      %554 = vmatmul.mubr.bf16.gmra.mrb[0].mxu0 %v357
      %v555 = vpop.f32.mrb[0].mxu0
      %v556 = vadd.f32 %v279, %v555
      %v557 = vpop.f32.mrb[0].mxu0
      %v558 = vpop.f32.mrb[0].mxu0
      %v559 = vadd.f32 %v279, %v558
      %v560 = vpop.f32.mrb[0].mxu0
      %561 = vmatprep.mubr.bf16.mxu0 0
      %562 = vmatmul.mubr.bf16.gmra.mrb[0].mxu0 %v358
      %v563 = vpop.f32.mrb[0].mxu0
      %v564 = vadd.f32 %v279, %v563
      %v565 = vpop.f32.mrb[0].mxu0
      %v566 = vpop.f32.mrb[0].mxu0
      %v567 = vadd.f32 %v279, %v566
      %v568 = vpop.f32.mrb[0].mxu0
      %569 = vmatprep.mubr.bf16.mxu0 0
      %570 = vmatmul.mubr.bf16.gmra.mrb[0].mxu0 %v359
      %v571 = vpop.f32.mrb[0].mxu0
      %v572 = vadd.f32 %v279, %v571
      %v573 = vpop.f32.mrb[0].mxu0
      %v574 = vpop.f32.mrb[0].mxu0
      %v575 = vadd.f32 %v279, %v574
      %v576 = vpop.f32.mrb[0].mxu0
      %577 = vmatprep.mubr.bf16.mxu0 0
      %578 = vmatmul.mubr.bf16.gmra.mrb[0].mxu0 %v360
      %v579 = vpop.f32.mrb[0].mxu0
      %v580 = vadd.f32 %v279, %v579
      %v581 = vpop.f32.mrb[0].mxu0
      %v582 = vpop.f32.mrb[0].mxu0
      %v583 = vadd.f32 %v279, %v582
      %v584 = vpop.f32.mrb[0].mxu0
      %585 = vdwg.mxu0
      %586 = vst [vmem:[%s223] sm:$0xff] %v460
      %587 = vst [vmem:[%s223 + $0x8] sm:$0xff] %v463
      %588 = vst [vmem:[%s223 + $0x10] sm:$0xff] %v468
      %589 = vst [vmem:[%s223 + $0x18] sm:$0xff] %v471
      %590 = vst [vmem:[%s223 + $0x20] sm:$0xff] %v476
      %591 = vst [vmem:[%s223 + $0x28] sm:$0xff] %v479
      %592 = vst [vmem:[%s223 + $0x30] sm:$0xff] %v484
      %593 = vst [vmem:[%s223 + $0x38] sm:$0xff] %v487
      %594 = vst [vmem:[%s223 + $0x40] sm:$0xff] %v492
      %595 = vst [vmem:[%s223 + $0x48] sm:$0xff] %v495
      %596 = vst [vmem:[%s223 + $0x50] sm:$0xff] %v500
      %597 = vst [vmem:[%s223 + $0x58] sm:$0xff] %v503
      %598 = vst [vmem:[%s223 + $0x60] sm:$0xff] %v508
      %599 = vst [vmem:[%s223 + $0x68] sm:$0xff] %v511
      %600 = vst [vmem:[%s223 + $0x70] sm:$0xff] %v516
      %601 = vst [vmem:[%s223 + $0x78] sm:$0xff] %v519
      %602 = vst [vmem:[%s223 + $0x80] sm:$0xff] %v524
      %603 = vst [vmem:[%s223 + $0x88] sm:$0xff] %v527
      %604 = vst [vmem:[%s223 + $0x90] sm:$0xff] %v532
      %605 = vst [vmem:[%s223 + $0x98] sm:$0xff] %v535
      %606 = vst [vmem:[%s223 + $0xa0] sm:$0xff] %v540
      %607 = vst [vmem:[%s223 + $0xa8] sm:$0xff] %v543
      %608 = vst [vmem:[%s223 + $0xb0] sm:$0xff] %v548
      %609 = vst [vmem:[%s223 + $0xb8] sm:$0xff] %v551
      %610 = vst [vmem:[%s223 + $0xc0] sm:$0xff] %v556
      %611 = vst [vmem:[%s223 + $0xc8] sm:$0xff] %v559
      %612 = vst [vmem:[%s223 + $0xd0] sm:$0xff] %v564
      %613 = vst [vmem:[%s223 + $0xd8] sm:$0xff] %v567
      %614 = vst [vmem:[%s223 + $0xe0] sm:$0xff] %v572
      %615 = vst [vmem:[%s223 + $0xe8] sm:$0xff] %v575
      %616 = vst [vmem:[%s223 + $0xf0] sm:$0xff] %v580
      %617 = vst [vmem:[%s223 + $0xf8] sm:$0xff] %v583
      %s618 = smul.u32 32, %s18
      %p619 = scmp.lt.s32.totalorder %s618, 255
      %s620 = scalar_select %p619, %s618, 255
      %p621 = scmp.lt.s32.totalorder %s19, 0
      %s622 = scalar_select %p621, %s19, 0
      %s623 = sadd.s32 %s622, %s620
      %s624 = smul.addr %s623, 8
      %s625 = scalar_lea.vmem %s3, %s624
      // Predicated region
      $region33: #{decoder_forward_fused.9} parent=31 // pred_check
        %p626 = pneg %p124
      $region34: #{decoder_forward_fused.9} parent=31 // pred_check_branch
        %628 = sbr.rel (%p626) target = $region36
      $region35: #{decoder_forward_fused.9} parent=31 // pred_region
        %s629 = smul.u32 32, %s18
      $region36: #{decoder_forward_fused.9} parent=31 // pred_fallthru
        _
    $region32: #{decoder_forward_fused.9} parent=5 // pred_fallthru
      _
    %p630 = scmp.le.s32.totalorder 2, %s9
    // Predicated region
    $region37: #{decoder_forward_fused.9} parent=5 // pred_check
      %p631 = pneg %p630
    $region38: #{decoder_forward_fused.9} parent=5 // pred_check_branch
      %633 = sbr.rel (%p631) target = $region40
    $region39: #{decoder_forward_fused.9} parent=5 // pred_region
      %s634 = ssub.s32 %s9, 2
      // Predicated region
      $region41: #{decoder_forward_fused.9} parent=39 // pred_check
        %p635 = pneg %p130
      $region42: #{decoder_forward_fused.9} parent=39 // pred_check_branch
        %637 = sbr.rel (%p635) target = $region44
      $region43: #{decoder_forward_fused.9} parent=39 // pred_region
        %s638 = smul.u32 32, %s20
        %p639 = scmp.lt.s32.totalorder %s638, 255
        %s640 = scalar_select %p639, %s638, 255
        %p641 = scmp.lt.s32.totalorder %s21, 0
        %s642 = scalar_select %p641, %s21, 0
        %s643 = sadd.s32 %s642, %s640
        %s644 = smul.addr %s643, 8
        %s645 = scalar_lea.vmem %s3, %s644
      $region44: #{decoder_forward_fused.9} parent=39 // pred_fallthru
        _
    $region40: #{decoder_forward_fused.9} parent=5 // pred_fallthru
      _
  $region6: #{decoder_forward_fused.9} parent=0 // loop_footer
    %s13 = sadd.s32 1, %s9
  $region7: #{decoder_forward_fused.9} parent=0 // loop_footer_branch
    %8 = sbr.rel target = $region3
  $region8: #{decoder_forward_fused.9} parent=0 // loop_exit
    _

</llo_original>
